<compile_context>
chip_gen: v6e
topology: v6e:2x2x1
jax: 0.10.0
libtpu: 0.0.40
codegen_flags: <defaults>
</compile_context>

<pallas_src>
import jax
import jax.numpy as jnp
from jax import lax
from jax.experimental import pallas as pl
from jax.experimental.pallas import tpu as pltpu

_BF16_SUBLANE = 16        # bf16 (16, 128) vreg tile: sublane granularity
_PADL = _BF16_SUBLANE     # interior starts at a bf16-tile-aligned column
_TARGET_M = 256           # target matmul M (rows) per chunk: keep MXU full


def _round_up(x, m):
    return (x + m - 1) // m * m


def _basic_block_kernel(x_ref, w1_ref, w2_ref, s1_ref, b1_ref, s2_ref, b2_ref,
                        o_ref, xpad_sc, mid_sc):
    """One grid step = one batch element.

    x_ref   : (1, H, W, C)            f32  input (also the residual)
    w*_ref  : (9, C, C)               bf16 conv weights, tap index = kh*3+kw
    s*_ref  : (1, C)                  f32  folded BN scale
    b*_ref  : (1, C)                  f32  folded BN shift
    o_ref   : (1, H, W, C)            f32  output
    xpad_sc : (H+2, wp, C)            bf16 VMEM scratch: halo-row-padded input
    mid_sc  : (H+2, wp, C)            bf16 VMEM scratch: halo-row-padded act1
    """
    _, H, W, C = x_ref.shape
    chunk_h = max(1, min(H, _TARGET_M // max(W, 1)))   # image rows per matmul chunk

    # Hoisted constants (JAX does not CSE broadcast/iota inside loops).
    col = lax.broadcasted_iota(jnp.int32, (1, W, C), 1)
    not_first_col = col > 0          # zero-padding column for kw == 0 taps
    not_last_col = col < (W - 1)     # zero-padding column for kw == 2 taps
    zero_tap = jnp.zeros((1, W, C), jnp.bfloat16)

    def zero_halo_rows(sc):
        # Only the top/bottom halo ROWS are stored as zeros (aligned,
        # full-width, ~3 vst each).  The left/right padding columns are never
        # written: the edge taps mask them at read time instead.
        zrow = jnp.zeros((1,) + sc.shape[1:], sc.dtype)
        sc[0:1, :, :] = zrow
        sc[H + 1:H + 2, :, :] = zrow

    def conv3x3(src_sc, wt_ref, r0, ch):
        # 3x3 conv for output rows [r0, r0+ch): nine per-tap bf16 matmuls
        # accumulated in f32 registers.  No im2col temp, no per-tap casts.
        acc = None
        for kh in range(3):
            for kw in range(3):
                tap = src_sc[r0 + kh:r0 + kh + ch,
                             _PADL - 1 + kw:_PADL - 1 + kw + W, :]
                if kw == 0:
                    tap = jnp.where(not_first_col, tap, zero_tap)
                elif kw == 2:
                    tap = jnp.where(not_last_col, tap, zero_tap)
                part = jnp.dot(tap.reshape(ch * W, C), wt_ref[kh * 3 + kw],
                               preferred_element_type=jnp.float32)
                acc = part if acc is None else acc + part
        return acc                                        # (ch*W, C) f32

    # ---- stage the input: single f32 -> bf16 cast per element ----
    zero_halo_rows(xpad_sc)
    zero_halo_rows(mid_sc)
    xpad_sc[1:1 + H, _PADL:_PADL + W, :] = x_ref[0].astype(xpad_sc.dtype)

    # ---- conv1 -> BN1 -> ReLU (f32 epilogue), staged to bf16 scratch ----
    for r0 in range(0, H, chunk_h):
        ch = min(chunk_h, H - r0)
        a1 = conv3x3(xpad_sc, w1_ref, r0, ch)
        a1 = jnp.maximum(a1 * s1_ref[...] + b1_ref[...], 0.0)
        mid_sc[1 + r0:1 + r0 + ch, _PADL:_PADL + W, :] = (
            a1.reshape(ch, W, C).astype(mid_sc.dtype))

    # ---- conv2 -> BN2 -> +residual -> ReLU (f32 epilogue) ----
    for r0 in range(0, H, chunk_h):
        ch = min(chunk_h, H - r0)
        a2 = conv3x3(mid_sc, w2_ref, r0, ch)
        a2 = a2 * s2_ref[...] + b2_ref[...]
        res = x_ref[:, r0:r0 + ch, :, :].reshape(ch * W, C)
        out = jnp.maximum(a2 + res, 0.0)
        o_ref[:, r0:r0 + ch, :, :] = out.reshape(1, ch, W, C).astype(o_ref.dtype)


@jax.jit
def basic_block_forward_nhwc(x, w1, w2, scale1, shift1, scale2, shift2):
    """x: (B, H, W, C) f32, w: (3, 3, Cin, Cout) HWIO. Returns (B, H, W, C)."""
    B, H, W, C = x.shape
    Cout = w1.shape[-1]
    assert w1.shape == (3, 3, C, Cout) and w2.shape == (3, 3, Cout, Cout)
    assert Cout == C, "BasicBlock with downsample=None requires planes == inplanes"
    assert C % 128 == 0 and W % 8 == 0, "lane-dense layout requires C%128==0, W%8==0"

    # Weights reshaped once to (tap, Cin, Cout); bf16 operands for the MXU.
    w1c = w1.astype(jnp.bfloat16).reshape(9, C, Cout)
    w2c = w2.astype(jnp.bfloat16).reshape(9, Cout, Cout)
    s1 = scale1.astype(jnp.float32).reshape(1, Cout)
    b1 = shift1.astype(jnp.float32).reshape(1, Cout)
    s2 = scale2.astype(jnp.float32).reshape(1, Cout)
    b2 = shift2.astype(jnp.float32).reshape(1, Cout)

    # Tile-aligned scratch width: [garbage | halo col | interior W | halo col | pad]
    wp = _round_up(_PADL + W + 1, _BF16_SUBLANE)

    def const_spec(shape):
        """Constant-index block: request single buffering (no double-buffer)."""
        idx = lambda b: (0,) * len(shape)
        try:
            return pl.BlockSpec(shape, idx,
                                pipeline_mode=pl.Buffered(buffer_count=1))
        except (TypeError, AttributeError):
            return pl.BlockSpec(shape, idx)

    # VMEM budget from actual block + scratch + buffering sizes (+ headroom),
    # instead of a hard-coded 32 MiB.
    xo_bytes = 2 * 2 * (H * W * C * 4)            # x + out blocks, double-buffered
    w_bytes = 2 * 2 * (9 * C * Cout * 2)          # weights (worst case 2 buffers)
    sb_bytes = 4 * 2 * (8 * 128 * 4)              # scale/shift (tile-padded)
    scratch_bytes = 2 * ((H + 2) * wp * C * 2)    # bf16 halo scratches
    vmem_limit = int(xo_bytes + w_bytes + sb_bytes + scratch_bytes
                     + 4 * 1024 * 1024)           # headroom for spills/temps

    return pl.pallas_call(
        _basic_block_kernel,
        out_shape=jax.ShapeDtypeStruct((B, H, W, Cout), x.dtype),
        grid_spec=pltpu.PrefetchScalarGridSpec(
            num_scalar_prefetch=0,
            grid=(B,),
            in_specs=[
                pl.BlockSpec((1, H, W, C), lambda b: (b, 0, 0, 0)),
                const_spec((9, C, Cout)),
                const_spec((9, Cout, Cout)),
                const_spec((1, Cout)),
                const_spec((1, Cout)),
                const_spec((1, Cout)),
                const_spec((1, Cout)),
            ],
            out_specs=pl.BlockSpec((1, H, W, Cout), lambda b: (b, 0, 0, 0)),
            scratch_shapes=[
                pltpu.VMEM((H + 2, wp, C), jnp.bfloat16),
                pltpu.VMEM((H + 2, wp, Cout), jnp.bfloat16),
            ],
        ),
        compiler_params=pltpu.CompilerParams(
            dimension_semantics=("parallel",),
            vmem_limit_bytes=vmem_limit,
        ),
    )(x, w1c, w2c, s1, b1, s2, b2)


def basic_block_forward_nchw(x_nchw, w1, w2, scale1, shift1, scale2, shift2):
    """Layout adapter for PyTorch-style NCHW callers (kernel path is NHWC)."""
    x = jnp.transpose(x_nchw, (0, 2, 3, 1))
    y = basic_block_forward_nhwc(x, w1, w2, scale1, shift1, scale2, shift2)
    return jnp.transpose(y, (0, 3, 1, 2))


def _fold_bn(gamma, beta, mean, var, eps=1e-5):
    scale = gamma / jnp.sqrt(var + eps)
    shift = beta - mean * scale
    return scale, shift


def _reference_nhwc(x, w1, w2, scale1, shift1, scale2, shift2,
                    matmul_dtype=jnp.bfloat16):
    """Plain-JAX NHWC reference.  matmul_dtype=bf16 mirrors the kernel's MXU
    operand precision (accumulation is f32 in both)."""
    def conv(a, w):
        return jax.lax.conv_general_dilated(
            a.astype(matmul_dtype), w.astype(matmul_dtype),
            window_strides=(1, 1), padding=((1, 1), (1, 1)),
            dimension_numbers=("NHWC", "HWIO", "NHWC"),
            preferred_element_type=jnp.float32)

    def bn(y, s, b):
        return y * s.reshape(1, 1, 1, -1) + b.reshape(1, 1, 1, -1)

    out = jax.nn.relu(bn(conv(x, w1), scale1, shift1))
    out = bn(conv(out, w2), scale2, shift2)
    return jax.nn.relu(out + x)


if __name__ == "__main__":
    key = jax.random.PRNGKey(0)
    B, H, W, C = 2, 16, 16, 128      # inplanes = planes = 128, stride = 1
    (k_x, k_w1, k_w2, k_g1, k_b1, k_m1, k_v1,
     k_g2, k_b2, k_m2, k_v2) = jax.random.split(key, 11)

    x = jax.random.normal(k_x, (B, H, W, C), jnp.float32)      # NHWC

    w_scale = (9.0 * C) ** -0.5
    w1 = jax.random.normal(k_w1, (3, 3, C, C), jnp.float32) * w_scale
    w2 = jax.random.normal(k_w2, (3, 3, C, C), jnp.float32) * w_scale

    gamma1 = 1.0 + 0.1 * jax.random.normal(k_g1, (C,), jnp.float32)
    beta1 = 0.1 * jax.random.normal(k_b1, (C,), jnp.float32)
    mean1 = 0.1 * jax.random.normal(k_m1, (C,), jnp.float32)
    var1 = jnp.abs(jax.random.normal(k_v1, (C,), jnp.float32)) + 0.5
    gamma2 = 1.0 + 0.1 * jax.random.normal(k_g2, (C,), jnp.float32)
    beta2 = 0.1 * jax.random.normal(k_b2, (C,), jnp.float32)
    mean2 = 0.1 * jax.random.normal(k_m2, (C,), jnp.float32)
    var2 = jnp.abs(jax.random.normal(k_v2, (C,), jnp.float32)) + 0.5

    scale1, shift1 = _fold_bn(gamma1, beta1, mean1, var1)
    scale2, shift2 = _fold_bn(gamma2, beta2, mean2, var2)

    out = basic_block_forward_nhwc(x, w1, w2, scale1, shift1, scale2, shift2)
    out = jax.block_until_ready(out)
    assert out.shape == (B, H, W, C)

    # 1) Matched-precision reference (bf16 matmul operands, f32 accumulation).
    ref = _reference_nhwc(x, w1, w2, scale1, shift1, scale2, shift2)
    err = float(jnp.max(jnp.abs(out - ref)))
    assert err < 5e-3, f"mismatch vs matched-precision reference: {err}"

    # 2) Loose sanity vs full-f32 reference (difference = bf16 operand rounding).
    ref32 = _reference_nhwc(x, w1, w2, scale1, shift1, scale2, shift2,
                            matmul_dtype=jnp.float32)
    err32 = float(jnp.max(jnp.abs(out - ref32)))
    assert err32 < 1.5e-1, f"mismatch vs f32 reference: {err32}"

    # 3) NCHW adapter parity (PyTorch layout).
    out_nchw = basic_block_forward_nchw(jnp.transpose(x, (0, 3, 1, 2)),
                                        w1, w2, scale1, shift1, scale2, shift2)
    err_nchw = float(jnp.max(jnp.abs(out_nchw - jnp.transpose(ref, (0, 3, 1, 2)))))
    assert err_nchw < 5e-3, f"NCHW adapter mismatch: {err_nchw}"

    print("KERNEL_OK")
</pallas_src>

<mosaic_0001>
module attributes {stable_mosaic.version = 11 : i64} {
  func.func @_basic_block_kernel(%arg0: i32, %arg1: memref<1x16x16x128xf32, #tpu.memory_space<vmem>>, %arg2: memref<9x128x128xbf16, #tpu.memory_space<vmem>>, %arg3: memref<9x128x128xbf16, #tpu.memory_space<vmem>>, %arg4: memref<1x128xf32, #tpu.memory_space<vmem>>, %arg5: memref<1x128xf32, #tpu.memory_space<vmem>>, %arg6: memref<1x128xf32, #tpu.memory_space<vmem>>, %arg7: memref<1x128xf32, #tpu.memory_space<vmem>>, %arg8: memref<1x16x16x128xf32, #tpu.memory_space<vmem>>, %arg9: memref<18x48x128xbf16, #tpu.memory_space<vmem>>, %arg10: memref<18x48x128xbf16, #tpu.memory_space<vmem>>) attributes {dimension_semantics = [#tpu.dimension_semantics<parallel>], iteration_bounds = array<i64: 2>, scalar_prefetch = 0 : i64, scratch_operands = 2 : i64, tpu.core_type = #tpu.core_type<tc>, window_params = [{transform_indices = @transform_0, window_bounds = array<i64: 1, 16, 16, 128>}, {pipeline_mode = #tpu.pipeline_mode<synchronous>, transform_indices = @transform_1, window_bounds = array<i64: 9, 128, 128>}, {pipeline_mode = #tpu.pipeline_mode<synchronous>, transform_indices = @transform_2, window_bounds = array<i64: 9, 128, 128>}, {pipeline_mode = #tpu.pipeline_mode<synchronous>, transform_indices = @transform_3, window_bounds = array<i64: 1, 128>}, {pipeline_mode = #tpu.pipeline_mode<synchronous>, transform_indices = @transform_4, window_bounds = array<i64: 1, 128>}, {pipeline_mode = #tpu.pipeline_mode<synchronous>, transform_indices = @transform_5, window_bounds = array<i64: 1, 128>}, {pipeline_mode = #tpu.pipeline_mode<synchronous>, transform_indices = @transform_6, window_bounds = array<i64: 1, 128>}, {transform_indices = @transform_7, window_bounds = array<i64: 1, 16, 16, 128>}]} {
    %0 = tpu.iota {dimensions = array<i32: 1>} : vector<1x16x128xi32>
    %c0_i32 = arith.constant 0 : i32
    %1 = vector.broadcast %c0_i32 : i32 to vector<1x16x128xi32>
    %2 = arith.cmpi sgt, %0, %1 : vector<1x16x128xi32>
    %c15_i32 = arith.constant 15 : i32
    %3 = vector.broadcast %c15_i32 : i32 to vector<1x16x128xi32>
    %4 = arith.cmpi slt, %0, %3 : vector<1x16x128xi32>
    %cst = arith.constant 0.000000e+00 : bf16
    %5 = vector.broadcast %cst : bf16 to vector<1x16x128xbf16>
    %cst_0 = arith.constant 0.000000e+00 : bf16
    %6 = vector.broadcast %cst_0 : bf16 to vector<1x48x128xbf16>
    %c0 = arith.constant 0 : index
    %c0_1 = arith.constant 0 : index
    %c0_2 = arith.constant 0 : index
    %7 = vector.load %arg9[%c0, %c0_1, %c0_2] : memref<18x48x128xbf16, #tpu.memory_space<vmem>>, vector<1x48x128xbf16>
    tpu.vector_store %arg9[%c0, %c0_1, %c0_2], %6 {strides = array<i32>} : memref<18x48x128xbf16, #tpu.memory_space<vmem>>, vector<1x48x128xbf16>,
    %c17 = arith.constant 17 : index
    %c0_3 = arith.constant 0 : index
    %c0_4 = arith.constant 0 : index
    %8 = vector.load %arg9[%c17, %c0_3, %c0_4] : memref<18x48x128xbf16, #tpu.memory_space<vmem>>, vector<1x48x128xbf16>
    tpu.vector_store %arg9[%c17, %c0_3, %c0_4], %6 {strides = array<i32>} : memref<18x48x128xbf16, #tpu.memory_space<vmem>>, vector<1x48x128xbf16>,
    %cst_5 = arith.constant 0.000000e+00 : bf16
    %9 = vector.broadcast %cst_5 : bf16 to vector<1x48x128xbf16>
    %c0_6 = arith.constant 0 : index
    %c0_7 = arith.constant 0 : index
    %c0_8 = arith.constant 0 : index
    %10 = vector.load %arg10[%c0_6, %c0_7, %c0_8] : memref<18x48x128xbf16, #tpu.memory_space<vmem>>, vector<1x48x128xbf16>
    tpu.vector_store %arg10[%c0_6, %c0_7, %c0_8], %9 {strides = array<i32>} : memref<18x48x128xbf16, #tpu.memory_space<vmem>>, vector<1x48x128xbf16>,
    %c17_9 = arith.constant 17 : index
    %c0_10 = arith.constant 0 : index
    %c0_11 = arith.constant 0 : index
    %11 = vector.load %arg10[%c17_9, %c0_10, %c0_11] : memref<18x48x128xbf16, #tpu.memory_space<vmem>>, vector<1x48x128xbf16>
    tpu.vector_store %arg10[%c17_9, %c0_10, %c0_11], %9 {strides = array<i32>} : memref<18x48x128xbf16, #tpu.memory_space<vmem>>, vector<1x48x128xbf16>,
    %c0_12 = arith.constant 0 : index
    %c0_13 = arith.constant 0 : index
    %c0_14 = arith.constant 0 : index
    %c0_15 = arith.constant 0 : index
    %12 = vector.load %arg1[%c0_12, %c0_13, %c0_14, %c0_15] : memref<1x16x16x128xf32, #tpu.memory_space<vmem>>, vector<1x16x16x128xf32>
    %13 = vector.shape_cast %12 : vector<1x16x16x128xf32> to vector<16x16x128xf32>
    %14 = arith.truncf %13 : vector<16x16x128xf32> to vector<16x16x128xbf16>
    %c1 = arith.constant 1 : index
    %c16 = arith.constant 16 : index
    %c0_16 = arith.constant 0 : index
    %15 = vector.load %arg9[%c1, %c16, %c0_16] : memref<18x48x128xbf16, #tpu.memory_space<vmem>>, vector<16x16x128xbf16>
    tpu.vector_store %arg9[%c1, %c16, %c0_16], %14 {strides = array<i32>} : memref<18x48x128xbf16, #tpu.memory_space<vmem>>, vector<16x16x128xbf16>,
    %c0_17 = arith.constant 0 : index
    %c15 = arith.constant 15 : index
    %c0_18 = arith.constant 0 : index
    %16 = vector.load %arg9[%c0_17, %c15, %c0_18] : memref<18x48x128xbf16, #tpu.memory_space<vmem>>, vector<16x16x128xbf16>
    %17 = vector.shape_cast %2 : vector<1x16x128xi1> to vector<1x16x128xi1>
    %18 = vector.broadcast %17 : vector<1x16x128xi1> to vector<16x16x128xi1>
    %19 = vector.shape_cast %5 : vector<1x16x128xbf16> to vector<1x16x128xbf16>
    %20 = vector.broadcast %19 : vector<1x16x128xbf16> to vector<16x16x128xbf16>
    %21 = arith.select %18, %16, %20 : vector<16x16x128xi1>, vector<16x16x128xbf16>
    %22 = vector.shape_cast %21 : vector<16x16x128xbf16> to vector<256x128xbf16>
    %c0_19 = arith.constant 0 : index
    %c0_20 = arith.constant 0 : index
    %c0_21 = arith.constant 0 : index
    %23 = vector.load %arg2[%c0_19, %c0_20, %c0_21] : memref<9x128x128xbf16, #tpu.memory_space<vmem>>, vector<1x128x128xbf16>
    %24 = vector.shape_cast %23 : vector<1x128x128xbf16> to vector<128x128xbf16>
    %cst_22 = arith.constant dense<0.000000e+00> : vector<256x128xf32>
    %25 = tpu.matmul %22, %24, %cst_22 {dimension_numbers = #tpu.dot_dimension_numbers<[1], [0], [0], [1], [0, 0, 1, 1], [], []>} : vector<256x128xbf16>, vector<128x128xbf16>, vector<256x128xf32> -> vector<256x128xf32>
    %c0_23 = arith.constant 0 : index
    %c16_24 = arith.constant 16 : index
    %c0_25 = arith.constant 0 : index
    %26 = vector.load %arg9[%c0_23, %c16_24, %c0_25] : memref<18x48x128xbf16, #tpu.memory_space<vmem>>, vector<16x16x128xbf16>
    %27 = vector.shape_cast %26 : vector<16x16x128xbf16> to vector<256x128xbf16>
    %c1_26 = arith.constant 1 : index
    %c0_27 = arith.constant 0 : index
    %c0_28 = arith.constant 0 : index
    %28 = vector.load %arg2[%c1_26, %c0_27, %c0_28] : memref<9x128x128xbf16, #tpu.memory_space<vmem>>, vector<1x128x128xbf16>
    %29 = vector.shape_cast %28 : vector<1x128x128xbf16> to vector<128x128xbf16>
    %cst_29 = arith.constant dense<0.000000e+00> : vector<256x128xf32>
    %30 = tpu.matmul %27, %29, %cst_29 {dimension_numbers = #tpu.dot_dimension_numbers<[1], [0], [0], [1], [0, 0, 1, 1], [], []>} : vector<256x128xbf16>, vector<128x128xbf16>, vector<256x128xf32> -> vector<256x128xf32>
    %31 = arith.addf %25, %30 : vector<256x128xf32>
    %c0_30 = arith.constant 0 : index
    %c17_31 = arith.constant 17 : index
    %c0_32 = arith.constant 0 : index
    %32 = vector.load %arg9[%c0_30, %c17_31, %c0_32] : memref<18x48x128xbf16, #tpu.memory_space<vmem>>, vector<16x16x128xbf16>
    %33 = vector.shape_cast %4 : vector<1x16x128xi1> to vector<1x16x128xi1>
    %34 = vector.broadcast %33 : vector<1x16x128xi1> to vector<16x16x128xi1>
    %35 = vector.shape_cast %5 : vector<1x16x128xbf16> to vector<1x16x128xbf16>
    %36 = vector.broadcast %35 : vector<1x16x128xbf16> to vector<16x16x128xbf16>
    %37 = arith.select %34, %32, %36 : vector<16x16x128xi1>, vector<16x16x128xbf16>
    %38 = vector.shape_cast %37 : vector<16x16x128xbf16> to vector<256x128xbf16>
    %c2 = arith.constant 2 : index
    %c0_33 = arith.constant 0 : index
    %c0_34 = arith.constant 0 : index
    %39 = vector.load %arg2[%c2, %c0_33, %c0_34] : memref<9x128x128xbf16, #tpu.memory_space<vmem>>, vector<1x128x128xbf16>
    %40 = vector.shape_cast %39 : vector<1x128x128xbf16> to vector<128x128xbf16>
    %cst_35 = arith.constant dense<0.000000e+00> : vector<256x128xf32>
    %41 = tpu.matmul %38, %40, %cst_35 {dimension_numbers = #tpu.dot_dimension_numbers<[1], [0], [0], [1], [0, 0, 1, 1], [], []>} : vector<256x128xbf16>, vector<128x128xbf16>, vector<256x128xf32> -> vector<256x128xf32>
    %42 = arith.addf %31, %41 : vector<256x128xf32>
    %c1_36 = arith.constant 1 : index
    %c15_37 = arith.constant 15 : index
    %c0_38 = arith.constant 0 : index
    %43 = vector.load %arg9[%c1_36, %c15_37, %c0_38] : memref<18x48x128xbf16, #tpu.memory_space<vmem>>, vector<16x16x128xbf16>
    %44 = vector.shape_cast %2 : vector<1x16x128xi1> to vector<1x16x128xi1>
    %45 = vector.broadcast %44 : vector<1x16x128xi1> to vector<16x16x128xi1>
    %46 = vector.shape_cast %5 : vector<1x16x128xbf16> to vector<1x16x128xbf16>
    %47 = vector.broadcast %46 : vector<1x16x128xbf16> to vector<16x16x128xbf16>
    %48 = arith.select %45, %43, %47 : vector<16x16x128xi1>, vector<16x16x128xbf16>
    %49 = vector.shape_cast %48 : vector<16x16x128xbf16> to vector<256x128xbf16>
    %c3 = arith.constant 3 : index
    %c0_39 = arith.constant 0 : index
    %c0_40 = arith.constant 0 : index
    %50 = vector.load %arg2[%c3, %c0_39, %c0_40] : memref<9x128x128xbf16, #tpu.memory_space<vmem>>, vector<1x128x128xbf16>
    %51 = vector.shape_cast %50 : vector<1x128x128xbf16> to vector<128x128xbf16>
    %cst_41 = arith.constant dense<0.000000e+00> : vector<256x128xf32>
    %52 = tpu.matmul %49, %51, %cst_41 {dimension_numbers = #tpu.dot_dimension_numbers<[1], [0], [0], [1], [0, 0, 1, 1], [], []>} : vector<256x128xbf16>, vector<128x128xbf16>, vector<256x128xf32> -> vector<256x128xf32>
    %53 = arith.addf %42, %52 : vector<256x128xf32>
    %c1_42 = arith.constant 1 : index
    %c16_43 = arith.constant 16 : index
    %c0_44 = arith.constant 0 : index
    %54 = vector.load %arg9[%c1_42, %c16_43, %c0_44] : memref<18x48x128xbf16, #tpu.memory_space<vmem>>, vector<16x16x128xbf16>
    %55 = vector.shape_cast %54 : vector<16x16x128xbf16> to vector<256x128xbf16>
    %c4 = arith.constant 4 : index
    %c0_45 = arith.constant 0 : index
    %c0_46 = arith.constant 0 : index
    %56 = vector.load %arg2[%c4, %c0_45, %c0_46] : memref<9x128x128xbf16, #tpu.memory_space<vmem>>, vector<1x128x128xbf16>
    %57 = vector.shape_cast %56 : vector<1x128x128xbf16> to vector<128x128xbf16>
    %cst_47 = arith.constant dense<0.000000e+00> : vector<256x128xf32>
    %58 = tpu.matmul %55, %57, %cst_47 {dimension_numbers = #tpu.dot_dimension_numbers<[1], [0], [0], [1], [0, 0, 1, 1], [], []>} : vector<256x128xbf16>, vector<128x128xbf16>, vector<256x128xf32> -> vector<256x128xf32>
    %59 = arith.addf %53, %58 : vector<256x128xf32>
    %c1_48 = arith.constant 1 : index
    %c17_49 = arith.constant 17 : index
    %c0_50 = arith.constant 0 : index
    %60 = vector.load %arg9[%c1_48, %c17_49, %c0_50] : memref<18x48x128xbf16, #tpu.memory_space<vmem>>, vector<16x16x128xbf16>
    %61 = vector.shape_cast %4 : vector<1x16x128xi1> to vector<1x16x128xi1>
    %62 = vector.broadcast %61 : vector<1x16x128xi1> to vector<16x16x128xi1>
    %63 = vector.shape_cast %5 : vector<1x16x128xbf16> to vector<1x16x128xbf16>
    %64 = vector.broadcast %63 : vector<1x16x128xbf16> to vector<16x16x128xbf16>
    %65 = arith.select %62, %60, %64 : vector<16x16x128xi1>, vector<16x16x128xbf16>
    %66 = vector.shape_cast %65 : vector<16x16x128xbf16> to vector<256x128xbf16>
    %c5 = arith.constant 5 : index
    %c0_51 = arith.constant 0 : index
    %c0_52 = arith.constant 0 : index
    %67 = vector.load %arg2[%c5, %c0_51, %c0_52] : memref<9x128x128xbf16, #tpu.memory_space<vmem>>, vector<1x128x128xbf16>
    %68 = vector.shape_cast %67 : vector<1x128x128xbf16> to vector<128x128xbf16>
    %cst_53 = arith.constant dense<0.000000e+00> : vector<256x128xf32>
    %69 = tpu.matmul %66, %68, %cst_53 {dimension_numbers = #tpu.dot_dimension_numbers<[1], [0], [0], [1], [0, 0, 1, 1], [], []>} : vector<256x128xbf16>, vector<128x128xbf16>, vector<256x128xf32> -> vector<256x128xf32>
    %70 = arith.addf %59, %69 : vector<256x128xf32>
    %c2_54 = arith.constant 2 : index
    %c15_55 = arith.constant 15 : index
    %c0_56 = arith.constant 0 : index
    %71 = vector.load %arg9[%c2_54, %c15_55, %c0_56] : memref<18x48x128xbf16, #tpu.memory_space<vmem>>, vector<16x16x128xbf16>
    %72 = vector.shape_cast %2 : vector<1x16x128xi1> to vector<1x16x128xi1>
    %73 = vector.broadcast %72 : vector<1x16x128xi1> to vector<16x16x128xi1>
    %74 = vector.shape_cast %5 : vector<1x16x128xbf16> to vector<1x16x128xbf16>
    %75 = vector.broadcast %74 : vector<1x16x128xbf16> to vector<16x16x128xbf16>
    %76 = arith.select %73, %71, %75 : vector<16x16x128xi1>, vector<16x16x128xbf16>
    %77 = vector.shape_cast %76 : vector<16x16x128xbf16> to vector<256x128xbf16>
    %c6 = arith.constant 6 : index
    %c0_57 = arith.constant 0 : index
    %c0_58 = arith.constant 0 : index
    %78 = vector.load %arg2[%c6, %c0_57, %c0_58] : memref<9x128x128xbf16, #tpu.memory_space<vmem>>, vector<1x128x128xbf16>
    %79 = vector.shape_cast %78 : vector<1x128x128xbf16> to vector<128x128xbf16>
    %cst_59 = arith.constant dense<0.000000e+00> : vector<256x128xf32>
    %80 = tpu.matmul %77, %79, %cst_59 {dimension_numbers = #tpu.dot_dimension_numbers<[1], [0], [0], [1], [0, 0, 1, 1], [], []>} : vector<256x128xbf16>, vector<128x128xbf16>, vector<256x128xf32> -> vector<256x128xf32>
    %81 = arith.addf %70, %80 : vector<256x128xf32>
    %c2_60 = arith.constant 2 : index
    %c16_61 = arith.constant 16 : index
    %c0_62 = arith.constant 0 : index
    %82 = vector.load %arg9[%c2_60, %c16_61, %c0_62] : memref<18x48x128xbf16, #tpu.memory_space<vmem>>, vector<16x16x128xbf16>
    %83 = vector.shape_cast %82 : vector<16x16x128xbf16> to vector<256x128xbf16>
    %c7 = arith.constant 7 : index
    %c0_63 = arith.constant 0 : index
    %c0_64 = arith.constant 0 : index
    %84 = vector.load %arg2[%c7, %c0_63, %c0_64] : memref<9x128x128xbf16, #tpu.memory_space<vmem>>, vector<1x128x128xbf16>
    %85 = vector.shape_cast %84 : vector<1x128x128xbf16> to vector<128x128xbf16>
    %cst_65 = arith.constant dense<0.000000e+00> : vector<256x128xf32>
    %86 = tpu.matmul %83, %85, %cst_65 {dimension_numbers = #tpu.dot_dimension_numbers<[1], [0], [0], [1], [0, 0, 1, 1], [], []>} : vector<256x128xbf16>, vector<128x128xbf16>, vector<256x128xf32> -> vector<256x128xf32>
    %87 = arith.addf %81, %86 : vector<256x128xf32>
    %c2_66 = arith.constant 2 : index
    %c17_67 = arith.constant 17 : index
    %c0_68 = arith.constant 0 : index
    %88 = vector.load %arg9[%c2_66, %c17_67, %c0_68] : memref<18x48x128xbf16, #tpu.memory_space<vmem>>, vector<16x16x128xbf16>
    %89 = vector.shape_cast %4 : vector<1x16x128xi1> to vector<1x16x128xi1>
    %90 = vector.broadcast %89 : vector<1x16x128xi1> to vector<16x16x128xi1>
    %91 = vector.shape_cast %5 : vector<1x16x128xbf16> to vector<1x16x128xbf16>
    %92 = vector.broadcast %91 : vector<1x16x128xbf16> to vector<16x16x128xbf16>
    %93 = arith.select %90, %88, %92 : vector<16x16x128xi1>, vector<16x16x128xbf16>
    %94 = vector.shape_cast %93 : vector<16x16x128xbf16> to vector<256x128xbf16>
    %c8 = arith.constant 8 : index
    %c0_69 = arith.constant 0 : index
    %c0_70 = arith.constant 0 : index
    %95 = vector.load %arg2[%c8, %c0_69, %c0_70] : memref<9x128x128xbf16, #tpu.memory_space<vmem>>, vector<1x128x128xbf16>
    %96 = vector.shape_cast %95 : vector<1x128x128xbf16> to vector<128x128xbf16>
    %cst_71 = arith.constant dense<0.000000e+00> : vector<256x128xf32>
    %97 = tpu.matmul %94, %96, %cst_71 {dimension_numbers = #tpu.dot_dimension_numbers<[1], [0], [0], [1], [0, 0, 1, 1], [], []>} : vector<256x128xbf16>, vector<128x128xbf16>, vector<256x128xf32> -> vector<256x128xf32>
    %98 = arith.addf %87, %97 : vector<256x128xf32>
    %c0_72 = arith.constant 0 : index
    %c0_73 = arith.constant 0 : index
    %99 = vector.load %arg4[%c0_72, %c0_73] : memref<1x128xf32, #tpu.memory_space<vmem>>, vector<1x128xf32>
    %100 = vector.broadcast %99 : vector<1x128xf32> to vector<256x128xf32>
    %101 = arith.mulf %98, %100 : vector<256x128xf32>
    %c0_74 = arith.constant 0 : index
    %c0_75 = arith.constant 0 : index
    %102 = vector.load %arg5[%c0_74, %c0_75] : memref<1x128xf32, #tpu.memory_space<vmem>>, vector<1x128xf32>
    %103 = vector.broadcast %102 : vector<1x128xf32> to vector<256x128xf32>
    %104 = arith.addf %101, %103 : vector<256x128xf32>
    %cst_76 = arith.constant 0.000000e+00 : f32
    %105 = vector.broadcast %cst_76 : f32 to vector<256x128xf32>
    %106 = arith.maximumf %104, %105 : vector<256x128xf32>
    %107 = vector.shape_cast %106 : vector<256x128xf32> to vector<16x16x128xf32>
    %108 = arith.truncf %107 : vector<16x16x128xf32> to vector<16x16x128xbf16>
    %c1_77 = arith.constant 1 : index
    %c16_78 = arith.constant 16 : index
    %c0_79 = arith.constant 0 : index
    %109 = vector.load %arg10[%c1_77, %c16_78, %c0_79] : memref<18x48x128xbf16, #tpu.memory_space<vmem>>, vector<16x16x128xbf16>
    tpu.vector_store %arg10[%c1_77, %c16_78, %c0_79], %108 {strides = array<i32>} : memref<18x48x128xbf16, #tpu.memory_space<vmem>>, vector<16x16x128xbf16>,
    %c0_80 = arith.constant 0 : index
    %c15_81 = arith.constant 15 : index
    %c0_82 = arith.constant 0 : index
    %110 = vector.load %arg10[%c0_80, %c15_81, %c0_82] : memref<18x48x128xbf16, #tpu.memory_space<vmem>>, vector<16x16x128xbf16>
    %111 = vector.shape_cast %2 : vector<1x16x128xi1> to vector<1x16x128xi1>
    %112 = vector.broadcast %111 : vector<1x16x128xi1> to vector<16x16x128xi1>
    %113 = vector.shape_cast %5 : vector<1x16x128xbf16> to vector<1x16x128xbf16>
    %114 = vector.broadcast %113 : vector<1x16x128xbf16> to vector<16x16x128xbf16>
    %115 = arith.select %112, %110, %114 : vector<16x16x128xi1>, vector<16x16x128xbf16>
    %116 = vector.shape_cast %115 : vector<16x16x128xbf16> to vector<256x128xbf16>
    %c0_83 = arith.constant 0 : index
    %c0_84 = arith.constant 0 : index
    %c0_85 = arith.constant 0 : index
    %117 = vector.load %arg3[%c0_83, %c0_84, %c0_85] : memref<9x128x128xbf16, #tpu.memory_space<vmem>>, vector<1x128x128xbf16>
    %118 = vector.shape_cast %117 : vector<1x128x128xbf16> to vector<128x128xbf16>
    %cst_86 = arith.constant dense<0.000000e+00> : vector<256x128xf32>
    %119 = tpu.matmul %116, %118, %cst_86 {dimension_numbers = #tpu.dot_dimension_numbers<[1], [0], [0], [1], [0, 0, 1, 1], [], []>} : vector<256x128xbf16>, vector<128x128xbf16>, vector<256x128xf32> -> vector<256x128xf32>
    %c0_87 = arith.constant 0 : index
    %c16_88 = arith.constant 16 : index
    %c0_89 = arith.constant 0 : index
    %120 = vector.load %arg10[%c0_87, %c16_88, %c0_89] : memref<18x48x128xbf16, #tpu.memory_space<vmem>>, vector<16x16x128xbf16>
    %121 = vector.shape_cast %120 : vector<16x16x128xbf16> to vector<256x128xbf16>
    %c1_90 = arith.constant 1 : index
    %c0_91 = arith.constant 0 : index
    %c0_92 = arith.constant 0 : index
    %122 = vector.load %arg3[%c1_90, %c0_91, %c0_92] : memref<9x128x128xbf16, #tpu.memory_space<vmem>>, vector<1x128x128xbf16>
    %123 = vector.shape_cast %122 : vector<1x128x128xbf16> to vector<128x128xbf16>
    %cst_93 = arith.constant dense<0.000000e+00> : vector<256x128xf32>
    %124 = tpu.matmul %121, %123, %cst_93 {dimension_numbers = #tpu.dot_dimension_numbers<[1], [0], [0], [1], [0, 0, 1, 1], [], []>} : vector<256x128xbf16>, vector<128x128xbf16>, vector<256x128xf32> -> vector<256x128xf32>
    %125 = arith.addf %119, %124 : vector<256x128xf32>
    %c0_94 = arith.constant 0 : index
    %c17_95 = arith.constant 17 : index
    %c0_96 = arith.constant 0 : index
    %126 = vector.load %arg10[%c0_94, %c17_95, %c0_96] : memref<18x48x128xbf16, #tpu.memory_space<vmem>>, vector<16x16x128xbf16>
    %127 = vector.shape_cast %4 : vector<1x16x128xi1> to vector<1x16x128xi1>
    %128 = vector.broadcast %127 : vector<1x16x128xi1> to vector<16x16x128xi1>
    %129 = vector.shape_cast %5 : vector<1x16x128xbf16> to vector<1x16x128xbf16>
    %130 = vector.broadcast %129 : vector<1x16x128xbf16> to vector<16x16x128xbf16>
    %131 = arith.select %128, %126, %130 : vector<16x16x128xi1>, vector<16x16x128xbf16>
    %132 = vector.shape_cast %131 : vector<16x16x128xbf16> to vector<256x128xbf16>
    %c2_97 = arith.constant 2 : index
    %c0_98 = arith.constant 0 : index
    %c0_99 = arith.constant 0 : index
    %133 = vector.load %arg3[%c2_97, %c0_98, %c0_99] : memref<9x128x128xbf16, #tpu.memory_space<vmem>>, vector<1x128x128xbf16>
    %134 = vector.shape_cast %133 : vector<1x128x128xbf16> to vector<128x128xbf16>
    %cst_100 = arith.constant dense<0.000000e+00> : vector<256x128xf32>
    %135 = tpu.matmul %132, %134, %cst_100 {dimension_numbers = #tpu.dot_dimension_numbers<[1], [0], [0], [1], [0, 0, 1, 1], [], []>} : vector<256x128xbf16>, vector<128x128xbf16>, vector<256x128xf32> -> vector<256x128xf32>
    %136 = arith.addf %125, %135 : vector<256x128xf32>
    %c1_101 = arith.constant 1 : index
    %c15_102 = arith.constant 15 : index
    %c0_103 = arith.constant 0 : index
    %137 = vector.load %arg10[%c1_101, %c15_102, %c0_103] : memref<18x48x128xbf16, #tpu.memory_space<vmem>>, vector<16x16x128xbf16>
    %138 = vector.shape_cast %2 : vector<1x16x128xi1> to vector<1x16x128xi1>
    %139 = vector.broadcast %138 : vector<1x16x128xi1> to vector<16x16x128xi1>
    %140 = vector.shape_cast %5 : vector<1x16x128xbf16> to vector<1x16x128xbf16>
    %141 = vector.broadcast %140 : vector<1x16x128xbf16> to vector<16x16x128xbf16>
    %142 = arith.select %139, %137, %141 : vector<16x16x128xi1>, vector<16x16x128xbf16>
    %143 = vector.shape_cast %142 : vector<16x16x128xbf16> to vector<256x128xbf16>
    %c3_104 = arith.constant 3 : index
    %c0_105 = arith.constant 0 : index
    %c0_106 = arith.constant 0 : index
    %144 = vector.load %arg3[%c3_104, %c0_105, %c0_106] : memref<9x128x128xbf16, #tpu.memory_space<vmem>>, vector<1x128x128xbf16>
    %145 = vector.shape_cast %144 : vector<1x128x128xbf16> to vector<128x128xbf16>
    %cst_107 = arith.constant dense<0.000000e+00> : vector<256x128xf32>
    %146 = tpu.matmul %143, %145, %cst_107 {dimension_numbers = #tpu.dot_dimension_numbers<[1], [0], [0], [1], [0, 0, 1, 1], [], []>} : vector<256x128xbf16>, vector<128x128xbf16>, vector<256x128xf32> -> vector<256x128xf32>
    %147 = arith.addf %136, %146 : vector<256x128xf32>
    %c1_108 = arith.constant 1 : index
    %c16_109 = arith.constant 16 : index
    %c0_110 = arith.constant 0 : index
    %148 = vector.load %arg10[%c1_108, %c16_109, %c0_110] : memref<18x48x128xbf16, #tpu.memory_space<vmem>>, vector<16x16x128xbf16>
    %149 = vector.shape_cast %148 : vector<16x16x128xbf16> to vector<256x128xbf16>
    %c4_111 = arith.constant 4 : index
    %c0_112 = arith.constant 0 : index
    %c0_113 = arith.constant 0 : index
    %150 = vector.load %arg3[%c4_111, %c0_112, %c0_113] : memref<9x128x128xbf16, #tpu.memory_space<vmem>>, vector<1x128x128xbf16>
    %151 = vector.shape_cast %150 : vector<1x128x128xbf16> to vector<128x128xbf16>
    %cst_114 = arith.constant dense<0.000000e+00> : vector<256x128xf32>
    %152 = tpu.matmul %149, %151, %cst_114 {dimension_numbers = #tpu.dot_dimension_numbers<[1], [0], [0], [1], [0, 0, 1, 1], [], []>} : vector<256x128xbf16>, vector<128x128xbf16>, vector<256x128xf32> -> vector<256x128xf32>
    %153 = arith.addf %147, %152 : vector<256x128xf32>
    %c1_115 = arith.constant 1 : index
    %c17_116 = arith.constant 17 : index
    %c0_117 = arith.constant 0 : index
    %154 = vector.load %arg10[%c1_115, %c17_116, %c0_117] : memref<18x48x128xbf16, #tpu.memory_space<vmem>>, vector<16x16x128xbf16>
    %155 = vector.shape_cast %4 : vector<1x16x128xi1> to vector<1x16x128xi1>
    %156 = vector.broadcast %155 : vector<1x16x128xi1> to vector<16x16x128xi1>
    %157 = vector.shape_cast %5 : vector<1x16x128xbf16> to vector<1x16x128xbf16>
    %158 = vector.broadcast %157 : vector<1x16x128xbf16> to vector<16x16x128xbf16>
    %159 = arith.select %156, %154, %158 : vector<16x16x128xi1>, vector<16x16x128xbf16>
    %160 = vector.shape_cast %159 : vector<16x16x128xbf16> to vector<256x128xbf16>
    %c5_118 = arith.constant 5 : index
    %c0_119 = arith.constant 0 : index
    %c0_120 = arith.constant 0 : index
    %161 = vector.load %arg3[%c5_118, %c0_119, %c0_120] : memref<9x128x128xbf16, #tpu.memory_space<vmem>>, vector<1x128x128xbf16>
    %162 = vector.shape_cast %161 : vector<1x128x128xbf16> to vector<128x128xbf16>
    %cst_121 = arith.constant dense<0.000000e+00> : vector<256x128xf32>
    %163 = tpu.matmul %160, %162, %cst_121 {dimension_numbers = #tpu.dot_dimension_numbers<[1], [0], [0], [1], [0, 0, 1, 1], [], []>} : vector<256x128xbf16>, vector<128x128xbf16>, vector<256x128xf32> -> vector<256x128xf32>
    %164 = arith.addf %153, %163 : vector<256x128xf32>
    %c2_122 = arith.constant 2 : index
    %c15_123 = arith.constant 15 : index
    %c0_124 = arith.constant 0 : index
    %165 = vector.load %arg10[%c2_122, %c15_123, %c0_124] : memref<18x48x128xbf16, #tpu.memory_space<vmem>>, vector<16x16x128xbf16>
    %166 = vector.shape_cast %2 : vector<1x16x128xi1> to vector<1x16x128xi1>
    %167 = vector.broadcast %166 : vector<1x16x128xi1> to vector<16x16x128xi1>
    %168 = vector.shape_cast %5 : vector<1x16x128xbf16> to vector<1x16x128xbf16>
    %169 = vector.broadcast %168 : vector<1x16x128xbf16> to vector<16x16x128xbf16>
    %170 = arith.select %167, %165, %169 : vector<16x16x128xi1>, vector<16x16x128xbf16>
    %171 = vector.shape_cast %170 : vector<16x16x128xbf16> to vector<256x128xbf16>
    %c6_125 = arith.constant 6 : index
    %c0_126 = arith.constant 0 : index
    %c0_127 = arith.constant 0 : index
    %172 = vector.load %arg3[%c6_125, %c0_126, %c0_127] : memref<9x128x128xbf16, #tpu.memory_space<vmem>>, vector<1x128x128xbf16>
    %173 = vector.shape_cast %172 : vector<1x128x128xbf16> to vector<128x128xbf16>
    %cst_128 = arith.constant dense<0.000000e+00> : vector<256x128xf32>
    %174 = tpu.matmul %171, %173, %cst_128 {dimension_numbers = #tpu.dot_dimension_numbers<[1], [0], [0], [1], [0, 0, 1, 1], [], []>} : vector<256x128xbf16>, vector<128x128xbf16>, vector<256x128xf32> -> vector<256x128xf32>
    %175 = arith.addf %164, %174 : vector<256x128xf32>
    %c2_129 = arith.constant 2 : index
    %c16_130 = arith.constant 16 : index
    %c0_131 = arith.constant 0 : index
    %176 = vector.load %arg10[%c2_129, %c16_130, %c0_131] : memref<18x48x128xbf16, #tpu.memory_space<vmem>>, vector<16x16x128xbf16>
    %177 = vector.shape_cast %176 : vector<16x16x128xbf16> to vector<256x128xbf16>
    %c7_132 = arith.constant 7 : index
    %c0_133 = arith.constant 0 : index
    %c0_134 = arith.constant 0 : index
    %178 = vector.load %arg3[%c7_132, %c0_133, %c0_134] : memref<9x128x128xbf16, #tpu.memory_space<vmem>>, vector<1x128x128xbf16>
    %179 = vector.shape_cast %178 : vector<1x128x128xbf16> to vector<128x128xbf16>
    %cst_135 = arith.constant dense<0.000000e+00> : vector<256x128xf32>
    %180 = tpu.matmul %177, %179, %cst_135 {dimension_numbers = #tpu.dot_dimension_numbers<[1], [0], [0], [1], [0, 0, 1, 1], [], []>} : vector<256x128xbf16>, vector<128x128xbf16>, vector<256x128xf32> -> vector<256x128xf32>
    %181 = arith.addf %175, %180 : vector<256x128xf32>
    %c2_136 = arith.constant 2 : index
    %c17_137 = arith.constant 17 : index
    %c0_138 = arith.constant 0 : index
    %182 = vector.load %arg10[%c2_136, %c17_137, %c0_138] : memref<18x48x128xbf16, #tpu.memory_space<vmem>>, vector<16x16x128xbf16>
    %183 = vector.shape_cast %4 : vector<1x16x128xi1> to vector<1x16x128xi1>
    %184 = vector.broadcast %183 : vector<1x16x128xi1> to vector<16x16x128xi1>
    %185 = vector.shape_cast %5 : vector<1x16x128xbf16> to vector<1x16x128xbf16>
    %186 = vector.broadcast %185 : vector<1x16x128xbf16> to vector<16x16x128xbf16>
    %187 = arith.select %184, %182, %186 : vector<16x16x128xi1>, vector<16x16x128xbf16>
    %188 = vector.shape_cast %187 : vector<16x16x128xbf16> to vector<256x128xbf16>
    %c8_139 = arith.constant 8 : index
    %c0_140 = arith.constant 0 : index
    %c0_141 = arith.constant 0 : index
    %189 = vector.load %arg3[%c8_139, %c0_140, %c0_141] : memref<9x128x128xbf16, #tpu.memory_space<vmem>>, vector<1x128x128xbf16>
    %190 = vector.shape_cast %189 : vector<1x128x128xbf16> to vector<128x128xbf16>
    %cst_142 = arith.constant dense<0.000000e+00> : vector<256x128xf32>
    %191 = tpu.matmul %188, %190, %cst_142 {dimension_numbers = #tpu.dot_dimension_numbers<[1], [0], [0], [1], [0, 0, 1, 1], [], []>} : vector<256x128xbf16>, vector<128x128xbf16>, vector<256x128xf32> -> vector<256x128xf32>
    %192 = arith.addf %181, %191 : vector<256x128xf32>
    %c0_143 = arith.constant 0 : index
    %c0_144 = arith.constant 0 : index
    %193 = vector.load %arg6[%c0_143, %c0_144] : memref<1x128xf32, #tpu.memory_space<vmem>>, vector<1x128xf32>
    %194 = vector.broadcast %193 : vector<1x128xf32> to vector<256x128xf32>
    %195 = arith.mulf %192, %194 : vector<256x128xf32>
    %c0_145 = arith.constant 0 : index
    %c0_146 = arith.constant 0 : index
    %196 = vector.load %arg7[%c0_145, %c0_146] : memref<1x128xf32, #tpu.memory_space<vmem>>, vector<1x128xf32>
    %197 = vector.broadcast %196 : vector<1x128xf32> to vector<256x128xf32>
    %198 = arith.addf %195, %197 : vector<256x128xf32>
    %c0_147 = arith.constant 0 : index
    %c0_148 = arith.constant 0 : index
    %c0_149 = arith.constant 0 : index
    %c0_150 = arith.constant 0 : index
    %199 = vector.load %arg1[%c0_147, %c0_148, %c0_149, %c0_150] : memref<1x16x16x128xf32, #tpu.memory_space<vmem>>, vector<1x16x16x128xf32>
    %200 = vector.shape_cast %199 : vector<1x16x16x128xf32> to vector<256x128xf32>
    %201 = arith.addf %198, %200 : vector<256x128xf32>
    %cst_151 = arith.constant 0.000000e+00 : f32
    %202 = vector.broadcast %cst_151 : f32 to vector<256x128xf32>
    %203 = arith.maximumf %201, %202 : vector<256x128xf32>
    %204 = vector.shape_cast %203 : vector<256x128xf32> to vector<1x16x16x128xf32>
    %c0_152 = arith.constant 0 : index
    %c0_153 = arith.constant 0 : index
    %c0_154 = arith.constant 0 : index
    %c0_155 = arith.constant 0 : index
    %205 = vector.load %arg8[%c0_152, %c0_153, %c0_154, %c0_155] : memref<1x16x16x128xf32, #tpu.memory_space<vmem>>, vector<1x16x16x128xf32>
    tpu.vector_store %arg8[%c0_152, %c0_153, %c0_154, %c0_155], %204 {strides = array<i32>} : memref<1x16x16x128xf32, #tpu.memory_space<vmem>>, vector<1x16x16x128xf32>,
    return
  }
  func.func @transform_0(%arg0: i32) -> (i32, i32, i32, i32) {
    %c0_i32 = arith.constant 0 : i32
    %c0_i32_0 = arith.constant 0 : i32
    %c0_i32_1 = arith.constant 0 : i32
    %c0_i32_2 = arith.constant 0 : i32
    return %arg0, %c0_i32, %c0_i32_0, %c0_i32_1 : i32, i32, i32, i32
  }
  func.func @transform_1(%arg0: i32) -> (i32, i32, i32) {
    %c0_i32 = arith.constant 0 : i32
    %c0_i32_0 = arith.constant 0 : i32
    %c0_i32_1 = arith.constant 0 : i32
    %c0_i32_2 = arith.constant 0 : i32
    return %c0_i32, %c0_i32_0, %c0_i32_1 : i32, i32, i32
  }
  func.func @transform_2(%arg0: i32) -> (i32, i32, i32) {
    %c0_i32 = arith.constant 0 : i32
    %c0_i32_0 = arith.constant 0 : i32
    %c0_i32_1 = arith.constant 0 : i32
    %c0_i32_2 = arith.constant 0 : i32
    return %c0_i32, %c0_i32_0, %c0_i32_1 : i32, i32, i32
  }
  func.func @transform_3(%arg0: i32) -> (i32, i32) {
    %c0_i32 = arith.constant 0 : i32
    %c0_i32_0 = arith.constant 0 : i32
    %c0_i32_1 = arith.constant 0 : i32
    return %c0_i32, %c0_i32_0 : i32, i32
  }
  func.func @transform_4(%arg0: i32) -> (i32, i32) {
    %c0_i32 = arith.constant 0 : i32
    %c0_i32_0 = arith.constant 0 : i32
    %c0_i32_1 = arith.constant 0 : i32
    return %c0_i32, %c0_i32_0 : i32, i32
  }
  func.func @transform_5(%arg0: i32) -> (i32, i32) {
    %c0_i32 = arith.constant 0 : i32
    %c0_i32_0 = arith.constant 0 : i32
    %c0_i32_1 = arith.constant 0 : i32
    return %c0_i32, %c0_i32_0 : i32, i32
  }
  func.func @transform_6(%arg0: i32) -> (i32, i32) {
    %c0_i32 = arith.constant 0 : i32
    %c0_i32_0 = arith.constant 0 : i32
    %c0_i32_1 = arith.constant 0 : i32
    return %c0_i32, %c0_i32_0 : i32, i32
  }
  func.func @transform_7(%arg0: i32) -> (i32, i32, i32, i32) {
    %c0_i32 = arith.constant 0 : i32
    %c0_i32_0 = arith.constant 0 : i32
    %c0_i32_1 = arith.constant 0 : i32
    %c0_i32_2 = arith.constant 0 : i32
    return %arg0, %c0_i32, %c0_i32_0, %c0_i32_1 : i32, i32, i32, i32
  }
}

</mosaic_0001>

<llo_original>
// kernel: basic_block_forward_nhwc.1
$region0: #{basic_block_forward_nhwc.1}
  #allocation0 [shape = 'u32[]', space=smem, size = 0x4, offset = 0x4, fixed_abs, tag = 'smem constant byte address 0x4 - core index']
  #allocation1 [shape = 'u32[144,128]{1,0:T(1,128)}', space=vmem, size = 0x12000, scoped, tag = 'internal scratch']
  #allocation2 [shape = 'bf16[18,48,128]{2,1,0:T(8,128)(2,1)}', space=vmem, size = 0x36000, scoped, tag = 'scratch operand']
  #allocation3 [shape = 'bf16[18,48,128]{2,1,0:T(8,128)(2,1)}', space=vmem, size = 0x36000, scoped, tag = 'scratch operand']
  %s0 = inlined_call_operand.vmem [shape: f32[2,16,16,128], index: 0, kind: input, shape index: {}]
  %s1 = inlined_call_operand.vmem [shape: bf16[9,128,128], index: 1, kind: input, shape index: {}]
  %s2 = inlined_call_operand.vmem [shape: bf16[9,128,128], index: 2, kind: input, shape index: {}]
  %s3 = inlined_call_operand.vmem [shape: f32[1,128], index: 3, kind: input, shape index: {}]
  %s4 = inlined_call_operand.vmem [shape: f32[1,128], index: 4, kind: input, shape index: {}]
  %s5 = inlined_call_operand.vmem [shape: f32[1,128], index: 5, kind: input, shape index: {}]
  %s6 = inlined_call_operand.vmem [shape: f32[1,128], index: 6, kind: input, shape index: {}]
  %s7 = inlined_call_operand.hbm [shape: f32[2,16,16,128], index: 7, kind: output, shape index: {}]
  %s8 = sld [smem:[#allocation0]]
  $region61: #{basic_block_forward_nhwc.1} parent=0
    _
  %s10 = ssub.s32 1, %s8
  %s11 = scalar_select 0, %s10, %s8
  $region1: #{basic_block_forward_nhwc.1} parent=0
    #allocation4 [shape = 'u8[262144]{0}', space=vmem, size = 0x40000, scoped, tag = 'output window, operand 0']
    #allocation5 [shape = 's32[2]{0}', space=sflag, size = 0x8, scoped, tag = 'scoped memory for basic_block_forward_nhwc.1']
    %12 = vsyncpa [#allocation5], 0
    %s13 = scalar_lea.sflag [#allocation5], 1
    %14 = vsyncpa %s13, 0
    loop: start=0, step=1, limit=4
    $region2: #{basic_block_forward_nhwc.1} parent=1 // loop_pre_header
      _
    $region3: #{basic_block_forward_nhwc.1} parent=1 // loop_header
      %s16 = sphi 0, %s20
      %p17 = scmp.ge.s32.totalorder %s16, 4
      %s26 = sphi 0, %s28
      %s29 = sphi 0, %s26
      %s30 = sphi 0, %s29
      %s46 = sphi 0, %s30
      %s50 = sphi 0, %s50
      %s52 = sphi 0, %s50
      %s53 = sphi 0, %s52
      %s67 = sphi 0, %s53
      %s71 = sphi 0, %s71
      %s73 = sphi 0, %s71
      %s74 = sphi 0, %s73
      %s88 = sphi 0, %s74
      %s92 = sphi 0, %s92
      %s94 = sphi 0, %s92
      %s95 = sphi 0, %s94
      %s109 = sphi 0, %s95
      %s113 = sphi 0, %s113
      %s115 = sphi 0, %s113
      %s116 = sphi 0, %s115
      %s130 = sphi 0, %s116
      %s134 = sphi 0, %s134
      %s136 = sphi 0, %s134
      %s137 = sphi 0, %s136
      %s151 = sphi 0, %s137
      %s155 = sphi 0, %s155
      %s157 = sphi 0, %s155
      %s158 = sphi 0, %s157
      %s172 = sphi 0, %s158
      %s178 = sphi 0, %s180
      %s181 = sphi 0, %s178
      %s182 = sphi 0, %s181
      %s198 = sphi 0, %s182
    $region4: #{basic_block_forward_nhwc.1} parent=1 // loop_header_branch
      %19 = sbr.rel (%p17) target = $region8
    $region5: #{basic_block_forward_nhwc.1} parent=1 // loop_body
      %s21 = ssub.s32 %s16, 1
      %s22 = ssub.s32 %s16, 2
      %s23 = sadd.s32 %s16, 1
      %s24 = ssub.s32 %s16, %s23
      %p25 = scmp.eq.s32.totalorder %s24, 0
      %s27 = sadd.s32 %s26, 1
      %s28 = scalar_select %p25, %s26, %s27
      %p31 = pneg %p25
      %p32 = scmp.eq.s32.totalorder %s16, 1
      %p33 = por %p31, %p32
      %p34 = scmp.ne.s32.totalorder %s26, %s29
      %p35 = scmp.eq.s32.totalorder %s16, 0
      %p36 = por %p34, %p35
      %p37 = scmp.ne.s32.totalorder %s26, %s29
      %p38 = scmp.eq.s32.totalorder %s21, 1
      %p39 = por %p37, %p38
      %p40 = scmp.ne.s32.totalorder %s29, %s30
      %p41 = scmp.eq.s32.totalorder %s21, 0
      %p42 = por %p40, %p41
      %p43 = scmp.ne.s32.totalorder %s29, %s30
      %p44 = scmp.eq.s32.totalorder %s22, 1
      %p45 = por %p43, %p44
      %p47 = scmp.ne.s32.totalorder %s30, %s46
      %p48 = scmp.eq.s32.totalorder %s22, 0
      %p49 = por %p47, %p48
      %s51 = sadd.s32 %s50, 1
      %p54 = scmp.eq.s32.totalorder %s16, 1
      %p55 = scmp.ne.s32.totalorder %s50, %s52
      %p56 = scmp.eq.s32.totalorder %s16, 0
      %p57 = por %p55, %p56
      %p58 = scmp.ne.s32.totalorder %s50, %s52
      %p59 = scmp.eq.s32.totalorder %s21, 1
      %p60 = por %p58, %p59
      %p61 = scmp.ne.s32.totalorder %s52, %s53
      %p62 = scmp.eq.s32.totalorder %s21, 0
      %p63 = por %p61, %p62
      %p64 = scmp.ne.s32.totalorder %s52, %s53
      %p65 = scmp.eq.s32.totalorder %s22, 1
      %p66 = por %p64, %p65
      %p68 = scmp.ne.s32.totalorder %s53, %s67
      %p69 = scmp.eq.s32.totalorder %s22, 0
      %p70 = por %p68, %p69
      %s72 = sadd.s32 %s71, 1
      %p75 = scmp.eq.s32.totalorder %s16, 1
      %p76 = scmp.ne.s32.totalorder %s71, %s73
      %p77 = scmp.eq.s32.totalorder %s16, 0
      %p78 = por %p76, %p77
      %p79 = scmp.ne.s32.totalorder %s71, %s73
      %p80 = scmp.eq.s32.totalorder %s21, 1
      %p81 = por %p79, %p80
      %p82 = scmp.ne.s32.totalorder %s73, %s74
      %p83 = scmp.eq.s32.totalorder %s21, 0
      %p84 = por %p82, %p83
      %p85 = scmp.ne.s32.totalorder %s73, %s74
      %p86 = scmp.eq.s32.totalorder %s22, 1
      %p87 = por %p85, %p86
      %p89 = scmp.ne.s32.totalorder %s74, %s88
      %p90 = scmp.eq.s32.totalorder %s22, 0
      %p91 = por %p89, %p90
      %s93 = sadd.s32 %s92, 1
      %p96 = scmp.eq.s32.totalorder %s16, 1
      %p97 = scmp.ne.s32.totalorder %s92, %s94
      %p98 = scmp.eq.s32.totalorder %s16, 0
      %p99 = por %p97, %p98
      %p100 = scmp.ne.s32.totalorder %s92, %s94
      %p101 = scmp.eq.s32.totalorder %s21, 1
      %p102 = por %p100, %p101
      %p103 = scmp.ne.s32.totalorder %s94, %s95
      %p104 = scmp.eq.s32.totalorder %s21, 0
      %p105 = por %p103, %p104
      %p106 = scmp.ne.s32.totalorder %s94, %s95
      %p107 = scmp.eq.s32.totalorder %s22, 1
      %p108 = por %p106, %p107
      %p110 = scmp.ne.s32.totalorder %s95, %s109
      %p111 = scmp.eq.s32.totalorder %s22, 0
      %p112 = por %p110, %p111
      %s114 = sadd.s32 %s113, 1
      %p117 = scmp.eq.s32.totalorder %s16, 1
      %p118 = scmp.ne.s32.totalorder %s113, %s115
      %p119 = scmp.eq.s32.totalorder %s16, 0
      %p120 = por %p118, %p119
      %p121 = scmp.ne.s32.totalorder %s113, %s115
      %p122 = scmp.eq.s32.totalorder %s21, 1
      %p123 = por %p121, %p122
      %p124 = scmp.ne.s32.totalorder %s115, %s116
      %p125 = scmp.eq.s32.totalorder %s21, 0
      %p126 = por %p124, %p125
      %p127 = scmp.ne.s32.totalorder %s115, %s116
      %p128 = scmp.eq.s32.totalorder %s22, 1
      %p129 = por %p127, %p128
      %p131 = scmp.ne.s32.totalorder %s116, %s130
      %p132 = scmp.eq.s32.totalorder %s22, 0
      %p133 = por %p131, %p132
      %s135 = sadd.s32 %s134, 1
      %p138 = scmp.eq.s32.totalorder %s16, 1
      %p139 = scmp.ne.s32.totalorder %s134, %s136
      %p140 = scmp.eq.s32.totalorder %s16, 0
      %p141 = por %p139, %p140
      %p142 = scmp.ne.s32.totalorder %s134, %s136
      %p143 = scmp.eq.s32.totalorder %s21, 1
      %p144 = por %p142, %p143
      %p145 = scmp.ne.s32.totalorder %s136, %s137
      %p146 = scmp.eq.s32.totalorder %s21, 0
      %p147 = por %p145, %p146
      %p148 = scmp.ne.s32.totalorder %s136, %s137
      %p149 = scmp.eq.s32.totalorder %s22, 1
      %p150 = por %p148, %p149
      %p152 = scmp.ne.s32.totalorder %s137, %s151
      %p153 = scmp.eq.s32.totalorder %s22, 0
      %p154 = por %p152, %p153
      %s156 = sadd.s32 %s155, 1
      %p159 = scmp.eq.s32.totalorder %s16, 1
      %p160 = scmp.ne.s32.totalorder %s155, %s157
      %p161 = scmp.eq.s32.totalorder %s16, 0
      %p162 = por %p160, %p161
      %p163 = scmp.ne.s32.totalorder %s155, %s157
      %p164 = scmp.eq.s32.totalorder %s21, 1
      %p165 = por %p163, %p164
      %p166 = scmp.ne.s32.totalorder %s157, %s158
      %p167 = scmp.eq.s32.totalorder %s21, 0
      %p168 = por %p166, %p167
      %p169 = scmp.ne.s32.totalorder %s157, %s158
      %p170 = scmp.eq.s32.totalorder %s22, 1
      %p171 = por %p169, %p170
      %p173 = scmp.ne.s32.totalorder %s158, %s172
      %p174 = scmp.eq.s32.totalorder %s22, 0
      %p175 = por %p173, %p174
      %s176 = ssub.s32 %s16, %s23
      %p177 = scmp.eq.s32.totalorder %s176, 0
      %s179 = sadd.s32 %s178, 1
      %s180 = scalar_select %p177, %s178, %s179
      %p183 = pneg %p177
      %p184 = scmp.eq.s32.totalorder %s16, 1
      %p185 = por %p183, %p184
      %p186 = scmp.ne.s32.totalorder %s178, %s181
      %p187 = scmp.eq.s32.totalorder %s16, 0
      %p188 = por %p186, %p187
      %p189 = scmp.ne.s32.totalorder %s178, %s181
      %p190 = scmp.eq.s32.totalorder %s21, 1
      %p191 = por %p189, %p190
      %p192 = scmp.ne.s32.totalorder %s181, %s182
      %p193 = scmp.eq.s32.totalorder %s21, 0
      %p194 = por %p192, %p193
      %p195 = scmp.ne.s32.totalorder %s181, %s182
      %p196 = scmp.eq.s32.totalorder %s22, 1
      %p197 = por %p195, %p196
      %p199 = scmp.ne.s32.totalorder %s182, %s198
      %p200 = scmp.eq.s32.totalorder %s22, 0
      %p201 = por %p199, %p200
      %p202 = scmp.le.s32.totalorder 1, %s16
      %p203 = scmp.lt.s32.totalorder %s16, 3
      %p204 = pnand %p202, %p203
      %p205 = pneg %p204
      // Predicated region
      $region9: #{basic_block_forward_nhwc.1} parent=5 // pred_check
        _
      $region10: #{basic_block_forward_nhwc.1} parent=5 // pred_check_branch
        %207 = sbr.rel (%p204) target = $region12
      $region11: #{basic_block_forward_nhwc.1} parent=5 // pred_region
        %s208 = ssub.s32 %s16, 1
        // Predicated region
        $region13: #{basic_block_forward_nhwc.1} parent=11 // pred_check
          %p209 = pneg %p63
        $region14: #{basic_block_forward_nhwc.1} parent=11 // pred_check_branch
          %211 = sbr.rel (%p209) target = $region16
        $region15: #{basic_block_forward_nhwc.1} parent=11 // pred_region
          _
        $region16: #{basic_block_forward_nhwc.1} parent=11 // pred_fallthru
          _
        // Predicated region
        $region17: #{basic_block_forward_nhwc.1} parent=11 // pred_check
          %p212 = pneg %p84
        $region18: #{basic_block_forward_nhwc.1} parent=11 // pred_check_branch
          %214 = sbr.rel (%p212) target = $region20
        $region19: #{basic_block_forward_nhwc.1} parent=11 // pred_region
          _
        $region20: #{basic_block_forward_nhwc.1} parent=11 // pred_fallthru
          _
        // Predicated region
        $region21: #{basic_block_forward_nhwc.1} parent=11 // pred_check
          %p215 = pneg %p105
        $region22: #{basic_block_forward_nhwc.1} parent=11 // pred_check_branch
          %217 = sbr.rel (%p215) target = $region24
        $region23: #{basic_block_forward_nhwc.1} parent=11 // pred_region
          _
        $region24: #{basic_block_forward_nhwc.1} parent=11 // pred_fallthru
          _
        // Predicated region
        $region25: #{basic_block_forward_nhwc.1} parent=11 // pred_check
          %p218 = pneg %p126
        $region26: #{basic_block_forward_nhwc.1} parent=11 // pred_check_branch
          %220 = sbr.rel (%p218) target = $region28
        $region27: #{basic_block_forward_nhwc.1} parent=11 // pred_region
          _
        $region28: #{basic_block_forward_nhwc.1} parent=11 // pred_fallthru
          _
        // Predicated region
        $region29: #{basic_block_forward_nhwc.1} parent=11 // pred_check
          %p221 = pneg %p147
        $region30: #{basic_block_forward_nhwc.1} parent=11 // pred_check_branch
          %223 = sbr.rel (%p221) target = $region32
        $region31: #{basic_block_forward_nhwc.1} parent=11 // pred_region
          _
        $region32: #{basic_block_forward_nhwc.1} parent=11 // pred_fallthru
          _
        // Predicated region
        $region33: #{basic_block_forward_nhwc.1} parent=11 // pred_check
          %p224 = pneg %p168
        $region34: #{basic_block_forward_nhwc.1} parent=11 // pred_check_branch
          %226 = sbr.rel (%p224) target = $region36
        $region35: #{basic_block_forward_nhwc.1} parent=11 // pred_region
          _
        $region36: #{basic_block_forward_nhwc.1} parent=11 // pred_fallthru
          _
      $region12: #{basic_block_forward_nhwc.1} parent=5 // pred_fallthru
        _
      %p227 = scmp.lt.s32.totalorder %s16, 2
      // Predicated region
      $region37: #{basic_block_forward_nhwc.1} parent=5 // pred_check
        %p228 = pneg %p227
      $region38: #{basic_block_forward_nhwc.1} parent=5 // pred_check_branch
        %230 = sbr.rel (%p228) target = $region40
      $region39: #{basic_block_forward_nhwc.1} parent=5 // pred_region
        // Predicated region
        $region41: #{basic_block_forward_nhwc.1} parent=39 // pred_check
          %p231 = pneg %p36
        $region42: #{basic_block_forward_nhwc.1} parent=39 // pred_check_branch
          %233 = sbr.rel (%p231) target = $region44
        $region43: #{basic_block_forward_nhwc.1} parent=39 // pred_region
          %p234 = scmp.lt.s32.totalorder %s16, 1
          %s235 = scalar_select %p234, %s16, 1
          %s236 = smul.addr %s235, 32
          %s237 = smul.addr %s236, 8
          %s238 = scalar_lea.vmem %s0, %s237
        $region44: #{basic_block_forward_nhwc.1} parent=39 // pred_fallthru
          _
      $region40: #{basic_block_forward_nhwc.1} parent=5 // pred_fallthru
        _
      %p239 = scmp.le.s32.totalorder 1, %s16
      %p240 = scmp.lt.s32.totalorder %s16, 3
      %p241 = pnand %p239, %p240
      %p242 = pneg %p241
      // Predicated region
      $region45: #{basic_block_forward_nhwc.1} parent=5 // pred_check
        _
      $region46: #{basic_block_forward_nhwc.1} parent=5 // pred_check_branch
        %244 = sbr.rel (%p241) target = $region48
      $region47: #{basic_block_forward_nhwc.1} parent=5 // pred_region
        %s245 = ssub.s32 %s16, 1
        %p246 = scmp.lt.s32.totalorder %s21, 1
        %s247 = scalar_select %p246, %s21, 1
        %s248 = smul.addr %s247, 32
        %s249 = smul.addr %s248, 8
        %s250 = scalar_lea.vmem %s0, %s249
        %p251 = pneg %p42
        %p252 = pneg %p39
        %p253 = pneg %p63
        %p254 = pneg %p60
        %p255 = pneg %p84
        %p256 = pneg %p81
        %p257 = pneg %p105
        %p258 = pneg %p102
        %p259 = pneg %p126
        %p260 = pneg %p123
        %p261 = pneg %p147
        %p262 = pneg %p144
        %p263 = pneg %p168
        %p264 = pneg %p165
        %p265 = pneg %p194
        %p266 = pneg %p191
        %s267 = sand.u32 %s181, 1
        %s268 = scalar_lea.sflag [#allocation5], %s267
        %s269 = sand.u32 %s181, 1
        %s270 = smul.addr %s269, 256
        %s271 = scalar_lea.vmem [#allocation4], %s270
        %p272 = scmp.lt.s32.totalorder %s21, 1
        %s273 = scalar_select %p272, %s21, 1
        %s274 = smul.addr %s273, 32
        %s275 = smul.addr %s274, 8
        %s276 = scalar_lea.vmem %s0, %s275
        %v280 = vlaneseq
        %v281 = vshrl.u32 %v280, 7
        %v282 = vadd.s32 %v281, 8
        %vm283 = vcmp.gt.s32.totalorder %v281, 0
        %vm284 = vcmp.gt.s32.totalorder %v282, 0
        %vm285 = vcmp.lt.s32.totalorder %v281, 15
        %vm286 = vcmp.lt.s32.totalorder %v282, 15
        %287 = vst [vmem:[#allocation2] sm:$0xf] 0
        %288 = vst [vmem:[#allocation2 + $0x4] sm:$0xf] 0
        %289 = vst [vmem:[#allocation2 + $0x8] sm:$0xf] 0
        %290 = vst [vmem:[#allocation2 + $0xc] sm:$0xf] 0
        %291 = vst [vmem:[#allocation2 + $0x10] sm:$0xf] 0
        %292 = vst [vmem:[#allocation2 + $0x14] sm:$0xf] 0
        %s293 = scalar_lea.vmem [#allocation2], 408
        %294 = vst [vmem:[%s293] sm:$0xf] 0
        %295 = vst [vmem:[%s293 + $0x4] sm:$0xf] 0
        %296 = vst [vmem:[%s293 + $0x8] sm:$0xf] 0
        %297 = vst [vmem:[%s293 + $0xc] sm:$0xf] 0
        %298 = vst [vmem:[%s293 + $0x10] sm:$0xf] 0
        %299 = vst [vmem:[%s293 + $0x14] sm:$0xf] 0
        %300 = vst [vmem:[#allocation3] sm:$0xf] 0
        %301 = vst [vmem:[#allocation3 + $0x4] sm:$0xf] 0
        %302 = vst [vmem:[#allocation3 + $0x8] sm:$0xf] 0
        %303 = vst [vmem:[#allocation3 + $0xc] sm:$0xf] 0
        %304 = vst [vmem:[#allocation3 + $0x10] sm:$0xf] 0
        %305 = vst [vmem:[#allocation3 + $0x14] sm:$0xf] 0
        %s306 = scalar_lea.vmem [#allocation3], 408
        %307 = vst [vmem:[%s306] sm:$0xf] 0
        %308 = vst [vmem:[%s306 + $0x4] sm:$0xf] 0
        %309 = vst [vmem:[%s306 + $0x8] sm:$0xf] 0
        %310 = vst [vmem:[%s306 + $0xc] sm:$0xf] 0
        %311 = vst [vmem:[%s306 + $0x10] sm:$0xf] 0
        %312 = vst [vmem:[%s306 + $0x14] sm:$0xf] 0
        %v313 = vld [vmem:[%s276] sm:$0xff]
        %v314 = vld [vmem:[%s276 + $0x8] sm:$0xff]
        %v315 = vld [vmem:[%s276 + $0x10] sm:$0xff]
        %v316 = vld [vmem:[%s276 + $0x18] sm:$0xff]
        %v317 = vld [vmem:[%s276 + $0x20] sm:$0xff]
        %v318 = vld [vmem:[%s276 + $0x28] sm:$0xff]
        %v319 = vld [vmem:[%s276 + $0x30] sm:$0xff]
        %v320 = vld [vmem:[%s276 + $0x38] sm:$0xff]
        %v321 = vld [vmem:[%s276 + $0x40] sm:$0xff]
        %v322 = vld [vmem:[%s276 + $0x48] sm:$0xff]
        %v323 = vld [vmem:[%s276 + $0x50] sm:$0xff]
        %v324 = vld [vmem:[%s276 + $0x58] sm:$0xff]
        %v325 = vld [vmem:[%s276 + $0x60] sm:$0xff]
        %v326 = vld [vmem:[%s276 + $0x68] sm:$0xff]
        %v327 = vld [vmem:[%s276 + $0x70] sm:$0xff]
        %v328 = vld [vmem:[%s276 + $0x78] sm:$0xff]
        %v329 = vld [vmem:[%s276 + $0x80] sm:$0xff]
        %v330 = vld [vmem:[%s276 + $0x88] sm:$0xff]
        %v331 = vld [vmem:[%s276 + $0x90] sm:$0xff]
        %v332 = vld [vmem:[%s276 + $0x98] sm:$0xff]
        %v333 = vld [vmem:[%s276 + $0xa0] sm:$0xff]
        %v334 = vld [vmem:[%s276 + $0xa8] sm:$0xff]
        %v335 = vld [vmem:[%s276 + $0xb0] sm:$0xff]
        %v336 = vld [vmem:[%s276 + $0xb8] sm:$0xff]
        %v337 = vld [vmem:[%s276 + $0xc0] sm:$0xff]
        %v338 = vld [vmem:[%s276 + $0xc8] sm:$0xff]
        %v339 = vld [vmem:[%s276 + $0xd0] sm:$0xff]
        %v340 = vld [vmem:[%s276 + $0xd8] sm:$0xff]
        %v341 = vld [vmem:[%s276 + $0xe0] sm:$0xff]
        %v342 = vld [vmem:[%s276 + $0xe8] sm:$0xff]
        %v343 = vld [vmem:[%s276 + $0xf0] sm:$0xff]
        %v344 = vld [vmem:[%s276 + $0xf8] sm:$0xff]
        %v345 = vpack.c.bf16 %v314, %v313
        %v346 = vpack.c.bf16 %v316, %v315
        %v347 = vpack.c.bf16 %v318, %v317
        %v348 = vpack.c.bf16 %v320, %v319
        %v349 = vpack.c.bf16 %v322, %v321
        %v350 = vpack.c.bf16 %v324, %v323
        %v351 = vpack.c.bf16 %v326, %v325
        %v352 = vpack.c.bf16 %v328, %v327
        %v353 = vpack.c.bf16 %v330, %v329
        %v354 = vpack.c.bf16 %v332, %v331
        %v355 = vpack.c.bf16 %v334, %v333
        %v356 = vpack.c.bf16 %v336, %v335
        %v357 = vpack.c.bf16 %v338, %v337
        %v358 = vpack.c.bf16 %v340, %v339
        %v359 = vpack.c.bf16 %v342, %v341
        %v360 = vpack.c.bf16 %v344, %v343
        %v377 = vunpack.c.l.b16 %v345
        %v378 = vunpack.c.h.b16 %v345
        %v379 = vunpack.c.l.b16 %v346
        %v380 = vunpack.c.h.b16 %v346
        %v381 = vunpack.c.l.b16 %v347
        %v382 = vunpack.c.h.b16 %v347
        %v383 = vunpack.c.l.b16 %v348
        %v384 = vunpack.c.h.b16 %v348
        %v385 = vunpack.c.l.b16 %v349
        %v386 = vunpack.c.h.b16 %v349
        %v387 = vunpack.c.l.b16 %v350
        %v388 = vunpack.c.h.b16 %v350
        %v389 = vunpack.c.l.b16 %v351
        %v390 = vunpack.c.h.b16 %v351
        %v391 = vunpack.c.l.b16 %v352
        %v392 = vunpack.c.h.b16 %v352
        %v393 = vunpack.c.l.b16 %v353
        %v394 = vunpack.c.h.b16 %v353
        %v395 = vunpack.c.l.b16 %v354
        %v396 = vunpack.c.h.b16 %v354
        %v397 = vunpack.c.l.b16 %v355
        %v398 = vunpack.c.h.b16 %v355
        %v399 = vunpack.c.l.b16 %v356
        %v400 = vunpack.c.h.b16 %v356
        %v401 = vunpack.c.l.b16 %v357
        %v402 = vunpack.c.h.b16 %v357
        %v403 = vunpack.c.l.b16 %v358
        %v404 = vunpack.c.h.b16 %v358
        %v405 = vunpack.c.l.b16 %v359
        %v406 = vunpack.c.h.b16 %v359
        %v407 = vunpack.c.l.b16 %v360
        %v408 = vunpack.c.h.b16 %v360
        %v409 = vpack.c.b16 %v377, %v377
        %v410 = vpack.c.b16 %v378, %v378
        %v411 = vpack.c.b16 %v379, %v379
        %v412 = vpack.c.b16 %v380, %v380
        %v413 = vpack.c.b16 %v381, %v381
        %v414 = vpack.c.b16 %v382, %v382
        %v415 = vpack.c.b16 %v383, %v383
        %v416 = vpack.c.b16 %v384, %v384
        %v417 = vpack.c.b16 %v385, %v385
        %v418 = vpack.c.b16 %v386, %v386
        %v419 = vpack.c.b16 %v387, %v387
        %v420 = vpack.c.b16 %v388, %v388
        %v421 = vpack.c.b16 %v389, %v389
        %v422 = vpack.c.b16 %v390, %v390
        %v423 = vpack.c.b16 %v391, %v391
        %v424 = vpack.c.b16 %v392, %v392
        %v425 = vpack.c.b16 %v393, %v393
        %v426 = vpack.c.b16 %v394, %v394
        %v427 = vpack.c.b16 %v395, %v395
        %v428 = vpack.c.b16 %v396, %v396
        %v429 = vpack.c.b16 %v397, %v397
        %v430 = vpack.c.b16 %v398, %v398
        %v431 = vpack.c.b16 %v399, %v399
        %v432 = vpack.c.b16 %v400, %v400
        %v433 = vpack.c.b16 %v401, %v401
        %v434 = vpack.c.b16 %v402, %v402
        %v435 = vpack.c.b16 %v403, %v403
        %v436 = vpack.c.b16 %v404, %v404
        %v437 = vpack.c.b16 %v405, %v405
        %v438 = vpack.c.b16 %v406, %v406
        %v439 = vpack.c.b16 %v407, %v407
        %v440 = vpack.c.b16 %v408, %v408
        %s473 = scalar_lea.vmem [#allocation2], 24
        %474 = vst [vmem:[%s473 + $0x8] sm:$0xf] %v409
        %475 = vst [vmem:[%s473 + $0xc] sm:$0xf] %v410
        %476 = vst [vmem:[%s473 + $0x20] sm:$0xf] %v411
        %477 = vst [vmem:[%s473 + $0x24] sm:$0xf] %v412
        %478 = vst [vmem:[%s473 + $0x38] sm:$0xf] %v413
        %479 = vst [vmem:[%s473 + $0x3c] sm:$0xf] %v414
        %480 = vst [vmem:[%s473 + $0x50] sm:$0xf] %v415
        %481 = vst [vmem:[%s473 + $0x54] sm:$0xf] %v416
        %482 = vst [vmem:[%s473 + $0x68] sm:$0xf] %v417
        %483 = vst [vmem:[%s473 + $0x6c] sm:$0xf] %v418
        %484 = vst [vmem:[%s473 + $0x80] sm:$0xf] %v419
        %485 = vst [vmem:[%s473 + $0x84] sm:$0xf] %v420
        %486 = vst [vmem:[%s473 + $0x98] sm:$0xf] %v421
        %487 = vst [vmem:[%s473 + $0x9c] sm:$0xf] %v422
        %488 = vst [vmem:[%s473 + $0xb0] sm:$0xf] %v423
        %489 = vst [vmem:[%s473 + $0xb4] sm:$0xf] %v424
        %490 = vst [vmem:[%s473 + $0xc8] sm:$0xf] %v425
        %491 = vst [vmem:[%s473 + $0xcc] sm:$0xf] %v426
        %492 = vst [vmem:[%s473 + $0xe0] sm:$0xf] %v427
        %493 = vst [vmem:[%s473 + $0xe4] sm:$0xf] %v428
        %494 = vst [vmem:[%s473 + $0xf8] sm:$0xf] %v429
        %495 = vst [vmem:[%s473 + $0xfc] sm:$0xf] %v430
        %496 = vst [vmem:[%s473 + $0x110] sm:$0xf] %v431
        %497 = vst [vmem:[%s473 + $0x114] sm:$0xf] %v432
        %498 = vst [vmem:[%s473 + $0x128] sm:$0xf] %v433
        %499 = vst [vmem:[%s473 + $0x12c] sm:$0xf] %v434
        %500 = vst [vmem:[%s473 + $0x140] sm:$0xf] %v435
        %501 = vst [vmem:[%s473 + $0x144] sm:$0xf] %v436
        %502 = vst [vmem:[%s473 + $0x158] sm:$0xf] %v437
        %503 = vst [vmem:[%s473 + $0x15c] sm:$0xf] %v438
        %504 = vst [vmem:[%s473 + $0x170] sm:$0xf] %v439
        %505 = vst [vmem:[%s473 + $0x174] sm:$0xf] %v440
        %v506 = vld [vmem:[#allocation2 + $0x4] sm:$0x8]
        %v507 = vld [vmem:[#allocation2 + $0x8] sm:$0xf]
        %v508 = vld [vmem:[#allocation2 + $0xc] sm:$0xf]
        %v509 = vld [vmem:[#allocation2 + $0x1c] sm:$0x8]
        %v510 = vld [vmem:[#allocation2 + $0x20] sm:$0xf]
        %v511 = vld [vmem:[#allocation2 + $0x24] sm:$0xf]
        %v512 = vld [vmem:[#allocation2 + $0x34] sm:$0x8]
        %v513 = vld [vmem:[#allocation2 + $0x38] sm:$0xf]
        %v514 = vld [vmem:[#allocation2 + $0x3c] sm:$0xf]
        %v515 = vld [vmem:[#allocation2 + $0x4c] sm:$0x8]
        %v516 = vld [vmem:[#allocation2 + $0x50] sm:$0xf]
        %v517 = vld [vmem:[#allocation2 + $0x54] sm:$0xf]
        %v518 = vld [vmem:[#allocation2 + $0x64] sm:$0x8]
        %v519 = vld [vmem:[#allocation2 + $0x68] sm:$0xf]
        %v520 = vld [vmem:[#allocation2 + $0x6c] sm:$0xf]
        %v521 = vld [vmem:[#allocation2 + $0x7c] sm:$0x8]
        %v522 = vld [vmem:[#allocation2 + $0x80] sm:$0xf]
        %v523 = vld [vmem:[#allocation2 + $0x84] sm:$0xf]
        %v524 = vld [vmem:[#allocation2 + $0x94] sm:$0x8]
        %v525 = vld [vmem:[#allocation2 + $0x98] sm:$0xf]
        %v526 = vld [vmem:[#allocation2 + $0x9c] sm:$0xf]
        %v527 = vld [vmem:[#allocation2 + $0xac] sm:$0x8]
        %v528 = vld [vmem:[#allocation2 + $0xb0] sm:$0xf]
        %v529 = vld [vmem:[#allocation2 + $0xb4] sm:$0xf]
        %v530 = vld [vmem:[#allocation2 + $0xc4] sm:$0x8]
        %v531 = vld [vmem:[#allocation2 + $0xc8] sm:$0xf]
        %v532 = vld [vmem:[#allocation2 + $0xcc] sm:$0xf]
        %v533 = vld [vmem:[#allocation2 + $0xdc] sm:$0x8]
        %v534 = vld [vmem:[#allocation2 + $0xe0] sm:$0xf]
        %v535 = vld [vmem:[#allocation2 + $0xe4] sm:$0xf]
        %v536 = vld [vmem:[#allocation2 + $0xf4] sm:$0x8]
        %v537 = vld [vmem:[#allocation2 + $0xf8] sm:$0xf]
        %v538 = vld [vmem:[#allocation2 + $0xfc] sm:$0xf]
        %v539 = vld [vmem:[#allocation2 + $0x10c] sm:$0x8]
        %v540 = vld [vmem:[#allocation2 + $0x110] sm:$0xf]
        %v541 = vld [vmem:[#allocation2 + $0x114] sm:$0xf]
        %v542 = vld [vmem:[#allocation2 + $0x124] sm:$0x8]
        %v543 = vld [vmem:[#allocation2 + $0x128] sm:$0xf]
        %v544 = vld [vmem:[#allocation2 + $0x12c] sm:$0xf]
        %v545 = vld [vmem:[#allocation2 + $0x13c] sm:$0x8]
        %v546 = vld [vmem:[#allocation2 + $0x140] sm:$0xf]
        %v547 = vld [vmem:[#allocation2 + $0x144] sm:$0xf]
        %v548 = vld [vmem:[#allocation2 + $0x154] sm:$0x8]
        %v549 = vld [vmem:[#allocation2 + $0x158] sm:$0xf]
        %v550 = vld [vmem:[#allocation2 + $0x15c] sm:$0xf]
        %v551 = vld [vmem:[#allocation2 + $0x16c] sm:$0x8]
        %v552 = vld [vmem:[#allocation2 + $0x170] sm:$0xf]
        %v553 = vld [vmem:[#allocation2 + $0x174] sm:$0xf]
        %v554 = vsel %vm283, 1, 0
        %v555 = vsel %vm284, 1, 0
        %vm556 = vcmp.eq.s32.totalorder %v554, 1
        %vm557 = vcmp.eq.s32.totalorder %v555, 1
        %vm558 = vmpackc.low %vm556, %vm556
        %vm559 = vmpackc.low %vm557, %vm557
        %v560 = vsel %vm558, 65537, 0
        %v561 = vsel %vm559, 65537, 0
        %vm562 = vsmask.f32 3328
        %vm563 = vsmask.f32 7440
        %vm564 = vmor %vm562, %vm563
        %v566 = vshll.u32 %v560, 16
        %v568 = vrot.slane %v566, 5
        %v569 = vshrl.u32 %v560, 16
        %v571 = vrot.slane %v569, 4
        %v572 = vor.u32 %v571, %v568
        %v573 = vrot.slane %v572, 4
        %v575 = vshll.u32 %v561, 16
        %v577 = vrot.slane %v575, 5
        %v578 = vsel %vm564, %v573, %v577
        %v579 = vshrl.u32 %v561, 16
        %v581 = vrot.slane %v579, 4
        %v582 = vor.u32 %v581, %v577
        %v583 = vrot.slane %v582, 4
        %vm584 = vcmp.ne.s16.totalorder %v568, 0
        %vm585 = vcmp.ne.s16.totalorder %v578, 0
        %vm586 = vcmp.ne.s16.totalorder %v583, 0
        %v587 = vsel %vm584, %v506, 0
        %v588 = vsel %vm585, %v507, 0
        %v589 = vsel %vm586, %v508, 0
        %v590 = vsel %vm584, %v509, 0
        %v591 = vsel %vm585, %v510, 0
        %v592 = vsel %vm586, %v511, 0
        %v593 = vsel %vm584, %v512, 0
        %v594 = vsel %vm585, %v513, 0
        %v595 = vsel %vm586, %v514, 0
        %v596 = vsel %vm584, %v515, 0
        %v597 = vsel %vm585, %v516, 0
        %v598 = vsel %vm586, %v517, 0
        %v599 = vsel %vm584, %v518, 0
        %v600 = vsel %vm585, %v519, 0
        %v601 = vsel %vm586, %v520, 0
        %v602 = vsel %vm584, %v521, 0
        %v603 = vsel %vm585, %v522, 0
        %v604 = vsel %vm586, %v523, 0
        %v605 = vsel %vm584, %v524, 0
        %v606 = vsel %vm585, %v525, 0
        %v607 = vsel %vm586, %v526, 0
        %v608 = vsel %vm584, %v527, 0
        %v609 = vsel %vm585, %v528, 0
        %v610 = vsel %vm586, %v529, 0
        %v611 = vsel %vm584, %v530, 0
        %v612 = vsel %vm585, %v531, 0
        %v613 = vsel %vm586, %v532, 0
        %v614 = vsel %vm584, %v533, 0
        %v615 = vsel %vm585, %v534, 0
        %v616 = vsel %vm586, %v535, 0
        %v617 = vsel %vm584, %v536, 0
        %v618 = vsel %vm585, %v537, 0
        %v619 = vsel %vm586, %v538, 0
        %v620 = vsel %vm584, %v539, 0
        %v621 = vsel %vm585, %v540, 0
        %v622 = vsel %vm586, %v541, 0
        %v623 = vsel %vm584, %v542, 0
        %v624 = vsel %vm585, %v543, 0
        %v625 = vsel %vm586, %v544, 0
        %v626 = vsel %vm584, %v545, 0
        %v627 = vsel %vm585, %v546, 0
        %v628 = vsel %vm586, %v547, 0
        %v629 = vsel %vm584, %v548, 0
        %v630 = vsel %vm585, %v549, 0
        %v631 = vsel %vm586, %v550, 0
        %v632 = vsel %vm584, %v551, 0
        %v633 = vsel %vm585, %v552, 0
        %v634 = vsel %vm586, %v553, 0
        %vm635 = vsmask.f32 256
        %vm636 = vsmask.f32 4368
        %vm637 = vmor %vm635, %vm636
        %v639 = vshrl.u32 %v587, 16
        %v641 = vrot.slane %v639, 7
        %v642 = vrot.slane %v641, 4
        %v644 = vshrl.u32 %v588, 16
        %v646 = vrot.slane %v644, 7
        %v647 = vshll.u32 %v588, 16
        %v649 = vor.u32 %v646, %v647
        %v650 = vsel %vm637, %v642, %v649
        %v651 = vrot.slane %v646, 4
        %v653 = vshrl.u32 %v589, 16
        %v655 = vrot.slane %v653, 7
        %v656 = vshll.u32 %v589, 16
        %v658 = vor.u32 %v655, %v656
        %v659 = vsel %vm637, %v651, %v658
        %v661 = vshrl.u32 %v590, 16
        %v663 = vrot.slane %v661, 7
        %v664 = vrot.slane %v663, 4
        %v666 = vshrl.u32 %v591, 16
        %v668 = vrot.slane %v666, 7
        %v669 = vshll.u32 %v591, 16
        %v671 = vor.u32 %v668, %v669
        %v672 = vsel %vm637, %v664, %v671
        %v673 = vrot.slane %v668, 4
        %v675 = vshrl.u32 %v592, 16
        %v677 = vrot.slane %v675, 7
        %v678 = vshll.u32 %v592, 16
        %v680 = vor.u32 %v677, %v678
        %v681 = vsel %vm637, %v673, %v680
        %v683 = vshrl.u32 %v593, 16
        %v685 = vrot.slane %v683, 7
        %v686 = vrot.slane %v685, 4
        %v688 = vshrl.u32 %v594, 16
        %v690 = vrot.slane %v688, 7
        %v691 = vshll.u32 %v594, 16
        %v693 = vor.u32 %v690, %v691
        %v694 = vsel %vm637, %v686, %v693
        %v695 = vrot.slane %v690, 4
        %v697 = vshrl.u32 %v595, 16
        %v699 = vrot.slane %v697, 7
        %v700 = vshll.u32 %v595, 16
        %v702 = vor.u32 %v699, %v700
        %v703 = vsel %vm637, %v695, %v702
        %v705 = vshrl.u32 %v596, 16
        %v707 = vrot.slane %v705, 7
        %v708 = vrot.slane %v707, 4
        %v710 = vshrl.u32 %v597, 16
        %v712 = vrot.slane %v710, 7
        %v713 = vshll.u32 %v597, 16
        %v715 = vor.u32 %v712, %v713
        %v716 = vsel %vm637, %v708, %v715
        %v717 = vrot.slane %v712, 4
        %v719 = vshrl.u32 %v598, 16
        %v721 = vrot.slane %v719, 7
        %v722 = vshll.u32 %v598, 16
        %v724 = vor.u32 %v721, %v722
        %v725 = vsel %vm637, %v717, %v724
        %v727 = vshrl.u32 %v599, 16
        %v729 = vrot.slane %v727, 7
        %v730 = vrot.slane %v729, 4
        %v732 = vshrl.u32 %v600, 16
        %v734 = vrot.slane %v732, 7
        %v735 = vshll.u32 %v600, 16
        %v737 = vor.u32 %v734, %v735
        %v738 = vsel %vm637, %v730, %v737
        %v739 = vrot.slane %v734, 4
        %v741 = vshrl.u32 %v601, 16
        %v743 = vrot.slane %v741, 7
        %v744 = vshll.u32 %v601, 16
        %v746 = vor.u32 %v743, %v744
        %v747 = vsel %vm637, %v739, %v746
        %v749 = vshrl.u32 %v602, 16
        %v751 = vrot.slane %v749, 7
        %v752 = vrot.slane %v751, 4
        %v754 = vshrl.u32 %v603, 16
        %v756 = vrot.slane %v754, 7
        %v757 = vshll.u32 %v603, 16
        %v759 = vor.u32 %v756, %v757
        %v760 = vsel %vm637, %v752, %v759
        %v761 = vrot.slane %v756, 4
        %v763 = vshrl.u32 %v604, 16
        %v765 = vrot.slane %v763, 7
        %v766 = vshll.u32 %v604, 16
        %v768 = vor.u32 %v765, %v766
        %v769 = vsel %vm637, %v761, %v768
        %v771 = vshrl.u32 %v605, 16
        %v773 = vrot.slane %v771, 7
        %v774 = vrot.slane %v773, 4
        %v776 = vshrl.u32 %v606, 16
        %v778 = vrot.slane %v776, 7
        %v779 = vshll.u32 %v606, 16
        %v781 = vor.u32 %v778, %v779
        %v782 = vsel %vm637, %v774, %v781
        %v783 = vrot.slane %v778, 4
        %v785 = vshrl.u32 %v607, 16
        %v787 = vrot.slane %v785, 7
        %v788 = vshll.u32 %v607, 16
        %v790 = vor.u32 %v787, %v788
        %v791 = vsel %vm637, %v783, %v790
        %v793 = vshrl.u32 %v608, 16
        %v795 = vrot.slane %v793, 7
        %v796 = vrot.slane %v795, 4
        %v798 = vshrl.u32 %v609, 16
        %v800 = vrot.slane %v798, 7
        %v801 = vshll.u32 %v609, 16
        %v803 = vor.u32 %v800, %v801
        %v804 = vsel %vm637, %v796, %v803
        %v805 = vrot.slane %v800, 4
        %v807 = vshrl.u32 %v610, 16
        %v809 = vrot.slane %v807, 7
        %v810 = vshll.u32 %v610, 16
        %v812 = vor.u32 %v809, %v810
        %v813 = vsel %vm637, %v805, %v812
        %v815 = vshrl.u32 %v611, 16
        %v817 = vrot.slane %v815, 7
        %v818 = vrot.slane %v817, 4
        %v820 = vshrl.u32 %v612, 16
        %v822 = vrot.slane %v820, 7
        %v823 = vshll.u32 %v612, 16
        %v825 = vor.u32 %v822, %v823
        %v826 = vsel %vm637, %v818, %v825
        %v827 = vrot.slane %v822, 4
        %v829 = vshrl.u32 %v613, 16
        %v831 = vrot.slane %v829, 7
        %v832 = vshll.u32 %v613, 16
        %v834 = vor.u32 %v831, %v832
        %v835 = vsel %vm637, %v827, %v834
        %v837 = vshrl.u32 %v614, 16
        %v839 = vrot.slane %v837, 7
        %v840 = vrot.slane %v839, 4
        %v842 = vshrl.u32 %v615, 16
        %v844 = vrot.slane %v842, 7
        %v845 = vshll.u32 %v615, 16
        %v847 = vor.u32 %v844, %v845
        %v848 = vsel %vm637, %v840, %v847
        %v849 = vrot.slane %v844, 4
        %v851 = vshrl.u32 %v616, 16
        %v853 = vrot.slane %v851, 7
        %v854 = vshll.u32 %v616, 16
        %v856 = vor.u32 %v853, %v854
        %v857 = vsel %vm637, %v849, %v856
        %v859 = vshrl.u32 %v617, 16
        %v861 = vrot.slane %v859, 7
        %v862 = vrot.slane %v861, 4
        %v864 = vshrl.u32 %v618, 16
        %v866 = vrot.slane %v864, 7
        %v867 = vshll.u32 %v618, 16
        %v869 = vor.u32 %v866, %v867
        %v870 = vsel %vm637, %v862, %v869
        %v871 = vrot.slane %v866, 4
        %v873 = vshrl.u32 %v619, 16
        %v875 = vrot.slane %v873, 7
        %v876 = vshll.u32 %v619, 16
        %v878 = vor.u32 %v875, %v876
        %v879 = vsel %vm637, %v871, %v878
        %v881 = vshrl.u32 %v620, 16
        %v883 = vrot.slane %v881, 7
        %v884 = vrot.slane %v883, 4
        %v886 = vshrl.u32 %v621, 16
        %v888 = vrot.slane %v886, 7
        %v889 = vshll.u32 %v621, 16
        %v891 = vor.u32 %v888, %v889
        %v892 = vsel %vm637, %v884, %v891
        %v893 = vrot.slane %v888, 4
        %v895 = vshrl.u32 %v622, 16
        %v897 = vrot.slane %v895, 7
        %v898 = vshll.u32 %v622, 16
        %v900 = vor.u32 %v897, %v898
        %v901 = vsel %vm637, %v893, %v900
        %v903 = vshrl.u32 %v623, 16
        %v905 = vrot.slane %v903, 7
        %v906 = vrot.slane %v905, 4
        %v908 = vshrl.u32 %v624, 16
        %v910 = vrot.slane %v908, 7
        %v911 = vshll.u32 %v624, 16
        %v913 = vor.u32 %v910, %v911
        %v914 = vsel %vm637, %v906, %v913
        %v915 = vrot.slane %v910, 4
        %v917 = vshrl.u32 %v625, 16
        %v919 = vrot.slane %v917, 7
        %v920 = vshll.u32 %v625, 16
        %v922 = vor.u32 %v919, %v920
        %v923 = vsel %vm637, %v915, %v922
        %v925 = vshrl.u32 %v626, 16
        %v927 = vrot.slane %v925, 7
        %v928 = vrot.slane %v927, 4
        %v930 = vshrl.u32 %v627, 16
        %v932 = vrot.slane %v930, 7
        %v933 = vshll.u32 %v627, 16
        %v935 = vor.u32 %v932, %v933
        %v936 = vsel %vm637, %v928, %v935
        %v937 = vrot.slane %v932, 4
        %v939 = vshrl.u32 %v628, 16
        %v941 = vrot.slane %v939, 7
        %v942 = vshll.u32 %v628, 16
        %v944 = vor.u32 %v941, %v942
        %v945 = vsel %vm637, %v937, %v944
        %v947 = vshrl.u32 %v629, 16
        %v949 = vrot.slane %v947, 7
        %v950 = vrot.slane %v949, 4
        %v952 = vshrl.u32 %v630, 16
        %v954 = vrot.slane %v952, 7
        %v955 = vshll.u32 %v630, 16
        %v957 = vor.u32 %v954, %v955
        %v958 = vsel %vm637, %v950, %v957
        %v959 = vrot.slane %v954, 4
        %v961 = vshrl.u32 %v631, 16
        %v963 = vrot.slane %v961, 7
        %v964 = vshll.u32 %v631, 16
        %v966 = vor.u32 %v963, %v964
        %v967 = vsel %vm637, %v959, %v966
        %v969 = vshrl.u32 %v632, 16
        %v971 = vrot.slane %v969, 7
        %v972 = vrot.slane %v971, 4
        %v974 = vshrl.u32 %v633, 16
        %v976 = vrot.slane %v974, 7
        %v977 = vshll.u32 %v633, 16
        %v979 = vor.u32 %v976, %v977
        %v980 = vsel %vm637, %v972, %v979
        %v981 = vrot.slane %v976, 4
        %v983 = vshrl.u32 %v634, 16
        %v985 = vrot.slane %v983, 7
        %v986 = vshll.u32 %v634, 16
        %v988 = vor.u32 %v985, %v986
        %v989 = vsel %vm637, %v981, %v988
        %v990 = vld [vmem:[%s1] sm:$0xf]
        %v991 = vld [vmem:[%s1 + $0x4] sm:$0xf]
        %v992 = vld [vmem:[%s1 + $0x8] sm:$0xf]
        %v993 = vld [vmem:[%s1 + $0xc] sm:$0xf]
        %v994 = vld [vmem:[%s1 + $0x10] sm:$0xf]
        %v995 = vld [vmem:[%s1 + $0x14] sm:$0xf]
        %v996 = vld [vmem:[%s1 + $0x18] sm:$0xf]
        %v997 = vld [vmem:[%s1 + $0x1c] sm:$0xf]
        %v998 = vld [vmem:[%s1 + $0x20] sm:$0xf]
        %v999 = vld [vmem:[%s1 + $0x24] sm:$0xf]
        %v1000 = vld [vmem:[%s1 + $0x28] sm:$0xf]
        %v1001 = vld [vmem:[%s1 + $0x2c] sm:$0xf]
        %v1002 = vld [vmem:[%s1 + $0x30] sm:$0xf]
        %v1003 = vld [vmem:[%s1 + $0x34] sm:$0xf]
        %v1004 = vld [vmem:[%s1 + $0x38] sm:$0xf]
        %v1005 = vld [vmem:[%s1 + $0x3c] sm:$0xf]
        %s1006 = scalar_lea.vmem %s1, 64
        %v1007 = vld [vmem:[%s1006] sm:$0xf]
        %v1008 = vld [vmem:[%s1006 + $0x4] sm:$0xf]
        %v1009 = vld [vmem:[%s1006 + $0x8] sm:$0xf]
        %v1010 = vld [vmem:[%s1006 + $0xc] sm:$0xf]
        %v1011 = vld [vmem:[%s1006 + $0x10] sm:$0xf]
        %v1012 = vld [vmem:[%s1006 + $0x14] sm:$0xf]
        %v1013 = vld [vmem:[%s1006 + $0x18] sm:$0xf]
        %v1014 = vld [vmem:[%s1006 + $0x1c] sm:$0xf]
        %v1015 = vld [vmem:[%s1006 + $0x20] sm:$0xf]
        %v1016 = vld [vmem:[%s1006 + $0x24] sm:$0xf]
        %v1017 = vld [vmem:[%s1006 + $0x28] sm:$0xf]
        %v1018 = vld [vmem:[%s1006 + $0x2c] sm:$0xf]
        %v1019 = vld [vmem:[%s1006 + $0x30] sm:$0xf]
        %v1020 = vld [vmem:[%s1006 + $0x34] sm:$0xf]
        %v1021 = vld [vmem:[%s1006 + $0x38] sm:$0xf]
        %v1022 = vld [vmem:[%s1006 + $0x3c] sm:$0xf]
        %v1055 = vunpack.c.l.b16 %v507
        %v1056 = vunpack.c.l.b16 %v508
        %v1057 = vunpack.c.l.b16 %v510
        %v1058 = vunpack.c.l.b16 %v511
        %v1059 = vunpack.c.l.b16 %v513
        %v1060 = vunpack.c.l.b16 %v514
        %v1061 = vunpack.c.l.b16 %v516
        %v1062 = vunpack.c.l.b16 %v517
        %v1063 = vunpack.c.l.b16 %v519
        %v1064 = vunpack.c.l.b16 %v520
        %v1065 = vunpack.c.l.b16 %v522
        %v1066 = vunpack.c.l.b16 %v523
        %v1067 = vunpack.c.l.b16 %v525
        %v1068 = vunpack.c.l.b16 %v526
        %v1069 = vunpack.c.l.b16 %v528
        %v1070 = vunpack.c.l.b16 %v529
        %v1071 = vunpack.c.l.b16 %v531
        %v1072 = vunpack.c.l.b16 %v532
        %v1073 = vunpack.c.l.b16 %v534
        %v1074 = vunpack.c.l.b16 %v535
        %v1075 = vunpack.c.l.b16 %v537
        %v1076 = vunpack.c.l.b16 %v538
        %v1077 = vunpack.c.l.b16 %v540
        %v1078 = vunpack.c.l.b16 %v541
        %v1079 = vunpack.c.l.b16 %v543
        %v1080 = vunpack.c.l.b16 %v544
        %v1081 = vunpack.c.l.b16 %v546
        %v1082 = vunpack.c.l.b16 %v547
        %v1083 = vunpack.c.l.b16 %v549
        %v1084 = vunpack.c.l.b16 %v550
        %v1085 = vunpack.c.l.b16 %v552
        %v1086 = vunpack.c.l.b16 %v553
        %v1087 = vpack.c.b16 %v1056, %v1055
        %v1088 = vpack.c.b16 %v1058, %v1057
        %v1089 = vpack.c.b16 %v1060, %v1059
        %v1090 = vpack.c.b16 %v1062, %v1061
        %v1091 = vpack.c.b16 %v1064, %v1063
        %v1092 = vpack.c.b16 %v1066, %v1065
        %v1093 = vpack.c.b16 %v1068, %v1067
        %v1094 = vpack.c.b16 %v1070, %v1069
        %v1095 = vpack.c.b16 %v1072, %v1071
        %v1096 = vpack.c.b16 %v1074, %v1073
        %v1097 = vpack.c.b16 %v1076, %v1075
        %v1098 = vpack.c.b16 %v1078, %v1077
        %v1099 = vpack.c.b16 %v1080, %v1079
        %v1100 = vpack.c.b16 %v1082, %v1081
        %v1101 = vpack.c.b16 %v1084, %v1083
        %v1102 = vpack.c.b16 %v1086, %v1085
        %v1135 = vunpack.c.l.b16 %v1007
        %v1136 = vunpack.c.l.b16 %v1008
        %v1137 = vunpack.c.l.b16 %v1009
        %v1138 = vunpack.c.l.b16 %v1010
        %v1139 = vunpack.c.l.b16 %v1011
        %v1140 = vunpack.c.l.b16 %v1012
        %v1141 = vunpack.c.l.b16 %v1013
        %v1142 = vunpack.c.l.b16 %v1014
        %v1143 = vunpack.c.l.b16 %v1015
        %v1144 = vunpack.c.l.b16 %v1016
        %v1145 = vunpack.c.l.b16 %v1017
        %v1146 = vunpack.c.l.b16 %v1018
        %v1147 = vunpack.c.l.b16 %v1019
        %v1148 = vunpack.c.l.b16 %v1020
        %v1149 = vunpack.c.l.b16 %v1021
        %v1150 = vunpack.c.l.b16 %v1022
        %v1151 = vpack.c.b16 %v1136, %v1135
        %v1152 = vpack.c.b16 %v1138, %v1137
        %v1153 = vpack.c.b16 %v1140, %v1139
        %v1154 = vpack.c.b16 %v1142, %v1141
        %v1155 = vpack.c.b16 %v1144, %v1143
        %v1156 = vpack.c.b16 %v1146, %v1145
        %v1157 = vpack.c.b16 %v1148, %v1147
        %v1158 = vpack.c.b16 %v1150, %v1149
        %1167 = vmatprep.subr.bf16.mxu0 0
        %1168 = vmatpush1.bf16.msra.mxu0 %v1158
        %1169 = vmatprep.subr.bf16.mxu0 0
        %1170 = vmatpush1.bf16.msra.mxu0 %v1157
        %1171 = vmatprep.subr.bf16.mxu0 0
        %1172 = vmatpush1.bf16.msra.mxu0 %v1156
        %1173 = vmatprep.subr.bf16.mxu0 0
        %1174 = vmatpush1.bf16.msra.mxu0 %v1155
        %1175 = vmatprep.subr.bf16.mxu0 0
        %1176 = vmatpush1.bf16.msra.mxu0 %v1154
        %1177 = vmatprep.subr.bf16.mxu0 0
        %1178 = vmatpush1.bf16.msra.mxu0 %v1153
        %1179 = vmatprep.subr.bf16.mxu0 0
        %1180 = vmatpush1.bf16.msra.mxu0 %v1152
        %1181 = vmatprep.subr.bf16.mxu0 0
        %1182 = vmatpush1.bf16.msra.mxu0 %v1151
        %1183 = vmatprep.subr.bf16.mxu0 0
        %1184 = vmatpush2.bf16.msra.mxu0 0
        %1185 = vmatprep.subr.bf16.mxu0 0
        %1186 = vmatpush2.bf16.msra.mxu0 0
        %1187 = vmatprep.subr.bf16.mxu0 0
        %1188 = vmatpush2.bf16.msra.mxu0 0
        %1189 = vmatprep.subr.bf16.mxu0 0
        %1190 = vmatpush2.bf16.msra.mxu0 0
        %1191 = vmatprep.subr.bf16.mxu0 0
        %1192 = vmatpush2.bf16.msra.mxu0 0
        %1193 = vmatprep.subr.bf16.mxu0 0
        %1194 = vmatpush2.bf16.msra.mxu0 0
        %1195 = vmatprep.subr.bf16.mxu0 0
        %1196 = vmatpush2.bf16.msra.mxu0 0
        %1197 = vmatprep.subr.bf16.mxu0 0
        %1198 = vmatpush2.bf16.msra.mxu0 0
        %1199 = vmatprep.mubr.bf16.mxu0 0
        %1200 = vmatmul.mubr.bf16.gmra.mxu0 %v1087
        %v1201 = vpop.f32.mrf.mxu0
        %v1202 = vadd.f32 0.0, %v1201
        %v1203 = vpop.f32.mrf.mxu0
        %v1204 = vpop.f32.mrf.mxu0
        %v1205 = vadd.f32 0.0, %v1204
        %v1206 = vpop.f32.mrf.mxu0
        %1207 = vmatprep.mubr.bf16.mxu0 0
        %1208 = vmatmul.mubr.bf16.gmra.mxu0 %v1088
        %v1209 = vpop.f32.mrf.mxu0
        %v1210 = vadd.f32 0.0, %v1209
        %v1211 = vpop.f32.mrf.mxu0
        %v1212 = vpop.f32.mrf.mxu0
        %v1213 = vadd.f32 0.0, %v1212
        %v1214 = vpop.f32.mrf.mxu0
        %1215 = vmatprep.mubr.bf16.mxu0 0
        %1216 = vmatmul.mubr.bf16.gmra.mxu0 %v1089
        %v1217 = vpop.f32.mrf.mxu0
        %v1218 = vadd.f32 0.0, %v1217
        %v1219 = vpop.f32.mrf.mxu0
        %v1220 = vpop.f32.mrf.mxu0
        %v1221 = vadd.f32 0.0, %v1220
        %v1222 = vpop.f32.mrf.mxu0
        %1223 = vmatprep.mubr.bf16.mxu0 0
        %1224 = vmatmul.mubr.bf16.gmra.mxu0 %v1090
        %v1225 = vpop.f32.mrf.mxu0
        %v1226 = vadd.f32 0.0, %v1225
        %v1227 = vpop.f32.mrf.mxu0
        %v1228 = vpop.f32.mrf.mxu0
        %v1229 = vadd.f32 0.0, %v1228
        %v1230 = vpop.f32.mrf.mxu0
        %1231 = vmatprep.mubr.bf16.mxu0 0
        %1232 = vmatmul.mubr.bf16.gmra.mxu0 %v1091
        %v1233 = vpop.f32.mrf.mxu0
        %v1234 = vadd.f32 0.0, %v1233
        %v1235 = vpop.f32.mrf.mxu0
        %v1236 = vpop.f32.mrf.mxu0
        %v1237 = vadd.f32 0.0, %v1236
        %v1238 = vpop.f32.mrf.mxu0
        %1239 = vmatprep.mubr.bf16.mxu0 0
        %1240 = vmatmul.mubr.bf16.gmra.mxu0 %v1092
        %v1241 = vpop.f32.mrf.mxu0
        %v1242 = vadd.f32 0.0, %v1241
        %v1243 = vpop.f32.mrf.mxu0
        %v1244 = vpop.f32.mrf.mxu0
        %v1245 = vadd.f32 0.0, %v1244
        %v1246 = vpop.f32.mrf.mxu0
        %1247 = vmatprep.mubr.bf16.mxu0 0
        %1248 = vmatmul.mubr.bf16.gmra.mxu0 %v1093
        %v1249 = vpop.f32.mrf.mxu0
        %v1250 = vadd.f32 0.0, %v1249
        %v1251 = vpop.f32.mrf.mxu0
        %v1252 = vpop.f32.mrf.mxu0
        %v1253 = vadd.f32 0.0, %v1252
        %v1254 = vpop.f32.mrf.mxu0
        %1255 = vmatprep.mubr.bf16.mxu0 0
        %1256 = vmatmul.mubr.bf16.gmra.mxu0 %v1094
        %v1257 = vpop.f32.mrf.mxu0
        %v1258 = vadd.f32 0.0, %v1257
        %v1259 = vpop.f32.mrf.mxu0
        %v1260 = vpop.f32.mrf.mxu0
        %v1261 = vadd.f32 0.0, %v1260
        %v1262 = vpop.f32.mrf.mxu0
        %1263 = vmatprep.mubr.bf16.mxu0 0
        %1264 = vmatmul.mubr.bf16.gmra.mxu0 %v1095
        %v1265 = vpop.f32.mrf.mxu0
        %v1266 = vadd.f32 0.0, %v1265
        %v1267 = vpop.f32.mrf.mxu0
        %v1268 = vpop.f32.mrf.mxu0
        %v1269 = vadd.f32 0.0, %v1268
        %v1270 = vpop.f32.mrf.mxu0
        %1271 = vmatprep.mubr.bf16.mxu0 0
        %1272 = vmatmul.mubr.bf16.gmra.mxu0 %v1096
        %v1273 = vpop.f32.mrf.mxu0
        %v1274 = vadd.f32 0.0, %v1273
        %v1275 = vpop.f32.mrf.mxu0
        %v1276 = vpop.f32.mrf.mxu0
        %v1277 = vadd.f32 0.0, %v1276
        %v1278 = vpop.f32.mrf.mxu0
        %1279 = vmatprep.mubr.bf16.mxu0 0
        %1280 = vmatmul.mubr.bf16.gmra.mxu0 %v1097
        %v1281 = vpop.f32.mrf.mxu0
        %v1282 = vadd.f32 0.0, %v1281
        %v1283 = vpop.f32.mrf.mxu0
        %v1284 = vpop.f32.mrf.mxu0
        %v1285 = vadd.f32 0.0, %v1284
        %v1286 = vpop.f32.mrf.mxu0
        %1287 = vmatprep.mubr.bf16.mxu0 0
        %1288 = vmatmul.mubr.bf16.gmra.mxu0 %v1098
        %v1289 = vpop.f32.mrf.mxu0
        %v1290 = vadd.f32 0.0, %v1289
        %v1291 = vpop.f32.mrf.mxu0
        %v1292 = vpop.f32.mrf.mxu0
        %v1293 = vadd.f32 0.0, %v1292
        %v1294 = vpop.f32.mrf.mxu0
        %1295 = vmatprep.mubr.bf16.mxu0 0
        %1296 = vmatmul.mubr.bf16.gmra.mxu0 %v1099
        %v1297 = vpop.f32.mrf.mxu0
        %v1298 = vadd.f32 0.0, %v1297
        %v1299 = vpop.f32.mrf.mxu0
        %v1300 = vpop.f32.mrf.mxu0
        %v1301 = vadd.f32 0.0, %v1300
        %v1302 = vpop.f32.mrf.mxu0
        %1303 = vmatprep.mubr.bf16.mxu0 0
        %1304 = vmatmul.mubr.bf16.gmra.mxu0 %v1100
        %v1305 = vpop.f32.mrf.mxu0
        %v1306 = vadd.f32 0.0, %v1305
        %v1307 = vpop.f32.mrf.mxu0
        %v1308 = vpop.f32.mrf.mxu0
        %v1309 = vadd.f32 0.0, %v1308
        %v1310 = vpop.f32.mrf.mxu0
        %1311 = vmatprep.mubr.bf16.mxu0 0
        %1312 = vmatmul.mubr.bf16.gmra.mxu0 %v1101
        %v1313 = vpop.f32.mrf.mxu0
        %v1314 = vadd.f32 0.0, %v1313
        %v1315 = vpop.f32.mrf.mxu0
        %v1316 = vpop.f32.mrf.mxu0
        %v1317 = vadd.f32 0.0, %v1316
        %v1318 = vpop.f32.mrf.mxu0
        %1319 = vmatprep.mubr.bf16.mxu0 0
        %1320 = vmatmul.mubr.bf16.gmra.mxu0 %v1102
        %v1321 = vpop.f32.mrf.mxu0
        %v1322 = vadd.f32 0.0, %v1321
        %v1323 = vpop.f32.mrf.mxu0
        %v1324 = vpop.f32.mrf.mxu0
        %v1325 = vadd.f32 0.0, %v1324
        %v1326 = vpop.f32.mrf.mxu0
        %1327 = vdwg.mxu0
        %v1328 = vunpack.c.l.b16 %v650
        %v1329 = vunpack.c.l.b16 %v659
        %v1330 = vunpack.c.l.b16 %v672
        %v1331 = vunpack.c.l.b16 %v681
        %v1332 = vunpack.c.l.b16 %v694
        %v1333 = vunpack.c.l.b16 %v703
        %v1334 = vunpack.c.l.b16 %v716
        %v1335 = vunpack.c.l.b16 %v725
        %v1336 = vunpack.c.l.b16 %v738
        %v1337 = vunpack.c.l.b16 %v747
        %v1338 = vunpack.c.l.b16 %v760
        %v1339 = vunpack.c.l.b16 %v769
        %v1340 = vunpack.c.l.b16 %v782
        %v1341 = vunpack.c.l.b16 %v791
        %v1342 = vunpack.c.l.b16 %v804
        %v1343 = vunpack.c.l.b16 %v813
        %v1344 = vunpack.c.l.b16 %v826
        %v1345 = vunpack.c.l.b16 %v835
        %v1346 = vunpack.c.l.b16 %v848
        %v1347 = vunpack.c.l.b16 %v857
        %v1348 = vunpack.c.l.b16 %v870
        %v1349 = vunpack.c.l.b16 %v879
        %v1350 = vunpack.c.l.b16 %v892
        %v1351 = vunpack.c.l.b16 %v901
        %v1352 = vunpack.c.l.b16 %v914
        %v1353 = vunpack.c.l.b16 %v923
        %v1354 = vunpack.c.l.b16 %v936
        %v1355 = vunpack.c.l.b16 %v945
        %v1356 = vunpack.c.l.b16 %v958
        %v1357 = vunpack.c.l.b16 %v967
        %v1358 = vunpack.c.l.b16 %v980
        %v1359 = vunpack.c.l.b16 %v989
        %v1360 = vpack.c.b16 %v1329, %v1328
        %v1361 = vpack.c.b16 %v1331, %v1330
        %v1362 = vpack.c.b16 %v1333, %v1332
        %v1363 = vpack.c.b16 %v1335, %v1334
        %v1364 = vpack.c.b16 %v1337, %v1336
        %v1365 = vpack.c.b16 %v1339, %v1338
        %v1366 = vpack.c.b16 %v1341, %v1340
        %v1367 = vpack.c.b16 %v1343, %v1342
        %v1368 = vpack.c.b16 %v1345, %v1344
        %v1369 = vpack.c.b16 %v1347, %v1346
        %v1370 = vpack.c.b16 %v1349, %v1348
        %v1371 = vpack.c.b16 %v1351, %v1350
        %v1372 = vpack.c.b16 %v1353, %v1352
        %v1373 = vpack.c.b16 %v1355, %v1354
        %v1374 = vpack.c.b16 %v1357, %v1356
        %v1375 = vpack.c.b16 %v1359, %v1358
        %v1408 = vunpack.c.l.b16 %v990
        %v1409 = vunpack.c.l.b16 %v991
        %v1410 = vunpack.c.l.b16 %v992
        %v1411 = vunpack.c.l.b16 %v993
        %v1412 = vunpack.c.l.b16 %v994
        %v1413 = vunpack.c.l.b16 %v995
        %v1414 = vunpack.c.l.b16 %v996
        %v1415 = vunpack.c.l.b16 %v997
        %v1416 = vunpack.c.l.b16 %v998
        %v1417 = vunpack.c.l.b16 %v999
        %v1418 = vunpack.c.l.b16 %v1000
        %v1419 = vunpack.c.l.b16 %v1001
        %v1420 = vunpack.c.l.b16 %v1002
        %v1421 = vunpack.c.l.b16 %v1003
        %v1422 = vunpack.c.l.b16 %v1004
        %v1423 = vunpack.c.l.b16 %v1005
        %v1424 = vpack.c.b16 %v1409, %v1408
        %v1425 = vpack.c.b16 %v1411, %v1410
        %v1426 = vpack.c.b16 %v1413, %v1412
        %v1427 = vpack.c.b16 %v1415, %v1414
        %v1428 = vpack.c.b16 %v1417, %v1416
        %v1429 = vpack.c.b16 %v1419, %v1418
        %v1430 = vpack.c.b16 %v1421, %v1420
        %v1431 = vpack.c.b16 %v1423, %v1422
        %1440 = vmatprep.subr.bf16.mxu0 0
        %1441 = vmatpush1.bf16.msra.mxu0 %v1431
        %1442 = vmatprep.subr.bf16.mxu0 0
        %1443 = vmatpush1.bf16.msra.mxu0 %v1430
        %1444 = vmatprep.subr.bf16.mxu0 0
        %1445 = vmatpush1.bf16.msra.mxu0 %v1429
        %1446 = vmatprep.subr.bf16.mxu0 0
        %1447 = vmatpush1.bf16.msra.mxu0 %v1428
        %1448 = vmatprep.subr.bf16.mxu0 0
        %1449 = vmatpush1.bf16.msra.mxu0 %v1427
        %1450 = vmatprep.subr.bf16.mxu0 0
        %1451 = vmatpush1.bf16.msra.mxu0 %v1426
        %1452 = vmatprep.subr.bf16.mxu0 0
        %1453 = vmatpush1.bf16.msra.mxu0 %v1425
        %1454 = vmatprep.subr.bf16.mxu0 0
        %1455 = vmatpush1.bf16.msra.mxu0 %v1424
        %1456 = vmatprep.subr.bf16.mxu0 0
        %1457 = vmatpush2.bf16.msra.mxu0 0
        %1458 = vmatprep.subr.bf16.mxu0 0
        %1459 = vmatpush2.bf16.msra.mxu0 0
        %1460 = vmatprep.subr.bf16.mxu0 0
        %1461 = vmatpush2.bf16.msra.mxu0 0
        %1462 = vmatprep.subr.bf16.mxu0 0
        %1463 = vmatpush2.bf16.msra.mxu0 0
        %1464 = vmatprep.subr.bf16.mxu0 0
        %1465 = vmatpush2.bf16.msra.mxu0 0
        %1466 = vmatprep.subr.bf16.mxu0 0
        %1467 = vmatpush2.bf16.msra.mxu0 0
        %1468 = vmatprep.subr.bf16.mxu0 0
        %1469 = vmatpush2.bf16.msra.mxu0 0
        %1470 = vmatprep.subr.bf16.mxu0 0
        %1471 = vmatpush2.bf16.msra.mxu0 0
        %1472 = vmatprep.mubr.bf16.mxu0 0
        %1473 = vmatmul.mubr.bf16.gmra.mxu0 %v1360
        %v1474 = vpop.f32.mrf.mxu0
        %v1475 = vadd.f32 %v1202, %v1474
        %v1476 = vpop.f32.mrf.mxu0
        %v1477 = vpop.f32.mrf.mxu0
        %v1478 = vadd.f32 %v1205, %v1477
        %v1479 = vpop.f32.mrf.mxu0
        %1480 = vmatprep.mubr.bf16.mxu0 0
        %1481 = vmatmul.mubr.bf16.gmra.mxu0 %v1361
        %v1482 = vpop.f32.mrf.mxu0
        %v1483 = vadd.f32 %v1210, %v1482
        %v1484 = vpop.f32.mrf.mxu0
        %v1485 = vpop.f32.mrf.mxu0
        %v1486 = vadd.f32 %v1213, %v1485
        %v1487 = vpop.f32.mrf.mxu0
        %1488 = vmatprep.mubr.bf16.mxu0 0
        %1489 = vmatmul.mubr.bf16.gmra.mxu0 %v1362
        %v1490 = vpop.f32.mrf.mxu0
        %v1491 = vadd.f32 %v1218, %v1490
        %v1492 = vpop.f32.mrf.mxu0
        %v1493 = vpop.f32.mrf.mxu0
        %v1494 = vadd.f32 %v1221, %v1493
        %v1495 = vpop.f32.mrf.mxu0
        %1496 = vmatprep.mubr.bf16.mxu0 0
        %1497 = vmatmul.mubr.bf16.gmra.mxu0 %v1363
        %v1498 = vpop.f32.mrf.mxu0
        %v1499 = vadd.f32 %v1226, %v1498
        %v1500 = vpop.f32.mrf.mxu0
        %v1501 = vpop.f32.mrf.mxu0
        %v1502 = vadd.f32 %v1229, %v1501
        %v1503 = vpop.f32.mrf.mxu0
        %1504 = vmatprep.mubr.bf16.mxu0 0
        %1505 = vmatmul.mubr.bf16.gmra.mxu0 %v1364
        %v1506 = vpop.f32.mrf.mxu0
        %v1507 = vadd.f32 %v1234, %v1506
        %v1508 = vpop.f32.mrf.mxu0
        %v1509 = vpop.f32.mrf.mxu0
        %v1510 = vadd.f32 %v1237, %v1509
        %v1511 = vpop.f32.mrf.mxu0
        %1512 = vmatprep.mubr.bf16.mxu0 0
        %1513 = vmatmul.mubr.bf16.gmra.mxu0 %v1365
        %v1514 = vpop.f32.mrf.mxu0
        %v1515 = vadd.f32 %v1242, %v1514
        %v1516 = vpop.f32.mrf.mxu0
        %v1517 = vpop.f32.mrf.mxu0
        %v1518 = vadd.f32 %v1245, %v1517
        %v1519 = vpop.f32.mrf.mxu0
        %1520 = vmatprep.mubr.bf16.mxu0 0
        %1521 = vmatmul.mubr.bf16.gmra.mxu0 %v1366
        %v1522 = vpop.f32.mrf.mxu0
        %v1523 = vadd.f32 %v1250, %v1522
        %v1524 = vpop.f32.mrf.mxu0
        %v1525 = vpop.f32.mrf.mxu0
        %v1526 = vadd.f32 %v1253, %v1525
        %v1527 = vpop.f32.mrf.mxu0
        %1528 = vmatprep.mubr.bf16.mxu0 0
        %1529 = vmatmul.mubr.bf16.gmra.mxu0 %v1367
        %v1530 = vpop.f32.mrf.mxu0
        %v1531 = vadd.f32 %v1258, %v1530
        %v1532 = vpop.f32.mrf.mxu0
        %v1533 = vpop.f32.mrf.mxu0
        %v1534 = vadd.f32 %v1261, %v1533
        %v1535 = vpop.f32.mrf.mxu0
        %1536 = vmatprep.mubr.bf16.mxu0 0
        %1537 = vmatmul.mubr.bf16.gmra.mxu0 %v1368
        %v1538 = vpop.f32.mrf.mxu0
        %v1539 = vadd.f32 %v1266, %v1538
        %v1540 = vpop.f32.mrf.mxu0
        %v1541 = vpop.f32.mrf.mxu0
        %v1542 = vadd.f32 %v1269, %v1541
        %v1543 = vpop.f32.mrf.mxu0
        %1544 = vmatprep.mubr.bf16.mxu0 0
        %1545 = vmatmul.mubr.bf16.gmra.mxu0 %v1369
        %v1546 = vpop.f32.mrf.mxu0
        %v1547 = vadd.f32 %v1274, %v1546
        %v1548 = vpop.f32.mrf.mxu0
        %v1549 = vpop.f32.mrf.mxu0
        %v1550 = vadd.f32 %v1277, %v1549
        %v1551 = vpop.f32.mrf.mxu0
        %1552 = vmatprep.mubr.bf16.mxu0 0
        %1553 = vmatmul.mubr.bf16.gmra.mxu0 %v1370
        %v1554 = vpop.f32.mrf.mxu0
        %v1555 = vadd.f32 %v1282, %v1554
        %v1556 = vpop.f32.mrf.mxu0
        %v1557 = vpop.f32.mrf.mxu0
        %v1558 = vadd.f32 %v1285, %v1557
        %v1559 = vpop.f32.mrf.mxu0
        %1560 = vmatprep.mubr.bf16.mxu0 0
        %1561 = vmatmul.mubr.bf16.gmra.mxu0 %v1371
        %v1562 = vpop.f32.mrf.mxu0
        %v1563 = vadd.f32 %v1290, %v1562
        %v1564 = vpop.f32.mrf.mxu0
        %v1565 = vpop.f32.mrf.mxu0
        %v1566 = vadd.f32 %v1293, %v1565
        %v1567 = vpop.f32.mrf.mxu0
        %1568 = vmatprep.mubr.bf16.mxu0 0
        %1569 = vmatmul.mubr.bf16.gmra.mxu0 %v1372
        %v1570 = vpop.f32.mrf.mxu0
        %v1571 = vadd.f32 %v1298, %v1570
        %v1572 = vpop.f32.mrf.mxu0
        %v1573 = vpop.f32.mrf.mxu0
        %v1574 = vadd.f32 %v1301, %v1573
        %v1575 = vpop.f32.mrf.mxu0
        %1576 = vmatprep.mubr.bf16.mxu0 0
        %1577 = vmatmul.mubr.bf16.gmra.mxu0 %v1373
        %v1578 = vpop.f32.mrf.mxu0
        %v1579 = vadd.f32 %v1306, %v1578
        %v1580 = vpop.f32.mrf.mxu0
        %v1581 = vpop.f32.mrf.mxu0
        %v1582 = vadd.f32 %v1309, %v1581
        %v1583 = vpop.f32.mrf.mxu0
        %1584 = vmatprep.mubr.bf16.mxu0 0
        %1585 = vmatmul.mubr.bf16.gmra.mxu0 %v1374
        %v1586 = vpop.f32.mrf.mxu0
        %v1587 = vadd.f32 %v1314, %v1586
        %v1588 = vpop.f32.mrf.mxu0
        %v1589 = vpop.f32.mrf.mxu0
        %v1590 = vadd.f32 %v1317, %v1589
        %v1591 = vpop.f32.mrf.mxu0
        %1592 = vmatprep.mubr.bf16.mxu0 0
        %1593 = vmatmul.mubr.bf16.gmra.mxu0 %v1375
        %v1594 = vpop.f32.mrf.mxu0
        %v1595 = vadd.f32 %v1322, %v1594
        %v1596 = vpop.f32.mrf.mxu0
        %v1597 = vpop.f32.mrf.mxu0
        %v1598 = vadd.f32 %v1325, %v1597
        %v1599 = vpop.f32.mrf.mxu0
        %1600 = vdwg.mxu0
        %v1601 = vld [vmem:[#allocation2 + $0x8] sm:$0xf]
        %v1602 = vld [vmem:[#allocation2 + $0xc] sm:$0xf]
        %v1603 = vld [vmem:[#allocation2 + $0x10] sm:$0x1]
        %v1604 = vld [vmem:[#allocation2 + $0x20] sm:$0xf]
        %v1605 = vld [vmem:[#allocation2 + $0x24] sm:$0xf]
        %v1606 = vld [vmem:[#allocation2 + $0x28] sm:$0x1]
        %v1607 = vld [vmem:[#allocation2 + $0x38] sm:$0xf]
        %v1608 = vld [vmem:[#allocation2 + $0x3c] sm:$0xf]
        %v1609 = vld [vmem:[#allocation2 + $0x40] sm:$0x1]
        %v1610 = vld [vmem:[#allocation2 + $0x50] sm:$0xf]
        %v1611 = vld [vmem:[#allocation2 + $0x54] sm:$0xf]
        %v1612 = vld [vmem:[#allocation2 + $0x58] sm:$0x1]
        %v1613 = vld [vmem:[#allocation2 + $0x68] sm:$0xf]
        %v1614 = vld [vmem:[#allocation2 + $0x6c] sm:$0xf]
        %v1615 = vld [vmem:[#allocation2 + $0x70] sm:$0x1]
        %v1616 = vld [vmem:[#allocation2 + $0x80] sm:$0xf]
        %v1617 = vld [vmem:[#allocation2 + $0x84] sm:$0xf]
        %v1618 = vld [vmem:[#allocation2 + $0x88] sm:$0x1]
        %v1619 = vld [vmem:[#allocation2 + $0x98] sm:$0xf]
        %v1620 = vld [vmem:[#allocation2 + $0x9c] sm:$0xf]
        %v1621 = vld [vmem:[#allocation2 + $0xa0] sm:$0x1]
        %v1622 = vld [vmem:[#allocation2 + $0xb0] sm:$0xf]
        %v1623 = vld [vmem:[#allocation2 + $0xb4] sm:$0xf]
        %v1624 = vld [vmem:[#allocation2 + $0xb8] sm:$0x1]
        %v1625 = vld [vmem:[#allocation2 + $0xc8] sm:$0xf]
        %v1626 = vld [vmem:[#allocation2 + $0xcc] sm:$0xf]
        %v1627 = vld [vmem:[#allocation2 + $0xd0] sm:$0x1]
        %v1628 = vld [vmem:[#allocation2 + $0xe0] sm:$0xf]
        %v1629 = vld [vmem:[#allocation2 + $0xe4] sm:$0xf]
        %v1630 = vld [vmem:[#allocation2 + $0xe8] sm:$0x1]
        %v1631 = vld [vmem:[#allocation2 + $0xf8] sm:$0xf]
        %v1632 = vld [vmem:[#allocation2 + $0xfc] sm:$0xf]
        %v1633 = vld [vmem:[#allocation2 + $0x100] sm:$0x1]
        %v1634 = vld [vmem:[#allocation2 + $0x110] sm:$0xf]
        %v1635 = vld [vmem:[#allocation2 + $0x114] sm:$0xf]
        %v1636 = vld [vmem:[#allocation2 + $0x118] sm:$0x1]
        %v1637 = vld [vmem:[#allocation2 + $0x128] sm:$0xf]
        %v1638 = vld [vmem:[#allocation2 + $0x12c] sm:$0xf]
        %v1639 = vld [vmem:[#allocation2 + $0x130] sm:$0x1]
        %v1640 = vld [vmem:[#allocation2 + $0x140] sm:$0xf]
        %v1641 = vld [vmem:[#allocation2 + $0x144] sm:$0xf]
        %v1642 = vld [vmem:[#allocation2 + $0x148] sm:$0x1]
        %v1643 = vld [vmem:[#allocation2 + $0x158] sm:$0xf]
        %v1644 = vld [vmem:[#allocation2 + $0x15c] sm:$0xf]
        %v1645 = vld [vmem:[#allocation2 + $0x160] sm:$0x1]
        %v1646 = vld [vmem:[#allocation2 + $0x170] sm:$0xf]
        %v1647 = vld [vmem:[#allocation2 + $0x174] sm:$0xf]
        %v1648 = vld [vmem:[#allocation2 + $0x178] sm:$0x1]
        %v1649 = vsel %vm285, 1, 0
        %v1650 = vsel %vm286, 1, 0
        %vm1651 = vcmp.eq.s32.totalorder %v1649, 1
        %vm1652 = vcmp.eq.s32.totalorder %v1650, 1
        %vm1653 = vmpackc.low %vm1651, %vm1651
        %vm1654 = vmpackc.low %vm1652, %vm1652
        %v1655 = vsel %vm1653, 65537, 0
        %v1656 = vsel %vm1654, 65537, 0
        %v1658 = vshrl.u32 %v1655, 16
        %v1660 = vrot.slane %v1658, 7
        %v1661 = vshll.u32 %v1655, 16
        %v1663 = vor.u32 %v1660, %v1661
        %v1664 = vrot.slane %v1660, 4
        %v1666 = vshrl.u32 %v1656, 16
        %v1668 = vrot.slane %v1666, 7
        %v1669 = vshll.u32 %v1656, 16
        %v1671 = vor.u32 %v1668, %v1669
        %v1672 = vsel %vm637, %v1664, %v1671
        %v1673 = vrot.slane %v1668, 4
        %vm1674 = vcmp.ne.s16.totalorder %v1663, 0
        %vm1675 = vcmp.ne.s16.totalorder %v1672, 0
        %vm1676 = vcmp.ne.s16.totalorder %v1673, 0
        %v1677 = vsel %vm1674, %v1601, 0
        %v1678 = vsel %vm1675, %v1602, 0
        %v1679 = vsel %vm1676, %v1603, 0
        %v1680 = vsel %vm1674, %v1604, 0
        %v1681 = vsel %vm1675, %v1605, 0
        %v1682 = vsel %vm1676, %v1606, 0
        %v1683 = vsel %vm1674, %v1607, 0
        %v1684 = vsel %vm1675, %v1608, 0
        %v1685 = vsel %vm1676, %v1609, 0
        %v1686 = vsel %vm1674, %v1610, 0
        %v1687 = vsel %vm1675, %v1611, 0
        %v1688 = vsel %vm1676, %v1612, 0
        %v1689 = vsel %vm1674, %v1613, 0
        %v1690 = vsel %vm1675, %v1614, 0
        %v1691 = vsel %vm1676, %v1615, 0
        %v1692 = vsel %vm1674, %v1616, 0
        %v1693 = vsel %vm1675, %v1617, 0
        %v1694 = vsel %vm1676, %v1618, 0
        %v1695 = vsel %vm1674, %v1619, 0
        %v1696 = vsel %vm1675, %v1620, 0
        %v1697 = vsel %vm1676, %v1621, 0
        %v1698 = vsel %vm1674, %v1622, 0
        %v1699 = vsel %vm1675, %v1623, 0
        %v1700 = vsel %vm1676, %v1624, 0
        %v1701 = vsel %vm1674, %v1625, 0
        %v1702 = vsel %vm1675, %v1626, 0
        %v1703 = vsel %vm1676, %v1627, 0
        %v1704 = vsel %vm1674, %v1628, 0
        %v1705 = vsel %vm1675, %v1629, 0
        %v1706 = vsel %vm1676, %v1630, 0
        %v1707 = vsel %vm1674, %v1631, 0
        %v1708 = vsel %vm1675, %v1632, 0
        %v1709 = vsel %vm1676, %v1633, 0
        %v1710 = vsel %vm1674, %v1634, 0
        %v1711 = vsel %vm1675, %v1635, 0
        %v1712 = vsel %vm1676, %v1636, 0
        %v1713 = vsel %vm1674, %v1637, 0
        %v1714 = vsel %vm1675, %v1638, 0
        %v1715 = vsel %vm1676, %v1639, 0
        %v1716 = vsel %vm1674, %v1640, 0
        %v1717 = vsel %vm1675, %v1641, 0
        %v1718 = vsel %vm1676, %v1642, 0
        %v1719 = vsel %vm1674, %v1643, 0
        %v1720 = vsel %vm1675, %v1644, 0
        %v1721 = vsel %vm1676, %v1645, 0
        %v1722 = vsel %vm1674, %v1646, 0
        %v1723 = vsel %vm1675, %v1647, 0
        %v1724 = vsel %vm1676, %v1648, 0
        %v1726 = vshrl.u32 %v1677, 16
        %v1728 = vrot.slane %v1726, 4
        %v1729 = vshll.u32 %v1677, 16
        %v1731 = vrot.slane %v1729, 5
        %v1732 = vor.u32 %v1728, %v1731
        %v1733 = vrot.slane %v1732, 4
        %v1735 = vshll.u32 %v1678, 16
        %v1737 = vrot.slane %v1735, 5
        %v1738 = vsel %vm564, %v1733, %v1737
        %v1739 = vshrl.u32 %v1678, 16
        %v1741 = vrot.slane %v1739, 4
        %v1742 = vor.u32 %v1741, %v1737
        %v1743 = vrot.slane %v1742, 4
        %v1745 = vshll.u32 %v1679, 16
        %v1747 = vrot.slane %v1745, 5
        %v1748 = vsel %vm564, %v1743, %v1747
        %v1750 = vshrl.u32 %v1680, 16
        %v1752 = vrot.slane %v1750, 4
        %v1753 = vshll.u32 %v1680, 16
        %v1755 = vrot.slane %v1753, 5
        %v1756 = vor.u32 %v1752, %v1755
        %v1757 = vrot.slane %v1756, 4
        %v1759 = vshll.u32 %v1681, 16
        %v1761 = vrot.slane %v1759, 5
        %v1762 = vsel %vm564, %v1757, %v1761
        %v1763 = vshrl.u32 %v1681, 16
        %v1765 = vrot.slane %v1763, 4
        %v1766 = vor.u32 %v1765, %v1761
        %v1767 = vrot.slane %v1766, 4
        %v1769 = vshll.u32 %v1682, 16
        %v1771 = vrot.slane %v1769, 5
        %v1772 = vsel %vm564, %v1767, %v1771
        %v1774 = vshrl.u32 %v1683, 16
        %v1776 = vrot.slane %v1774, 4
        %v1777 = vshll.u32 %v1683, 16
        %v1779 = vrot.slane %v1777, 5
        %v1780 = vor.u32 %v1776, %v1779
        %v1781 = vrot.slane %v1780, 4
        %v1783 = vshll.u32 %v1684, 16
        %v1785 = vrot.slane %v1783, 5
        %v1786 = vsel %vm564, %v1781, %v1785
        %v1787 = vshrl.u32 %v1684, 16
        %v1789 = vrot.slane %v1787, 4
        %v1790 = vor.u32 %v1789, %v1785
        %v1791 = vrot.slane %v1790, 4
        %v1793 = vshll.u32 %v1685, 16
        %v1795 = vrot.slane %v1793, 5
        %v1796 = vsel %vm564, %v1791, %v1795
        %v1798 = vshrl.u32 %v1686, 16
        %v1800 = vrot.slane %v1798, 4
        %v1801 = vshll.u32 %v1686, 16
        %v1803 = vrot.slane %v1801, 5
        %v1804 = vor.u32 %v1800, %v1803
        %v1805 = vrot.slane %v1804, 4
        %v1807 = vshll.u32 %v1687, 16
        %v1809 = vrot.slane %v1807, 5
        %v1810 = vsel %vm564, %v1805, %v1809
        %v1811 = vshrl.u32 %v1687, 16
        %v1813 = vrot.slane %v1811, 4
        %v1814 = vor.u32 %v1813, %v1809
        %v1815 = vrot.slane %v1814, 4
        %v1817 = vshll.u32 %v1688, 16
        %v1819 = vrot.slane %v1817, 5
        %v1820 = vsel %vm564, %v1815, %v1819
        %v1822 = vshrl.u32 %v1689, 16
        %v1824 = vrot.slane %v1822, 4
        %v1825 = vshll.u32 %v1689, 16
        %v1827 = vrot.slane %v1825, 5
        %v1828 = vor.u32 %v1824, %v1827
        %v1829 = vrot.slane %v1828, 4
        %v1831 = vshll.u32 %v1690, 16
        %v1833 = vrot.slane %v1831, 5
        %v1834 = vsel %vm564, %v1829, %v1833
        %v1835 = vshrl.u32 %v1690, 16
        %v1837 = vrot.slane %v1835, 4
        %v1838 = vor.u32 %v1837, %v1833
        %v1839 = vrot.slane %v1838, 4
        %v1841 = vshll.u32 %v1691, 16
        %v1843 = vrot.slane %v1841, 5
        %v1844 = vsel %vm564, %v1839, %v1843
        %v1846 = vshrl.u32 %v1692, 16
        %v1848 = vrot.slane %v1846, 4
        %v1849 = vshll.u32 %v1692, 16
        %v1851 = vrot.slane %v1849, 5
        %v1852 = vor.u32 %v1848, %v1851
        %v1853 = vrot.slane %v1852, 4
        %v1855 = vshll.u32 %v1693, 16
        %v1857 = vrot.slane %v1855, 5
        %v1858 = vsel %vm564, %v1853, %v1857
        %v1859 = vshrl.u32 %v1693, 16
        %v1861 = vrot.slane %v1859, 4
        %v1862 = vor.u32 %v1861, %v1857
        %v1863 = vrot.slane %v1862, 4
        %v1865 = vshll.u32 %v1694, 16
        %v1867 = vrot.slane %v1865, 5
        %v1868 = vsel %vm564, %v1863, %v1867
        %v1870 = vshrl.u32 %v1695, 16
        %v1872 = vrot.slane %v1870, 4
        %v1873 = vshll.u32 %v1695, 16
        %v1875 = vrot.slane %v1873, 5
        %v1876 = vor.u32 %v1872, %v1875
        %v1877 = vrot.slane %v1876, 4
        %v1879 = vshll.u32 %v1696, 16
        %v1881 = vrot.slane %v1879, 5
        %v1882 = vsel %vm564, %v1877, %v1881
        %v1883 = vshrl.u32 %v1696, 16
        %v1885 = vrot.slane %v1883, 4
        %v1886 = vor.u32 %v1885, %v1881
        %v1887 = vrot.slane %v1886, 4
        %v1889 = vshll.u32 %v1697, 16
        %v1891 = vrot.slane %v1889, 5
        %v1892 = vsel %vm564, %v1887, %v1891
        %v1894 = vshrl.u32 %v1698, 16
        %v1896 = vrot.slane %v1894, 4
        %v1897 = vshll.u32 %v1698, 16
        %v1899 = vrot.slane %v1897, 5
        %v1900 = vor.u32 %v1896, %v1899
        %v1901 = vrot.slane %v1900, 4
        %v1903 = vshll.u32 %v1699, 16
        %v1905 = vrot.slane %v1903, 5
        %v1906 = vsel %vm564, %v1901, %v1905
        %v1907 = vshrl.u32 %v1699, 16
        %v1909 = vrot.slane %v1907, 4
        %v1910 = vor.u32 %v1909, %v1905
        %v1911 = vrot.slane %v1910, 4
        %v1913 = vshll.u32 %v1700, 16
        %v1915 = vrot.slane %v1913, 5
        %v1916 = vsel %vm564, %v1911, %v1915
        %v1918 = vshrl.u32 %v1701, 16
        %v1920 = vrot.slane %v1918, 4
        %v1921 = vshll.u32 %v1701, 16
        %v1923 = vrot.slane %v1921, 5
        %v1924 = vor.u32 %v1920, %v1923
        %v1925 = vrot.slane %v1924, 4
        %v1927 = vshll.u32 %v1702, 16
        %v1929 = vrot.slane %v1927, 5
        %v1930 = vsel %vm564, %v1925, %v1929
        %v1931 = vshrl.u32 %v1702, 16
        %v1933 = vrot.slane %v1931, 4
        %v1934 = vor.u32 %v1933, %v1929
        %v1935 = vrot.slane %v1934, 4
        %v1937 = vshll.u32 %v1703, 16
        %v1939 = vrot.slane %v1937, 5
        %v1940 = vsel %vm564, %v1935, %v1939
        %v1942 = vshrl.u32 %v1704, 16
        %v1944 = vrot.slane %v1942, 4
        %v1945 = vshll.u32 %v1704, 16
        %v1947 = vrot.slane %v1945, 5
        %v1948 = vor.u32 %v1944, %v1947
        %v1949 = vrot.slane %v1948, 4
        %v1951 = vshll.u32 %v1705, 16
        %v1953 = vrot.slane %v1951, 5
        %v1954 = vsel %vm564, %v1949, %v1953
        %v1955 = vshrl.u32 %v1705, 16
        %v1957 = vrot.slane %v1955, 4
        %v1958 = vor.u32 %v1957, %v1953
        %v1959 = vrot.slane %v1958, 4
        %v1961 = vshll.u32 %v1706, 16
        %v1963 = vrot.slane %v1961, 5
        %v1964 = vsel %vm564, %v1959, %v1963
        %v1966 = vshrl.u32 %v1707, 16
        %v1968 = vrot.slane %v1966, 4
        %v1969 = vshll.u32 %v1707, 16
        %v1971 = vrot.slane %v1969, 5
        %v1972 = vor.u32 %v1968, %v1971
        %v1973 = vrot.slane %v1972, 4
        %v1975 = vshll.u32 %v1708, 16
        %v1977 = vrot.slane %v1975, 5
        %v1978 = vsel %vm564, %v1973, %v1977
        %v1979 = vshrl.u32 %v1708, 16
        %v1981 = vrot.slane %v1979, 4
        %v1982 = vor.u32 %v1981, %v1977
        %v1983 = vrot.slane %v1982, 4
        %v1985 = vshll.u32 %v1709, 16
        %v1987 = vrot.slane %v1985, 5
        %v1988 = vsel %vm564, %v1983, %v1987
        %v1990 = vshrl.u32 %v1710, 16
        %v1992 = vrot.slane %v1990, 4
        %v1993 = vshll.u32 %v1710, 16
        %v1995 = vrot.slane %v1993, 5
        %v1996 = vor.u32 %v1992, %v1995
        %v1997 = vrot.slane %v1996, 4
        %v1999 = vshll.u32 %v1711, 16
        %v2001 = vrot.slane %v1999, 5
        %v2002 = vsel %vm564, %v1997, %v2001
        %v2003 = vshrl.u32 %v1711, 16
        %v2005 = vrot.slane %v2003, 4
        %v2006 = vor.u32 %v2005, %v2001
        %v2007 = vrot.slane %v2006, 4
        %v2009 = vshll.u32 %v1712, 16
        %v2011 = vrot.slane %v2009, 5
        %v2012 = vsel %vm564, %v2007, %v2011
        %v2014 = vshrl.u32 %v1713, 16
        %v2016 = vrot.slane %v2014, 4
        %v2017 = vshll.u32 %v1713, 16
        %v2019 = vrot.slane %v2017, 5
        %v2020 = vor.u32 %v2016, %v2019
        %v2021 = vrot.slane %v2020, 4
        %v2023 = vshll.u32 %v1714, 16
        %v2025 = vrot.slane %v2023, 5
        %v2026 = vsel %vm564, %v2021, %v2025
        %v2027 = vshrl.u32 %v1714, 16
        %v2029 = vrot.slane %v2027, 4
        %v2030 = vor.u32 %v2029, %v2025
        %v2031 = vrot.slane %v2030, 4
        %v2033 = vshll.u32 %v1715, 16
        %v2035 = vrot.slane %v2033, 5
        %v2036 = vsel %vm564, %v2031, %v2035
        %v2038 = vshrl.u32 %v1716, 16
        %v2040 = vrot.slane %v2038, 4
        %v2041 = vshll.u32 %v1716, 16
        %v2043 = vrot.slane %v2041, 5
        %v2044 = vor.u32 %v2040, %v2043
        %v2045 = vrot.slane %v2044, 4
        %v2047 = vshll.u32 %v1717, 16
        %v2049 = vrot.slane %v2047, 5
        %v2050 = vsel %vm564, %v2045, %v2049
        %v2051 = vshrl.u32 %v1717, 16
        %v2053 = vrot.slane %v2051, 4
        %v2054 = vor.u32 %v2053, %v2049
        %v2055 = vrot.slane %v2054, 4
        %v2057 = vshll.u32 %v1718, 16
        %v2059 = vrot.slane %v2057, 5
        %v2060 = vsel %vm564, %v2055, %v2059
        %v2062 = vshrl.u32 %v1719, 16
        %v2064 = vrot.slane %v2062, 4
        %v2065 = vshll.u32 %v1719, 16
        %v2067 = vrot.slane %v2065, 5
        %v2068 = vor.u32 %v2064, %v2067
        %v2069 = vrot.slane %v2068, 4
        %v2071 = vshll.u32 %v1720, 16
        %v2073 = vrot.slane %v2071, 5
        %v2074 = vsel %vm564, %v2069, %v2073
        %v2075 = vshrl.u32 %v1720, 16
        %v2077 = vrot.slane %v2075, 4
        %v2078 = vor.u32 %v2077, %v2073
        %v2079 = vrot.slane %v2078, 4
        %v2081 = vshll.u32 %v1721, 16
        %v2083 = vrot.slane %v2081, 5
        %v2084 = vsel %vm564, %v2079, %v2083
        %v2086 = vshrl.u32 %v1722, 16
        %v2088 = vrot.slane %v2086, 4
        %v2089 = vshll.u32 %v1722, 16
        %v2091 = vrot.slane %v2089, 5
        %v2092 = vor.u32 %v2088, %v2091
        %v2093 = vrot.slane %v2092, 4
        %v2095 = vshll.u32 %v1723, 16
        %v2097 = vrot.slane %v2095, 5
        %v2098 = vsel %vm564, %v2093, %v2097
        %v2099 = vshrl.u32 %v1723, 16
        %v2101 = vrot.slane %v2099, 4
        %v2102 = vor.u32 %v2101, %v2097
        %v2103 = vrot.slane %v2102, 4
        %v2105 = vshll.u32 %v1724, 16
        %v2107 = vrot.slane %v2105, 5
        %v2108 = vsel %vm564, %v2103, %v2107
        %s2109 = scalar_lea.vmem %s1, 128
        %v2110 = vld [vmem:[%s2109] sm:$0xf]
        %v2111 = vld [vmem:[%s2109 + $0x4] sm:$0xf]
        %v2112 = vld [vmem:[%s2109 + $0x8] sm:$0xf]
        %v2113 = vld [vmem:[%s2109 + $0xc] sm:$0xf]
        %v2114 = vld [vmem:[%s2109 + $0x10] sm:$0xf]
        %v2115 = vld [vmem:[%s2109 + $0x14] sm:$0xf]
        %v2116 = vld [vmem:[%s2109 + $0x18] sm:$0xf]
        %v2117 = vld [vmem:[%s2109 + $0x1c] sm:$0xf]
        %v2118 = vld [vmem:[%s2109 + $0x20] sm:$0xf]
        %v2119 = vld [vmem:[%s2109 + $0x24] sm:$0xf]
        %v2120 = vld [vmem:[%s2109 + $0x28] sm:$0xf]
        %v2121 = vld [vmem:[%s2109 + $0x2c] sm:$0xf]
        %v2122 = vld [vmem:[%s2109 + $0x30] sm:$0xf]
        %v2123 = vld [vmem:[%s2109 + $0x34] sm:$0xf]
        %v2124 = vld [vmem:[%s2109 + $0x38] sm:$0xf]
        %v2125 = vld [vmem:[%s2109 + $0x3c] sm:$0xf]
        %v2126 = vunpack.c.l.b16 %v1738
        %v2127 = vunpack.c.l.b16 %v1748
        %v2128 = vunpack.c.l.b16 %v1762
        %v2129 = vunpack.c.l.b16 %v1772
        %v2130 = vunpack.c.l.b16 %v1786
        %v2131 = vunpack.c.l.b16 %v1796
        %v2132 = vunpack.c.l.b16 %v1810
        %v2133 = vunpack.c.l.b16 %v1820
        %v2134 = vunpack.c.l.b16 %v1834
        %v2135 = vunpack.c.l.b16 %v1844
        %v2136 = vunpack.c.l.b16 %v1858
        %v2137 = vunpack.c.l.b16 %v1868
        %v2138 = vunpack.c.l.b16 %v1882
        %v2139 = vunpack.c.l.b16 %v1892
        %v2140 = vunpack.c.l.b16 %v1906
        %v2141 = vunpack.c.l.b16 %v1916
        %v2142 = vunpack.c.l.b16 %v1930
        %v2143 = vunpack.c.l.b16 %v1940
        %v2144 = vunpack.c.l.b16 %v1954
        %v2145 = vunpack.c.l.b16 %v1964
        %v2146 = vunpack.c.l.b16 %v1978
        %v2147 = vunpack.c.l.b16 %v1988
        %v2148 = vunpack.c.l.b16 %v2002
        %v2149 = vunpack.c.l.b16 %v2012
        %v2150 = vunpack.c.l.b16 %v2026
        %v2151 = vunpack.c.l.b16 %v2036
        %v2152 = vunpack.c.l.b16 %v2050
        %v2153 = vunpack.c.l.b16 %v2060
        %v2154 = vunpack.c.l.b16 %v2074
        %v2155 = vunpack.c.l.b16 %v2084
        %v2156 = vunpack.c.l.b16 %v2098
        %v2157 = vunpack.c.l.b16 %v2108
        %v2158 = vpack.c.b16 %v2127, %v2126
        %v2159 = vpack.c.b16 %v2129, %v2128
        %v2160 = vpack.c.b16 %v2131, %v2130
        %v2161 = vpack.c.b16 %v2133, %v2132
        %v2162 = vpack.c.b16 %v2135, %v2134
        %v2163 = vpack.c.b16 %v2137, %v2136
        %v2164 = vpack.c.b16 %v2139, %v2138
        %v2165 = vpack.c.b16 %v2141, %v2140
        %v2166 = vpack.c.b16 %v2143, %v2142
        %v2167 = vpack.c.b16 %v2145, %v2144
        %v2168 = vpack.c.b16 %v2147, %v2146
        %v2169 = vpack.c.b16 %v2149, %v2148
        %v2170 = vpack.c.b16 %v2151, %v2150
        %v2171 = vpack.c.b16 %v2153, %v2152
        %v2172 = vpack.c.b16 %v2155, %v2154
        %v2173 = vpack.c.b16 %v2157, %v2156
        %v2206 = vunpack.c.l.b16 %v2110
        %v2207 = vunpack.c.l.b16 %v2111
        %v2208 = vunpack.c.l.b16 %v2112
        %v2209 = vunpack.c.l.b16 %v2113
        %v2210 = vunpack.c.l.b16 %v2114
        %v2211 = vunpack.c.l.b16 %v2115
        %v2212 = vunpack.c.l.b16 %v2116
        %v2213 = vunpack.c.l.b16 %v2117
        %v2214 = vunpack.c.l.b16 %v2118
        %v2215 = vunpack.c.l.b16 %v2119
        %v2216 = vunpack.c.l.b16 %v2120
        %v2217 = vunpack.c.l.b16 %v2121
        %v2218 = vunpack.c.l.b16 %v2122
        %v2219 = vunpack.c.l.b16 %v2123
        %v2220 = vunpack.c.l.b16 %v2124
        %v2221 = vunpack.c.l.b16 %v2125
        %v2222 = vpack.c.b16 %v2207, %v2206
        %v2223 = vpack.c.b16 %v2209, %v2208
        %v2224 = vpack.c.b16 %v2211, %v2210
        %v2225 = vpack.c.b16 %v2213, %v2212
        %v2226 = vpack.c.b16 %v2215, %v2214
        %v2227 = vpack.c.b16 %v2217, %v2216
        %v2228 = vpack.c.b16 %v2219, %v2218
        %v2229 = vpack.c.b16 %v2221, %v2220
        %2238 = vmatprep.subr.bf16.mxu0 0
        %2239 = vmatpush1.bf16.msra.mxu0 %v2229
        %2240 = vmatprep.subr.bf16.mxu0 0
        %2241 = vmatpush1.bf16.msra.mxu0 %v2228
        %2242 = vmatprep.subr.bf16.mxu0 0
        %2243 = vmatpush1.bf16.msra.mxu0 %v2227
        %2244 = vmatprep.subr.bf16.mxu0 0
        %2245 = vmatpush1.bf16.msra.mxu0 %v2226
        %2246 = vmatprep.subr.bf16.mxu0 0
        %2247 = vmatpush1.bf16.msra.mxu0 %v2225
        %2248 = vmatprep.subr.bf16.mxu0 0
        %2249 = vmatpush1.bf16.msra.mxu0 %v2224
        %2250 = vmatprep.subr.bf16.mxu0 0
        %2251 = vmatpush1.bf16.msra.mxu0 %v2223
        %2252 = vmatprep.subr.bf16.mxu0 0
        %2253 = vmatpush1.bf16.msra.mxu0 %v2222
        %2254 = vmatprep.subr.bf16.mxu0 0
        %2255 = vmatpush2.bf16.msra.mxu0 0
        %2256 = vmatprep.subr.bf16.mxu0 0
        %2257 = vmatpush2.bf16.msra.mxu0 0
        %2258 = vmatprep.subr.bf16.mxu0 0
        %2259 = vmatpush2.bf16.msra.mxu0 0
        %2260 = vmatprep.subr.bf16.mxu0 0
        %2261 = vmatpush2.bf16.msra.mxu0 0
        %2262 = vmatprep.subr.bf16.mxu0 0
        %2263 = vmatpush2.bf16.msra.mxu0 0
        %2264 = vmatprep.subr.bf16.mxu0 0
        %2265 = vmatpush2.bf16.msra.mxu0 0
        %2266 = vmatprep.subr.bf16.mxu0 0
        %2267 = vmatpush2.bf16.msra.mxu0 0
        %2268 = vmatprep.subr.bf16.mxu0 0
        %2269 = vmatpush2.bf16.msra.mxu0 0
        %2270 = vmatprep.mubr.bf16.mxu0 0
        %2271 = vmatmul.mubr.bf16.gmra.mxu0 %v2158
        %v2272 = vpop.f32.mrf.mxu0
        %v2273 = vadd.f32 0.0, %v2272
        %v2274 = vpop.f32.mrf.mxu0
        %v2275 = vpop.f32.mrf.mxu0
        %v2276 = vadd.f32 0.0, %v2275
        %v2277 = vpop.f32.mrf.mxu0
        %2278 = vmatprep.mubr.bf16.mxu0 0
        %2279 = vmatmul.mubr.bf16.gmra.mxu0 %v2159
        %v2280 = vpop.f32.mrf.mxu0
        %v2281 = vadd.f32 0.0, %v2280
        %v2282 = vpop.f32.mrf.mxu0
        %v2283 = vpop.f32.mrf.mxu0
        %v2284 = vadd.f32 0.0, %v2283
        %v2285 = vpop.f32.mrf.mxu0
        %2286 = vmatprep.mubr.bf16.mxu0 0
        %2287 = vmatmul.mubr.bf16.gmra.mxu0 %v2160
        %v2288 = vpop.f32.mrf.mxu0
        %v2289 = vadd.f32 0.0, %v2288
        %v2290 = vpop.f32.mrf.mxu0
        %v2291 = vpop.f32.mrf.mxu0
        %v2292 = vadd.f32 0.0, %v2291
        %v2293 = vpop.f32.mrf.mxu0
        %2294 = vmatprep.mubr.bf16.mxu0 0
        %2295 = vmatmul.mubr.bf16.gmra.mxu0 %v2161
        %v2296 = vpop.f32.mrf.mxu0
        %v2297 = vadd.f32 0.0, %v2296
        %v2298 = vpop.f32.mrf.mxu0
        %v2299 = vpop.f32.mrf.mxu0
        %v2300 = vadd.f32 0.0, %v2299
        %v2301 = vpop.f32.mrf.mxu0
        %2302 = vmatprep.mubr.bf16.mxu0 0
        %2303 = vmatmul.mubr.bf16.gmra.mxu0 %v2162
        %v2304 = vpop.f32.mrf.mxu0
        %v2305 = vadd.f32 0.0, %v2304
        %v2306 = vpop.f32.mrf.mxu0
        %v2307 = vpop.f32.mrf.mxu0
        %v2308 = vadd.f32 0.0, %v2307
        %v2309 = vpop.f32.mrf.mxu0
        %2310 = vmatprep.mubr.bf16.mxu0 0
        %2311 = vmatmul.mubr.bf16.gmra.mxu0 %v2163
        %v2312 = vpop.f32.mrf.mxu0
        %v2313 = vadd.f32 0.0, %v2312
        %v2314 = vpop.f32.mrf.mxu0
        %v2315 = vpop.f32.mrf.mxu0
        %v2316 = vadd.f32 0.0, %v2315
        %v2317 = vpop.f32.mrf.mxu0
        %2318 = vmatprep.mubr.bf16.mxu0 0
        %2319 = vmatmul.mubr.bf16.gmra.mxu0 %v2164
        %v2320 = vpop.f32.mrf.mxu0
        %v2321 = vadd.f32 0.0, %v2320
        %v2322 = vpop.f32.mrf.mxu0
        %v2323 = vpop.f32.mrf.mxu0
        %v2324 = vadd.f32 0.0, %v2323
        %v2325 = vpop.f32.mrf.mxu0
        %2326 = vmatprep.mubr.bf16.mxu0 0
        %2327 = vmatmul.mubr.bf16.gmra.mxu0 %v2165
        %v2328 = vpop.f32.mrf.mxu0
        %v2329 = vadd.f32 0.0, %v2328
        %v2330 = vpop.f32.mrf.mxu0
        %v2331 = vpop.f32.mrf.mxu0
        %v2332 = vadd.f32 0.0, %v2331
        %v2333 = vpop.f32.mrf.mxu0
        %2334 = vmatprep.mubr.bf16.mxu0 0
        %2335 = vmatmul.mubr.bf16.gmra.mxu0 %v2166
        %v2336 = vpop.f32.mrf.mxu0
        %v2337 = vadd.f32 0.0, %v2336
        %v2338 = vpop.f32.mrf.mxu0
        %v2339 = vpop.f32.mrf.mxu0
        %v2340 = vadd.f32 0.0, %v2339
        %v2341 = vpop.f32.mrf.mxu0
        %2342 = vmatprep.mubr.bf16.mxu0 0
        %2343 = vmatmul.mubr.bf16.gmra.mxu0 %v2167
        %v2344 = vpop.f32.mrf.mxu0
        %v2345 = vadd.f32 0.0, %v2344
        %v2346 = vpop.f32.mrf.mxu0
        %v2347 = vpop.f32.mrf.mxu0
        %v2348 = vadd.f32 0.0, %v2347
        %v2349 = vpop.f32.mrf.mxu0
        %2350 = vmatprep.mubr.bf16.mxu0 0
        %2351 = vmatmul.mubr.bf16.gmra.mxu0 %v2168
        %v2352 = vpop.f32.mrf.mxu0
        %v2353 = vadd.f32 0.0, %v2352
        %v2354 = vpop.f32.mrf.mxu0
        %v2355 = vpop.f32.mrf.mxu0
        %v2356 = vadd.f32 0.0, %v2355
        %v2357 = vpop.f32.mrf.mxu0
        %2358 = vmatprep.mubr.bf16.mxu0 0
        %2359 = vmatmul.mubr.bf16.gmra.mxu0 %v2169
        %v2360 = vpop.f32.mrf.mxu0
        %v2361 = vadd.f32 0.0, %v2360
        %v2362 = vpop.f32.mrf.mxu0
        %v2363 = vpop.f32.mrf.mxu0
        %v2364 = vadd.f32 0.0, %v2363
        %v2365 = vpop.f32.mrf.mxu0
        %2366 = vmatprep.mubr.bf16.mxu0 0
        %2367 = vmatmul.mubr.bf16.gmra.mxu0 %v2170
        %v2368 = vpop.f32.mrf.mxu0
        %v2369 = vadd.f32 0.0, %v2368
        %v2370 = vpop.f32.mrf.mxu0
        %v2371 = vpop.f32.mrf.mxu0
        %v2372 = vadd.f32 0.0, %v2371
        %v2373 = vpop.f32.mrf.mxu0
        %2374 = vmatprep.mubr.bf16.mxu0 0
        %2375 = vmatmul.mubr.bf16.gmra.mxu0 %v2171
        %v2376 = vpop.f32.mrf.mxu0
        %v2377 = vadd.f32 0.0, %v2376
        %v2378 = vpop.f32.mrf.mxu0
        %v2379 = vpop.f32.mrf.mxu0
        %v2380 = vadd.f32 0.0, %v2379
        %v2381 = vpop.f32.mrf.mxu0
        %2382 = vmatprep.mubr.bf16.mxu0 0
        %2383 = vmatmul.mubr.bf16.gmra.mxu0 %v2172
        %v2384 = vpop.f32.mrf.mxu0
        %v2385 = vadd.f32 0.0, %v2384
        %v2386 = vpop.f32.mrf.mxu0
        %v2387 = vpop.f32.mrf.mxu0
        %v2388 = vadd.f32 0.0, %v2387
        %v2389 = vpop.f32.mrf.mxu0
        %2390 = vmatprep.mubr.bf16.mxu0 0
        %2391 = vmatmul.mubr.bf16.gmra.mxu0 %v2173
        %v2392 = vpop.f32.mrf.mxu0
        %v2393 = vadd.f32 0.0, %v2392
        %v2394 = vpop.f32.mrf.mxu0
        %v2395 = vpop.f32.mrf.mxu0
        %v2396 = vadd.f32 0.0, %v2395
        %v2397 = vpop.f32.mrf.mxu0
        %2398 = vdwg.mxu0
        %v2399 = vadd.f32 %v1475, %v2273
        %v2400 = vadd.f32 %v1478, %v2276
        %v2401 = vadd.f32 %v1483, %v2281
        %v2402 = vadd.f32 %v1486, %v2284
        %v2403 = vadd.f32 %v1491, %v2289
        %v2404 = vadd.f32 %v1494, %v2292
        %v2405 = vadd.f32 %v1499, %v2297
        %v2406 = vadd.f32 %v1502, %v2300
        %v2407 = vadd.f32 %v1507, %v2305
        %v2408 = vadd.f32 %v1510, %v2308
        %v2409 = vadd.f32 %v1515, %v2313
        %v2410 = vadd.f32 %v1518, %v2316
        %v2411 = vadd.f32 %v1523, %v2321
        %v2412 = vadd.f32 %v1526, %v2324
        %v2413 = vadd.f32 %v1531, %v2329
        %v2414 = vadd.f32 %v1534, %v2332
        %v2415 = vadd.f32 %v1539, %v2337
        %v2416 = vadd.f32 %v1542, %v2340
        %v2417 = vadd.f32 %v1547, %v2345
        %v2418 = vadd.f32 %v1550, %v2348
        %v2419 = vadd.f32 %v1555, %v2353
        %v2420 = vadd.f32 %v1558, %v2356
        %v2421 = vadd.f32 %v1563, %v2361
        %v2422 = vadd.f32 %v1566, %v2364
        %v2423 = vadd.f32 %v1571, %v2369
        %v2424 = vadd.f32 %v1574, %v2372
        %v2425 = vadd.f32 %v1579, %v2377
        %v2426 = vadd.f32 %v1582, %v2380
        %v2427 = vadd.f32 %v1587, %v2385
        %v2428 = vadd.f32 %v1590, %v2388
        %v2429 = vadd.f32 %v1595, %v2393
        %v2430 = vadd.f32 %v1598, %v2396
        %v2431 = vld [vmem:[%s473 + $0x4] sm:$0x8]
        %v2432 = vld [vmem:[%s473 + $0x8] sm:$0xf]
        %v2433 = vld [vmem:[%s473 + $0xc] sm:$0xf]
        %v2434 = vld [vmem:[%s473 + $0x1c] sm:$0x8]
        %v2435 = vld [vmem:[%s473 + $0x20] sm:$0xf]
        %v2436 = vld [vmem:[%s473 + $0x24] sm:$0xf]
        %v2437 = vld [vmem:[%s473 + $0x34] sm:$0x8]
        %v2438 = vld [vmem:[%s473 + $0x38] sm:$0xf]
        %v2439 = vld [vmem:[%s473 + $0x3c] sm:$0xf]
        %v2440 = vld [vmem:[%s473 + $0x4c] sm:$0x8]
        %v2441 = vld [vmem:[%s473 + $0x50] sm:$0xf]
        %v2442 = vld [vmem:[%s473 + $0x54] sm:$0xf]
        %v2443 = vld [vmem:[%s473 + $0x64] sm:$0x8]
        %v2444 = vld [vmem:[%s473 + $0x68] sm:$0xf]
        %v2445 = vld [vmem:[%s473 + $0x6c] sm:$0xf]
        %v2446 = vld [vmem:[%s473 + $0x7c] sm:$0x8]
        %v2447 = vld [vmem:[%s473 + $0x80] sm:$0xf]
        %v2448 = vld [vmem:[%s473 + $0x84] sm:$0xf]
        %v2449 = vld [vmem:[%s473 + $0x94] sm:$0x8]
        %v2450 = vld [vmem:[%s473 + $0x98] sm:$0xf]
        %v2451 = vld [vmem:[%s473 + $0x9c] sm:$0xf]
        %v2452 = vld [vmem:[%s473 + $0xac] sm:$0x8]
        %v2453 = vld [vmem:[%s473 + $0xb0] sm:$0xf]
        %v2454 = vld [vmem:[%s473 + $0xb4] sm:$0xf]
        %v2455 = vld [vmem:[%s473 + $0xc4] sm:$0x8]
        %v2456 = vld [vmem:[%s473 + $0xc8] sm:$0xf]
        %v2457 = vld [vmem:[%s473 + $0xcc] sm:$0xf]
        %v2458 = vld [vmem:[%s473 + $0xdc] sm:$0x8]
        %v2459 = vld [vmem:[%s473 + $0xe0] sm:$0xf]
        %v2460 = vld [vmem:[%s473 + $0xe4] sm:$0xf]
        %v2461 = vld [vmem:[%s473 + $0xf4] sm:$0x8]
        %v2462 = vld [vmem:[%s473 + $0xf8] sm:$0xf]
        %v2463 = vld [vmem:[%s473 + $0xfc] sm:$0xf]
        %v2464 = vld [vmem:[%s473 + $0x10c] sm:$0x8]
        %v2465 = vld [vmem:[%s473 + $0x110] sm:$0xf]
        %v2466 = vld [vmem:[%s473 + $0x114] sm:$0xf]
        %v2467 = vld [vmem:[%s473 + $0x124] sm:$0x8]
        %v2468 = vld [vmem:[%s473 + $0x128] sm:$0xf]
        %v2469 = vld [vmem:[%s473 + $0x12c] sm:$0xf]
        %v2470 = vld [vmem:[%s473 + $0x13c] sm:$0x8]
        %v2471 = vld [vmem:[%s473 + $0x140] sm:$0xf]
        %v2472 = vld [vmem:[%s473 + $0x144] sm:$0xf]
        %v2473 = vld [vmem:[%s473 + $0x154] sm:$0x8]
        %v2474 = vld [vmem:[%s473 + $0x158] sm:$0xf]
        %v2475 = vld [vmem:[%s473 + $0x15c] sm:$0xf]
        %v2476 = vld [vmem:[%s473 + $0x16c] sm:$0x8]
        %v2477 = vld [vmem:[%s473 + $0x170] sm:$0xf]
        %v2478 = vld [vmem:[%s473 + $0x174] sm:$0xf]
        %v2479 = vsel %vm584, %v2431, 0
        %v2480 = vsel %vm585, %v2432, 0
        %v2481 = vsel %vm586, %v2433, 0
        %v2482 = vsel %vm584, %v2434, 0
        %v2483 = vsel %vm585, %v2435, 0
        %v2484 = vsel %vm586, %v2436, 0
        %v2485 = vsel %vm584, %v2437, 0
        %v2486 = vsel %vm585, %v2438, 0
        %v2487 = vsel %vm586, %v2439, 0
        %v2488 = vsel %vm584, %v2440, 0
        %v2489 = vsel %vm585, %v2441, 0
        %v2490 = vsel %vm586, %v2442, 0
        %v2491 = vsel %vm584, %v2443, 0
        %v2492 = vsel %vm585, %v2444, 0
        %v2493 = vsel %vm586, %v2445, 0
        %v2494 = vsel %vm584, %v2446, 0
        %v2495 = vsel %vm585, %v2447, 0
        %v2496 = vsel %vm586, %v2448, 0
        %v2497 = vsel %vm584, %v2449, 0
        %v2498 = vsel %vm585, %v2450, 0
        %v2499 = vsel %vm586, %v2451, 0
        %v2500 = vsel %vm584, %v2452, 0
        %v2501 = vsel %vm585, %v2453, 0
        %v2502 = vsel %vm586, %v2454, 0
        %v2503 = vsel %vm584, %v2455, 0
        %v2504 = vsel %vm585, %v2456, 0
        %v2505 = vsel %vm586, %v2457, 0
        %v2506 = vsel %vm584, %v2458, 0
        %v2507 = vsel %vm585, %v2459, 0
        %v2508 = vsel %vm586, %v2460, 0
        %v2509 = vsel %vm584, %v2461, 0
        %v2510 = vsel %vm585, %v2462, 0
        %v2511 = vsel %vm586, %v2463, 0
        %v2512 = vsel %vm584, %v2464, 0
        %v2513 = vsel %vm585, %v2465, 0
        %v2514 = vsel %vm586, %v2466, 0
        %v2515 = vsel %vm584, %v2467, 0
        %v2516 = vsel %vm585, %v2468, 0
        %v2517 = vsel %vm586, %v2469, 0
        %v2518 = vsel %vm584, %v2470, 0
        %v2519 = vsel %vm585, %v2471, 0
        %v2520 = vsel %vm586, %v2472, 0
        %v2521 = vsel %vm584, %v2473, 0
        %v2522 = vsel %vm585, %v2474, 0
        %v2523 = vsel %vm586, %v2475, 0
        %v2524 = vsel %vm584, %v2476, 0
        %v2525 = vsel %vm585, %v2477, 0
        %v2526 = vsel %vm586, %v2478, 0
        %v2528 = vshrl.u32 %v2479, 16
        %v2530 = vrot.slane %v2528, 7
        %v2531 = vrot.slane %v2530, 4
        %v2533 = vshrl.u32 %v2480, 16
        %v2535 = vrot.slane %v2533, 7
        %v2536 = vshll.u32 %v2480, 16
        %v2538 = vor.u32 %v2535, %v2536
        %v2539 = vsel %vm637, %v2531, %v2538
        %v2540 = vrot.slane %v2535, 4
        %v2542 = vshrl.u32 %v2481, 16
        %v2544 = vrot.slane %v2542, 7
        %v2545 = vshll.u32 %v2481, 16
        %v2547 = vor.u32 %v2544, %v2545
        %v2548 = vsel %vm637, %v2540, %v2547
        %v2550 = vshrl.u32 %v2482, 16
        %v2552 = vrot.slane %v2550, 7
        %v2553 = vrot.slane %v2552, 4
        %v2555 = vshrl.u32 %v2483, 16
        %v2557 = vrot.slane %v2555, 7
        %v2558 = vshll.u32 %v2483, 16
        %v2560 = vor.u32 %v2557, %v2558
        %v2561 = vsel %vm637, %v2553, %v2560
        %v2562 = vrot.slane %v2557, 4
        %v2564 = vshrl.u32 %v2484, 16
        %v2566 = vrot.slane %v2564, 7
        %v2567 = vshll.u32 %v2484, 16
        %v2569 = vor.u32 %v2566, %v2567
        %v2570 = vsel %vm637, %v2562, %v2569
        %v2572 = vshrl.u32 %v2485, 16
        %v2574 = vrot.slane %v2572, 7
        %v2575 = vrot.slane %v2574, 4
        %v2577 = vshrl.u32 %v2486, 16
        %v2579 = vrot.slane %v2577, 7
        %v2580 = vshll.u32 %v2486, 16
        %v2582 = vor.u32 %v2579, %v2580
        %v2583 = vsel %vm637, %v2575, %v2582
        %v2584 = vrot.slane %v2579, 4
        %v2586 = vshrl.u32 %v2487, 16
        %v2588 = vrot.slane %v2586, 7
        %v2589 = vshll.u32 %v2487, 16
        %v2591 = vor.u32 %v2588, %v2589
        %v2592 = vsel %vm637, %v2584, %v2591
        %v2594 = vshrl.u32 %v2488, 16
        %v2596 = vrot.slane %v2594, 7
        %v2597 = vrot.slane %v2596, 4
        %v2599 = vshrl.u32 %v2489, 16
        %v2601 = vrot.slane %v2599, 7
        %v2602 = vshll.u32 %v2489, 16
        %v2604 = vor.u32 %v2601, %v2602
        %v2605 = vsel %vm637, %v2597, %v2604
        %v2606 = vrot.slane %v2601, 4
        %v2608 = vshrl.u32 %v2490, 16
        %v2610 = vrot.slane %v2608, 7
        %v2611 = vshll.u32 %v2490, 16
        %v2613 = vor.u32 %v2610, %v2611
        %v2614 = vsel %vm637, %v2606, %v2613
        %v2616 = vshrl.u32 %v2491, 16
        %v2618 = vrot.slane %v2616, 7
        %v2619 = vrot.slane %v2618, 4
        %v2621 = vshrl.u32 %v2492, 16
        %v2623 = vrot.slane %v2621, 7
        %v2624 = vshll.u32 %v2492, 16
        %v2626 = vor.u32 %v2623, %v2624
        %v2627 = vsel %vm637, %v2619, %v2626
        %v2628 = vrot.slane %v2623, 4
        %v2630 = vshrl.u32 %v2493, 16
        %v2632 = vrot.slane %v2630, 7
        %v2633 = vshll.u32 %v2493, 16
        %v2635 = vor.u32 %v2632, %v2633
        %v2636 = vsel %vm637, %v2628, %v2635
        %v2638 = vshrl.u32 %v2494, 16
        %v2640 = vrot.slane %v2638, 7
        %v2641 = vrot.slane %v2640, 4
        %v2643 = vshrl.u32 %v2495, 16
        %v2645 = vrot.slane %v2643, 7
        %v2646 = vshll.u32 %v2495, 16
        %v2648 = vor.u32 %v2645, %v2646
        %v2649 = vsel %vm637, %v2641, %v2648
        %v2650 = vrot.slane %v2645, 4
        %v2652 = vshrl.u32 %v2496, 16
        %v2654 = vrot.slane %v2652, 7
        %v2655 = vshll.u32 %v2496, 16
        %v2657 = vor.u32 %v2654, %v2655
        %v2658 = vsel %vm637, %v2650, %v2657
        %v2660 = vshrl.u32 %v2497, 16
        %v2662 = vrot.slane %v2660, 7
        %v2663 = vrot.slane %v2662, 4
        %v2665 = vshrl.u32 %v2498, 16
        %v2667 = vrot.slane %v2665, 7
        %v2668 = vshll.u32 %v2498, 16
        %v2670 = vor.u32 %v2667, %v2668
        %v2671 = vsel %vm637, %v2663, %v2670
        %v2672 = vrot.slane %v2667, 4
        %v2674 = vshrl.u32 %v2499, 16
        %v2676 = vrot.slane %v2674, 7
        %v2677 = vshll.u32 %v2499, 16
        %v2679 = vor.u32 %v2676, %v2677
        %v2680 = vsel %vm637, %v2672, %v2679
        %v2682 = vshrl.u32 %v2500, 16
        %v2684 = vrot.slane %v2682, 7
        %v2685 = vrot.slane %v2684, 4
        %v2687 = vshrl.u32 %v2501, 16
        %v2689 = vrot.slane %v2687, 7
        %v2690 = vshll.u32 %v2501, 16
        %v2692 = vor.u32 %v2689, %v2690
        %v2693 = vsel %vm637, %v2685, %v2692
        %v2694 = vrot.slane %v2689, 4
        %v2696 = vshrl.u32 %v2502, 16
        %v2698 = vrot.slane %v2696, 7
        %v2699 = vshll.u32 %v2502, 16
        %v2701 = vor.u32 %v2698, %v2699
        %v2702 = vsel %vm637, %v2694, %v2701
        %v2704 = vshrl.u32 %v2503, 16
        %v2706 = vrot.slane %v2704, 7
        %v2707 = vrot.slane %v2706, 4
        %v2709 = vshrl.u32 %v2504, 16
        %v2711 = vrot.slane %v2709, 7
        %v2712 = vshll.u32 %v2504, 16
        %v2714 = vor.u32 %v2711, %v2712
        %v2715 = vsel %vm637, %v2707, %v2714
        %v2716 = vrot.slane %v2711, 4
        %v2718 = vshrl.u32 %v2505, 16
        %v2720 = vrot.slane %v2718, 7
        %v2721 = vshll.u32 %v2505, 16
        %v2723 = vor.u32 %v2720, %v2721
        %v2724 = vsel %vm637, %v2716, %v2723
        %v2726 = vshrl.u32 %v2506, 16
        %v2728 = vrot.slane %v2726, 7
        %v2729 = vrot.slane %v2728, 4
        %v2731 = vshrl.u32 %v2507, 16
        %v2733 = vrot.slane %v2731, 7
        %v2734 = vshll.u32 %v2507, 16
        %v2736 = vor.u32 %v2733, %v2734
        %v2737 = vsel %vm637, %v2729, %v2736
        %v2738 = vrot.slane %v2733, 4
        %v2740 = vshrl.u32 %v2508, 16
        %v2742 = vrot.slane %v2740, 7
        %v2743 = vshll.u32 %v2508, 16
        %v2745 = vor.u32 %v2742, %v2743
        %v2746 = vsel %vm637, %v2738, %v2745
        %v2748 = vshrl.u32 %v2509, 16
        %v2750 = vrot.slane %v2748, 7
        %v2751 = vrot.slane %v2750, 4
        %v2753 = vshrl.u32 %v2510, 16
        %v2755 = vrot.slane %v2753, 7
        %v2756 = vshll.u32 %v2510, 16
        %v2758 = vor.u32 %v2755, %v2756
        %v2759 = vsel %vm637, %v2751, %v2758
        %v2760 = vrot.slane %v2755, 4
        %v2762 = vshrl.u32 %v2511, 16
        %v2764 = vrot.slane %v2762, 7
        %v2765 = vshll.u32 %v2511, 16
        %v2767 = vor.u32 %v2764, %v2765
        %v2768 = vsel %vm637, %v2760, %v2767
        %v2770 = vshrl.u32 %v2512, 16
        %v2772 = vrot.slane %v2770, 7
        %v2773 = vrot.slane %v2772, 4
        %v2775 = vshrl.u32 %v2513, 16
        %v2777 = vrot.slane %v2775, 7
        %v2778 = vshll.u32 %v2513, 16
        %v2780 = vor.u32 %v2777, %v2778
        %v2781 = vsel %vm637, %v2773, %v2780
        %v2782 = vrot.slane %v2777, 4
        %v2784 = vshrl.u32 %v2514, 16
        %v2786 = vrot.slane %v2784, 7
        %v2787 = vshll.u32 %v2514, 16
        %v2789 = vor.u32 %v2786, %v2787
        %v2790 = vsel %vm637, %v2782, %v2789
        %v2792 = vshrl.u32 %v2515, 16
        %v2794 = vrot.slane %v2792, 7
        %v2795 = vrot.slane %v2794, 4
        %v2797 = vshrl.u32 %v2516, 16
        %v2799 = vrot.slane %v2797, 7
        %v2800 = vshll.u32 %v2516, 16
        %v2802 = vor.u32 %v2799, %v2800
        %v2803 = vsel %vm637, %v2795, %v2802
        %v2804 = vrot.slane %v2799, 4
        %v2806 = vshrl.u32 %v2517, 16
        %v2808 = vrot.slane %v2806, 7
        %v2809 = vshll.u32 %v2517, 16
        %v2811 = vor.u32 %v2808, %v2809
        %v2812 = vsel %vm637, %v2804, %v2811
        %v2814 = vshrl.u32 %v2518, 16
        %v2816 = vrot.slane %v2814, 7
        %v2817 = vrot.slane %v2816, 4
        %v2819 = vshrl.u32 %v2519, 16
        %v2821 = vrot.slane %v2819, 7
        %v2822 = vshll.u32 %v2519, 16
        %v2824 = vor.u32 %v2821, %v2822
        %v2825 = vsel %vm637, %v2817, %v2824
        %v2826 = vrot.slane %v2821, 4
        %v2828 = vshrl.u32 %v2520, 16
        %v2830 = vrot.slane %v2828, 7
        %v2831 = vshll.u32 %v2520, 16
        %v2833 = vor.u32 %v2830, %v2831
        %v2834 = vsel %vm637, %v2826, %v2833
        %v2836 = vshrl.u32 %v2521, 16
        %v2838 = vrot.slane %v2836, 7
        %v2839 = vrot.slane %v2838, 4
        %v2841 = vshrl.u32 %v2522, 16
        %v2843 = vrot.slane %v2841, 7
        %v2844 = vshll.u32 %v2522, 16
        %v2846 = vor.u32 %v2843, %v2844
        %v2847 = vsel %vm637, %v2839, %v2846
        %v2848 = vrot.slane %v2843, 4
        %v2850 = vshrl.u32 %v2523, 16
        %v2852 = vrot.slane %v2850, 7
        %v2853 = vshll.u32 %v2523, 16
        %v2855 = vor.u32 %v2852, %v2853
        %v2856 = vsel %vm637, %v2848, %v2855
        %v2858 = vshrl.u32 %v2524, 16
        %v2860 = vrot.slane %v2858, 7
        %v2861 = vrot.slane %v2860, 4
        %v2863 = vshrl.u32 %v2525, 16
        %v2865 = vrot.slane %v2863, 7
        %v2866 = vshll.u32 %v2525, 16
        %v2868 = vor.u32 %v2865, %v2866
        %v2869 = vsel %vm637, %v2861, %v2868
        %v2870 = vrot.slane %v2865, 4
        %v2872 = vshrl.u32 %v2526, 16
        %v2874 = vrot.slane %v2872, 7
        %v2875 = vshll.u32 %v2526, 16
        %v2877 = vor.u32 %v2874, %v2875
        %v2878 = vsel %vm637, %v2870, %v2877
        %s2879 = scalar_lea.vmem %s1, 192
        %v2880 = vld [vmem:[%s2879] sm:$0xf]
        %v2881 = vld [vmem:[%s2879 + $0x4] sm:$0xf]
        %v2882 = vld [vmem:[%s2879 + $0x8] sm:$0xf]
        %v2883 = vld [vmem:[%s2879 + $0xc] sm:$0xf]
        %v2884 = vld [vmem:[%s2879 + $0x10] sm:$0xf]
        %v2885 = vld [vmem:[%s2879 + $0x14] sm:$0xf]
        %v2886 = vld [vmem:[%s2879 + $0x18] sm:$0xf]
        %v2887 = vld [vmem:[%s2879 + $0x1c] sm:$0xf]
        %v2888 = vld [vmem:[%s2879 + $0x20] sm:$0xf]
        %v2889 = vld [vmem:[%s2879 + $0x24] sm:$0xf]
        %v2890 = vld [vmem:[%s2879 + $0x28] sm:$0xf]
        %v2891 = vld [vmem:[%s2879 + $0x2c] sm:$0xf]
        %v2892 = vld [vmem:[%s2879 + $0x30] sm:$0xf]
        %v2893 = vld [vmem:[%s2879 + $0x34] sm:$0xf]
        %v2894 = vld [vmem:[%s2879 + $0x38] sm:$0xf]
        %v2895 = vld [vmem:[%s2879 + $0x3c] sm:$0xf]
        %v2896 = vunpack.c.l.b16 %v2539
        %v2897 = vunpack.c.l.b16 %v2548
        %v2898 = vunpack.c.l.b16 %v2561
        %v2899 = vunpack.c.l.b16 %v2570
        %v2900 = vunpack.c.l.b16 %v2583
        %v2901 = vunpack.c.l.b16 %v2592
        %v2902 = vunpack.c.l.b16 %v2605
        %v2903 = vunpack.c.l.b16 %v2614
        %v2904 = vunpack.c.l.b16 %v2627
        %v2905 = vunpack.c.l.b16 %v2636
        %v2906 = vunpack.c.l.b16 %v2649
        %v2907 = vunpack.c.l.b16 %v2658
        %v2908 = vunpack.c.l.b16 %v2671
        %v2909 = vunpack.c.l.b16 %v2680
        %v2910 = vunpack.c.l.b16 %v2693
        %v2911 = vunpack.c.l.b16 %v2702
        %v2912 = vunpack.c.l.b16 %v2715
        %v2913 = vunpack.c.l.b16 %v2724
        %v2914 = vunpack.c.l.b16 %v2737
        %v2915 = vunpack.c.l.b16 %v2746
        %v2916 = vunpack.c.l.b16 %v2759
        %v2917 = vunpack.c.l.b16 %v2768
        %v2918 = vunpack.c.l.b16 %v2781
        %v2919 = vunpack.c.l.b16 %v2790
        %v2920 = vunpack.c.l.b16 %v2803
        %v2921 = vunpack.c.l.b16 %v2812
        %v2922 = vunpack.c.l.b16 %v2825
        %v2923 = vunpack.c.l.b16 %v2834
        %v2924 = vunpack.c.l.b16 %v2847
        %v2925 = vunpack.c.l.b16 %v2856
        %v2926 = vunpack.c.l.b16 %v2869
        %v2927 = vunpack.c.l.b16 %v2878
        %v2928 = vpack.c.b16 %v2897, %v2896
        %v2929 = vpack.c.b16 %v2899, %v2898
        %v2930 = vpack.c.b16 %v2901, %v2900
        %v2931 = vpack.c.b16 %v2903, %v2902
        %v2932 = vpack.c.b16 %v2905, %v2904
        %v2933 = vpack.c.b16 %v2907, %v2906
        %v2934 = vpack.c.b16 %v2909, %v2908
        %v2935 = vpack.c.b16 %v2911, %v2910
        %v2936 = vpack.c.b16 %v2913, %v2912
        %v2937 = vpack.c.b16 %v2915, %v2914
        %v2938 = vpack.c.b16 %v2917, %v2916
        %v2939 = vpack.c.b16 %v2919, %v2918
        %v2940 = vpack.c.b16 %v2921, %v2920
        %v2941 = vpack.c.b16 %v2923, %v2922
        %v2942 = vpack.c.b16 %v2925, %v2924
        %v2943 = vpack.c.b16 %v2927, %v2926
        %v2976 = vunpack.c.l.b16 %v2880
        %v2977 = vunpack.c.l.b16 %v2881
        %v2978 = vunpack.c.l.b16 %v2882
        %v2979 = vunpack.c.l.b16 %v2883
        %v2980 = vunpack.c.l.b16 %v2884
        %v2981 = vunpack.c.l.b16 %v2885
        %v2982 = vunpack.c.l.b16 %v2886
        %v2983 = vunpack.c.l.b16 %v2887
        %v2984 = vunpack.c.l.b16 %v2888
        %v2985 = vunpack.c.l.b16 %v2889
        %v2986 = vunpack.c.l.b16 %v2890
        %v2987 = vunpack.c.l.b16 %v2891
        %v2988 = vunpack.c.l.b16 %v2892
        %v2989 = vunpack.c.l.b16 %v2893
        %v2990 = vunpack.c.l.b16 %v2894
        %v2991 = vunpack.c.l.b16 %v2895
        %v2992 = vpack.c.b16 %v2977, %v2976
        %v2993 = vpack.c.b16 %v2979, %v2978
        %v2994 = vpack.c.b16 %v2981, %v2980
        %v2995 = vpack.c.b16 %v2983, %v2982
        %v2996 = vpack.c.b16 %v2985, %v2984
        %v2997 = vpack.c.b16 %v2987, %v2986
        %v2998 = vpack.c.b16 %v2989, %v2988
        %v2999 = vpack.c.b16 %v2991, %v2990
        %3008 = vmatprep.subr.bf16.mxu0 0
        %3009 = vmatpush1.bf16.msra.mxu0 %v2999
        %3010 = vmatprep.subr.bf16.mxu0 0
        %3011 = vmatpush1.bf16.msra.mxu0 %v2998
        %3012 = vmatprep.subr.bf16.mxu0 0
        %3013 = vmatpush1.bf16.msra.mxu0 %v2997
        %3014 = vmatprep.subr.bf16.mxu0 0
        %3015 = vmatpush1.bf16.msra.mxu0 %v2996
        %3016 = vmatprep.subr.bf16.mxu0 0
        %3017 = vmatpush1.bf16.msra.mxu0 %v2995
        %3018 = vmatprep.subr.bf16.mxu0 0
        %3019 = vmatpush1.bf16.msra.mxu0 %v2994
        %3020 = vmatprep.subr.bf16.mxu0 0
        %3021 = vmatpush1.bf16.msra.mxu0 %v2993
        %3022 = vmatprep.subr.bf16.mxu0 0
        %3023 = vmatpush1.bf16.msra.mxu0 %v2992
        %3024 = vmatprep.subr.bf16.mxu0 0
        %3025 = vmatpush2.bf16.msra.mxu0 0
        %3026 = vmatprep.subr.bf16.mxu0 0
        %3027 = vmatpush2.bf16.msra.mxu0 0
        %3028 = vmatprep.subr.bf16.mxu0 0
        %3029 = vmatpush2.bf16.msra.mxu0 0
        %3030 = vmatprep.subr.bf16.mxu0 0
        %3031 = vmatpush2.bf16.msra.mxu0 0
        %3032 = vmatprep.subr.bf16.mxu0 0
        %3033 = vmatpush2.bf16.msra.mxu0 0
        %3034 = vmatprep.subr.bf16.mxu0 0
        %3035 = vmatpush2.bf16.msra.mxu0 0
        %3036 = vmatprep.subr.bf16.mxu0 0
        %3037 = vmatpush2.bf16.msra.mxu0 0
        %3038 = vmatprep.subr.bf16.mxu0 0
        %3039 = vmatpush2.bf16.msra.mxu0 0
        %3040 = vmatprep.mubr.bf16.mxu0 0
        %3041 = vmatmul.mubr.bf16.gmra.mxu0 %v2928
        %v3042 = vpop.f32.mrf.mxu0
        %v3043 = vadd.f32 0.0, %v3042
        %v3044 = vpop.f32.mrf.mxu0
        %v3045 = vpop.f32.mrf.mxu0
        %v3046 = vadd.f32 0.0, %v3045
        %v3047 = vpop.f32.mrf.mxu0
        %3048 = vmatprep.mubr.bf16.mxu0 0
        %3049 = vmatmul.mubr.bf16.gmra.mxu0 %v2929
        %v3050 = vpop.f32.mrf.mxu0
        %v3051 = vadd.f32 0.0, %v3050
        %v3052 = vpop.f32.mrf.mxu0
        %v3053 = vpop.f32.mrf.mxu0
        %v3054 = vadd.f32 0.0, %v3053
        %v3055 = vpop.f32.mrf.mxu0
        %3056 = vmatprep.mubr.bf16.mxu0 0
        %3057 = vmatmul.mubr.bf16.gmra.mxu0 %v2930
        %v3058 = vpop.f32.mrf.mxu0
        %v3059 = vadd.f32 0.0, %v3058
        %v3060 = vpop.f32.mrf.mxu0
        %v3061 = vpop.f32.mrf.mxu0
        %v3062 = vadd.f32 0.0, %v3061
        %v3063 = vpop.f32.mrf.mxu0
        %3064 = vmatprep.mubr.bf16.mxu0 0
        %3065 = vmatmul.mubr.bf16.gmra.mxu0 %v2931
        %v3066 = vpop.f32.mrf.mxu0
        %v3067 = vadd.f32 0.0, %v3066
        %v3068 = vpop.f32.mrf.mxu0
        %v3069 = vpop.f32.mrf.mxu0
        %v3070 = vadd.f32 0.0, %v3069
        %v3071 = vpop.f32.mrf.mxu0
        %3072 = vmatprep.mubr.bf16.mxu0 0
        %3073 = vmatmul.mubr.bf16.gmra.mxu0 %v2932
        %v3074 = vpop.f32.mrf.mxu0
        %v3075 = vadd.f32 0.0, %v3074
        %v3076 = vpop.f32.mrf.mxu0
        %v3077 = vpop.f32.mrf.mxu0
        %v3078 = vadd.f32 0.0, %v3077
        %v3079 = vpop.f32.mrf.mxu0
        %3080 = vmatprep.mubr.bf16.mxu0 0
        %3081 = vmatmul.mubr.bf16.gmra.mxu0 %v2933
        %v3082 = vpop.f32.mrf.mxu0
        %v3083 = vadd.f32 0.0, %v3082
        %v3084 = vpop.f32.mrf.mxu0
        %v3085 = vpop.f32.mrf.mxu0
        %v3086 = vadd.f32 0.0, %v3085
        %v3087 = vpop.f32.mrf.mxu0
        %3088 = vmatprep.mubr.bf16.mxu0 0
        %3089 = vmatmul.mubr.bf16.gmra.mxu0 %v2934
        %v3090 = vpop.f32.mrf.mxu0
        %v3091 = vadd.f32 0.0, %v3090
        %v3092 = vpop.f32.mrf.mxu0
        %v3093 = vpop.f32.mrf.mxu0
        %v3094 = vadd.f32 0.0, %v3093
        %v3095 = vpop.f32.mrf.mxu0
        %3096 = vmatprep.mubr.bf16.mxu0 0
        %3097 = vmatmul.mubr.bf16.gmra.mxu0 %v2935
        %v3098 = vpop.f32.mrf.mxu0
        %v3099 = vadd.f32 0.0, %v3098
        %v3100 = vpop.f32.mrf.mxu0
        %v3101 = vpop.f32.mrf.mxu0
        %v3102 = vadd.f32 0.0, %v3101
        %v3103 = vpop.f32.mrf.mxu0
        %3104 = vmatprep.mubr.bf16.mxu0 0
        %3105 = vmatmul.mubr.bf16.gmra.mxu0 %v2936
        %v3106 = vpop.f32.mrf.mxu0
        %v3107 = vadd.f32 0.0, %v3106
        %v3108 = vpop.f32.mrf.mxu0
        %v3109 = vpop.f32.mrf.mxu0
        %v3110 = vadd.f32 0.0, %v3109
        %v3111 = vpop.f32.mrf.mxu0
        %3112 = vmatprep.mubr.bf16.mxu0 0
        %3113 = vmatmul.mubr.bf16.gmra.mxu0 %v2937
        %v3114 = vpop.f32.mrf.mxu0
        %v3115 = vadd.f32 0.0, %v3114
        %v3116 = vpop.f32.mrf.mxu0
        %v3117 = vpop.f32.mrf.mxu0
        %v3118 = vadd.f32 0.0, %v3117
        %v3119 = vpop.f32.mrf.mxu0
        %3120 = vmatprep.mubr.bf16.mxu0 0
        %3121 = vmatmul.mubr.bf16.gmra.mxu0 %v2938
        %v3122 = vpop.f32.mrf.mxu0
        %v3123 = vadd.f32 0.0, %v3122
        %v3124 = vpop.f32.mrf.mxu0
        %v3125 = vpop.f32.mrf.mxu0
        %v3126 = vadd.f32 0.0, %v3125
        %v3127 = vpop.f32.mrf.mxu0
        %3128 = vmatprep.mubr.bf16.mxu0 0
        %3129 = vmatmul.mubr.bf16.gmra.mxu0 %v2939
        %v3130 = vpop.f32.mrf.mxu0
        %v3131 = vadd.f32 0.0, %v3130
        %v3132 = vpop.f32.mrf.mxu0
        %v3133 = vpop.f32.mrf.mxu0
        %v3134 = vadd.f32 0.0, %v3133
        %v3135 = vpop.f32.mrf.mxu0
        %3136 = vmatprep.mubr.bf16.mxu0 0
        %3137 = vmatmul.mubr.bf16.gmra.mxu0 %v2940
        %v3138 = vpop.f32.mrf.mxu0
        %v3139 = vadd.f32 0.0, %v3138
        %v3140 = vpop.f32.mrf.mxu0
        %v3141 = vpop.f32.mrf.mxu0
        %v3142 = vadd.f32 0.0, %v3141
        %v3143 = vpop.f32.mrf.mxu0
        %3144 = vmatprep.mubr.bf16.mxu0 0
        %3145 = vmatmul.mubr.bf16.gmra.mxu0 %v2941
        %v3146 = vpop.f32.mrf.mxu0
        %v3147 = vadd.f32 0.0, %v3146
        %v3148 = vpop.f32.mrf.mxu0
        %v3149 = vpop.f32.mrf.mxu0
        %v3150 = vadd.f32 0.0, %v3149
        %v3151 = vpop.f32.mrf.mxu0
        %3152 = vmatprep.mubr.bf16.mxu0 0
        %3153 = vmatmul.mubr.bf16.gmra.mxu0 %v2942
        %v3154 = vpop.f32.mrf.mxu0
        %v3155 = vadd.f32 0.0, %v3154
        %v3156 = vpop.f32.mrf.mxu0
        %v3157 = vpop.f32.mrf.mxu0
        %v3158 = vadd.f32 0.0, %v3157
        %v3159 = vpop.f32.mrf.mxu0
        %3160 = vmatprep.mubr.bf16.mxu0 0
        %3161 = vmatmul.mubr.bf16.gmra.mxu0 %v2943
        %v3162 = vpop.f32.mrf.mxu0
        %v3163 = vadd.f32 0.0, %v3162
        %v3164 = vpop.f32.mrf.mxu0
        %v3165 = vpop.f32.mrf.mxu0
        %v3166 = vadd.f32 0.0, %v3165
        %v3167 = vpop.f32.mrf.mxu0
        %3168 = vdwg.mxu0
        %v3169 = vadd.f32 %v2399, %v3043
        %v3170 = vadd.f32 %v2400, %v3046
        %v3171 = vadd.f32 %v2401, %v3051
        %v3172 = vadd.f32 %v2402, %v3054
        %v3173 = vadd.f32 %v2403, %v3059
        %v3174 = vadd.f32 %v2404, %v3062
        %v3175 = vadd.f32 %v2405, %v3067
        %v3176 = vadd.f32 %v2406, %v3070
        %v3177 = vadd.f32 %v2407, %v3075
        %v3178 = vadd.f32 %v2408, %v3078
        %v3179 = vadd.f32 %v2409, %v3083
        %v3180 = vadd.f32 %v2410, %v3086
        %v3181 = vadd.f32 %v2411, %v3091
        %v3182 = vadd.f32 %v2412, %v3094
        %v3183 = vadd.f32 %v2413, %v3099
        %v3184 = vadd.f32 %v2414, %v3102
        %v3185 = vadd.f32 %v2415, %v3107
        %v3186 = vadd.f32 %v2416, %v3110
        %v3187 = vadd.f32 %v2417, %v3115
        %v3188 = vadd.f32 %v2418, %v3118
        %v3189 = vadd.f32 %v2419, %v3123
        %v3190 = vadd.f32 %v2420, %v3126
        %v3191 = vadd.f32 %v2421, %v3131
        %v3192 = vadd.f32 %v2422, %v3134
        %v3193 = vadd.f32 %v2423, %v3139
        %v3194 = vadd.f32 %v2424, %v3142
        %v3195 = vadd.f32 %v2425, %v3147
        %v3196 = vadd.f32 %v2426, %v3150
        %v3197 = vadd.f32 %v2427, %v3155
        %v3198 = vadd.f32 %v2428, %v3158
        %v3199 = vadd.f32 %v2429, %v3163
        %v3200 = vadd.f32 %v2430, %v3166
        %s3201 = scalar_lea.vmem %s1, 256
        %v3202 = vld [vmem:[%s3201] sm:$0xf]
        %v3203 = vld [vmem:[%s3201 + $0x4] sm:$0xf]
        %v3204 = vld [vmem:[%s3201 + $0x8] sm:$0xf]
        %v3205 = vld [vmem:[%s3201 + $0xc] sm:$0xf]
        %v3206 = vld [vmem:[%s3201 + $0x10] sm:$0xf]
        %v3207 = vld [vmem:[%s3201 + $0x14] sm:$0xf]
        %v3208 = vld [vmem:[%s3201 + $0x18] sm:$0xf]
        %v3209 = vld [vmem:[%s3201 + $0x1c] sm:$0xf]
        %v3210 = vld [vmem:[%s3201 + $0x20] sm:$0xf]
        %v3211 = vld [vmem:[%s3201 + $0x24] sm:$0xf]
        %v3212 = vld [vmem:[%s3201 + $0x28] sm:$0xf]
        %v3213 = vld [vmem:[%s3201 + $0x2c] sm:$0xf]
        %v3214 = vld [vmem:[%s3201 + $0x30] sm:$0xf]
        %v3215 = vld [vmem:[%s3201 + $0x34] sm:$0xf]
        %v3216 = vld [vmem:[%s3201 + $0x38] sm:$0xf]
        %v3217 = vld [vmem:[%s3201 + $0x3c] sm:$0xf]
        %v3250 = vunpack.c.l.b16 %v2432
        %v3251 = vunpack.c.l.b16 %v2433
        %v3252 = vunpack.c.l.b16 %v2435
        %v3253 = vunpack.c.l.b16 %v2436
        %v3254 = vunpack.c.l.b16 %v2438
        %v3255 = vunpack.c.l.b16 %v2439
        %v3256 = vunpack.c.l.b16 %v2441
        %v3257 = vunpack.c.l.b16 %v2442
        %v3258 = vunpack.c.l.b16 %v2444
        %v3259 = vunpack.c.l.b16 %v2445
        %v3260 = vunpack.c.l.b16 %v2447
        %v3261 = vunpack.c.l.b16 %v2448
        %v3262 = vunpack.c.l.b16 %v2450
        %v3263 = vunpack.c.l.b16 %v2451
        %v3264 = vunpack.c.l.b16 %v2453
        %v3265 = vunpack.c.l.b16 %v2454
        %v3266 = vunpack.c.l.b16 %v2456
        %v3267 = vunpack.c.l.b16 %v2457
        %v3268 = vunpack.c.l.b16 %v2459
        %v3269 = vunpack.c.l.b16 %v2460
        %v3270 = vunpack.c.l.b16 %v2462
        %v3271 = vunpack.c.l.b16 %v2463
        %v3272 = vunpack.c.l.b16 %v2465
        %v3273 = vunpack.c.l.b16 %v2466
        %v3274 = vunpack.c.l.b16 %v2468
        %v3275 = vunpack.c.l.b16 %v2469
        %v3276 = vunpack.c.l.b16 %v2471
        %v3277 = vunpack.c.l.b16 %v2472
        %v3278 = vunpack.c.l.b16 %v2474
        %v3279 = vunpack.c.l.b16 %v2475
        %v3280 = vunpack.c.l.b16 %v2477
        %v3281 = vunpack.c.l.b16 %v2478
        %v3282 = vpack.c.b16 %v3251, %v3250
        %v3283 = vpack.c.b16 %v3253, %v3252
        %v3284 = vpack.c.b16 %v3255, %v3254
        %v3285 = vpack.c.b16 %v3257, %v3256
        %v3286 = vpack.c.b16 %v3259, %v3258
        %v3287 = vpack.c.b16 %v3261, %v3260
        %v3288 = vpack.c.b16 %v3263, %v3262
        %v3289 = vpack.c.b16 %v3265, %v3264
        %v3290 = vpack.c.b16 %v3267, %v3266
        %v3291 = vpack.c.b16 %v3269, %v3268
        %v3292 = vpack.c.b16 %v3271, %v3270
        %v3293 = vpack.c.b16 %v3273, %v3272
        %v3294 = vpack.c.b16 %v3275, %v3274
        %v3295 = vpack.c.b16 %v3277, %v3276
        %v3296 = vpack.c.b16 %v3279, %v3278
        %v3297 = vpack.c.b16 %v3281, %v3280
        %v3330 = vunpack.c.l.b16 %v3202
        %v3331 = vunpack.c.l.b16 %v3203
        %v3332 = vunpack.c.l.b16 %v3204
        %v3333 = vunpack.c.l.b16 %v3205
        %v3334 = vunpack.c.l.b16 %v3206
        %v3335 = vunpack.c.l.b16 %v3207
        %v3336 = vunpack.c.l.b16 %v3208
        %v3337 = vunpack.c.l.b16 %v3209
        %v3338 = vunpack.c.l.b16 %v3210
        %v3339 = vunpack.c.l.b16 %v3211
        %v3340 = vunpack.c.l.b16 %v3212
        %v3341 = vunpack.c.l.b16 %v3213
        %v3342 = vunpack.c.l.b16 %v3214
        %v3343 = vunpack.c.l.b16 %v3215
        %v3344 = vunpack.c.l.b16 %v3216
        %v3345 = vunpack.c.l.b16 %v3217
        %v3346 = vpack.c.b16 %v3331, %v3330
        %v3347 = vpack.c.b16 %v3333, %v3332
        %v3348 = vpack.c.b16 %v3335, %v3334
        %v3349 = vpack.c.b16 %v3337, %v3336
        %v3350 = vpack.c.b16 %v3339, %v3338
        %v3351 = vpack.c.b16 %v3341, %v3340
        %v3352 = vpack.c.b16 %v3343, %v3342
        %v3353 = vpack.c.b16 %v3345, %v3344
        %3362 = vmatprep.subr.bf16.mxu0 0
        %3363 = vmatpush1.bf16.msra.mxu0 %v3353
        %3364 = vmatprep.subr.bf16.mxu0 0
        %3365 = vmatpush1.bf16.msra.mxu0 %v3352
        %3366 = vmatprep.subr.bf16.mxu0 0
        %3367 = vmatpush1.bf16.msra.mxu0 %v3351
        %3368 = vmatprep.subr.bf16.mxu0 0
        %3369 = vmatpush1.bf16.msra.mxu0 %v3350
        %3370 = vmatprep.subr.bf16.mxu0 0
        %3371 = vmatpush1.bf16.msra.mxu0 %v3349
        %3372 = vmatprep.subr.bf16.mxu0 0
        %3373 = vmatpush1.bf16.msra.mxu0 %v3348
        %3374 = vmatprep.subr.bf16.mxu0 0
        %3375 = vmatpush1.bf16.msra.mxu0 %v3347
        %3376 = vmatprep.subr.bf16.mxu0 0
        %3377 = vmatpush1.bf16.msra.mxu0 %v3346
        %3378 = vmatprep.subr.bf16.mxu0 0
        %3379 = vmatpush2.bf16.msra.mxu0 0
        %3380 = vmatprep.subr.bf16.mxu0 0
        %3381 = vmatpush2.bf16.msra.mxu0 0
        %3382 = vmatprep.subr.bf16.mxu0 0
        %3383 = vmatpush2.bf16.msra.mxu0 0
        %3384 = vmatprep.subr.bf16.mxu0 0
        %3385 = vmatpush2.bf16.msra.mxu0 0
        %3386 = vmatprep.subr.bf16.mxu0 0
        %3387 = vmatpush2.bf16.msra.mxu0 0
        %3388 = vmatprep.subr.bf16.mxu0 0
        %3389 = vmatpush2.bf16.msra.mxu0 0
        %3390 = vmatprep.subr.bf16.mxu0 0
        %3391 = vmatpush2.bf16.msra.mxu0 0
        %3392 = vmatprep.subr.bf16.mxu0 0
        %3393 = vmatpush2.bf16.msra.mxu0 0
        %3394 = vmatprep.mubr.bf16.mxu0 0
        %3395 = vmatmul.mubr.bf16.gmra.mxu0 %v3282
        %v3396 = vpop.f32.mrf.mxu0
        %v3397 = vadd.f32 0.0, %v3396
        %v3398 = vpop.f32.mrf.mxu0
        %v3399 = vpop.f32.mrf.mxu0
        %v3400 = vadd.f32 0.0, %v3399
        %v3401 = vpop.f32.mrf.mxu0
        %3402 = vmatprep.mubr.bf16.mxu0 0
        %3403 = vmatmul.mubr.bf16.gmra.mxu0 %v3283
        %v3404 = vpop.f32.mrf.mxu0
        %v3405 = vadd.f32 0.0, %v3404
        %v3406 = vpop.f32.mrf.mxu0
        %v3407 = vpop.f32.mrf.mxu0
        %v3408 = vadd.f32 0.0, %v3407
        %v3409 = vpop.f32.mrf.mxu0
        %3410 = vmatprep.mubr.bf16.mxu0 0
        %3411 = vmatmul.mubr.bf16.gmra.mxu0 %v3284
        %v3412 = vpop.f32.mrf.mxu0
        %v3413 = vadd.f32 0.0, %v3412
        %v3414 = vpop.f32.mrf.mxu0
        %v3415 = vpop.f32.mrf.mxu0
        %v3416 = vadd.f32 0.0, %v3415
        %v3417 = vpop.f32.mrf.mxu0
        %3418 = vmatprep.mubr.bf16.mxu0 0
        %3419 = vmatmul.mubr.bf16.gmra.mxu0 %v3285
        %v3420 = vpop.f32.mrf.mxu0
        %v3421 = vadd.f32 0.0, %v3420
        %v3422 = vpop.f32.mrf.mxu0
        %v3423 = vpop.f32.mrf.mxu0
        %v3424 = vadd.f32 0.0, %v3423
        %v3425 = vpop.f32.mrf.mxu0
        %3426 = vmatprep.mubr.bf16.mxu0 0
        %3427 = vmatmul.mubr.bf16.gmra.mxu0 %v3286
        %v3428 = vpop.f32.mrf.mxu0
        %v3429 = vadd.f32 0.0, %v3428
        %v3430 = vpop.f32.mrf.mxu0
        %v3431 = vpop.f32.mrf.mxu0
        %v3432 = vadd.f32 0.0, %v3431
        %v3433 = vpop.f32.mrf.mxu0
        %3434 = vmatprep.mubr.bf16.mxu0 0
        %3435 = vmatmul.mubr.bf16.gmra.mxu0 %v3287
        %v3436 = vpop.f32.mrf.mxu0
        %v3437 = vadd.f32 0.0, %v3436
        %v3438 = vpop.f32.mrf.mxu0
        %v3439 = vpop.f32.mrf.mxu0
        %v3440 = vadd.f32 0.0, %v3439
        %v3441 = vpop.f32.mrf.mxu0
        %3442 = vmatprep.mubr.bf16.mxu0 0
        %3443 = vmatmul.mubr.bf16.gmra.mxu0 %v3288
        %v3444 = vpop.f32.mrf.mxu0
        %v3445 = vadd.f32 0.0, %v3444
        %v3446 = vpop.f32.mrf.mxu0
        %v3447 = vpop.f32.mrf.mxu0
        %v3448 = vadd.f32 0.0, %v3447
        %v3449 = vpop.f32.mrf.mxu0
        %3450 = vmatprep.mubr.bf16.mxu0 0
        %3451 = vmatmul.mubr.bf16.gmra.mxu0 %v3289
        %v3452 = vpop.f32.mrf.mxu0
        %v3453 = vadd.f32 0.0, %v3452
        %v3454 = vpop.f32.mrf.mxu0
        %v3455 = vpop.f32.mrf.mxu0
        %v3456 = vadd.f32 0.0, %v3455
        %v3457 = vpop.f32.mrf.mxu0
        %3458 = vmatprep.mubr.bf16.mxu0 0
        %3459 = vmatmul.mubr.bf16.gmra.mxu0 %v3290
        %v3460 = vpop.f32.mrf.mxu0
        %v3461 = vadd.f32 0.0, %v3460
        %v3462 = vpop.f32.mrf.mxu0
        %v3463 = vpop.f32.mrf.mxu0
        %v3464 = vadd.f32 0.0, %v3463
        %v3465 = vpop.f32.mrf.mxu0
        %3466 = vmatprep.mubr.bf16.mxu0 0
        %3467 = vmatmul.mubr.bf16.gmra.mxu0 %v3291
        %v3468 = vpop.f32.mrf.mxu0
        %v3469 = vadd.f32 0.0, %v3468
        %v3470 = vpop.f32.mrf.mxu0
        %v3471 = vpop.f32.mrf.mxu0
        %v3472 = vadd.f32 0.0, %v3471
        %v3473 = vpop.f32.mrf.mxu0
        %3474 = vmatprep.mubr.bf16.mxu0 0
        %3475 = vmatmul.mubr.bf16.gmra.mxu0 %v3292
        %v3476 = vpop.f32.mrf.mxu0
        %v3477 = vadd.f32 0.0, %v3476
        %v3478 = vpop.f32.mrf.mxu0
        %v3479 = vpop.f32.mrf.mxu0
        %v3480 = vadd.f32 0.0, %v3479
        %v3481 = vpop.f32.mrf.mxu0
        %3482 = vmatprep.mubr.bf16.mxu0 0
        %3483 = vmatmul.mubr.bf16.gmra.mxu0 %v3293
        %v3484 = vpop.f32.mrf.mxu0
        %v3485 = vadd.f32 0.0, %v3484
        %v3486 = vpop.f32.mrf.mxu0
        %v3487 = vpop.f32.mrf.mxu0
        %v3488 = vadd.f32 0.0, %v3487
        %v3489 = vpop.f32.mrf.mxu0
        %3490 = vmatprep.mubr.bf16.mxu0 0
        %3491 = vmatmul.mubr.bf16.gmra.mxu0 %v3294
        %v3492 = vpop.f32.mrf.mxu0
        %v3493 = vadd.f32 0.0, %v3492
        %v3494 = vpop.f32.mrf.mxu0
        %v3495 = vpop.f32.mrf.mxu0
        %v3496 = vadd.f32 0.0, %v3495
        %v3497 = vpop.f32.mrf.mxu0
        %3498 = vmatprep.mubr.bf16.mxu0 0
        %3499 = vmatmul.mubr.bf16.gmra.mxu0 %v3295
        %v3500 = vpop.f32.mrf.mxu0
        %v3501 = vadd.f32 0.0, %v3500
        %v3502 = vpop.f32.mrf.mxu0
        %v3503 = vpop.f32.mrf.mxu0
        %v3504 = vadd.f32 0.0, %v3503
        %v3505 = vpop.f32.mrf.mxu0
        %3506 = vmatprep.mubr.bf16.mxu0 0
        %3507 = vmatmul.mubr.bf16.gmra.mxu0 %v3296
        %v3508 = vpop.f32.mrf.mxu0
        %v3509 = vadd.f32 0.0, %v3508
        %v3510 = vpop.f32.mrf.mxu0
        %v3511 = vpop.f32.mrf.mxu0
        %v3512 = vadd.f32 0.0, %v3511
        %v3513 = vpop.f32.mrf.mxu0
        %3514 = vmatprep.mubr.bf16.mxu0 0
        %3515 = vmatmul.mubr.bf16.gmra.mxu0 %v3297
        %v3516 = vpop.f32.mrf.mxu0
        %v3517 = vadd.f32 0.0, %v3516
        %v3518 = vpop.f32.mrf.mxu0
        %v3519 = vpop.f32.mrf.mxu0
        %v3520 = vadd.f32 0.0, %v3519
        %v3521 = vpop.f32.mrf.mxu0
        %3522 = vdwg.mxu0
        %v3523 = vadd.f32 %v3169, %v3397
        %v3524 = vadd.f32 %v3170, %v3400
        %v3525 = vadd.f32 %v3171, %v3405
        %v3526 = vadd.f32 %v3172, %v3408
        %v3527 = vadd.f32 %v3173, %v3413
        %v3528 = vadd.f32 %v3174, %v3416
        %v3529 = vadd.f32 %v3175, %v3421
        %v3530 = vadd.f32 %v3176, %v3424
        %v3531 = vadd.f32 %v3177, %v3429
        %v3532 = vadd.f32 %v3178, %v3432
        %v3533 = vadd.f32 %v3179, %v3437
        %v3534 = vadd.f32 %v3180, %v3440
        %v3535 = vadd.f32 %v3181, %v3445
        %v3536 = vadd.f32 %v3182, %v3448
        %v3537 = vadd.f32 %v3183, %v3453
        %v3538 = vadd.f32 %v3184, %v3456
        %v3539 = vadd.f32 %v3185, %v3461
        %v3540 = vadd.f32 %v3186, %v3464
        %v3541 = vadd.f32 %v3187, %v3469
        %v3542 = vadd.f32 %v3188, %v3472
        %v3543 = vadd.f32 %v3189, %v3477
        %v3544 = vadd.f32 %v3190, %v3480
        %v3545 = vadd.f32 %v3191, %v3485
        %v3546 = vadd.f32 %v3192, %v3488
        %v3547 = vadd.f32 %v3193, %v3493
        %v3548 = vadd.f32 %v3194, %v3496
        %v3549 = vadd.f32 %v3195, %v3501
        %v3550 = vadd.f32 %v3196, %v3504
        %v3551 = vadd.f32 %v3197, %v3509
        %v3552 = vadd.f32 %v3198, %v3512
        %v3553 = vadd.f32 %v3199, %v3517
        %v3554 = vadd.f32 %v3200, %v3520
        %v3555 = vld [vmem:[%s473 + $0x8] sm:$0xf]
        %v3556 = vld [vmem:[%s473 + $0xc] sm:$0xf]
        %v3557 = vld [vmem:[%s473 + $0x10] sm:$0x1]
        %v3558 = vld [vmem:[%s473 + $0x20] sm:$0xf]
        %v3559 = vld [vmem:[%s473 + $0x24] sm:$0xf]
        %v3560 = vld [vmem:[%s473 + $0x28] sm:$0x1]
        %v3561 = vld [vmem:[%s473 + $0x38] sm:$0xf]
        %v3562 = vld [vmem:[%s473 + $0x3c] sm:$0xf]
        %v3563 = vld [vmem:[%s473 + $0x40] sm:$0x1]
        %v3564 = vld [vmem:[%s473 + $0x50] sm:$0xf]
        %v3565 = vld [vmem:[%s473 + $0x54] sm:$0xf]
        %v3566 = vld [vmem:[%s473 + $0x58] sm:$0x1]
        %v3567 = vld [vmem:[%s473 + $0x68] sm:$0xf]
        %v3568 = vld [vmem:[%s473 + $0x6c] sm:$0xf]
        %v3569 = vld [vmem:[%s473 + $0x70] sm:$0x1]
        %v3570 = vld [vmem:[%s473 + $0x80] sm:$0xf]
        %v3571 = vld [vmem:[%s473 + $0x84] sm:$0xf]
        %v3572 = vld [vmem:[%s473 + $0x88] sm:$0x1]
        %v3573 = vld [vmem:[%s473 + $0x98] sm:$0xf]
        %v3574 = vld [vmem:[%s473 + $0x9c] sm:$0xf]
        %v3575 = vld [vmem:[%s473 + $0xa0] sm:$0x1]
        %v3576 = vld [vmem:[%s473 + $0xb0] sm:$0xf]
        %v3577 = vld [vmem:[%s473 + $0xb4] sm:$0xf]
        %v3578 = vld [vmem:[%s473 + $0xb8] sm:$0x1]
        %v3579 = vld [vmem:[%s473 + $0xc8] sm:$0xf]
        %v3580 = vld [vmem:[%s473 + $0xcc] sm:$0xf]
        %v3581 = vld [vmem:[%s473 + $0xd0] sm:$0x1]
        %v3582 = vld [vmem:[%s473 + $0xe0] sm:$0xf]
        %v3583 = vld [vmem:[%s473 + $0xe4] sm:$0xf]
        %v3584 = vld [vmem:[%s473 + $0xe8] sm:$0x1]
        %v3585 = vld [vmem:[%s473 + $0xf8] sm:$0xf]
        %v3586 = vld [vmem:[%s473 + $0xfc] sm:$0xf]
        %v3587 = vld [vmem:[%s473 + $0x100] sm:$0x1]
        %v3588 = vld [vmem:[%s473 + $0x110] sm:$0xf]
        %v3589 = vld [vmem:[%s473 + $0x114] sm:$0xf]
        %v3590 = vld [vmem:[%s473 + $0x118] sm:$0x1]
        %v3591 = vld [vmem:[%s473 + $0x128] sm:$0xf]
        %v3592 = vld [vmem:[%s473 + $0x12c] sm:$0xf]
        %v3593 = vld [vmem:[%s473 + $0x130] sm:$0x1]
        %v3594 = vld [vmem:[%s473 + $0x140] sm:$0xf]
        %v3595 = vld [vmem:[%s473 + $0x144] sm:$0xf]
        %v3596 = vld [vmem:[%s473 + $0x148] sm:$0x1]
        %v3597 = vld [vmem:[%s473 + $0x158] sm:$0xf]
        %v3598 = vld [vmem:[%s473 + $0x15c] sm:$0xf]
        %v3599 = vld [vmem:[%s473 + $0x160] sm:$0x1]
        %v3600 = vld [vmem:[%s473 + $0x170] sm:$0xf]
        %v3601 = vld [vmem:[%s473 + $0x174] sm:$0xf]
        %v3602 = vld [vmem:[%s473 + $0x178] sm:$0x1]
        %v3603 = vsel %vm1674, %v3555, 0
        %v3604 = vsel %vm1675, %v3556, 0
        %v3605 = vsel %vm1676, %v3557, 0
        %v3606 = vsel %vm1674, %v3558, 0
        %v3607 = vsel %vm1675, %v3559, 0
        %v3608 = vsel %vm1676, %v3560, 0
        %v3609 = vsel %vm1674, %v3561, 0
        %v3610 = vsel %vm1675, %v3562, 0
        %v3611 = vsel %vm1676, %v3563, 0
        %v3612 = vsel %vm1674, %v3564, 0
        %v3613 = vsel %vm1675, %v3565, 0
        %v3614 = vsel %vm1676, %v3566, 0
        %v3615 = vsel %vm1674, %v3567, 0
        %v3616 = vsel %vm1675, %v3568, 0
        %v3617 = vsel %vm1676, %v3569, 0
        %v3618 = vsel %vm1674, %v3570, 0
        %v3619 = vsel %vm1675, %v3571, 0
        %v3620 = vsel %vm1676, %v3572, 0
        %v3621 = vsel %vm1674, %v3573, 0
        %v3622 = vsel %vm1675, %v3574, 0
        %v3623 = vsel %vm1676, %v3575, 0
        %v3624 = vsel %vm1674, %v3576, 0
        %v3625 = vsel %vm1675, %v3577, 0
        %v3626 = vsel %vm1676, %v3578, 0
        %v3627 = vsel %vm1674, %v3579, 0
        %v3628 = vsel %vm1675, %v3580, 0
        %v3629 = vsel %vm1676, %v3581, 0
        %v3630 = vsel %vm1674, %v3582, 0
        %v3631 = vsel %vm1675, %v3583, 0
        %v3632 = vsel %vm1676, %v3584, 0
        %v3633 = vsel %vm1674, %v3585, 0
        %v3634 = vsel %vm1675, %v3586, 0
        %v3635 = vsel %vm1676, %v3587, 0
        %v3636 = vsel %vm1674, %v3588, 0
        %v3637 = vsel %vm1675, %v3589, 0
        %v3638 = vsel %vm1676, %v3590, 0
        %v3639 = vsel %vm1674, %v3591, 0
        %v3640 = vsel %vm1675, %v3592, 0
        %v3641 = vsel %vm1676, %v3593, 0
        %v3642 = vsel %vm1674, %v3594, 0
        %v3643 = vsel %vm1675, %v3595, 0
        %v3644 = vsel %vm1676, %v3596, 0
        %v3645 = vsel %vm1674, %v3597, 0
        %v3646 = vsel %vm1675, %v3598, 0
        %v3647 = vsel %vm1676, %v3599, 0
        %v3648 = vsel %vm1674, %v3600, 0
        %v3649 = vsel %vm1675, %v3601, 0
        %v3650 = vsel %vm1676, %v3602, 0
        %v3652 = vshrl.u32 %v3603, 16
        %v3654 = vrot.slane %v3652, 4
        %v3655 = vshll.u32 %v3603, 16
        %v3657 = vrot.slane %v3655, 5
        %v3658 = vor.u32 %v3654, %v3657
        %v3659 = vrot.slane %v3658, 4
        %v3661 = vshll.u32 %v3604, 16
        %v3663 = vrot.slane %v3661, 5
        %v3664 = vsel %vm564, %v3659, %v3663
        %v3665 = vshrl.u32 %v3604, 16
        %v3667 = vrot.slane %v3665, 4
        %v3668 = vor.u32 %v3667, %v3663
        %v3669 = vrot.slane %v3668, 4
        %v3671 = vshll.u32 %v3605, 16
        %v3673 = vrot.slane %v3671, 5
        %v3674 = vsel %vm564, %v3669, %v3673
        %v3676 = vshrl.u32 %v3606, 16
        %v3678 = vrot.slane %v3676, 4
        %v3679 = vshll.u32 %v3606, 16
        %v3681 = vrot.slane %v3679, 5
        %v3682 = vor.u32 %v3678, %v3681
        %v3683 = vrot.slane %v3682, 4
        %v3685 = vshll.u32 %v3607, 16
        %v3687 = vrot.slane %v3685, 5
        %v3688 = vsel %vm564, %v3683, %v3687
        %v3689 = vshrl.u32 %v3607, 16
        %v3691 = vrot.slane %v3689, 4
        %v3692 = vor.u32 %v3691, %v3687
        %v3693 = vrot.slane %v3692, 4
        %v3695 = vshll.u32 %v3608, 16
        %v3697 = vrot.slane %v3695, 5
        %v3698 = vsel %vm564, %v3693, %v3697
        %v3700 = vshrl.u32 %v3609, 16
        %v3702 = vrot.slane %v3700, 4
        %v3703 = vshll.u32 %v3609, 16
        %v3705 = vrot.slane %v3703, 5
        %v3706 = vor.u32 %v3702, %v3705
        %v3707 = vrot.slane %v3706, 4
        %v3709 = vshll.u32 %v3610, 16
        %v3711 = vrot.slane %v3709, 5
        %v3712 = vsel %vm564, %v3707, %v3711
        %v3713 = vshrl.u32 %v3610, 16
        %v3715 = vrot.slane %v3713, 4
        %v3716 = vor.u32 %v3715, %v3711
        %v3717 = vrot.slane %v3716, 4
        %v3719 = vshll.u32 %v3611, 16
        %v3721 = vrot.slane %v3719, 5
        %v3722 = vsel %vm564, %v3717, %v3721
        %v3724 = vshrl.u32 %v3612, 16
        %v3726 = vrot.slane %v3724, 4
        %v3727 = vshll.u32 %v3612, 16
        %v3729 = vrot.slane %v3727, 5
        %v3730 = vor.u32 %v3726, %v3729
        %v3731 = vrot.slane %v3730, 4
        %v3733 = vshll.u32 %v3613, 16
        %v3735 = vrot.slane %v3733, 5
        %v3736 = vsel %vm564, %v3731, %v3735
        %v3737 = vshrl.u32 %v3613, 16
        %v3739 = vrot.slane %v3737, 4
        %v3740 = vor.u32 %v3739, %v3735
        %v3741 = vrot.slane %v3740, 4
        %v3743 = vshll.u32 %v3614, 16
        %v3745 = vrot.slane %v3743, 5
        %v3746 = vsel %vm564, %v3741, %v3745
        %v3748 = vshrl.u32 %v3615, 16
        %v3750 = vrot.slane %v3748, 4
        %v3751 = vshll.u32 %v3615, 16
        %v3753 = vrot.slane %v3751, 5
        %v3754 = vor.u32 %v3750, %v3753
        %v3755 = vrot.slane %v3754, 4
        %v3757 = vshll.u32 %v3616, 16
        %v3759 = vrot.slane %v3757, 5
        %v3760 = vsel %vm564, %v3755, %v3759
        %v3761 = vshrl.u32 %v3616, 16
        %v3763 = vrot.slane %v3761, 4
        %v3764 = vor.u32 %v3763, %v3759
        %v3765 = vrot.slane %v3764, 4
        %v3767 = vshll.u32 %v3617, 16
        %v3769 = vrot.slane %v3767, 5
        %v3770 = vsel %vm564, %v3765, %v3769
        %v3772 = vshrl.u32 %v3618, 16
        %v3774 = vrot.slane %v3772, 4
        %v3775 = vshll.u32 %v3618, 16
        %v3777 = vrot.slane %v3775, 5
        %v3778 = vor.u32 %v3774, %v3777
        %v3779 = vrot.slane %v3778, 4
        %v3781 = vshll.u32 %v3619, 16
        %v3783 = vrot.slane %v3781, 5
        %v3784 = vsel %vm564, %v3779, %v3783
        %v3785 = vshrl.u32 %v3619, 16
        %v3787 = vrot.slane %v3785, 4
        %v3788 = vor.u32 %v3787, %v3783
        %v3789 = vrot.slane %v3788, 4
        %v3791 = vshll.u32 %v3620, 16
        %v3793 = vrot.slane %v3791, 5
        %v3794 = vsel %vm564, %v3789, %v3793
        %v3796 = vshrl.u32 %v3621, 16
        %v3798 = vrot.slane %v3796, 4
        %v3799 = vshll.u32 %v3621, 16
        %v3801 = vrot.slane %v3799, 5
        %v3802 = vor.u32 %v3798, %v3801
        %v3803 = vrot.slane %v3802, 4
        %v3805 = vshll.u32 %v3622, 16
        %v3807 = vrot.slane %v3805, 5
        %v3808 = vsel %vm564, %v3803, %v3807
        %v3809 = vshrl.u32 %v3622, 16
        %v3811 = vrot.slane %v3809, 4
        %v3812 = vor.u32 %v3811, %v3807
        %v3813 = vrot.slane %v3812, 4
        %v3815 = vshll.u32 %v3623, 16
        %v3817 = vrot.slane %v3815, 5
        %v3818 = vsel %vm564, %v3813, %v3817
        %v3820 = vshrl.u32 %v3624, 16
        %v3822 = vrot.slane %v3820, 4
        %v3823 = vshll.u32 %v3624, 16
        %v3825 = vrot.slane %v3823, 5
        %v3826 = vor.u32 %v3822, %v3825
        %v3827 = vrot.slane %v3826, 4
        %v3829 = vshll.u32 %v3625, 16
        %v3831 = vrot.slane %v3829, 5
        %v3832 = vsel %vm564, %v3827, %v3831
        %v3833 = vshrl.u32 %v3625, 16
        %v3835 = vrot.slane %v3833, 4
        %v3836 = vor.u32 %v3835, %v3831
        %v3837 = vrot.slane %v3836, 4
        %v3839 = vshll.u32 %v3626, 16
        %v3841 = vrot.slane %v3839, 5
        %v3842 = vsel %vm564, %v3837, %v3841
        %v3844 = vshrl.u32 %v3627, 16
        %v3846 = vrot.slane %v3844, 4
        %v3847 = vshll.u32 %v3627, 16
        %v3849 = vrot.slane %v3847, 5
        %v3850 = vor.u32 %v3846, %v3849
        %v3851 = vrot.slane %v3850, 4
        %v3853 = vshll.u32 %v3628, 16
        %v3855 = vrot.slane %v3853, 5
        %v3856 = vsel %vm564, %v3851, %v3855
        %v3857 = vshrl.u32 %v3628, 16
        %v3859 = vrot.slane %v3857, 4
        %v3860 = vor.u32 %v3859, %v3855
        %v3861 = vrot.slane %v3860, 4
        %v3863 = vshll.u32 %v3629, 16
        %v3865 = vrot.slane %v3863, 5
        %v3866 = vsel %vm564, %v3861, %v3865
        %v3868 = vshrl.u32 %v3630, 16
        %v3870 = vrot.slane %v3868, 4
        %v3871 = vshll.u32 %v3630, 16
        %v3873 = vrot.slane %v3871, 5
        %v3874 = vor.u32 %v3870, %v3873
        %v3875 = vrot.slane %v3874, 4
        %v3877 = vshll.u32 %v3631, 16
        %v3879 = vrot.slane %v3877, 5
        %v3880 = vsel %vm564, %v3875, %v3879
        %v3881 = vshrl.u32 %v3631, 16
        %v3883 = vrot.slane %v3881, 4
        %v3884 = vor.u32 %v3883, %v3879
        %v3885 = vrot.slane %v3884, 4
        %v3887 = vshll.u32 %v3632, 16
        %v3889 = vrot.slane %v3887, 5
        %v3890 = vsel %vm564, %v3885, %v3889
        %v3892 = vshrl.u32 %v3633, 16
        %v3894 = vrot.slane %v3892, 4
        %v3895 = vshll.u32 %v3633, 16
        %v3897 = vrot.slane %v3895, 5
        %v3898 = vor.u32 %v3894, %v3897
        %v3899 = vrot.slane %v3898, 4
        %v3901 = vshll.u32 %v3634, 16
        %v3903 = vrot.slane %v3901, 5
        %v3904 = vsel %vm564, %v3899, %v3903
        %v3905 = vshrl.u32 %v3634, 16
        %v3907 = vrot.slane %v3905, 4
        %v3908 = vor.u32 %v3907, %v3903
        %v3909 = vrot.slane %v3908, 4
        %v3911 = vshll.u32 %v3635, 16
        %v3913 = vrot.slane %v3911, 5
        %v3914 = vsel %vm564, %v3909, %v3913
        %v3916 = vshrl.u32 %v3636, 16
        %v3918 = vrot.slane %v3916, 4
        %v3919 = vshll.u32 %v3636, 16
        %v3921 = vrot.slane %v3919, 5
        %v3922 = vor.u32 %v3918, %v3921
        %v3923 = vrot.slane %v3922, 4
        %v3925 = vshll.u32 %v3637, 16
        %v3927 = vrot.slane %v3925, 5
        %v3928 = vsel %vm564, %v3923, %v3927
        %v3929 = vshrl.u32 %v3637, 16
        %v3931 = vrot.slane %v3929, 4
        %v3932 = vor.u32 %v3931, %v3927
        %v3933 = vrot.slane %v3932, 4
        %v3935 = vshll.u32 %v3638, 16
        %v3937 = vrot.slane %v3935, 5
        %v3938 = vsel %vm564, %v3933, %v3937
        %v3940 = vshrl.u32 %v3639, 16
        %v3942 = vrot.slane %v3940, 4
        %v3943 = vshll.u32 %v3639, 16
        %v3945 = vrot.slane %v3943, 5
        %v3946 = vor.u32 %v3942, %v3945
        %v3947 = vrot.slane %v3946, 4
        %v3949 = vshll.u32 %v3640, 16
        %v3951 = vrot.slane %v3949, 5
        %v3952 = vsel %vm564, %v3947, %v3951
        %v3953 = vshrl.u32 %v3640, 16
        %v3955 = vrot.slane %v3953, 4
        %v3956 = vor.u32 %v3955, %v3951
        %v3957 = vrot.slane %v3956, 4
        %v3959 = vshll.u32 %v3641, 16
        %v3961 = vrot.slane %v3959, 5
        %v3962 = vsel %vm564, %v3957, %v3961
        %v3964 = vshrl.u32 %v3642, 16
        %v3966 = vrot.slane %v3964, 4
        %v3967 = vshll.u32 %v3642, 16
        %v3969 = vrot.slane %v3967, 5
        %v3970 = vor.u32 %v3966, %v3969
        %v3971 = vrot.slane %v3970, 4
        %v3973 = vshll.u32 %v3643, 16
        %v3975 = vrot.slane %v3973, 5
        %v3976 = vsel %vm564, %v3971, %v3975
        %v3977 = vshrl.u32 %v3643, 16
        %v3979 = vrot.slane %v3977, 4
        %v3980 = vor.u32 %v3979, %v3975
        %v3981 = vrot.slane %v3980, 4
        %v3983 = vshll.u32 %v3644, 16
        %v3985 = vrot.slane %v3983, 5
        %v3986 = vsel %vm564, %v3981, %v3985
        %v3988 = vshrl.u32 %v3645, 16
        %v3990 = vrot.slane %v3988, 4
        %v3991 = vshll.u32 %v3645, 16
        %v3993 = vrot.slane %v3991, 5
        %v3994 = vor.u32 %v3990, %v3993
        %v3995 = vrot.slane %v3994, 4
        %v3997 = vshll.u32 %v3646, 16
        %v3999 = vrot.slane %v3997, 5
        %v4000 = vsel %vm564, %v3995, %v3999
        %v4001 = vshrl.u32 %v3646, 16
        %v4003 = vrot.slane %v4001, 4
        %v4004 = vor.u32 %v4003, %v3999
        %v4005 = vrot.slane %v4004, 4
        %v4007 = vshll.u32 %v3647, 16
        %v4009 = vrot.slane %v4007, 5
        %v4010 = vsel %vm564, %v4005, %v4009
        %v4012 = vshrl.u32 %v3648, 16
        %v4014 = vrot.slane %v4012, 4
        %v4015 = vshll.u32 %v3648, 16
        %v4017 = vrot.slane %v4015, 5
        %v4018 = vor.u32 %v4014, %v4017
        %v4019 = vrot.slane %v4018, 4
        %v4021 = vshll.u32 %v3649, 16
        %v4023 = vrot.slane %v4021, 5
        %v4024 = vsel %vm564, %v4019, %v4023
        %v4025 = vshrl.u32 %v3649, 16
        %v4027 = vrot.slane %v4025, 4
        %v4028 = vor.u32 %v4027, %v4023
        %v4029 = vrot.slane %v4028, 4
        %v4031 = vshll.u32 %v3650, 16
        %v4033 = vrot.slane %v4031, 5
        %v4034 = vsel %vm564, %v4029, %v4033
        %s4035 = scalar_lea.vmem %s1, 320
        %v4036 = vld [vmem:[%s4035] sm:$0xf]
        %v4037 = vld [vmem:[%s4035 + $0x4] sm:$0xf]
        %v4038 = vld [vmem:[%s4035 + $0x8] sm:$0xf]
        %v4039 = vld [vmem:[%s4035 + $0xc] sm:$0xf]
        %v4040 = vld [vmem:[%s4035 + $0x10] sm:$0xf]
        %v4041 = vld [vmem:[%s4035 + $0x14] sm:$0xf]
        %v4042 = vld [vmem:[%s4035 + $0x18] sm:$0xf]
        %v4043 = vld [vmem:[%s4035 + $0x1c] sm:$0xf]
        %v4044 = vld [vmem:[%s4035 + $0x20] sm:$0xf]
        %v4045 = vld [vmem:[%s4035 + $0x24] sm:$0xf]
        %v4046 = vld [vmem:[%s4035 + $0x28] sm:$0xf]
        %v4047 = vld [vmem:[%s4035 + $0x2c] sm:$0xf]
        %v4048 = vld [vmem:[%s4035 + $0x30] sm:$0xf]
        %v4049 = vld [vmem:[%s4035 + $0x34] sm:$0xf]
        %v4050 = vld [vmem:[%s4035 + $0x38] sm:$0xf]
        %v4051 = vld [vmem:[%s4035 + $0x3c] sm:$0xf]
        %v4052 = vunpack.c.l.b16 %v3664
        %v4053 = vunpack.c.l.b16 %v3674
        %v4054 = vunpack.c.l.b16 %v3688
        %v4055 = vunpack.c.l.b16 %v3698
        %v4056 = vunpack.c.l.b16 %v3712
        %v4057 = vunpack.c.l.b16 %v3722
        %v4058 = vunpack.c.l.b16 %v3736
        %v4059 = vunpack.c.l.b16 %v3746
        %v4060 = vunpack.c.l.b16 %v3760
        %v4061 = vunpack.c.l.b16 %v3770
        %v4062 = vunpack.c.l.b16 %v3784
        %v4063 = vunpack.c.l.b16 %v3794
        %v4064 = vunpack.c.l.b16 %v3808
        %v4065 = vunpack.c.l.b16 %v3818
        %v4066 = vunpack.c.l.b16 %v3832
        %v4067 = vunpack.c.l.b16 %v3842
        %v4068 = vunpack.c.l.b16 %v3856
        %v4069 = vunpack.c.l.b16 %v3866
        %v4070 = vunpack.c.l.b16 %v3880
        %v4071 = vunpack.c.l.b16 %v3890
        %v4072 = vunpack.c.l.b16 %v3904
        %v4073 = vunpack.c.l.b16 %v3914
        %v4074 = vunpack.c.l.b16 %v3928
        %v4075 = vunpack.c.l.b16 %v3938
        %v4076 = vunpack.c.l.b16 %v3952
        %v4077 = vunpack.c.l.b16 %v3962
        %v4078 = vunpack.c.l.b16 %v3976
        %v4079 = vunpack.c.l.b16 %v3986
        %v4080 = vunpack.c.l.b16 %v4000
        %v4081 = vunpack.c.l.b16 %v4010
        %v4082 = vunpack.c.l.b16 %v4024
        %v4083 = vunpack.c.l.b16 %v4034
        %v4084 = vpack.c.b16 %v4053, %v4052
        %v4085 = vpack.c.b16 %v4055, %v4054
        %v4086 = vpack.c.b16 %v4057, %v4056
        %v4087 = vpack.c.b16 %v4059, %v4058
        %v4088 = vpack.c.b16 %v4061, %v4060
        %v4089 = vpack.c.b16 %v4063, %v4062
        %v4090 = vpack.c.b16 %v4065, %v4064
        %v4091 = vpack.c.b16 %v4067, %v4066
        %v4092 = vpack.c.b16 %v4069, %v4068
        %v4093 = vpack.c.b16 %v4071, %v4070
        %v4094 = vpack.c.b16 %v4073, %v4072
        %v4095 = vpack.c.b16 %v4075, %v4074
        %v4096 = vpack.c.b16 %v4077, %v4076
        %v4097 = vpack.c.b16 %v4079, %v4078
        %v4098 = vpack.c.b16 %v4081, %v4080
        %v4099 = vpack.c.b16 %v4083, %v4082
        %v4132 = vunpack.c.l.b16 %v4036
        %v4133 = vunpack.c.l.b16 %v4037
        %v4134 = vunpack.c.l.b16 %v4038
        %v4135 = vunpack.c.l.b16 %v4039
        %v4136 = vunpack.c.l.b16 %v4040
        %v4137 = vunpack.c.l.b16 %v4041
        %v4138 = vunpack.c.l.b16 %v4042
        %v4139 = vunpack.c.l.b16 %v4043
        %v4140 = vunpack.c.l.b16 %v4044
        %v4141 = vunpack.c.l.b16 %v4045
        %v4142 = vunpack.c.l.b16 %v4046
        %v4143 = vunpack.c.l.b16 %v4047
        %v4144 = vunpack.c.l.b16 %v4048
        %v4145 = vunpack.c.l.b16 %v4049
        %v4146 = vunpack.c.l.b16 %v4050
        %v4147 = vunpack.c.l.b16 %v4051
        %v4148 = vpack.c.b16 %v4133, %v4132
        %v4149 = vpack.c.b16 %v4135, %v4134
        %v4150 = vpack.c.b16 %v4137, %v4136
        %v4151 = vpack.c.b16 %v4139, %v4138
        %v4152 = vpack.c.b16 %v4141, %v4140
        %v4153 = vpack.c.b16 %v4143, %v4142
        %v4154 = vpack.c.b16 %v4145, %v4144
        %v4155 = vpack.c.b16 %v4147, %v4146
        %4164 = vmatprep.subr.bf16.mxu0 0
        %4165 = vmatpush1.bf16.msra.mxu0 %v4155
        %4166 = vmatprep.subr.bf16.mxu0 0
        %4167 = vmatpush1.bf16.msra.mxu0 %v4154
        %4168 = vmatprep.subr.bf16.mxu0 0
        %4169 = vmatpush1.bf16.msra.mxu0 %v4153
        %4170 = vmatprep.subr.bf16.mxu0 0
        %4171 = vmatpush1.bf16.msra.mxu0 %v4152
        %4172 = vmatprep.subr.bf16.mxu0 0
        %4173 = vmatpush1.bf16.msra.mxu0 %v4151
        %4174 = vmatprep.subr.bf16.mxu0 0
        %4175 = vmatpush1.bf16.msra.mxu0 %v4150
        %4176 = vmatprep.subr.bf16.mxu0 0
        %4177 = vmatpush1.bf16.msra.mxu0 %v4149
        %4178 = vmatprep.subr.bf16.mxu0 0
        %4179 = vmatpush1.bf16.msra.mxu0 %v4148
        %4180 = vmatprep.subr.bf16.mxu0 0
        %4181 = vmatpush2.bf16.msra.mxu0 0
        %4182 = vmatprep.subr.bf16.mxu0 0
        %4183 = vmatpush2.bf16.msra.mxu0 0
        %4184 = vmatprep.subr.bf16.mxu0 0
        %4185 = vmatpush2.bf16.msra.mxu0 0
        %4186 = vmatprep.subr.bf16.mxu0 0
        %4187 = vmatpush2.bf16.msra.mxu0 0
        %4188 = vmatprep.subr.bf16.mxu0 0
        %4189 = vmatpush2.bf16.msra.mxu0 0
        %4190 = vmatprep.subr.bf16.mxu0 0
        %4191 = vmatpush2.bf16.msra.mxu0 0
        %4192 = vmatprep.subr.bf16.mxu0 0
        %4193 = vmatpush2.bf16.msra.mxu0 0
        %4194 = vmatprep.subr.bf16.mxu0 0
        %4195 = vmatpush2.bf16.msra.mxu0 0
        %4196 = vmatprep.mubr.bf16.mxu0 0
        %4197 = vmatmul.mubr.bf16.gmra.mxu0 %v4084
        %v4198 = vpop.f32.mrf.mxu0
        %v4199 = vadd.f32 0.0, %v4198
        %v4200 = vpop.f32.mrf.mxu0
        %v4201 = vpop.f32.mrf.mxu0
        %v4202 = vadd.f32 0.0, %v4201
        %v4203 = vpop.f32.mrf.mxu0
        %4204 = vmatprep.mubr.bf16.mxu0 0
        %4205 = vmatmul.mubr.bf16.gmra.mxu0 %v4085
        %v4206 = vpop.f32.mrf.mxu0
        %v4207 = vadd.f32 0.0, %v4206
        %v4208 = vpop.f32.mrf.mxu0
        %v4209 = vpop.f32.mrf.mxu0
        %v4210 = vadd.f32 0.0, %v4209
        %v4211 = vpop.f32.mrf.mxu0
        %4212 = vmatprep.mubr.bf16.mxu0 0
        %4213 = vmatmul.mubr.bf16.gmra.mxu0 %v4086
        %v4214 = vpop.f32.mrf.mxu0
        %v4215 = vadd.f32 0.0, %v4214
        %v4216 = vpop.f32.mrf.mxu0
        %v4217 = vpop.f32.mrf.mxu0
        %v4218 = vadd.f32 0.0, %v4217
        %v4219 = vpop.f32.mrf.mxu0
        %4220 = vmatprep.mubr.bf16.mxu0 0
        %4221 = vmatmul.mubr.bf16.gmra.mxu0 %v4087
        %v4222 = vpop.f32.mrf.mxu0
        %v4223 = vadd.f32 0.0, %v4222
        %v4224 = vpop.f32.mrf.mxu0
        %v4225 = vpop.f32.mrf.mxu0
        %v4226 = vadd.f32 0.0, %v4225
        %v4227 = vpop.f32.mrf.mxu0
        %4228 = vmatprep.mubr.bf16.mxu0 0
        %4229 = vmatmul.mubr.bf16.gmra.mxu0 %v4088
        %v4230 = vpop.f32.mrf.mxu0
        %v4231 = vadd.f32 0.0, %v4230
        %v4232 = vpop.f32.mrf.mxu0
        %v4233 = vpop.f32.mrf.mxu0
        %v4234 = vadd.f32 0.0, %v4233
        %v4235 = vpop.f32.mrf.mxu0
        %4236 = vmatprep.mubr.bf16.mxu0 0
        %4237 = vmatmul.mubr.bf16.gmra.mxu0 %v4089
        %v4238 = vpop.f32.mrf.mxu0
        %v4239 = vadd.f32 0.0, %v4238
        %v4240 = vpop.f32.mrf.mxu0
        %v4241 = vpop.f32.mrf.mxu0
        %v4242 = vadd.f32 0.0, %v4241
        %v4243 = vpop.f32.mrf.mxu0
        %4244 = vmatprep.mubr.bf16.mxu0 0
        %4245 = vmatmul.mubr.bf16.gmra.mxu0 %v4090
        %v4246 = vpop.f32.mrf.mxu0
        %v4247 = vadd.f32 0.0, %v4246
        %v4248 = vpop.f32.mrf.mxu0
        %v4249 = vpop.f32.mrf.mxu0
        %v4250 = vadd.f32 0.0, %v4249
        %v4251 = vpop.f32.mrf.mxu0
        %4252 = vmatprep.mubr.bf16.mxu0 0
        %4253 = vmatmul.mubr.bf16.gmra.mxu0 %v4091
        %v4254 = vpop.f32.mrf.mxu0
        %v4255 = vadd.f32 0.0, %v4254
        %v4256 = vpop.f32.mrf.mxu0
        %v4257 = vpop.f32.mrf.mxu0
        %v4258 = vadd.f32 0.0, %v4257
        %v4259 = vpop.f32.mrf.mxu0
        %4260 = vmatprep.mubr.bf16.mxu0 0
        %4261 = vmatmul.mubr.bf16.gmra.mxu0 %v4092
        %v4262 = vpop.f32.mrf.mxu0
        %v4263 = vadd.f32 0.0, %v4262
        %v4264 = vpop.f32.mrf.mxu0
        %v4265 = vpop.f32.mrf.mxu0
        %v4266 = vadd.f32 0.0, %v4265
        %v4267 = vpop.f32.mrf.mxu0
        %4268 = vmatprep.mubr.bf16.mxu0 0
        %4269 = vmatmul.mubr.bf16.gmra.mxu0 %v4093
        %v4270 = vpop.f32.mrf.mxu0
        %v4271 = vadd.f32 0.0, %v4270
        %v4272 = vpop.f32.mrf.mxu0
        %v4273 = vpop.f32.mrf.mxu0
        %v4274 = vadd.f32 0.0, %v4273
        %v4275 = vpop.f32.mrf.mxu0
        %4276 = vmatprep.mubr.bf16.mxu0 0
        %4277 = vmatmul.mubr.bf16.gmra.mxu0 %v4094
        %v4278 = vpop.f32.mrf.mxu0
        %v4279 = vadd.f32 0.0, %v4278
        %v4280 = vpop.f32.mrf.mxu0
        %v4281 = vpop.f32.mrf.mxu0
        %v4282 = vadd.f32 0.0, %v4281
        %v4283 = vpop.f32.mrf.mxu0
        %4284 = vmatprep.mubr.bf16.mxu0 0
        %4285 = vmatmul.mubr.bf16.gmra.mxu0 %v4095
        %v4286 = vpop.f32.mrf.mxu0
        %v4287 = vadd.f32 0.0, %v4286
        %v4288 = vpop.f32.mrf.mxu0
        %v4289 = vpop.f32.mrf.mxu0
        %v4290 = vadd.f32 0.0, %v4289
        %v4291 = vpop.f32.mrf.mxu0
        %4292 = vmatprep.mubr.bf16.mxu0 0
        %4293 = vmatmul.mubr.bf16.gmra.mxu0 %v4096
        %v4294 = vpop.f32.mrf.mxu0
        %v4295 = vadd.f32 0.0, %v4294
        %v4296 = vpop.f32.mrf.mxu0
        %v4297 = vpop.f32.mrf.mxu0
        %v4298 = vadd.f32 0.0, %v4297
        %v4299 = vpop.f32.mrf.mxu0
        %4300 = vmatprep.mubr.bf16.mxu0 0
        %4301 = vmatmul.mubr.bf16.gmra.mxu0 %v4097
        %v4302 = vpop.f32.mrf.mxu0
        %v4303 = vadd.f32 0.0, %v4302
        %v4304 = vpop.f32.mrf.mxu0
        %v4305 = vpop.f32.mrf.mxu0
        %v4306 = vadd.f32 0.0, %v4305
        %v4307 = vpop.f32.mrf.mxu0
        %4308 = vmatprep.mubr.bf16.mxu0 0
        %4309 = vmatmul.mubr.bf16.gmra.mxu0 %v4098
        %v4310 = vpop.f32.mrf.mxu0
        %v4311 = vadd.f32 0.0, %v4310
        %v4312 = vpop.f32.mrf.mxu0
        %v4313 = vpop.f32.mrf.mxu0
        %v4314 = vadd.f32 0.0, %v4313
        %v4315 = vpop.f32.mrf.mxu0
        %4316 = vmatprep.mubr.bf16.mxu0 0
        %4317 = vmatmul.mubr.bf16.gmra.mxu0 %v4099
        %v4318 = vpop.f32.mrf.mxu0
        %v4319 = vadd.f32 0.0, %v4318
        %v4320 = vpop.f32.mrf.mxu0
        %v4321 = vpop.f32.mrf.mxu0
        %v4322 = vadd.f32 0.0, %v4321
        %v4323 = vpop.f32.mrf.mxu0
        %4324 = vdwg.mxu0
        %v4325 = vadd.f32 %v3523, %v4199
        %v4326 = vadd.f32 %v3524, %v4202
        %v4327 = vadd.f32 %v3525, %v4207
        %v4328 = vadd.f32 %v3526, %v4210
        %v4329 = vadd.f32 %v3527, %v4215
        %v4330 = vadd.f32 %v3528, %v4218
        %v4331 = vadd.f32 %v3529, %v4223
        %v4332 = vadd.f32 %v3530, %v4226
        %v4333 = vadd.f32 %v3531, %v4231
        %v4334 = vadd.f32 %v3532, %v4234
        %v4335 = vadd.f32 %v3533, %v4239
        %v4336 = vadd.f32 %v3534, %v4242
        %v4337 = vadd.f32 %v3535, %v4247
        %v4338 = vadd.f32 %v3536, %v4250
        %v4339 = vadd.f32 %v3537, %v4255
        %v4340 = vadd.f32 %v3538, %v4258
        %v4341 = vadd.f32 %v3539, %v4263
        %v4342 = vadd.f32 %v3540, %v4266
        %v4343 = vadd.f32 %v3541, %v4271
        %v4344 = vadd.f32 %v3542, %v4274
        %v4345 = vadd.f32 %v3543, %v4279
        %v4346 = vadd.f32 %v3544, %v4282
        %v4347 = vadd.f32 %v3545, %v4287
        %v4348 = vadd.f32 %v3546, %v4290
        %v4349 = vadd.f32 %v3547, %v4295
        %v4350 = vadd.f32 %v3548, %v4298
        %v4351 = vadd.f32 %v3549, %v4303
        %v4352 = vadd.f32 %v3550, %v4306
        %v4353 = vadd.f32 %v3551, %v4311
        %v4354 = vadd.f32 %v3552, %v4314
        %v4355 = vadd.f32 %v3553, %v4319
        %v4356 = vadd.f32 %v3554, %v4322
        %s4357 = scalar_lea.vmem [#allocation2], 48
        %v4358 = vld [vmem:[%s4357 + $0x4] sm:$0x8]
        %v4359 = vld [vmem:[%s4357 + $0x8] sm:$0xf]
        %v4360 = vld [vmem:[%s4357 + $0xc] sm:$0xf]
        %v4361 = vld [vmem:[%s4357 + $0x1c] sm:$0x8]
        %v4362 = vld [vmem:[%s4357 + $0x20] sm:$0xf]
        %v4363 = vld [vmem:[%s4357 + $0x24] sm:$0xf]
        %v4364 = vld [vmem:[%s4357 + $0x34] sm:$0x8]
        %v4365 = vld [vmem:[%s4357 + $0x38] sm:$0xf]
        %v4366 = vld [vmem:[%s4357 + $0x3c] sm:$0xf]
        %v4367 = vld [vmem:[%s4357 + $0x4c] sm:$0x8]
        %v4368 = vld [vmem:[%s4357 + $0x50] sm:$0xf]
        %v4369 = vld [vmem:[%s4357 + $0x54] sm:$0xf]
        %v4370 = vld [vmem:[%s4357 + $0x64] sm:$0x8]
        %v4371 = vld [vmem:[%s4357 + $0x68] sm:$0xf]
        %v4372 = vld [vmem:[%s4357 + $0x6c] sm:$0xf]
        %v4373 = vld [vmem:[%s4357 + $0x7c] sm:$0x8]
        %v4374 = vld [vmem:[%s4357 + $0x80] sm:$0xf]
        %v4375 = vld [vmem:[%s4357 + $0x84] sm:$0xf]
        %v4376 = vld [vmem:[%s4357 + $0x94] sm:$0x8]
        %v4377 = vld [vmem:[%s4357 + $0x98] sm:$0xf]
        %v4378 = vld [vmem:[%s4357 + $0x9c] sm:$0xf]
        %v4379 = vld [vmem:[%s4357 + $0xac] sm:$0x8]
        %v4380 = vld [vmem:[%s4357 + $0xb0] sm:$0xf]
        %v4381 = vld [vmem:[%s4357 + $0xb4] sm:$0xf]
        %v4382 = vld [vmem:[%s4357 + $0xc4] sm:$0x8]
        %v4383 = vld [vmem:[%s4357 + $0xc8] sm:$0xf]
        %v4384 = vld [vmem:[%s4357 + $0xcc] sm:$0xf]
        %v4385 = vld [vmem:[%s4357 + $0xdc] sm:$0x8]
        %v4386 = vld [vmem:[%s4357 + $0xe0] sm:$0xf]
        %v4387 = vld [vmem:[%s4357 + $0xe4] sm:$0xf]
        %v4388 = vld [vmem:[%s4357 + $0xf4] sm:$0x8]
        %v4389 = vld [vmem:[%s4357 + $0xf8] sm:$0xf]
        %v4390 = vld [vmem:[%s4357 + $0xfc] sm:$0xf]
        %v4391 = vld [vmem:[%s4357 + $0x10c] sm:$0x8]
        %v4392 = vld [vmem:[%s4357 + $0x110] sm:$0xf]
        %v4393 = vld [vmem:[%s4357 + $0x114] sm:$0xf]
        %v4394 = vld [vmem:[%s4357 + $0x124] sm:$0x8]
        %v4395 = vld [vmem:[%s4357 + $0x128] sm:$0xf]
        %v4396 = vld [vmem:[%s4357 + $0x12c] sm:$0xf]
        %v4397 = vld [vmem:[%s4357 + $0x13c] sm:$0x8]
        %v4398 = vld [vmem:[%s4357 + $0x140] sm:$0xf]
        %v4399 = vld [vmem:[%s4357 + $0x144] sm:$0xf]
        %v4400 = vld [vmem:[%s4357 + $0x154] sm:$0x8]
        %v4401 = vld [vmem:[%s4357 + $0x158] sm:$0xf]
        %v4402 = vld [vmem:[%s4357 + $0x15c] sm:$0xf]
        %v4403 = vld [vmem:[%s4357 + $0x16c] sm:$0x8]
        %v4404 = vld [vmem:[%s4357 + $0x170] sm:$0xf]
        %v4405 = vld [vmem:[%s4357 + $0x174] sm:$0xf]
        %v4406 = vsel %vm584, %v4358, 0
        %v4407 = vsel %vm585, %v4359, 0
        %v4408 = vsel %vm586, %v4360, 0
        %v4409 = vsel %vm584, %v4361, 0
        %v4410 = vsel %vm585, %v4362, 0
        %v4411 = vsel %vm586, %v4363, 0
        %v4412 = vsel %vm584, %v4364, 0
        %v4413 = vsel %vm585, %v4365, 0
        %v4414 = vsel %vm586, %v4366, 0
        %v4415 = vsel %vm584, %v4367, 0
        %v4416 = vsel %vm585, %v4368, 0
        %v4417 = vsel %vm586, %v4369, 0
        %v4418 = vsel %vm584, %v4370, 0
        %v4419 = vsel %vm585, %v4371, 0
        %v4420 = vsel %vm586, %v4372, 0
        %v4421 = vsel %vm584, %v4373, 0
        %v4422 = vsel %vm585, %v4374, 0
        %v4423 = vsel %vm586, %v4375, 0
        %v4424 = vsel %vm584, %v4376, 0
        %v4425 = vsel %vm585, %v4377, 0
        %v4426 = vsel %vm586, %v4378, 0
        %v4427 = vsel %vm584, %v4379, 0
        %v4428 = vsel %vm585, %v4380, 0
        %v4429 = vsel %vm586, %v4381, 0
        %v4430 = vsel %vm584, %v4382, 0
        %v4431 = vsel %vm585, %v4383, 0
        %v4432 = vsel %vm586, %v4384, 0
        %v4433 = vsel %vm584, %v4385, 0
        %v4434 = vsel %vm585, %v4386, 0
        %v4435 = vsel %vm586, %v4387, 0
        %v4436 = vsel %vm584, %v4388, 0
        %v4437 = vsel %vm585, %v4389, 0
        %v4438 = vsel %vm586, %v4390, 0
        %v4439 = vsel %vm584, %v4391, 0
        %v4440 = vsel %vm585, %v4392, 0
        %v4441 = vsel %vm586, %v4393, 0
        %v4442 = vsel %vm584, %v4394, 0
        %v4443 = vsel %vm585, %v4395, 0
        %v4444 = vsel %vm586, %v4396, 0
        %v4445 = vsel %vm584, %v4397, 0
        %v4446 = vsel %vm585, %v4398, 0
        %v4447 = vsel %vm586, %v4399, 0
        %v4448 = vsel %vm584, %v4400, 0
        %v4449 = vsel %vm585, %v4401, 0
        %v4450 = vsel %vm586, %v4402, 0
        %v4451 = vsel %vm584, %v4403, 0
        %v4452 = vsel %vm585, %v4404, 0
        %v4453 = vsel %vm586, %v4405, 0
        %v4455 = vshrl.u32 %v4406, 16
        %v4457 = vrot.slane %v4455, 7
        %v4458 = vrot.slane %v4457, 4
        %v4460 = vshrl.u32 %v4407, 16
        %v4462 = vrot.slane %v4460, 7
        %v4463 = vshll.u32 %v4407, 16
        %v4465 = vor.u32 %v4462, %v4463
        %v4466 = vsel %vm637, %v4458, %v4465
        %v4467 = vrot.slane %v4462, 4
        %v4469 = vshrl.u32 %v4408, 16
        %v4471 = vrot.slane %v4469, 7
        %v4472 = vshll.u32 %v4408, 16
        %v4474 = vor.u32 %v4471, %v4472
        %v4475 = vsel %vm637, %v4467, %v4474
        %v4477 = vshrl.u32 %v4409, 16
        %v4479 = vrot.slane %v4477, 7
        %v4480 = vrot.slane %v4479, 4
        %v4482 = vshrl.u32 %v4410, 16
        %v4484 = vrot.slane %v4482, 7
        %v4485 = vshll.u32 %v4410, 16
        %v4487 = vor.u32 %v4484, %v4485
        %v4488 = vsel %vm637, %v4480, %v4487
        %v4489 = vrot.slane %v4484, 4
        %v4491 = vshrl.u32 %v4411, 16
        %v4493 = vrot.slane %v4491, 7
        %v4494 = vshll.u32 %v4411, 16
        %v4496 = vor.u32 %v4493, %v4494
        %v4497 = vsel %vm637, %v4489, %v4496
        %v4499 = vshrl.u32 %v4412, 16
        %v4501 = vrot.slane %v4499, 7
        %v4502 = vrot.slane %v4501, 4
        %v4504 = vshrl.u32 %v4413, 16
        %v4506 = vrot.slane %v4504, 7
        %v4507 = vshll.u32 %v4413, 16
        %v4509 = vor.u32 %v4506, %v4507
        %v4510 = vsel %vm637, %v4502, %v4509
        %v4511 = vrot.slane %v4506, 4
        %v4513 = vshrl.u32 %v4414, 16
        %v4515 = vrot.slane %v4513, 7
        %v4516 = vshll.u32 %v4414, 16
        %v4518 = vor.u32 %v4515, %v4516
        %v4519 = vsel %vm637, %v4511, %v4518
        %v4521 = vshrl.u32 %v4415, 16
        %v4523 = vrot.slane %v4521, 7
        %v4524 = vrot.slane %v4523, 4
        %v4526 = vshrl.u32 %v4416, 16
        %v4528 = vrot.slane %v4526, 7
        %v4529 = vshll.u32 %v4416, 16
        %v4531 = vor.u32 %v4528, %v4529
        %v4532 = vsel %vm637, %v4524, %v4531
        %v4533 = vrot.slane %v4528, 4
        %v4535 = vshrl.u32 %v4417, 16
        %v4537 = vrot.slane %v4535, 7
        %v4538 = vshll.u32 %v4417, 16
        %v4540 = vor.u32 %v4537, %v4538
        %v4541 = vsel %vm637, %v4533, %v4540
        %v4543 = vshrl.u32 %v4418, 16
        %v4545 = vrot.slane %v4543, 7
        %v4546 = vrot.slane %v4545, 4
        %v4548 = vshrl.u32 %v4419, 16
        %v4550 = vrot.slane %v4548, 7
        %v4551 = vshll.u32 %v4419, 16
        %v4553 = vor.u32 %v4550, %v4551
        %v4554 = vsel %vm637, %v4546, %v4553
        %v4555 = vrot.slane %v4550, 4
        %v4557 = vshrl.u32 %v4420, 16
        %v4559 = vrot.slane %v4557, 7
        %v4560 = vshll.u32 %v4420, 16
        %v4562 = vor.u32 %v4559, %v4560
        %v4563 = vsel %vm637, %v4555, %v4562
        %v4565 = vshrl.u32 %v4421, 16
        %v4567 = vrot.slane %v4565, 7
        %v4568 = vrot.slane %v4567, 4
        %v4570 = vshrl.u32 %v4422, 16
        %v4572 = vrot.slane %v4570, 7
        %v4573 = vshll.u32 %v4422, 16
        %v4575 = vor.u32 %v4572, %v4573
        %v4576 = vsel %vm637, %v4568, %v4575
        %v4577 = vrot.slane %v4572, 4
        %v4579 = vshrl.u32 %v4423, 16
        %v4581 = vrot.slane %v4579, 7
        %v4582 = vshll.u32 %v4423, 16
        %v4584 = vor.u32 %v4581, %v4582
        %v4585 = vsel %vm637, %v4577, %v4584
        %v4587 = vshrl.u32 %v4424, 16
        %v4589 = vrot.slane %v4587, 7
        %v4590 = vrot.slane %v4589, 4
        %v4592 = vshrl.u32 %v4425, 16
        %v4594 = vrot.slane %v4592, 7
        %v4595 = vshll.u32 %v4425, 16
        %v4597 = vor.u32 %v4594, %v4595
        %v4598 = vsel %vm637, %v4590, %v4597
        %v4599 = vrot.slane %v4594, 4
        %v4601 = vshrl.u32 %v4426, 16
        %v4603 = vrot.slane %v4601, 7
        %v4604 = vshll.u32 %v4426, 16
        %v4606 = vor.u32 %v4603, %v4604
        %v4607 = vsel %vm637, %v4599, %v4606
        %v4609 = vshrl.u32 %v4427, 16
        %v4611 = vrot.slane %v4609, 7
        %v4612 = vrot.slane %v4611, 4
        %v4614 = vshrl.u32 %v4428, 16
        %v4616 = vrot.slane %v4614, 7
        %v4617 = vshll.u32 %v4428, 16
        %v4619 = vor.u32 %v4616, %v4617
        %v4620 = vsel %vm637, %v4612, %v4619
        %v4621 = vrot.slane %v4616, 4
        %v4623 = vshrl.u32 %v4429, 16
        %v4625 = vrot.slane %v4623, 7
        %v4626 = vshll.u32 %v4429, 16
        %v4628 = vor.u32 %v4625, %v4626
        %v4629 = vsel %vm637, %v4621, %v4628
        %v4631 = vshrl.u32 %v4430, 16
        %v4633 = vrot.slane %v4631, 7
        %v4634 = vrot.slane %v4633, 4
        %v4636 = vshrl.u32 %v4431, 16
        %v4638 = vrot.slane %v4636, 7
        %v4639 = vshll.u32 %v4431, 16
        %v4641 = vor.u32 %v4638, %v4639
        %v4642 = vsel %vm637, %v4634, %v4641
        %v4643 = vrot.slane %v4638, 4
        %v4645 = vshrl.u32 %v4432, 16
        %v4647 = vrot.slane %v4645, 7
        %v4648 = vshll.u32 %v4432, 16
        %v4650 = vor.u32 %v4647, %v4648
        %v4651 = vsel %vm637, %v4643, %v4650
        %v4653 = vshrl.u32 %v4433, 16
        %v4655 = vrot.slane %v4653, 7
        %v4656 = vrot.slane %v4655, 4
        %v4658 = vshrl.u32 %v4434, 16
        %v4660 = vrot.slane %v4658, 7
        %v4661 = vshll.u32 %v4434, 16
        %v4663 = vor.u32 %v4660, %v4661
        %v4664 = vsel %vm637, %v4656, %v4663
        %v4665 = vrot.slane %v4660, 4
        %v4667 = vshrl.u32 %v4435, 16
        %v4669 = vrot.slane %v4667, 7
        %v4670 = vshll.u32 %v4435, 16
        %v4672 = vor.u32 %v4669, %v4670
        %v4673 = vsel %vm637, %v4665, %v4672
        %v4675 = vshrl.u32 %v4436, 16
        %v4677 = vrot.slane %v4675, 7
        %v4678 = vrot.slane %v4677, 4
        %v4680 = vshrl.u32 %v4437, 16
        %v4682 = vrot.slane %v4680, 7
        %v4683 = vshll.u32 %v4437, 16
        %v4685 = vor.u32 %v4682, %v4683
        %v4686 = vsel %vm637, %v4678, %v4685
        %v4687 = vrot.slane %v4682, 4
        %v4689 = vshrl.u32 %v4438, 16
        %v4691 = vrot.slane %v4689, 7
        %v4692 = vshll.u32 %v4438, 16
        %v4694 = vor.u32 %v4691, %v4692
        %v4695 = vsel %vm637, %v4687, %v4694
        %v4697 = vshrl.u32 %v4439, 16
        %v4699 = vrot.slane %v4697, 7
        %v4700 = vrot.slane %v4699, 4
        %v4702 = vshrl.u32 %v4440, 16
        %v4704 = vrot.slane %v4702, 7
        %v4705 = vshll.u32 %v4440, 16
        %v4707 = vor.u32 %v4704, %v4705
        %v4708 = vsel %vm637, %v4700, %v4707
        %v4709 = vrot.slane %v4704, 4
        %v4711 = vshrl.u32 %v4441, 16
        %v4713 = vrot.slane %v4711, 7
        %v4714 = vshll.u32 %v4441, 16
        %v4716 = vor.u32 %v4713, %v4714
        %v4717 = vsel %vm637, %v4709, %v4716
        %v4719 = vshrl.u32 %v4442, 16
        %v4721 = vrot.slane %v4719, 7
        %v4722 = vrot.slane %v4721, 4
        %v4724 = vshrl.u32 %v4443, 16
        %v4726 = vrot.slane %v4724, 7
        %v4727 = vshll.u32 %v4443, 16
        %v4729 = vor.u32 %v4726, %v4727
        %v4730 = vsel %vm637, %v4722, %v4729
        %v4731 = vrot.slane %v4726, 4
        %v4733 = vshrl.u32 %v4444, 16
        %v4735 = vrot.slane %v4733, 7
        %v4736 = vshll.u32 %v4444, 16
        %v4738 = vor.u32 %v4735, %v4736
        %v4739 = vsel %vm637, %v4731, %v4738
        %v4741 = vshrl.u32 %v4445, 16
        %v4743 = vrot.slane %v4741, 7
        %v4744 = vrot.slane %v4743, 4
        %v4746 = vshrl.u32 %v4446, 16
        %v4748 = vrot.slane %v4746, 7
        %v4749 = vshll.u32 %v4446, 16
        %v4751 = vor.u32 %v4748, %v4749
        %v4752 = vsel %vm637, %v4744, %v4751
        %v4753 = vrot.slane %v4748, 4
        %v4755 = vshrl.u32 %v4447, 16
        %v4757 = vrot.slane %v4755, 7
        %v4758 = vshll.u32 %v4447, 16
        %v4760 = vor.u32 %v4757, %v4758
        %v4761 = vsel %vm637, %v4753, %v4760
        %v4763 = vshrl.u32 %v4448, 16
        %v4765 = vrot.slane %v4763, 7
        %v4766 = vrot.slane %v4765, 4
        %v4768 = vshrl.u32 %v4449, 16
        %v4770 = vrot.slane %v4768, 7
        %v4771 = vshll.u32 %v4449, 16
        %v4773 = vor.u32 %v4770, %v4771
        %v4774 = vsel %vm637, %v4766, %v4773
        %v4775 = vrot.slane %v4770, 4
        %v4777 = vshrl.u32 %v4450, 16
        %v4779 = vrot.slane %v4777, 7
        %v4780 = vshll.u32 %v4450, 16
        %v4782 = vor.u32 %v4779, %v4780
        %v4783 = vsel %vm637, %v4775, %v4782
        %v4785 = vshrl.u32 %v4451, 16
        %v4787 = vrot.slane %v4785, 7
        %v4788 = vrot.slane %v4787, 4
        %v4790 = vshrl.u32 %v4452, 16
        %v4792 = vrot.slane %v4790, 7
        %v4793 = vshll.u32 %v4452, 16
        %v4795 = vor.u32 %v4792, %v4793
        %v4796 = vsel %vm637, %v4788, %v4795
        %v4797 = vrot.slane %v4792, 4
        %v4799 = vshrl.u32 %v4453, 16
        %v4801 = vrot.slane %v4799, 7
        %v4802 = vshll.u32 %v4453, 16
        %v4804 = vor.u32 %v4801, %v4802
        %v4805 = vsel %vm637, %v4797, %v4804
        %s4806 = scalar_lea.vmem %s1, 384
        %v4807 = vld [vmem:[%s4806] sm:$0xf]
        %v4808 = vld [vmem:[%s4806 + $0x4] sm:$0xf]
        %v4809 = vld [vmem:[%s4806 + $0x8] sm:$0xf]
        %v4810 = vld [vmem:[%s4806 + $0xc] sm:$0xf]
        %v4811 = vld [vmem:[%s4806 + $0x10] sm:$0xf]
        %v4812 = vld [vmem:[%s4806 + $0x14] sm:$0xf]
        %v4813 = vld [vmem:[%s4806 + $0x18] sm:$0xf]
        %v4814 = vld [vmem:[%s4806 + $0x1c] sm:$0xf]
        %v4815 = vld [vmem:[%s4806 + $0x20] sm:$0xf]
        %v4816 = vld [vmem:[%s4806 + $0x24] sm:$0xf]
        %v4817 = vld [vmem:[%s4806 + $0x28] sm:$0xf]
        %v4818 = vld [vmem:[%s4806 + $0x2c] sm:$0xf]
        %v4819 = vld [vmem:[%s4806 + $0x30] sm:$0xf]
        %v4820 = vld [vmem:[%s4806 + $0x34] sm:$0xf]
        %v4821 = vld [vmem:[%s4806 + $0x38] sm:$0xf]
        %v4822 = vld [vmem:[%s4806 + $0x3c] sm:$0xf]
        %v4823 = vunpack.c.l.b16 %v4466
        %v4824 = vunpack.c.l.b16 %v4475
        %v4825 = vunpack.c.l.b16 %v4488
        %v4826 = vunpack.c.l.b16 %v4497
        %v4827 = vunpack.c.l.b16 %v4510
        %v4828 = vunpack.c.l.b16 %v4519
        %v4829 = vunpack.c.l.b16 %v4532
        %v4830 = vunpack.c.l.b16 %v4541
        %v4831 = vunpack.c.l.b16 %v4554
        %v4832 = vunpack.c.l.b16 %v4563
        %v4833 = vunpack.c.l.b16 %v4576
        %v4834 = vunpack.c.l.b16 %v4585
        %v4835 = vunpack.c.l.b16 %v4598
        %v4836 = vunpack.c.l.b16 %v4607
        %v4837 = vunpack.c.l.b16 %v4620
        %v4838 = vunpack.c.l.b16 %v4629
        %v4839 = vunpack.c.l.b16 %v4642
        %v4840 = vunpack.c.l.b16 %v4651
        %v4841 = vunpack.c.l.b16 %v4664
        %v4842 = vunpack.c.l.b16 %v4673
        %v4843 = vunpack.c.l.b16 %v4686
        %v4844 = vunpack.c.l.b16 %v4695
        %v4845 = vunpack.c.l.b16 %v4708
        %v4846 = vunpack.c.l.b16 %v4717
        %v4847 = vunpack.c.l.b16 %v4730
        %v4848 = vunpack.c.l.b16 %v4739
        %v4849 = vunpack.c.l.b16 %v4752
        %v4850 = vunpack.c.l.b16 %v4761
        %v4851 = vunpack.c.l.b16 %v4774
        %v4852 = vunpack.c.l.b16 %v4783
        %v4853 = vunpack.c.l.b16 %v4796
        %v4854 = vunpack.c.l.b16 %v4805
        %v4855 = vpack.c.b16 %v4824, %v4823
        %v4856 = vpack.c.b16 %v4826, %v4825
        %v4857 = vpack.c.b16 %v4828, %v4827
        %v4858 = vpack.c.b16 %v4830, %v4829
        %v4859 = vpack.c.b16 %v4832, %v4831
        %v4860 = vpack.c.b16 %v4834, %v4833
        %v4861 = vpack.c.b16 %v4836, %v4835
        %v4862 = vpack.c.b16 %v4838, %v4837
        %v4863 = vpack.c.b16 %v4840, %v4839
        %v4864 = vpack.c.b16 %v4842, %v4841
        %v4865 = vpack.c.b16 %v4844, %v4843
        %v4866 = vpack.c.b16 %v4846, %v4845
        %v4867 = vpack.c.b16 %v4848, %v4847
        %v4868 = vpack.c.b16 %v4850, %v4849
        %v4869 = vpack.c.b16 %v4852, %v4851
        %v4870 = vpack.c.b16 %v4854, %v4853
        %v4903 = vunpack.c.l.b16 %v4807
        %v4904 = vunpack.c.l.b16 %v4808
        %v4905 = vunpack.c.l.b16 %v4809
        %v4906 = vunpack.c.l.b16 %v4810
        %v4907 = vunpack.c.l.b16 %v4811
        %v4908 = vunpack.c.l.b16 %v4812
        %v4909 = vunpack.c.l.b16 %v4813
        %v4910 = vunpack.c.l.b16 %v4814
        %v4911 = vunpack.c.l.b16 %v4815
        %v4912 = vunpack.c.l.b16 %v4816
        %v4913 = vunpack.c.l.b16 %v4817
        %v4914 = vunpack.c.l.b16 %v4818
        %v4915 = vunpack.c.l.b16 %v4819
        %v4916 = vunpack.c.l.b16 %v4820
        %v4917 = vunpack.c.l.b16 %v4821
        %v4918 = vunpack.c.l.b16 %v4822
        %v4919 = vpack.c.b16 %v4904, %v4903
        %v4920 = vpack.c.b16 %v4906, %v4905
        %v4921 = vpack.c.b16 %v4908, %v4907
        %v4922 = vpack.c.b16 %v4910, %v4909
        %v4923 = vpack.c.b16 %v4912, %v4911
        %v4924 = vpack.c.b16 %v4914, %v4913
        %v4925 = vpack.c.b16 %v4916, %v4915
        %v4926 = vpack.c.b16 %v4918, %v4917
        %4935 = vmatprep.subr.bf16.mxu0 0
        %4936 = vmatpush1.bf16.msra.mxu0 %v4926
        %4937 = vmatprep.subr.bf16.mxu0 0
        %4938 = vmatpush1.bf16.msra.mxu0 %v4925
        %4939 = vmatprep.subr.bf16.mxu0 0
        %4940 = vmatpush1.bf16.msra.mxu0 %v4924
        %4941 = vmatprep.subr.bf16.mxu0 0
        %4942 = vmatpush1.bf16.msra.mxu0 %v4923
        %4943 = vmatprep.subr.bf16.mxu0 0
        %4944 = vmatpush1.bf16.msra.mxu0 %v4922
        %4945 = vmatprep.subr.bf16.mxu0 0
        %4946 = vmatpush1.bf16.msra.mxu0 %v4921
        %4947 = vmatprep.subr.bf16.mxu0 0
        %4948 = vmatpush1.bf16.msra.mxu0 %v4920
        %4949 = vmatprep.subr.bf16.mxu0 0
        %4950 = vmatpush1.bf16.msra.mxu0 %v4919
        %4951 = vmatprep.subr.bf16.mxu0 0
        %4952 = vmatpush2.bf16.msra.mxu0 0
        %4953 = vmatprep.subr.bf16.mxu0 0
        %4954 = vmatpush2.bf16.msra.mxu0 0
        %4955 = vmatprep.subr.bf16.mxu0 0
        %4956 = vmatpush2.bf16.msra.mxu0 0
        %4957 = vmatprep.subr.bf16.mxu0 0
        %4958 = vmatpush2.bf16.msra.mxu0 0
        %4959 = vmatprep.subr.bf16.mxu0 0
        %4960 = vmatpush2.bf16.msra.mxu0 0
        %4961 = vmatprep.subr.bf16.mxu0 0
        %4962 = vmatpush2.bf16.msra.mxu0 0
        %4963 = vmatprep.subr.bf16.mxu0 0
        %4964 = vmatpush2.bf16.msra.mxu0 0
        %4965 = vmatprep.subr.bf16.mxu0 0
        %4966 = vmatpush2.bf16.msra.mxu0 0
        %4967 = vmatprep.mubr.bf16.mxu0 0
        %4968 = vmatmul.mubr.bf16.gmra.mxu0 %v4855
        %v4969 = vpop.f32.mrf.mxu0
        %v4970 = vadd.f32 0.0, %v4969
        %v4971 = vpop.f32.mrf.mxu0
        %v4972 = vpop.f32.mrf.mxu0
        %v4973 = vadd.f32 0.0, %v4972
        %v4974 = vpop.f32.mrf.mxu0
        %4975 = vmatprep.mubr.bf16.mxu0 0
        %4976 = vmatmul.mubr.bf16.gmra.mxu0 %v4856
        %v4977 = vpop.f32.mrf.mxu0
        %v4978 = vadd.f32 0.0, %v4977
        %v4979 = vpop.f32.mrf.mxu0
        %v4980 = vpop.f32.mrf.mxu0
        %v4981 = vadd.f32 0.0, %v4980
        %v4982 = vpop.f32.mrf.mxu0
        %4983 = vmatprep.mubr.bf16.mxu0 0
        %4984 = vmatmul.mubr.bf16.gmra.mxu0 %v4857
        %v4985 = vpop.f32.mrf.mxu0
        %v4986 = vadd.f32 0.0, %v4985
        %v4987 = vpop.f32.mrf.mxu0
        %v4988 = vpop.f32.mrf.mxu0
        %v4989 = vadd.f32 0.0, %v4988
        %v4990 = vpop.f32.mrf.mxu0
        %4991 = vmatprep.mubr.bf16.mxu0 0
        %4992 = vmatmul.mubr.bf16.gmra.mxu0 %v4858
        %v4993 = vpop.f32.mrf.mxu0
        %v4994 = vadd.f32 0.0, %v4993
        %v4995 = vpop.f32.mrf.mxu0
        %v4996 = vpop.f32.mrf.mxu0
        %v4997 = vadd.f32 0.0, %v4996
        %v4998 = vpop.f32.mrf.mxu0
        %4999 = vmatprep.mubr.bf16.mxu0 0
        %5000 = vmatmul.mubr.bf16.gmra.mxu0 %v4859
        %v5001 = vpop.f32.mrf.mxu0
        %v5002 = vadd.f32 0.0, %v5001
        %v5003 = vpop.f32.mrf.mxu0
        %v5004 = vpop.f32.mrf.mxu0
        %v5005 = vadd.f32 0.0, %v5004
        %v5006 = vpop.f32.mrf.mxu0
        %5007 = vmatprep.mubr.bf16.mxu0 0
        %5008 = vmatmul.mubr.bf16.gmra.mxu0 %v4860
        %v5009 = vpop.f32.mrf.mxu0
        %v5010 = vadd.f32 0.0, %v5009
        %v5011 = vpop.f32.mrf.mxu0
        %v5012 = vpop.f32.mrf.mxu0
        %v5013 = vadd.f32 0.0, %v5012
        %v5014 = vpop.f32.mrf.mxu0
        %5015 = vmatprep.mubr.bf16.mxu0 0
        %5016 = vmatmul.mubr.bf16.gmra.mxu0 %v4861
        %v5017 = vpop.f32.mrf.mxu0
        %v5018 = vadd.f32 0.0, %v5017
        %v5019 = vpop.f32.mrf.mxu0
        %v5020 = vpop.f32.mrf.mxu0
        %v5021 = vadd.f32 0.0, %v5020
        %v5022 = vpop.f32.mrf.mxu0
        %5023 = vmatprep.mubr.bf16.mxu0 0
        %5024 = vmatmul.mubr.bf16.gmra.mxu0 %v4862
        %v5025 = vpop.f32.mrf.mxu0
        %v5026 = vadd.f32 0.0, %v5025
        %v5027 = vpop.f32.mrf.mxu0
        %v5028 = vpop.f32.mrf.mxu0
        %v5029 = vadd.f32 0.0, %v5028
        %v5030 = vpop.f32.mrf.mxu0
        %5031 = vmatprep.mubr.bf16.mxu0 0
        %5032 = vmatmul.mubr.bf16.gmra.mxu0 %v4863
        %v5033 = vpop.f32.mrf.mxu0
        %v5034 = vadd.f32 0.0, %v5033
        %v5035 = vpop.f32.mrf.mxu0
        %v5036 = vpop.f32.mrf.mxu0
        %v5037 = vadd.f32 0.0, %v5036
        %v5038 = vpop.f32.mrf.mxu0
        %5039 = vmatprep.mubr.bf16.mxu0 0
        %5040 = vmatmul.mubr.bf16.gmra.mxu0 %v4864
        %v5041 = vpop.f32.mrf.mxu0
        %v5042 = vadd.f32 0.0, %v5041
        %v5043 = vpop.f32.mrf.mxu0
        %v5044 = vpop.f32.mrf.mxu0
        %v5045 = vadd.f32 0.0, %v5044
        %v5046 = vpop.f32.mrf.mxu0
        %5047 = vmatprep.mubr.bf16.mxu0 0
        %5048 = vmatmul.mubr.bf16.gmra.mxu0 %v4865
        %v5049 = vpop.f32.mrf.mxu0
        %v5050 = vadd.f32 0.0, %v5049
        %v5051 = vpop.f32.mrf.mxu0
        %v5052 = vpop.f32.mrf.mxu0
        %v5053 = vadd.f32 0.0, %v5052
        %v5054 = vpop.f32.mrf.mxu0
        %5055 = vmatprep.mubr.bf16.mxu0 0
        %5056 = vmatmul.mubr.bf16.gmra.mxu0 %v4866
        %v5057 = vpop.f32.mrf.mxu0
        %v5058 = vadd.f32 0.0, %v5057
        %v5059 = vpop.f32.mrf.mxu0
        %v5060 = vpop.f32.mrf.mxu0
        %v5061 = vadd.f32 0.0, %v5060
        %v5062 = vpop.f32.mrf.mxu0
        %5063 = vmatprep.mubr.bf16.mxu0 0
        %5064 = vmatmul.mubr.bf16.gmra.mxu0 %v4867
        %v5065 = vpop.f32.mrf.mxu0
        %v5066 = vadd.f32 0.0, %v5065
        %v5067 = vpop.f32.mrf.mxu0
        %v5068 = vpop.f32.mrf.mxu0
        %v5069 = vadd.f32 0.0, %v5068
        %v5070 = vpop.f32.mrf.mxu0
        %5071 = vmatprep.mubr.bf16.mxu0 0
        %5072 = vmatmul.mubr.bf16.gmra.mxu0 %v4868
        %v5073 = vpop.f32.mrf.mxu0
        %v5074 = vadd.f32 0.0, %v5073
        %v5075 = vpop.f32.mrf.mxu0
        %v5076 = vpop.f32.mrf.mxu0
        %v5077 = vadd.f32 0.0, %v5076
        %v5078 = vpop.f32.mrf.mxu0
        %5079 = vmatprep.mubr.bf16.mxu0 0
        %5080 = vmatmul.mubr.bf16.gmra.mxu0 %v4869
        %v5081 = vpop.f32.mrf.mxu0
        %v5082 = vadd.f32 0.0, %v5081
        %v5083 = vpop.f32.mrf.mxu0
        %v5084 = vpop.f32.mrf.mxu0
        %v5085 = vadd.f32 0.0, %v5084
        %v5086 = vpop.f32.mrf.mxu0
        %5087 = vmatprep.mubr.bf16.mxu0 0
        %5088 = vmatmul.mubr.bf16.gmra.mxu0 %v4870
        %v5089 = vpop.f32.mrf.mxu0
        %v5090 = vadd.f32 0.0, %v5089
        %v5091 = vpop.f32.mrf.mxu0
        %v5092 = vpop.f32.mrf.mxu0
        %v5093 = vadd.f32 0.0, %v5092
        %v5094 = vpop.f32.mrf.mxu0
        %5095 = vdwg.mxu0
        %v5096 = vadd.f32 %v4325, %v4970
        %v5097 = vadd.f32 %v4326, %v4973
        %v5098 = vadd.f32 %v4327, %v4978
        %v5099 = vadd.f32 %v4328, %v4981
        %v5100 = vadd.f32 %v4329, %v4986
        %v5101 = vadd.f32 %v4330, %v4989
        %v5102 = vadd.f32 %v4331, %v4994
        %v5103 = vadd.f32 %v4332, %v4997
        %v5104 = vadd.f32 %v4333, %v5002
        %v5105 = vadd.f32 %v4334, %v5005
        %v5106 = vadd.f32 %v4335, %v5010
        %v5107 = vadd.f32 %v4336, %v5013
        %v5108 = vadd.f32 %v4337, %v5018
        %v5109 = vadd.f32 %v4338, %v5021
        %v5110 = vadd.f32 %v4339, %v5026
        %v5111 = vadd.f32 %v4340, %v5029
        %v5112 = vadd.f32 %v4341, %v5034
        %v5113 = vadd.f32 %v4342, %v5037
        %v5114 = vadd.f32 %v4343, %v5042
        %v5115 = vadd.f32 %v4344, %v5045
        %v5116 = vadd.f32 %v4345, %v5050
        %v5117 = vadd.f32 %v4346, %v5053
        %v5118 = vadd.f32 %v4347, %v5058
        %v5119 = vadd.f32 %v4348, %v5061
        %v5120 = vadd.f32 %v4349, %v5066
        %v5121 = vadd.f32 %v4350, %v5069
        %v5122 = vadd.f32 %v4351, %v5074
        %v5123 = vadd.f32 %v4352, %v5077
        %v5124 = vadd.f32 %v4353, %v5082
        %v5125 = vadd.f32 %v4354, %v5085
        %v5126 = vadd.f32 %v4355, %v5090
        %v5127 = vadd.f32 %v4356, %v5093
        %s5128 = scalar_lea.vmem %s1, 448
        %v5129 = vld [vmem:[%s5128] sm:$0xf]
        %v5130 = vld [vmem:[%s5128 + $0x4] sm:$0xf]
        %v5131 = vld [vmem:[%s5128 + $0x8] sm:$0xf]
        %v5132 = vld [vmem:[%s5128 + $0xc] sm:$0xf]
        %v5133 = vld [vmem:[%s5128 + $0x10] sm:$0xf]
        %v5134 = vld [vmem:[%s5128 + $0x14] sm:$0xf]
        %v5135 = vld [vmem:[%s5128 + $0x18] sm:$0xf]
        %v5136 = vld [vmem:[%s5128 + $0x1c] sm:$0xf]
        %v5137 = vld [vmem:[%s5128 + $0x20] sm:$0xf]
        %v5138 = vld [vmem:[%s5128 + $0x24] sm:$0xf]
        %v5139 = vld [vmem:[%s5128 + $0x28] sm:$0xf]
        %v5140 = vld [vmem:[%s5128 + $0x2c] sm:$0xf]
        %v5141 = vld [vmem:[%s5128 + $0x30] sm:$0xf]
        %v5142 = vld [vmem:[%s5128 + $0x34] sm:$0xf]
        %v5143 = vld [vmem:[%s5128 + $0x38] sm:$0xf]
        %v5144 = vld [vmem:[%s5128 + $0x3c] sm:$0xf]
        %v5177 = vunpack.c.l.b16 %v4359
        %v5178 = vunpack.c.l.b16 %v4360
        %v5179 = vunpack.c.l.b16 %v4362
        %v5180 = vunpack.c.l.b16 %v4363
        %v5181 = vunpack.c.l.b16 %v4365
        %v5182 = vunpack.c.l.b16 %v4366
        %v5183 = vunpack.c.l.b16 %v4368
        %v5184 = vunpack.c.l.b16 %v4369
        %v5185 = vunpack.c.l.b16 %v4371
        %v5186 = vunpack.c.l.b16 %v4372
        %v5187 = vunpack.c.l.b16 %v4374
        %v5188 = vunpack.c.l.b16 %v4375
        %v5189 = vunpack.c.l.b16 %v4377
        %v5190 = vunpack.c.l.b16 %v4378
        %v5191 = vunpack.c.l.b16 %v4380
        %v5192 = vunpack.c.l.b16 %v4381
        %v5193 = vunpack.c.l.b16 %v4383
        %v5194 = vunpack.c.l.b16 %v4384
        %v5195 = vunpack.c.l.b16 %v4386
        %v5196 = vunpack.c.l.b16 %v4387
        %v5197 = vunpack.c.l.b16 %v4389
        %v5198 = vunpack.c.l.b16 %v4390
        %v5199 = vunpack.c.l.b16 %v4392
        %v5200 = vunpack.c.l.b16 %v4393
        %v5201 = vunpack.c.l.b16 %v4395
        %v5202 = vunpack.c.l.b16 %v4396
        %v5203 = vunpack.c.l.b16 %v4398
        %v5204 = vunpack.c.l.b16 %v4399
        %v5205 = vunpack.c.l.b16 %v4401
        %v5206 = vunpack.c.l.b16 %v4402
        %v5207 = vunpack.c.l.b16 %v4404
        %v5208 = vunpack.c.l.b16 %v4405
        %v5209 = vpack.c.b16 %v5178, %v5177
        %v5210 = vpack.c.b16 %v5180, %v5179
        %v5211 = vpack.c.b16 %v5182, %v5181
        %v5212 = vpack.c.b16 %v5184, %v5183
        %v5213 = vpack.c.b16 %v5186, %v5185
        %v5214 = vpack.c.b16 %v5188, %v5187
        %v5215 = vpack.c.b16 %v5190, %v5189
        %v5216 = vpack.c.b16 %v5192, %v5191
        %v5217 = vpack.c.b16 %v5194, %v5193
        %v5218 = vpack.c.b16 %v5196, %v5195
        %v5219 = vpack.c.b16 %v5198, %v5197
        %v5220 = vpack.c.b16 %v5200, %v5199
        %v5221 = vpack.c.b16 %v5202, %v5201
        %v5222 = vpack.c.b16 %v5204, %v5203
        %v5223 = vpack.c.b16 %v5206, %v5205
        %v5224 = vpack.c.b16 %v5208, %v5207
        %v5257 = vunpack.c.l.b16 %v5129
        %v5258 = vunpack.c.l.b16 %v5130
        %v5259 = vunpack.c.l.b16 %v5131
        %v5260 = vunpack.c.l.b16 %v5132
        %v5261 = vunpack.c.l.b16 %v5133
        %v5262 = vunpack.c.l.b16 %v5134
        %v5263 = vunpack.c.l.b16 %v5135
        %v5264 = vunpack.c.l.b16 %v5136
        %v5265 = vunpack.c.l.b16 %v5137
        %v5266 = vunpack.c.l.b16 %v5138
        %v5267 = vunpack.c.l.b16 %v5139
        %v5268 = vunpack.c.l.b16 %v5140
        %v5269 = vunpack.c.l.b16 %v5141
        %v5270 = vunpack.c.l.b16 %v5142
        %v5271 = vunpack.c.l.b16 %v5143
        %v5272 = vunpack.c.l.b16 %v5144
        %v5273 = vpack.c.b16 %v5258, %v5257
        %v5274 = vpack.c.b16 %v5260, %v5259
        %v5275 = vpack.c.b16 %v5262, %v5261
        %v5276 = vpack.c.b16 %v5264, %v5263
        %v5277 = vpack.c.b16 %v5266, %v5265
        %v5278 = vpack.c.b16 %v5268, %v5267
        %v5279 = vpack.c.b16 %v5270, %v5269
        %v5280 = vpack.c.b16 %v5272, %v5271
        %5289 = vmatprep.subr.bf16.mxu0 0
        %5290 = vmatpush1.bf16.msra.mxu0 %v5280
        %5291 = vmatprep.subr.bf16.mxu0 0
        %5292 = vmatpush1.bf16.msra.mxu0 %v5279
        %5293 = vmatprep.subr.bf16.mxu0 0
        %5294 = vmatpush1.bf16.msra.mxu0 %v5278
        %5295 = vmatprep.subr.bf16.mxu0 0
        %5296 = vmatpush1.bf16.msra.mxu0 %v5277
        %5297 = vmatprep.subr.bf16.mxu0 0
        %5298 = vmatpush1.bf16.msra.mxu0 %v5276
        %5299 = vmatprep.subr.bf16.mxu0 0
        %5300 = vmatpush1.bf16.msra.mxu0 %v5275
        %5301 = vmatprep.subr.bf16.mxu0 0
        %5302 = vmatpush1.bf16.msra.mxu0 %v5274
        %5303 = vmatprep.subr.bf16.mxu0 0
        %5304 = vmatpush1.bf16.msra.mxu0 %v5273
        %5305 = vmatprep.subr.bf16.mxu0 0
        %5306 = vmatpush2.bf16.msra.mxu0 0
        %5307 = vmatprep.subr.bf16.mxu0 0
        %5308 = vmatpush2.bf16.msra.mxu0 0
        %5309 = vmatprep.subr.bf16.mxu0 0
        %5310 = vmatpush2.bf16.msra.mxu0 0
        %5311 = vmatprep.subr.bf16.mxu0 0
        %5312 = vmatpush2.bf16.msra.mxu0 0
        %5313 = vmatprep.subr.bf16.mxu0 0
        %5314 = vmatpush2.bf16.msra.mxu0 0
        %5315 = vmatprep.subr.bf16.mxu0 0
        %5316 = vmatpush2.bf16.msra.mxu0 0
        %5317 = vmatprep.subr.bf16.mxu0 0
        %5318 = vmatpush2.bf16.msra.mxu0 0
        %5319 = vmatprep.subr.bf16.mxu0 0
        %5320 = vmatpush2.bf16.msra.mxu0 0
        %5321 = vmatprep.mubr.bf16.mxu0 0
        %5322 = vmatmul.mubr.bf16.gmra.mxu0 %v5209
        %v5323 = vpop.f32.mrf.mxu0
        %v5324 = vadd.f32 0.0, %v5323
        %v5325 = vpop.f32.mrf.mxu0
        %v5326 = vpop.f32.mrf.mxu0
        %v5327 = vadd.f32 0.0, %v5326
        %v5328 = vpop.f32.mrf.mxu0
        %5329 = vmatprep.mubr.bf16.mxu0 0
        %5330 = vmatmul.mubr.bf16.gmra.mxu0 %v5210
        %v5331 = vpop.f32.mrf.mxu0
        %v5332 = vadd.f32 0.0, %v5331
        %v5333 = vpop.f32.mrf.mxu0
        %v5334 = vpop.f32.mrf.mxu0
        %v5335 = vadd.f32 0.0, %v5334
        %v5336 = vpop.f32.mrf.mxu0
        %5337 = vmatprep.mubr.bf16.mxu0 0
        %5338 = vmatmul.mubr.bf16.gmra.mxu0 %v5211
        %v5339 = vpop.f32.mrf.mxu0
        %v5340 = vadd.f32 0.0, %v5339
        %v5341 = vpop.f32.mrf.mxu0
        %v5342 = vpop.f32.mrf.mxu0
        %v5343 = vadd.f32 0.0, %v5342
        %v5344 = vpop.f32.mrf.mxu0
        %5345 = vmatprep.mubr.bf16.mxu0 0
        %5346 = vmatmul.mubr.bf16.gmra.mxu0 %v5212
        %v5347 = vpop.f32.mrf.mxu0
        %v5348 = vadd.f32 0.0, %v5347
        %v5349 = vpop.f32.mrf.mxu0
        %v5350 = vpop.f32.mrf.mxu0
        %v5351 = vadd.f32 0.0, %v5350
        %v5352 = vpop.f32.mrf.mxu0
        %5353 = vmatprep.mubr.bf16.mxu0 0
        %5354 = vmatmul.mubr.bf16.gmra.mxu0 %v5213
        %v5355 = vpop.f32.mrf.mxu0
        %v5356 = vadd.f32 0.0, %v5355
        %v5357 = vpop.f32.mrf.mxu0
        %v5358 = vpop.f32.mrf.mxu0
        %v5359 = vadd.f32 0.0, %v5358
        %v5360 = vpop.f32.mrf.mxu0
        %5361 = vmatprep.mubr.bf16.mxu0 0
        %5362 = vmatmul.mubr.bf16.gmra.mxu0 %v5214
        %v5363 = vpop.f32.mrf.mxu0
        %v5364 = vadd.f32 0.0, %v5363
        %v5365 = vpop.f32.mrf.mxu0
        %v5366 = vpop.f32.mrf.mxu0
        %v5367 = vadd.f32 0.0, %v5366
        %v5368 = vpop.f32.mrf.mxu0
        %5369 = vmatprep.mubr.bf16.mxu0 0
        %5370 = vmatmul.mubr.bf16.gmra.mxu0 %v5215
        %v5371 = vpop.f32.mrf.mxu0
        %v5372 = vadd.f32 0.0, %v5371
        %v5373 = vpop.f32.mrf.mxu0
        %v5374 = vpop.f32.mrf.mxu0
        %v5375 = vadd.f32 0.0, %v5374
        %v5376 = vpop.f32.mrf.mxu0
        %5377 = vmatprep.mubr.bf16.mxu0 0
        %5378 = vmatmul.mubr.bf16.gmra.mxu0 %v5216
        %v5379 = vpop.f32.mrf.mxu0
        %v5380 = vadd.f32 0.0, %v5379
        %v5381 = vpop.f32.mrf.mxu0
        %v5382 = vpop.f32.mrf.mxu0
        %v5383 = vadd.f32 0.0, %v5382
        %v5384 = vpop.f32.mrf.mxu0
        %5385 = vmatprep.mubr.bf16.mxu0 0
        %5386 = vmatmul.mubr.bf16.gmra.mxu0 %v5217
        %v5387 = vpop.f32.mrf.mxu0
        %v5388 = vadd.f32 0.0, %v5387
        %v5389 = vpop.f32.mrf.mxu0
        %v5390 = vpop.f32.mrf.mxu0
        %v5391 = vadd.f32 0.0, %v5390
        %v5392 = vpop.f32.mrf.mxu0
        %5393 = vmatprep.mubr.bf16.mxu0 0
        %5394 = vmatmul.mubr.bf16.gmra.mxu0 %v5218
        %v5395 = vpop.f32.mrf.mxu0
        %v5396 = vadd.f32 0.0, %v5395
        %v5397 = vpop.f32.mrf.mxu0
        %v5398 = vpop.f32.mrf.mxu0
        %v5399 = vadd.f32 0.0, %v5398
        %v5400 = vpop.f32.mrf.mxu0
        %5401 = vmatprep.mubr.bf16.mxu0 0
        %5402 = vmatmul.mubr.bf16.gmra.mxu0 %v5219
        %v5403 = vpop.f32.mrf.mxu0
        %v5404 = vadd.f32 0.0, %v5403
        %v5405 = vpop.f32.mrf.mxu0
        %v5406 = vpop.f32.mrf.mxu0
        %v5407 = vadd.f32 0.0, %v5406
        %v5408 = vpop.f32.mrf.mxu0
        %5409 = vmatprep.mubr.bf16.mxu0 0
        %5410 = vmatmul.mubr.bf16.gmra.mxu0 %v5220
        %v5411 = vpop.f32.mrf.mxu0
        %v5412 = vadd.f32 0.0, %v5411
        %v5413 = vpop.f32.mrf.mxu0
        %v5414 = vpop.f32.mrf.mxu0
        %v5415 = vadd.f32 0.0, %v5414
        %v5416 = vpop.f32.mrf.mxu0
        %5417 = vmatprep.mubr.bf16.mxu0 0
        %5418 = vmatmul.mubr.bf16.gmra.mxu0 %v5221
        %v5419 = vpop.f32.mrf.mxu0
        %v5420 = vadd.f32 0.0, %v5419
        %v5421 = vpop.f32.mrf.mxu0
        %v5422 = vpop.f32.mrf.mxu0
        %v5423 = vadd.f32 0.0, %v5422
        %v5424 = vpop.f32.mrf.mxu0
        %5425 = vmatprep.mubr.bf16.mxu0 0
        %5426 = vmatmul.mubr.bf16.gmra.mxu0 %v5222
        %v5427 = vpop.f32.mrf.mxu0
        %v5428 = vadd.f32 0.0, %v5427
        %v5429 = vpop.f32.mrf.mxu0
        %v5430 = vpop.f32.mrf.mxu0
        %v5431 = vadd.f32 0.0, %v5430
        %v5432 = vpop.f32.mrf.mxu0
        %5433 = vmatprep.mubr.bf16.mxu0 0
        %5434 = vmatmul.mubr.bf16.gmra.mxu0 %v5223
        %v5435 = vpop.f32.mrf.mxu0
        %v5436 = vadd.f32 0.0, %v5435
        %v5437 = vpop.f32.mrf.mxu0
        %v5438 = vpop.f32.mrf.mxu0
        %v5439 = vadd.f32 0.0, %v5438
        %v5440 = vpop.f32.mrf.mxu0
        %5441 = vmatprep.mubr.bf16.mxu0 0
        %5442 = vmatmul.mubr.bf16.gmra.mxu0 %v5224
        %v5443 = vpop.f32.mrf.mxu0
        %v5444 = vadd.f32 0.0, %v5443
        %v5445 = vpop.f32.mrf.mxu0
        %v5446 = vpop.f32.mrf.mxu0
        %v5447 = vadd.f32 0.0, %v5446
        %v5448 = vpop.f32.mrf.mxu0
        %5449 = vdwg.mxu0
        %v5450 = vadd.f32 %v5096, %v5324
        %v5451 = vadd.f32 %v5097, %v5327
        %v5452 = vadd.f32 %v5098, %v5332
        %v5453 = vadd.f32 %v5099, %v5335
        %v5454 = vadd.f32 %v5100, %v5340
        %v5455 = vadd.f32 %v5101, %v5343
        %v5456 = vadd.f32 %v5102, %v5348
        %v5457 = vadd.f32 %v5103, %v5351
        %v5458 = vadd.f32 %v5104, %v5356
        %v5459 = vadd.f32 %v5105, %v5359
        %v5460 = vadd.f32 %v5106, %v5364
        %v5461 = vadd.f32 %v5107, %v5367
        %v5462 = vadd.f32 %v5108, %v5372
        %v5463 = vadd.f32 %v5109, %v5375
        %v5464 = vadd.f32 %v5110, %v5380
        %v5465 = vadd.f32 %v5111, %v5383
        %v5466 = vadd.f32 %v5112, %v5388
        %v5467 = vadd.f32 %v5113, %v5391
        %v5468 = vadd.f32 %v5114, %v5396
        %v5469 = vadd.f32 %v5115, %v5399
        %v5470 = vadd.f32 %v5116, %v5404
        %v5471 = vadd.f32 %v5117, %v5407
        %v5472 = vadd.f32 %v5118, %v5412
        %v5473 = vadd.f32 %v5119, %v5415
        %v5474 = vadd.f32 %v5120, %v5420
        %v5475 = vadd.f32 %v5121, %v5423
        %v5476 = vadd.f32 %v5122, %v5428
        %v5477 = vadd.f32 %v5123, %v5431
        %v5478 = vadd.f32 %v5124, %v5436
        %v5479 = vadd.f32 %v5125, %v5439
        %v5480 = vadd.f32 %v5126, %v5444
        %v5481 = vadd.f32 %v5127, %v5447
        %v5482 = vld [vmem:[%s4357 + $0x8] sm:$0xf]
        %v5483 = vld [vmem:[%s4357 + $0xc] sm:$0xf]
        %v5484 = vld [vmem:[%s4357 + $0x10] sm:$0x1]
        %v5485 = vld [vmem:[%s4357 + $0x20] sm:$0xf]
        %v5486 = vld [vmem:[%s4357 + $0x24] sm:$0xf]
        %v5487 = vld [vmem:[%s4357 + $0x28] sm:$0x1]
        %v5488 = vld [vmem:[%s4357 + $0x38] sm:$0xf]
        %v5489 = vld [vmem:[%s4357 + $0x3c] sm:$0xf]
        %v5490 = vld [vmem:[%s4357 + $0x40] sm:$0x1]
        %v5491 = vld [vmem:[%s4357 + $0x50] sm:$0xf]
        %v5492 = vld [vmem:[%s4357 + $0x54] sm:$0xf]
        %v5493 = vld [vmem:[%s4357 + $0x58] sm:$0x1]
        %v5494 = vld [vmem:[%s4357 + $0x68] sm:$0xf]
        %v5495 = vld [vmem:[%s4357 + $0x6c] sm:$0xf]
        %v5496 = vld [vmem:[%s4357 + $0x70] sm:$0x1]
        %v5497 = vld [vmem:[%s4357 + $0x80] sm:$0xf]
        %v5498 = vld [vmem:[%s4357 + $0x84] sm:$0xf]
        %v5499 = vld [vmem:[%s4357 + $0x88] sm:$0x1]
        %v5500 = vld [vmem:[%s4357 + $0x98] sm:$0xf]
        %v5501 = vld [vmem:[%s4357 + $0x9c] sm:$0xf]
        %v5502 = vld [vmem:[%s4357 + $0xa0] sm:$0x1]
        %v5503 = vld [vmem:[%s4357 + $0xb0] sm:$0xf]
        %v5504 = vld [vmem:[%s4357 + $0xb4] sm:$0xf]
        %v5505 = vld [vmem:[%s4357 + $0xb8] sm:$0x1]
        %v5506 = vld [vmem:[%s4357 + $0xc8] sm:$0xf]
        %v5507 = vld [vmem:[%s4357 + $0xcc] sm:$0xf]
        %v5508 = vld [vmem:[%s4357 + $0xd0] sm:$0x1]
        %v5509 = vld [vmem:[%s4357 + $0xe0] sm:$0xf]
        %v5510 = vld [vmem:[%s4357 + $0xe4] sm:$0xf]
        %v5511 = vld [vmem:[%s4357 + $0xe8] sm:$0x1]
        %v5512 = vld [vmem:[%s4357 + $0xf8] sm:$0xf]
        %v5513 = vld [vmem:[%s4357 + $0xfc] sm:$0xf]
        %v5514 = vld [vmem:[%s4357 + $0x100] sm:$0x1]
        %v5515 = vld [vmem:[%s4357 + $0x110] sm:$0xf]
        %v5516 = vld [vmem:[%s4357 + $0x114] sm:$0xf]
        %v5517 = vld [vmem:[%s4357 + $0x118] sm:$0x1]
        %v5518 = vld [vmem:[%s4357 + $0x128] sm:$0xf]
        %v5519 = vld [vmem:[%s4357 + $0x12c] sm:$0xf]
        %v5520 = vld [vmem:[%s4357 + $0x130] sm:$0x1]
        %v5521 = vld [vmem:[%s4357 + $0x140] sm:$0xf]
        %v5522 = vld [vmem:[%s4357 + $0x144] sm:$0xf]
        %v5523 = vld [vmem:[%s4357 + $0x148] sm:$0x1]
        %v5524 = vld [vmem:[%s4357 + $0x158] sm:$0xf]
        %v5525 = vld [vmem:[%s4357 + $0x15c] sm:$0xf]
        %v5526 = vld [vmem:[%s4357 + $0x160] sm:$0x1]
        %v5527 = vld [vmem:[%s4357 + $0x170] sm:$0xf]
        %v5528 = vld [vmem:[%s4357 + $0x174] sm:$0xf]
        %v5529 = vld [vmem:[%s4357 + $0x178] sm:$0x1]
        %v5530 = vsel %vm1674, %v5482, 0
        %v5531 = vsel %vm1675, %v5483, 0
        %v5532 = vsel %vm1676, %v5484, 0
        %v5533 = vsel %vm1674, %v5485, 0
        %v5534 = vsel %vm1675, %v5486, 0
        %v5535 = vsel %vm1676, %v5487, 0
        %v5536 = vsel %vm1674, %v5488, 0
        %v5537 = vsel %vm1675, %v5489, 0
        %v5538 = vsel %vm1676, %v5490, 0
        %v5539 = vsel %vm1674, %v5491, 0
        %v5540 = vsel %vm1675, %v5492, 0
        %v5541 = vsel %vm1676, %v5493, 0
        %v5542 = vsel %vm1674, %v5494, 0
        %v5543 = vsel %vm1675, %v5495, 0
        %v5544 = vsel %vm1676, %v5496, 0
        %v5545 = vsel %vm1674, %v5497, 0
        %v5546 = vsel %vm1675, %v5498, 0
        %v5547 = vsel %vm1676, %v5499, 0
        %v5548 = vsel %vm1674, %v5500, 0
        %v5549 = vsel %vm1675, %v5501, 0
        %v5550 = vsel %vm1676, %v5502, 0
        %v5551 = vsel %vm1674, %v5503, 0
        %v5552 = vsel %vm1675, %v5504, 0
        %v5553 = vsel %vm1676, %v5505, 0
        %v5554 = vsel %vm1674, %v5506, 0
        %v5555 = vsel %vm1675, %v5507, 0
        %v5556 = vsel %vm1676, %v5508, 0
        %v5557 = vsel %vm1674, %v5509, 0
        %v5558 = vsel %vm1675, %v5510, 0
        %v5559 = vsel %vm1676, %v5511, 0
        %v5560 = vsel %vm1674, %v5512, 0
        %v5561 = vsel %vm1675, %v5513, 0
        %v5562 = vsel %vm1676, %v5514, 0
        %v5563 = vsel %vm1674, %v5515, 0
        %v5564 = vsel %vm1675, %v5516, 0
        %v5565 = vsel %vm1676, %v5517, 0
        %v5566 = vsel %vm1674, %v5518, 0
        %v5567 = vsel %vm1675, %v5519, 0
        %v5568 = vsel %vm1676, %v5520, 0
        %v5569 = vsel %vm1674, %v5521, 0
        %v5570 = vsel %vm1675, %v5522, 0
        %v5571 = vsel %vm1676, %v5523, 0
        %v5572 = vsel %vm1674, %v5524, 0
        %v5573 = vsel %vm1675, %v5525, 0
        %v5574 = vsel %vm1676, %v5526, 0
        %v5575 = vsel %vm1674, %v5527, 0
        %v5576 = vsel %vm1675, %v5528, 0
        %v5577 = vsel %vm1676, %v5529, 0
        %v5579 = vshrl.u32 %v5530, 16
        %v5581 = vrot.slane %v5579, 4
        %v5582 = vshll.u32 %v5530, 16
        %v5584 = vrot.slane %v5582, 5
        %v5585 = vor.u32 %v5581, %v5584
        %v5586 = vrot.slane %v5585, 4
        %v5588 = vshll.u32 %v5531, 16
        %v5590 = vrot.slane %v5588, 5
        %v5591 = vsel %vm564, %v5586, %v5590
        %v5592 = vshrl.u32 %v5531, 16
        %v5594 = vrot.slane %v5592, 4
        %v5595 = vor.u32 %v5594, %v5590
        %v5596 = vrot.slane %v5595, 4
        %v5598 = vshll.u32 %v5532, 16
        %v5600 = vrot.slane %v5598, 5
        %v5601 = vsel %vm564, %v5596, %v5600
        %v5603 = vshrl.u32 %v5533, 16
        %v5605 = vrot.slane %v5603, 4
        %v5606 = vshll.u32 %v5533, 16
        %v5608 = vrot.slane %v5606, 5
        %v5609 = vor.u32 %v5605, %v5608
        %v5610 = vrot.slane %v5609, 4
        %v5612 = vshll.u32 %v5534, 16
        %v5614 = vrot.slane %v5612, 5
        %v5615 = vsel %vm564, %v5610, %v5614
        %v5616 = vshrl.u32 %v5534, 16
        %v5618 = vrot.slane %v5616, 4
        %v5619 = vor.u32 %v5618, %v5614
        %v5620 = vrot.slane %v5619, 4
        %v5622 = vshll.u32 %v5535, 16
        %v5624 = vrot.slane %v5622, 5
        %v5625 = vsel %vm564, %v5620, %v5624
        %v5627 = vshrl.u32 %v5536, 16
        %v5629 = vrot.slane %v5627, 4
        %v5630 = vshll.u32 %v5536, 16
        %v5632 = vrot.slane %v5630, 5
        %v5633 = vor.u32 %v5629, %v5632
        %v5634 = vrot.slane %v5633, 4
        %v5636 = vshll.u32 %v5537, 16
        %v5638 = vrot.slane %v5636, 5
        %v5639 = vsel %vm564, %v5634, %v5638
        %v5640 = vshrl.u32 %v5537, 16
        %v5642 = vrot.slane %v5640, 4
        %v5643 = vor.u32 %v5642, %v5638
        %v5644 = vrot.slane %v5643, 4
        %v5646 = vshll.u32 %v5538, 16
        %v5648 = vrot.slane %v5646, 5
        %v5649 = vsel %vm564, %v5644, %v5648
        %v5651 = vshrl.u32 %v5539, 16
        %v5653 = vrot.slane %v5651, 4
        %v5654 = vshll.u32 %v5539, 16
        %v5656 = vrot.slane %v5654, 5
        %v5657 = vor.u32 %v5653, %v5656
        %v5658 = vrot.slane %v5657, 4
        %v5660 = vshll.u32 %v5540, 16
        %v5662 = vrot.slane %v5660, 5
        %v5663 = vsel %vm564, %v5658, %v5662
        %v5664 = vshrl.u32 %v5540, 16
        %v5666 = vrot.slane %v5664, 4
        %v5667 = vor.u32 %v5666, %v5662
        %v5668 = vrot.slane %v5667, 4
        %v5670 = vshll.u32 %v5541, 16
        %v5672 = vrot.slane %v5670, 5
        %v5673 = vsel %vm564, %v5668, %v5672
        %v5675 = vshrl.u32 %v5542, 16
        %v5677 = vrot.slane %v5675, 4
        %v5678 = vshll.u32 %v5542, 16
        %v5680 = vrot.slane %v5678, 5
        %v5681 = vor.u32 %v5677, %v5680
        %v5682 = vrot.slane %v5681, 4
        %v5684 = vshll.u32 %v5543, 16
        %v5686 = vrot.slane %v5684, 5
        %v5687 = vsel %vm564, %v5682, %v5686
        %v5688 = vshrl.u32 %v5543, 16
        %v5690 = vrot.slane %v5688, 4
        %v5691 = vor.u32 %v5690, %v5686
        %v5692 = vrot.slane %v5691, 4
        %v5694 = vshll.u32 %v5544, 16
        %v5696 = vrot.slane %v5694, 5
        %v5697 = vsel %vm564, %v5692, %v5696
        %v5699 = vshrl.u32 %v5545, 16
        %v5701 = vrot.slane %v5699, 4
        %v5702 = vshll.u32 %v5545, 16
        %v5704 = vrot.slane %v5702, 5
        %v5705 = vor.u32 %v5701, %v5704
        %v5706 = vrot.slane %v5705, 4
        %v5708 = vshll.u32 %v5546, 16
        %v5710 = vrot.slane %v5708, 5
        %v5711 = vsel %vm564, %v5706, %v5710
        %v5712 = vshrl.u32 %v5546, 16
        %v5714 = vrot.slane %v5712, 4
        %v5715 = vor.u32 %v5714, %v5710
        %v5716 = vrot.slane %v5715, 4
        %v5718 = vshll.u32 %v5547, 16
        %v5720 = vrot.slane %v5718, 5
        %v5721 = vsel %vm564, %v5716, %v5720
        %v5723 = vshrl.u32 %v5548, 16
        %v5725 = vrot.slane %v5723, 4
        %v5726 = vshll.u32 %v5548, 16
        %v5728 = vrot.slane %v5726, 5
        %v5729 = vor.u32 %v5725, %v5728
        %v5730 = vrot.slane %v5729, 4
        %v5732 = vshll.u32 %v5549, 16
        %v5734 = vrot.slane %v5732, 5
        %v5735 = vsel %vm564, %v5730, %v5734
        %v5736 = vshrl.u32 %v5549, 16
        %v5738 = vrot.slane %v5736, 4
        %v5739 = vor.u32 %v5738, %v5734
        %v5740 = vrot.slane %v5739, 4
        %v5742 = vshll.u32 %v5550, 16
        %v5744 = vrot.slane %v5742, 5
        %v5745 = vsel %vm564, %v5740, %v5744
        %v5747 = vshrl.u32 %v5551, 16
        %v5749 = vrot.slane %v5747, 4
        %v5750 = vshll.u32 %v5551, 16
        %v5752 = vrot.slane %v5750, 5
        %v5753 = vor.u32 %v5749, %v5752
        %v5754 = vrot.slane %v5753, 4
        %v5756 = vshll.u32 %v5552, 16
        %v5758 = vrot.slane %v5756, 5
        %v5759 = vsel %vm564, %v5754, %v5758
        %v5760 = vshrl.u32 %v5552, 16
        %v5762 = vrot.slane %v5760, 4
        %v5763 = vor.u32 %v5762, %v5758
        %v5764 = vrot.slane %v5763, 4
        %v5766 = vshll.u32 %v5553, 16
        %v5768 = vrot.slane %v5766, 5
        %v5769 = vsel %vm564, %v5764, %v5768
        %v5771 = vshrl.u32 %v5554, 16
        %v5773 = vrot.slane %v5771, 4
        %v5774 = vshll.u32 %v5554, 16
        %v5776 = vrot.slane %v5774, 5
        %v5777 = vor.u32 %v5773, %v5776
        %v5778 = vrot.slane %v5777, 4
        %v5780 = vshll.u32 %v5555, 16
        %v5782 = vrot.slane %v5780, 5
        %v5783 = vsel %vm564, %v5778, %v5782
        %v5784 = vshrl.u32 %v5555, 16
        %v5786 = vrot.slane %v5784, 4
        %v5787 = vor.u32 %v5786, %v5782
        %v5788 = vrot.slane %v5787, 4
        %v5790 = vshll.u32 %v5556, 16
        %v5792 = vrot.slane %v5790, 5
        %v5793 = vsel %vm564, %v5788, %v5792
        %v5795 = vshrl.u32 %v5557, 16
        %v5797 = vrot.slane %v5795, 4
        %v5798 = vshll.u32 %v5557, 16
        %v5800 = vrot.slane %v5798, 5
        %v5801 = vor.u32 %v5797, %v5800
        %v5802 = vrot.slane %v5801, 4
        %v5804 = vshll.u32 %v5558, 16
        %v5806 = vrot.slane %v5804, 5
        %v5807 = vsel %vm564, %v5802, %v5806
        %v5808 = vshrl.u32 %v5558, 16
        %v5810 = vrot.slane %v5808, 4
        %v5811 = vor.u32 %v5810, %v5806
        %v5812 = vrot.slane %v5811, 4
        %v5814 = vshll.u32 %v5559, 16
        %v5816 = vrot.slane %v5814, 5
        %v5817 = vsel %vm564, %v5812, %v5816
        %v5819 = vshrl.u32 %v5560, 16
        %v5821 = vrot.slane %v5819, 4
        %v5822 = vshll.u32 %v5560, 16
        %v5824 = vrot.slane %v5822, 5
        %v5825 = vor.u32 %v5821, %v5824
        %v5826 = vrot.slane %v5825, 4
        %v5828 = vshll.u32 %v5561, 16
        %v5830 = vrot.slane %v5828, 5
        %v5831 = vsel %vm564, %v5826, %v5830
        %v5832 = vshrl.u32 %v5561, 16
        %v5834 = vrot.slane %v5832, 4
        %v5835 = vor.u32 %v5834, %v5830
        %v5836 = vrot.slane %v5835, 4
        %v5838 = vshll.u32 %v5562, 16
        %v5840 = vrot.slane %v5838, 5
        %v5841 = vsel %vm564, %v5836, %v5840
        %v5843 = vshrl.u32 %v5563, 16
        %v5845 = vrot.slane %v5843, 4
        %v5846 = vshll.u32 %v5563, 16
        %v5848 = vrot.slane %v5846, 5
        %v5849 = vor.u32 %v5845, %v5848
        %v5850 = vrot.slane %v5849, 4
        %v5852 = vshll.u32 %v5564, 16
        %v5854 = vrot.slane %v5852, 5
        %v5855 = vsel %vm564, %v5850, %v5854
        %v5856 = vshrl.u32 %v5564, 16
        %v5858 = vrot.slane %v5856, 4
        %v5859 = vor.u32 %v5858, %v5854
        %v5860 = vrot.slane %v5859, 4
        %v5862 = vshll.u32 %v5565, 16
        %v5864 = vrot.slane %v5862, 5
        %v5865 = vsel %vm564, %v5860, %v5864
        %v5867 = vshrl.u32 %v5566, 16
        %v5869 = vrot.slane %v5867, 4
        %v5870 = vshll.u32 %v5566, 16
        %v5872 = vrot.slane %v5870, 5
        %v5873 = vor.u32 %v5869, %v5872
        %v5874 = vrot.slane %v5873, 4
        %v5876 = vshll.u32 %v5567, 16
        %v5878 = vrot.slane %v5876, 5
        %v5879 = vsel %vm564, %v5874, %v5878
        %v5880 = vshrl.u32 %v5567, 16
        %v5882 = vrot.slane %v5880, 4
        %v5883 = vor.u32 %v5882, %v5878
        %v5884 = vrot.slane %v5883, 4
        %v5886 = vshll.u32 %v5568, 16
        %v5888 = vrot.slane %v5886, 5
        %v5889 = vsel %vm564, %v5884, %v5888
        %v5891 = vshrl.u32 %v5569, 16
        %v5893 = vrot.slane %v5891, 4
        %v5894 = vshll.u32 %v5569, 16
        %v5896 = vrot.slane %v5894, 5
        %v5897 = vor.u32 %v5893, %v5896
        %v5898 = vrot.slane %v5897, 4
        %v5900 = vshll.u32 %v5570, 16
        %v5902 = vrot.slane %v5900, 5
        %v5903 = vsel %vm564, %v5898, %v5902
        %v5904 = vshrl.u32 %v5570, 16
        %v5906 = vrot.slane %v5904, 4
        %v5907 = vor.u32 %v5906, %v5902
        %v5908 = vrot.slane %v5907, 4
        %v5910 = vshll.u32 %v5571, 16
        %v5912 = vrot.slane %v5910, 5
        %v5913 = vsel %vm564, %v5908, %v5912
        %v5915 = vshrl.u32 %v5572, 16
        %v5917 = vrot.slane %v5915, 4
        %v5918 = vshll.u32 %v5572, 16
        %v5920 = vrot.slane %v5918, 5
        %v5921 = vor.u32 %v5917, %v5920
        %v5922 = vrot.slane %v5921, 4
        %v5924 = vshll.u32 %v5573, 16
        %v5926 = vrot.slane %v5924, 5
        %v5927 = vsel %vm564, %v5922, %v5926
        %v5928 = vshrl.u32 %v5573, 16
        %v5930 = vrot.slane %v5928, 4
        %v5931 = vor.u32 %v5930, %v5926
        %v5932 = vrot.slane %v5931, 4
        %v5934 = vshll.u32 %v5574, 16
        %v5936 = vrot.slane %v5934, 5
        %v5937 = vsel %vm564, %v5932, %v5936
        %v5939 = vshrl.u32 %v5575, 16
        %v5941 = vrot.slane %v5939, 4
        %v5942 = vshll.u32 %v5575, 16
        %v5944 = vrot.slane %v5942, 5
        %v5945 = vor.u32 %v5941, %v5944
        %v5946 = vrot.slane %v5945, 4
        %v5948 = vshll.u32 %v5576, 16
        %v5950 = vrot.slane %v5948, 5
        %v5951 = vsel %vm564, %v5946, %v5950
        %v5952 = vshrl.u32 %v5576, 16
        %v5954 = vrot.slane %v5952, 4
        %v5955 = vor.u32 %v5954, %v5950
        %v5956 = vrot.slane %v5955, 4
        %v5958 = vshll.u32 %v5577, 16
        %v5960 = vrot.slane %v5958, 5
        %v5961 = vsel %vm564, %v5956, %v5960
        %s5962 = scalar_lea.vmem %s1, 512
        %v5963 = vld [vmem:[%s5962] sm:$0xf]
        %v5964 = vld [vmem:[%s5962 + $0x4] sm:$0xf]
        %v5965 = vld [vmem:[%s5962 + $0x8] sm:$0xf]
        %v5966 = vld [vmem:[%s5962 + $0xc] sm:$0xf]
        %v5967 = vld [vmem:[%s5962 + $0x10] sm:$0xf]
        %v5968 = vld [vmem:[%s5962 + $0x14] sm:$0xf]
        %v5969 = vld [vmem:[%s5962 + $0x18] sm:$0xf]
        %v5970 = vld [vmem:[%s5962 + $0x1c] sm:$0xf]
        %v5971 = vld [vmem:[%s5962 + $0x20] sm:$0xf]
        %v5972 = vld [vmem:[%s5962 + $0x24] sm:$0xf]
        %v5973 = vld [vmem:[%s5962 + $0x28] sm:$0xf]
        %v5974 = vld [vmem:[%s5962 + $0x2c] sm:$0xf]
        %v5975 = vld [vmem:[%s5962 + $0x30] sm:$0xf]
        %v5976 = vld [vmem:[%s5962 + $0x34] sm:$0xf]
        %v5977 = vld [vmem:[%s5962 + $0x38] sm:$0xf]
        %v5978 = vld [vmem:[%s5962 + $0x3c] sm:$0xf]
        %v5979 = vunpack.c.l.b16 %v5591
        %v5980 = vunpack.c.l.b16 %v5601
        %v5981 = vunpack.c.l.b16 %v5615
        %v5982 = vunpack.c.l.b16 %v5625
        %v5983 = vunpack.c.l.b16 %v5639
        %v5984 = vunpack.c.l.b16 %v5649
        %v5985 = vunpack.c.l.b16 %v5663
        %v5986 = vunpack.c.l.b16 %v5673
        %v5987 = vunpack.c.l.b16 %v5687
        %v5988 = vunpack.c.l.b16 %v5697
        %v5989 = vunpack.c.l.b16 %v5711
        %v5990 = vunpack.c.l.b16 %v5721
        %v5991 = vunpack.c.l.b16 %v5735
        %v5992 = vunpack.c.l.b16 %v5745
        %v5993 = vunpack.c.l.b16 %v5759
        %v5994 = vunpack.c.l.b16 %v5769
        %v5995 = vunpack.c.l.b16 %v5783
        %v5996 = vunpack.c.l.b16 %v5793
        %v5997 = vunpack.c.l.b16 %v5807
        %v5998 = vunpack.c.l.b16 %v5817
        %v5999 = vunpack.c.l.b16 %v5831
        %v6000 = vunpack.c.l.b16 %v5841
        %v6001 = vunpack.c.l.b16 %v5855
        %v6002 = vunpack.c.l.b16 %v5865
        %v6003 = vunpack.c.l.b16 %v5879
        %v6004 = vunpack.c.l.b16 %v5889
        %v6005 = vunpack.c.l.b16 %v5903
        %v6006 = vunpack.c.l.b16 %v5913
        %v6007 = vunpack.c.l.b16 %v5927
        %v6008 = vunpack.c.l.b16 %v5937
        %v6009 = vunpack.c.l.b16 %v5951
        %v6010 = vunpack.c.l.b16 %v5961
        %v6011 = vpack.c.b16 %v5980, %v5979
        %v6012 = vpack.c.b16 %v5982, %v5981
        %v6013 = vpack.c.b16 %v5984, %v5983
        %v6014 = vpack.c.b16 %v5986, %v5985
        %v6015 = vpack.c.b16 %v5988, %v5987
        %v6016 = vpack.c.b16 %v5990, %v5989
        %v6017 = vpack.c.b16 %v5992, %v5991
        %v6018 = vpack.c.b16 %v5994, %v5993
        %v6019 = vpack.c.b16 %v5996, %v5995
        %v6020 = vpack.c.b16 %v5998, %v5997
        %v6021 = vpack.c.b16 %v6000, %v5999
        %v6022 = vpack.c.b16 %v6002, %v6001
        %v6023 = vpack.c.b16 %v6004, %v6003
        %v6024 = vpack.c.b16 %v6006, %v6005
        %v6025 = vpack.c.b16 %v6008, %v6007
        %v6026 = vpack.c.b16 %v6010, %v6009
        %v6059 = vunpack.c.l.b16 %v5963
        %v6060 = vunpack.c.l.b16 %v5964
        %v6061 = vunpack.c.l.b16 %v5965
        %v6062 = vunpack.c.l.b16 %v5966
        %v6063 = vunpack.c.l.b16 %v5967
        %v6064 = vunpack.c.l.b16 %v5968
        %v6065 = vunpack.c.l.b16 %v5969
        %v6066 = vunpack.c.l.b16 %v5970
        %v6067 = vunpack.c.l.b16 %v5971
        %v6068 = vunpack.c.l.b16 %v5972
        %v6069 = vunpack.c.l.b16 %v5973
        %v6070 = vunpack.c.l.b16 %v5974
        %v6071 = vunpack.c.l.b16 %v5975
        %v6072 = vunpack.c.l.b16 %v5976
        %v6073 = vunpack.c.l.b16 %v5977
        %v6074 = vunpack.c.l.b16 %v5978
        %v6075 = vpack.c.b16 %v6060, %v6059
        %v6076 = vpack.c.b16 %v6062, %v6061
        %v6077 = vpack.c.b16 %v6064, %v6063
        %v6078 = vpack.c.b16 %v6066, %v6065
        %v6079 = vpack.c.b16 %v6068, %v6067
        %v6080 = vpack.c.b16 %v6070, %v6069
        %v6081 = vpack.c.b16 %v6072, %v6071
        %v6082 = vpack.c.b16 %v6074, %v6073
        %6091 = vmatprep.subr.bf16.mxu0 0
        %6092 = vmatpush1.bf16.msra.mxu0 %v6082
        %6093 = vmatprep.subr.bf16.mxu0 0
        %6094 = vmatpush1.bf16.msra.mxu0 %v6081
        %6095 = vmatprep.subr.bf16.mxu0 0
        %6096 = vmatpush1.bf16.msra.mxu0 %v6080
        %6097 = vmatprep.subr.bf16.mxu0 0
        %6098 = vmatpush1.bf16.msra.mxu0 %v6079
        %6099 = vmatprep.subr.bf16.mxu0 0
        %6100 = vmatpush1.bf16.msra.mxu0 %v6078
        %6101 = vmatprep.subr.bf16.mxu0 0
        %6102 = vmatpush1.bf16.msra.mxu0 %v6077
        %6103 = vmatprep.subr.bf16.mxu0 0
        %6104 = vmatpush1.bf16.msra.mxu0 %v6076
        %6105 = vmatprep.subr.bf16.mxu0 0
        %6106 = vmatpush1.bf16.msra.mxu0 %v6075
        %6107 = vmatprep.subr.bf16.mxu0 0
        %6108 = vmatpush2.bf16.msra.mxu0 0
        %6109 = vmatprep.subr.bf16.mxu0 0
        %6110 = vmatpush2.bf16.msra.mxu0 0
        %6111 = vmatprep.subr.bf16.mxu0 0
        %6112 = vmatpush2.bf16.msra.mxu0 0
        %6113 = vmatprep.subr.bf16.mxu0 0
        %6114 = vmatpush2.bf16.msra.mxu0 0
        %6115 = vmatprep.subr.bf16.mxu0 0
        %6116 = vmatpush2.bf16.msra.mxu0 0
        %6117 = vmatprep.subr.bf16.mxu0 0
        %6118 = vmatpush2.bf16.msra.mxu0 0
        %6119 = vmatprep.subr.bf16.mxu0 0
        %6120 = vmatpush2.bf16.msra.mxu0 0
        %6121 = vmatprep.subr.bf16.mxu0 0
        %6122 = vmatpush2.bf16.msra.mxu0 0
        %6123 = vmatprep.mubr.bf16.mxu0 0
        %6124 = vmatmul.mubr.bf16.gmra.mxu0 %v6011
        %v6125 = vpop.f32.mrf.mxu0
        %v6126 = vadd.f32 0.0, %v6125
        %v6127 = vpop.f32.mrf.mxu0
        %v6128 = vpop.f32.mrf.mxu0
        %v6129 = vadd.f32 0.0, %v6128
        %v6130 = vpop.f32.mrf.mxu0
        %6131 = vmatprep.mubr.bf16.mxu0 0
        %6132 = vmatmul.mubr.bf16.gmra.mxu0 %v6012
        %v6133 = vpop.f32.mrf.mxu0
        %v6134 = vadd.f32 0.0, %v6133
        %v6135 = vpop.f32.mrf.mxu0
        %v6136 = vpop.f32.mrf.mxu0
        %v6137 = vadd.f32 0.0, %v6136
        %v6138 = vpop.f32.mrf.mxu0
        %6139 = vmatprep.mubr.bf16.mxu0 0
        %6140 = vmatmul.mubr.bf16.gmra.mxu0 %v6013
        %v6141 = vpop.f32.mrf.mxu0
        %v6142 = vadd.f32 0.0, %v6141
        %v6143 = vpop.f32.mrf.mxu0
        %v6144 = vpop.f32.mrf.mxu0
        %v6145 = vadd.f32 0.0, %v6144
        %v6146 = vpop.f32.mrf.mxu0
        %6147 = vmatprep.mubr.bf16.mxu0 0
        %6148 = vmatmul.mubr.bf16.gmra.mxu0 %v6014
        %v6149 = vpop.f32.mrf.mxu0
        %v6150 = vadd.f32 0.0, %v6149
        %v6151 = vpop.f32.mrf.mxu0
        %v6152 = vpop.f32.mrf.mxu0
        %v6153 = vadd.f32 0.0, %v6152
        %v6154 = vpop.f32.mrf.mxu0
        %6155 = vmatprep.mubr.bf16.mxu0 0
        %6156 = vmatmul.mubr.bf16.gmra.mxu0 %v6015
        %v6157 = vpop.f32.mrf.mxu0
        %v6158 = vadd.f32 0.0, %v6157
        %v6159 = vpop.f32.mrf.mxu0
        %v6160 = vpop.f32.mrf.mxu0
        %v6161 = vadd.f32 0.0, %v6160
        %v6162 = vpop.f32.mrf.mxu0
        %6163 = vmatprep.mubr.bf16.mxu0 0
        %6164 = vmatmul.mubr.bf16.gmra.mxu0 %v6016
        %v6165 = vpop.f32.mrf.mxu0
        %v6166 = vadd.f32 0.0, %v6165
        %v6167 = vpop.f32.mrf.mxu0
        %v6168 = vpop.f32.mrf.mxu0
        %v6169 = vadd.f32 0.0, %v6168
        %v6170 = vpop.f32.mrf.mxu0
        %6171 = vmatprep.mubr.bf16.mxu0 0
        %6172 = vmatmul.mubr.bf16.gmra.mxu0 %v6017
        %v6173 = vpop.f32.mrf.mxu0
        %v6174 = vadd.f32 0.0, %v6173
        %v6175 = vpop.f32.mrf.mxu0
        %v6176 = vpop.f32.mrf.mxu0
        %v6177 = vadd.f32 0.0, %v6176
        %v6178 = vpop.f32.mrf.mxu0
        %6179 = vmatprep.mubr.bf16.mxu0 0
        %6180 = vmatmul.mubr.bf16.gmra.mxu0 %v6018
        %v6181 = vpop.f32.mrf.mxu0
        %v6182 = vadd.f32 0.0, %v6181
        %v6183 = vpop.f32.mrf.mxu0
        %v6184 = vpop.f32.mrf.mxu0
        %v6185 = vadd.f32 0.0, %v6184
        %v6186 = vpop.f32.mrf.mxu0
        %6187 = vmatprep.mubr.bf16.mxu0 0
        %6188 = vmatmul.mubr.bf16.gmra.mxu0 %v6019
        %v6189 = vpop.f32.mrf.mxu0
        %v6190 = vadd.f32 0.0, %v6189
        %v6191 = vpop.f32.mrf.mxu0
        %v6192 = vpop.f32.mrf.mxu0
        %v6193 = vadd.f32 0.0, %v6192
        %v6194 = vpop.f32.mrf.mxu0
        %6195 = vmatprep.mubr.bf16.mxu0 0
        %6196 = vmatmul.mubr.bf16.gmra.mxu0 %v6020
        %v6197 = vpop.f32.mrf.mxu0
        %v6198 = vadd.f32 0.0, %v6197
        %v6199 = vpop.f32.mrf.mxu0
        %v6200 = vpop.f32.mrf.mxu0
        %v6201 = vadd.f32 0.0, %v6200
        %v6202 = vpop.f32.mrf.mxu0
        %6203 = vmatprep.mubr.bf16.mxu0 0
        %6204 = vmatmul.mubr.bf16.gmra.mxu0 %v6021
        %v6205 = vpop.f32.mrf.mxu0
        %v6206 = vadd.f32 0.0, %v6205
        %v6207 = vpop.f32.mrf.mxu0
        %v6208 = vpop.f32.mrf.mxu0
        %v6209 = vadd.f32 0.0, %v6208
        %v6210 = vpop.f32.mrf.mxu0
        %6211 = vmatprep.mubr.bf16.mxu0 0
        %6212 = vmatmul.mubr.bf16.gmra.mxu0 %v6022
        %v6213 = vpop.f32.mrf.mxu0
        %v6214 = vadd.f32 0.0, %v6213
        %v6215 = vpop.f32.mrf.mxu0
        %v6216 = vpop.f32.mrf.mxu0
        %v6217 = vadd.f32 0.0, %v6216
        %v6218 = vpop.f32.mrf.mxu0
        %6219 = vmatprep.mubr.bf16.mxu0 0
        %6220 = vmatmul.mubr.bf16.gmra.mxu0 %v6023
        %v6221 = vpop.f32.mrf.mxu0
        %v6222 = vadd.f32 0.0, %v6221
        %v6223 = vpop.f32.mrf.mxu0
        %v6224 = vpop.f32.mrf.mxu0
        %v6225 = vadd.f32 0.0, %v6224
        %v6226 = vpop.f32.mrf.mxu0
        %6227 = vmatprep.mubr.bf16.mxu0 0
        %6228 = vmatmul.mubr.bf16.gmra.mxu0 %v6024
        %v6229 = vpop.f32.mrf.mxu0
        %v6230 = vadd.f32 0.0, %v6229
        %v6231 = vpop.f32.mrf.mxu0
        %v6232 = vpop.f32.mrf.mxu0
        %v6233 = vadd.f32 0.0, %v6232
        %v6234 = vpop.f32.mrf.mxu0
        %6235 = vmatprep.mubr.bf16.mxu0 0
        %6236 = vmatmul.mubr.bf16.gmra.mxu0 %v6025
        %v6237 = vpop.f32.mrf.mxu0
        %v6238 = vadd.f32 0.0, %v6237
        %v6239 = vpop.f32.mrf.mxu0
        %v6240 = vpop.f32.mrf.mxu0
        %v6241 = vadd.f32 0.0, %v6240
        %v6242 = vpop.f32.mrf.mxu0
        %6243 = vmatprep.mubr.bf16.mxu0 0
        %6244 = vmatmul.mubr.bf16.gmra.mxu0 %v6026
        %v6245 = vpop.f32.mrf.mxu0
        %v6246 = vadd.f32 0.0, %v6245
        %v6247 = vpop.f32.mrf.mxu0
        %v6248 = vpop.f32.mrf.mxu0
        %v6249 = vadd.f32 0.0, %v6248
        %v6250 = vpop.f32.mrf.mxu0
        %6251 = vdwg.mxu0
        %v6252 = vadd.f32 %v5450, %v6126
        %v6253 = vadd.f32 %v5451, %v6129
        %v6254 = vadd.f32 %v5452, %v6134
        %v6255 = vadd.f32 %v5453, %v6137
        %v6256 = vadd.f32 %v5454, %v6142
        %v6257 = vadd.f32 %v5455, %v6145
        %v6258 = vadd.f32 %v5456, %v6150
        %v6259 = vadd.f32 %v5457, %v6153
        %v6260 = vadd.f32 %v5458, %v6158
        %v6261 = vadd.f32 %v5459, %v6161
        %v6262 = vadd.f32 %v5460, %v6166
        %v6263 = vadd.f32 %v5461, %v6169
        %v6264 = vadd.f32 %v5462, %v6174
        %v6265 = vadd.f32 %v5463, %v6177
        %v6266 = vadd.f32 %v5464, %v6182
        %v6267 = vadd.f32 %v5465, %v6185
        %v6268 = vadd.f32 %v5466, %v6190
        %v6269 = vadd.f32 %v5467, %v6193
        %v6270 = vadd.f32 %v5468, %v6198
        %v6271 = vadd.f32 %v5469, %v6201
        %v6272 = vadd.f32 %v5470, %v6206
        %v6273 = vadd.f32 %v5471, %v6209
        %v6274 = vadd.f32 %v5472, %v6214
        %v6275 = vadd.f32 %v5473, %v6217
        %v6276 = vadd.f32 %v5474, %v6222
        %v6277 = vadd.f32 %v5475, %v6225
        %v6278 = vadd.f32 %v5476, %v6230
        %v6279 = vadd.f32 %v5477, %v6233
        %v6280 = vadd.f32 %v5478, %v6238
        %v6281 = vadd.f32 %v5479, %v6241
        %v6282 = vadd.f32 %v5480, %v6246
        %v6283 = vadd.f32 %v5481, %v6249
        %v6284 = vld [vmem:[%s3] sm:$0x1]
        %v6286 = vlaneseq
        %v6287 = vshrl.u32 %v6286, 7
        %v6288 = vsub.s32 0, %v6287
        %v6289 = vrot.slane %v6284, %v6288
        %v6291 = vmul.f32 %v6252, %v6289
        %v6292 = vmul.f32 %v6253, %v6289
        %v6293 = vmul.f32 %v6254, %v6289
        %v6294 = vmul.f32 %v6255, %v6289
        %v6295 = vmul.f32 %v6256, %v6289
        %v6296 = vmul.f32 %v6257, %v6289
        %v6297 = vmul.f32 %v6258, %v6289
        %v6298 = vmul.f32 %v6259, %v6289
        %v6299 = vmul.f32 %v6260, %v6289
        %v6300 = vmul.f32 %v6261, %v6289
        %v6301 = vmul.f32 %v6262, %v6289
        %v6302 = vmul.f32 %v6263, %v6289
        %v6303 = vmul.f32 %v6264, %v6289
        %v6304 = vmul.f32 %v6265, %v6289
        %v6305 = vmul.f32 %v6266, %v6289
        %v6306 = vmul.f32 %v6267, %v6289
        %v6307 = vmul.f32 %v6268, %v6289
        %v6308 = vmul.f32 %v6269, %v6289
        %v6309 = vmul.f32 %v6270, %v6289
        %v6310 = vmul.f32 %v6271, %v6289
        %v6311 = vmul.f32 %v6272, %v6289
        %v6312 = vmul.f32 %v6273, %v6289
        %v6313 = vmul.f32 %v6274, %v6289
        %v6314 = vmul.f32 %v6275, %v6289
        %v6315 = vmul.f32 %v6276, %v6289
        %v6316 = vmul.f32 %v6277, %v6289
        %v6317 = vmul.f32 %v6278, %v6289
        %v6318 = vmul.f32 %v6279, %v6289
        %v6319 = vmul.f32 %v6280, %v6289
        %v6320 = vmul.f32 %v6281, %v6289
        %v6321 = vmul.f32 %v6282, %v6289
        %v6322 = vmul.f32 %v6283, %v6289
        %v6323 = vld [vmem:[%s4] sm:$0x1]
        %v6325 = vlaneseq
        %v6326 = vshrl.u32 %v6325, 7
        %v6327 = vsub.s32 0, %v6326
        %v6328 = vrot.slane %v6323, %v6327
        %v6330 = vadd.f32 %v6291, %v6328
        %v6331 = vadd.f32 %v6292, %v6328
        %v6332 = vadd.f32 %v6293, %v6328
        %v6333 = vadd.f32 %v6294, %v6328
        %v6334 = vadd.f32 %v6295, %v6328
        %v6335 = vadd.f32 %v6296, %v6328
        %v6336 = vadd.f32 %v6297, %v6328
        %v6337 = vadd.f32 %v6298, %v6328
        %v6338 = vadd.f32 %v6299, %v6328
        %v6339 = vadd.f32 %v6300, %v6328
        %v6340 = vadd.f32 %v6301, %v6328
        %v6341 = vadd.f32 %v6302, %v6328
        %v6342 = vadd.f32 %v6303, %v6328
        %v6343 = vadd.f32 %v6304, %v6328
        %v6344 = vadd.f32 %v6305, %v6328
        %v6345 = vadd.f32 %v6306, %v6328
        %v6346 = vadd.f32 %v6307, %v6328
        %v6347 = vadd.f32 %v6308, %v6328
        %v6348 = vadd.f32 %v6309, %v6328
        %v6349 = vadd.f32 %v6310, %v6328
        %v6350 = vadd.f32 %v6311, %v6328
        %v6351 = vadd.f32 %v6312, %v6328
        %v6352 = vadd.f32 %v6313, %v6328
        %v6353 = vadd.f32 %v6314, %v6328
        %v6354 = vadd.f32 %v6315, %v6328
        %v6355 = vadd.f32 %v6316, %v6328
        %v6356 = vadd.f32 %v6317, %v6328
        %v6357 = vadd.f32 %v6318, %v6328
        %v6358 = vadd.f32 %v6319, %v6328
        %v6359 = vadd.f32 %v6320, %v6328
        %v6360 = vadd.f32 %v6321, %v6328
        %v6361 = vadd.f32 %v6322, %v6328
        %v6362 = vmax.f32 %v6330, 0.0
        %v6363 = vmax.f32 %v6331, 0.0
        %v6364 = vmax.f32 %v6332, 0.0
        %v6365 = vmax.f32 %v6333, 0.0
        %v6366 = vmax.f32 %v6334, 0.0
        %v6367 = vmax.f32 %v6335, 0.0
        %v6368 = vmax.f32 %v6336, 0.0
        %v6369 = vmax.f32 %v6337, 0.0
        %v6370 = vmax.f32 %v6338, 0.0
        %v6371 = vmax.f32 %v6339, 0.0
        %v6372 = vmax.f32 %v6340, 0.0
        %v6373 = vmax.f32 %v6341, 0.0
        %v6374 = vmax.f32 %v6342, 0.0
        %v6375 = vmax.f32 %v6343, 0.0
        %v6376 = vmax.f32 %v6344, 0.0
        %v6377 = vmax.f32 %v6345, 0.0
        %v6378 = vmax.f32 %v6346, 0.0
        %v6379 = vmax.f32 %v6347, 0.0
        %v6380 = vmax.f32 %v6348, 0.0
        %v6381 = vmax.f32 %v6349, 0.0
        %v6382 = vmax.f32 %v6350, 0.0
        %v6383 = vmax.f32 %v6351, 0.0
        %v6384 = vmax.f32 %v6352, 0.0
        %v6385 = vmax.f32 %v6353, 0.0
        %v6386 = vmax.f32 %v6354, 0.0
        %v6387 = vmax.f32 %v6355, 0.0
        %v6388 = vmax.f32 %v6356, 0.0
        %v6389 = vmax.f32 %v6357, 0.0
        %v6390 = vmax.f32 %v6358, 0.0
        %v6391 = vmax.f32 %v6359, 0.0
        %v6392 = vmax.f32 %v6360, 0.0
        %v6393 = vmax.f32 %v6361, 0.0
        %v6394 = vpack.c.bf16 %v6363, %v6362
        %v6395 = vpack.c.bf16 %v6365, %v6364
        %v6396 = vpack.c.bf16 %v6367, %v6366
        %v6397 = vpack.c.bf16 %v6369, %v6368
        %v6398 = vpack.c.bf16 %v6371, %v6370
        %v6399 = vpack.c.bf16 %v6373, %v6372
        %v6400 = vpack.c.bf16 %v6375, %v6374
        %v6401 = vpack.c.bf16 %v6377, %v6376
        %v6402 = vpack.c.bf16 %v6379, %v6378
        %v6403 = vpack.c.bf16 %v6381, %v6380
        %v6404 = vpack.c.bf16 %v6383, %v6382
        %v6405 = vpack.c.bf16 %v6385, %v6384
        %v6406 = vpack.c.bf16 %v6387, %v6386
        %v6407 = vpack.c.bf16 %v6389, %v6388
        %v6408 = vpack.c.bf16 %v6391, %v6390
        %v6409 = vpack.c.bf16 %v6393, %v6392
        %v6426 = vunpack.c.l.b16 %v6394
        %v6427 = vunpack.c.h.b16 %v6394
        %v6428 = vunpack.c.l.b16 %v6395
        %v6429 = vunpack.c.h.b16 %v6395
        %v6430 = vunpack.c.l.b16 %v6396
        %v6431 = vunpack.c.h.b16 %v6396
        %v6432 = vunpack.c.l.b16 %v6397
        %v6433 = vunpack.c.h.b16 %v6397
        %v6434 = vunpack.c.l.b16 %v6398
        %v6435 = vunpack.c.h.b16 %v6398
        %v6436 = vunpack.c.l.b16 %v6399
        %v6437 = vunpack.c.h.b16 %v6399
        %v6438 = vunpack.c.l.b16 %v6400
        %v6439 = vunpack.c.h.b16 %v6400
        %v6440 = vunpack.c.l.b16 %v6401
        %v6441 = vunpack.c.h.b16 %v6401
        %v6442 = vunpack.c.l.b16 %v6402
        %v6443 = vunpack.c.h.b16 %v6402
        %v6444 = vunpack.c.l.b16 %v6403
        %v6445 = vunpack.c.h.b16 %v6403
        %v6446 = vunpack.c.l.b16 %v6404
        %v6447 = vunpack.c.h.b16 %v6404
        %v6448 = vunpack.c.l.b16 %v6405
        %v6449 = vunpack.c.h.b16 %v6405
        %v6450 = vunpack.c.l.b16 %v6406
        %v6451 = vunpack.c.h.b16 %v6406
        %v6452 = vunpack.c.l.b16 %v6407
        %v6453 = vunpack.c.h.b16 %v6407
        %v6454 = vunpack.c.l.b16 %v6408
        %v6455 = vunpack.c.h.b16 %v6408
        %v6456 = vunpack.c.l.b16 %v6409
        %v6457 = vunpack.c.h.b16 %v6409
        %v6458 = vpack.c.b16 %v6426, %v6426
        %v6459 = vpack.c.b16 %v6427, %v6427
        %v6460 = vpack.c.b16 %v6428, %v6428
        %v6461 = vpack.c.b16 %v6429, %v6429
        %v6462 = vpack.c.b16 %v6430, %v6430
        %v6463 = vpack.c.b16 %v6431, %v6431
        %v6464 = vpack.c.b16 %v6432, %v6432
        %v6465 = vpack.c.b16 %v6433, %v6433
        %v6466 = vpack.c.b16 %v6434, %v6434
        %v6467 = vpack.c.b16 %v6435, %v6435
        %v6468 = vpack.c.b16 %v6436, %v6436
        %v6469 = vpack.c.b16 %v6437, %v6437
        %v6470 = vpack.c.b16 %v6438, %v6438
        %v6471 = vpack.c.b16 %v6439, %v6439
        %v6472 = vpack.c.b16 %v6440, %v6440
        %v6473 = vpack.c.b16 %v6441, %v6441
        %v6474 = vpack.c.b16 %v6442, %v6442
        %v6475 = vpack.c.b16 %v6443, %v6443
        %v6476 = vpack.c.b16 %v6444, %v6444
        %v6477 = vpack.c.b16 %v6445, %v6445
        %v6478 = vpack.c.b16 %v6446, %v6446
        %v6479 = vpack.c.b16 %v6447, %v6447
        %v6480 = vpack.c.b16 %v6448, %v6448
        %v6481 = vpack.c.b16 %v6449, %v6449
        %v6482 = vpack.c.b16 %v6450, %v6450
        %v6483 = vpack.c.b16 %v6451, %v6451
        %v6484 = vpack.c.b16 %v6452, %v6452
        %v6485 = vpack.c.b16 %v6453, %v6453
        %v6486 = vpack.c.b16 %v6454, %v6454
        %v6487 = vpack.c.b16 %v6455, %v6455
        %v6488 = vpack.c.b16 %v6456, %v6456
        %v6489 = vpack.c.b16 %v6457, %v6457
        %s6522 = scalar_lea.vmem [#allocation3], 24
        %6523 = vst [vmem:[%s6522 + $0x8] sm:$0xf] %v6458
        %6524 = vst [vmem:[%s6522 + $0xc] sm:$0xf] %v6459
        %6525 = vst [vmem:[%s6522 + $0x20] sm:$0xf] %v6460
        %6526 = vst [vmem:[%s6522 + $0x24] sm:$0xf] %v6461
        %6527 = vst [vmem:[%s6522 + $0x38] sm:$0xf] %v6462
        %6528 = vst [vmem:[%s6522 + $0x3c] sm:$0xf] %v6463
        %6529 = vst [vmem:[%s6522 + $0x50] sm:$0xf] %v6464
        %6530 = vst [vmem:[%s6522 + $0x54] sm:$0xf] %v6465
        %6531 = vst [vmem:[%s6522 + $0x68] sm:$0xf] %v6466
        %6532 = vst [vmem:[%s6522 + $0x6c] sm:$0xf] %v6467
        %6533 = vst [vmem:[%s6522 + $0x80] sm:$0xf] %v6468
        %6534 = vst [vmem:[%s6522 + $0x84] sm:$0xf] %v6469
        %6535 = vst [vmem:[%s6522 + $0x98] sm:$0xf] %v6470
        %6536 = vst [vmem:[%s6522 + $0x9c] sm:$0xf] %v6471
        %6537 = vst [vmem:[%s6522 + $0xb0] sm:$0xf] %v6472
        %6538 = vst [vmem:[%s6522 + $0xb4] sm:$0xf] %v6473
        %6539 = vst [vmem:[%s6522 + $0xc8] sm:$0xf] %v6474
        %6540 = vst [vmem:[%s6522 + $0xcc] sm:$0xf] %v6475
        %6541 = vst [vmem:[%s6522 + $0xe0] sm:$0xf] %v6476
        %6542 = vst [vmem:[%s6522 + $0xe4] sm:$0xf] %v6477
        %6543 = vst [vmem:[%s6522 + $0xf8] sm:$0xf] %v6478
        %6544 = vst [vmem:[%s6522 + $0xfc] sm:$0xf] %v6479
        %6545 = vst [vmem:[%s6522 + $0x110] sm:$0xf] %v6480
        %6546 = vst [vmem:[%s6522 + $0x114] sm:$0xf] %v6481
        %6547 = vst [vmem:[%s6522 + $0x128] sm:$0xf] %v6482
        %6548 = vst [vmem:[%s6522 + $0x12c] sm:$0xf] %v6483
        %6549 = vst [vmem:[%s6522 + $0x140] sm:$0xf] %v6484
        %6550 = vst [vmem:[%s6522 + $0x144] sm:$0xf] %v6485
        %6551 = vst [vmem:[%s6522 + $0x158] sm:$0xf] %v6486
        %6552 = vst [vmem:[%s6522 + $0x15c] sm:$0xf] %v6487
        %6553 = vst [vmem:[%s6522 + $0x170] sm:$0xf] %v6488
        %6554 = vst [vmem:[%s6522 + $0x174] sm:$0xf] %v6489
        %v6555 = vld [vmem:[#allocation3 + $0x4] sm:$0x8]
        %v6556 = vld [vmem:[#allocation3 + $0x8] sm:$0xf]
        %v6557 = vld [vmem:[#allocation3 + $0xc] sm:$0xf]
        %v6558 = vld [vmem:[#allocation3 + $0x1c] sm:$0x8]
        %v6559 = vld [vmem:[#allocation3 + $0x20] sm:$0xf]
        %v6560 = vld [vmem:[#allocation3 + $0x24] sm:$0xf]
        %v6561 = vld [vmem:[#allocation3 + $0x34] sm:$0x8]
        %v6562 = vld [vmem:[#allocation3 + $0x38] sm:$0xf]
        %v6563 = vld [vmem:[#allocation3 + $0x3c] sm:$0xf]
        %v6564 = vld [vmem:[#allocation3 + $0x4c] sm:$0x8]
        %v6565 = vld [vmem:[#allocation3 + $0x50] sm:$0xf]
        %v6566 = vld [vmem:[#allocation3 + $0x54] sm:$0xf]
        %v6567 = vld [vmem:[#allocation3 + $0x64] sm:$0x8]
        %v6568 = vld [vmem:[#allocation3 + $0x68] sm:$0xf]
        %v6569 = vld [vmem:[#allocation3 + $0x6c] sm:$0xf]
        %v6570 = vld [vmem:[#allocation3 + $0x7c] sm:$0x8]
        %v6571 = vld [vmem:[#allocation3 + $0x80] sm:$0xf]
        %v6572 = vld [vmem:[#allocation3 + $0x84] sm:$0xf]
        %v6573 = vld [vmem:[#allocation3 + $0x94] sm:$0x8]
        %v6574 = vld [vmem:[#allocation3 + $0x98] sm:$0xf]
        %v6575 = vld [vmem:[#allocation3 + $0x9c] sm:$0xf]
        %v6576 = vld [vmem:[#allocation3 + $0xac] sm:$0x8]
        %v6577 = vld [vmem:[#allocation3 + $0xb0] sm:$0xf]
        %v6578 = vld [vmem:[#allocation3 + $0xb4] sm:$0xf]
        %v6579 = vld [vmem:[#allocation3 + $0xc4] sm:$0x8]
        %v6580 = vld [vmem:[#allocation3 + $0xc8] sm:$0xf]
        %v6581 = vld [vmem:[#allocation3 + $0xcc] sm:$0xf]
        %v6582 = vld [vmem:[#allocation3 + $0xdc] sm:$0x8]
        %v6583 = vld [vmem:[#allocation3 + $0xe0] sm:$0xf]
        %v6584 = vld [vmem:[#allocation3 + $0xe4] sm:$0xf]
        %v6585 = vld [vmem:[#allocation3 + $0xf4] sm:$0x8]
        %v6586 = vld [vmem:[#allocation3 + $0xf8] sm:$0xf]
        %v6587 = vld [vmem:[#allocation3 + $0xfc] sm:$0xf]
        %v6588 = vld [vmem:[#allocation3 + $0x10c] sm:$0x8]
        %v6589 = vld [vmem:[#allocation3 + $0x110] sm:$0xf]
        %v6590 = vld [vmem:[#allocation3 + $0x114] sm:$0xf]
        %v6591 = vld [vmem:[#allocation3 + $0x124] sm:$0x8]
        %v6592 = vld [vmem:[#allocation3 + $0x128] sm:$0xf]
        %v6593 = vld [vmem:[#allocation3 + $0x12c] sm:$0xf]
        %v6594 = vld [vmem:[#allocation3 + $0x13c] sm:$0x8]
        %v6595 = vld [vmem:[#allocation3 + $0x140] sm:$0xf]
        %v6596 = vld [vmem:[#allocation3 + $0x144] sm:$0xf]
        %v6597 = vld [vmem:[#allocation3 + $0x154] sm:$0x8]
        %v6598 = vld [vmem:[#allocation3 + $0x158] sm:$0xf]
        %v6599 = vld [vmem:[#allocation3 + $0x15c] sm:$0xf]
        %v6600 = vld [vmem:[#allocation3 + $0x16c] sm:$0x8]
        %v6601 = vld [vmem:[#allocation3 + $0x170] sm:$0xf]
        %v6602 = vld [vmem:[#allocation3 + $0x174] sm:$0xf]
        %v6603 = vsel %vm584, %v6555, 0
        %v6604 = vsel %vm585, %v6556, 0
        %v6605 = vsel %vm586, %v6557, 0
        %v6606 = vsel %vm584, %v6558, 0
        %v6607 = vsel %vm585, %v6559, 0
        %v6608 = vsel %vm586, %v6560, 0
        %v6609 = vsel %vm584, %v6561, 0
        %v6610 = vsel %vm585, %v6562, 0
        %v6611 = vsel %vm586, %v6563, 0
        %v6612 = vsel %vm584, %v6564, 0
        %v6613 = vsel %vm585, %v6565, 0
        %v6614 = vsel %vm586, %v6566, 0
        %v6615 = vsel %vm584, %v6567, 0
        %v6616 = vsel %vm585, %v6568, 0
        %v6617 = vsel %vm586, %v6569, 0
        %v6618 = vsel %vm584, %v6570, 0
        %v6619 = vsel %vm585, %v6571, 0
        %v6620 = vsel %vm586, %v6572, 0
        %v6621 = vsel %vm584, %v6573, 0
        %v6622 = vsel %vm585, %v6574, 0
        %v6623 = vsel %vm586, %v6575, 0
        %v6624 = vsel %vm584, %v6576, 0
        %v6625 = vsel %vm585, %v6577, 0
        %v6626 = vsel %vm586, %v6578, 0
        %v6627 = vsel %vm584, %v6579, 0
        %v6628 = vsel %vm585, %v6580, 0
        %v6629 = vsel %vm586, %v6581, 0
        %v6630 = vsel %vm584, %v6582, 0
        %v6631 = vsel %vm585, %v6583, 0
        %v6632 = vsel %vm586, %v6584, 0
        %v6633 = vsel %vm584, %v6585, 0
        %v6634 = vsel %vm585, %v6586, 0
        %v6635 = vsel %vm586, %v6587, 0
        %v6636 = vsel %vm584, %v6588, 0
        %v6637 = vsel %vm585, %v6589, 0
        %v6638 = vsel %vm586, %v6590, 0
        %v6639 = vsel %vm584, %v6591, 0
        %v6640 = vsel %vm585, %v6592, 0
        %v6641 = vsel %vm586, %v6593, 0
        %v6642 = vsel %vm584, %v6594, 0
        %v6643 = vsel %vm585, %v6595, 0
        %v6644 = vsel %vm586, %v6596, 0
        %v6645 = vsel %vm584, %v6597, 0
        %v6646 = vsel %vm585, %v6598, 0
        %v6647 = vsel %vm586, %v6599, 0
        %v6648 = vsel %vm584, %v6600, 0
        %v6649 = vsel %vm585, %v6601, 0
        %v6650 = vsel %vm586, %v6602, 0
        %v6652 = vshrl.u32 %v6603, 16
        %v6654 = vrot.slane %v6652, 7
        %v6655 = vrot.slane %v6654, 4
        %v6657 = vshrl.u32 %v6604, 16
        %v6659 = vrot.slane %v6657, 7
        %v6660 = vshll.u32 %v6604, 16
        %v6662 = vor.u32 %v6659, %v6660
        %v6663 = vsel %vm637, %v6655, %v6662
        %v6664 = vrot.slane %v6659, 4
        %v6666 = vshrl.u32 %v6605, 16
        %v6668 = vrot.slane %v6666, 7
        %v6669 = vshll.u32 %v6605, 16
        %v6671 = vor.u32 %v6668, %v6669
        %v6672 = vsel %vm637, %v6664, %v6671
        %v6674 = vshrl.u32 %v6606, 16
        %v6676 = vrot.slane %v6674, 7
        %v6677 = vrot.slane %v6676, 4
        %v6679 = vshrl.u32 %v6607, 16
        %v6681 = vrot.slane %v6679, 7
        %v6682 = vshll.u32 %v6607, 16
        %v6684 = vor.u32 %v6681, %v6682
        %v6685 = vsel %vm637, %v6677, %v6684
        %v6686 = vrot.slane %v6681, 4
        %v6688 = vshrl.u32 %v6608, 16
        %v6690 = vrot.slane %v6688, 7
        %v6691 = vshll.u32 %v6608, 16
        %v6693 = vor.u32 %v6690, %v6691
        %v6694 = vsel %vm637, %v6686, %v6693
        %v6696 = vshrl.u32 %v6609, 16
        %v6698 = vrot.slane %v6696, 7
        %v6699 = vrot.slane %v6698, 4
        %v6701 = vshrl.u32 %v6610, 16
        %v6703 = vrot.slane %v6701, 7
        %v6704 = vshll.u32 %v6610, 16
        %v6706 = vor.u32 %v6703, %v6704
        %v6707 = vsel %vm637, %v6699, %v6706
        %v6708 = vrot.slane %v6703, 4
        %v6710 = vshrl.u32 %v6611, 16
        %v6712 = vrot.slane %v6710, 7
        %v6713 = vshll.u32 %v6611, 16
        %v6715 = vor.u32 %v6712, %v6713
        %v6716 = vsel %vm637, %v6708, %v6715
        %v6718 = vshrl.u32 %v6612, 16
        %v6720 = vrot.slane %v6718, 7
        %v6721 = vrot.slane %v6720, 4
        %v6723 = vshrl.u32 %v6613, 16
        %v6725 = vrot.slane %v6723, 7
        %v6726 = vshll.u32 %v6613, 16
        %v6728 = vor.u32 %v6725, %v6726
        %v6729 = vsel %vm637, %v6721, %v6728
        %v6730 = vrot.slane %v6725, 4
        %v6732 = vshrl.u32 %v6614, 16
        %v6734 = vrot.slane %v6732, 7
        %v6735 = vshll.u32 %v6614, 16
        %v6737 = vor.u32 %v6734, %v6735
        %v6738 = vsel %vm637, %v6730, %v6737
        %v6740 = vshrl.u32 %v6615, 16
        %v6742 = vrot.slane %v6740, 7
        %v6743 = vrot.slane %v6742, 4
        %v6745 = vshrl.u32 %v6616, 16
        %v6747 = vrot.slane %v6745, 7
        %v6748 = vshll.u32 %v6616, 16
        %v6750 = vor.u32 %v6747, %v6748
        %v6751 = vsel %vm637, %v6743, %v6750
        %v6752 = vrot.slane %v6747, 4
        %v6754 = vshrl.u32 %v6617, 16
        %v6756 = vrot.slane %v6754, 7
        %v6757 = vshll.u32 %v6617, 16
        %v6759 = vor.u32 %v6756, %v6757
        %v6760 = vsel %vm637, %v6752, %v6759
        %v6762 = vshrl.u32 %v6618, 16
        %v6764 = vrot.slane %v6762, 7
        %v6765 = vrot.slane %v6764, 4
        %v6767 = vshrl.u32 %v6619, 16
        %v6769 = vrot.slane %v6767, 7
        %v6770 = vshll.u32 %v6619, 16
        %v6772 = vor.u32 %v6769, %v6770
        %v6773 = vsel %vm637, %v6765, %v6772
        %v6774 = vrot.slane %v6769, 4
        %v6776 = vshrl.u32 %v6620, 16
        %v6778 = vrot.slane %v6776, 7
        %v6779 = vshll.u32 %v6620, 16
        %v6781 = vor.u32 %v6778, %v6779
        %v6782 = vsel %vm637, %v6774, %v6781
        %v6784 = vshrl.u32 %v6621, 16
        %v6786 = vrot.slane %v6784, 7
        %v6787 = vrot.slane %v6786, 4
        %v6789 = vshrl.u32 %v6622, 16
        %v6791 = vrot.slane %v6789, 7
        %v6792 = vshll.u32 %v6622, 16
        %v6794 = vor.u32 %v6791, %v6792
        %v6795 = vsel %vm637, %v6787, %v6794
        %v6796 = vrot.slane %v6791, 4
        %v6798 = vshrl.u32 %v6623, 16
        %v6800 = vrot.slane %v6798, 7
        %v6801 = vshll.u32 %v6623, 16
        %v6803 = vor.u32 %v6800, %v6801
        %v6804 = vsel %vm637, %v6796, %v6803
        %v6806 = vshrl.u32 %v6624, 16
        %v6808 = vrot.slane %v6806, 7
        %v6809 = vrot.slane %v6808, 4
        %v6811 = vshrl.u32 %v6625, 16
        %v6813 = vrot.slane %v6811, 7
        %v6814 = vshll.u32 %v6625, 16
        %v6816 = vor.u32 %v6813, %v6814
        %v6817 = vsel %vm637, %v6809, %v6816
        %v6818 = vrot.slane %v6813, 4
        %v6820 = vshrl.u32 %v6626, 16
        %v6822 = vrot.slane %v6820, 7
        %v6823 = vshll.u32 %v6626, 16
        %v6825 = vor.u32 %v6822, %v6823
        %v6826 = vsel %vm637, %v6818, %v6825
        %v6828 = vshrl.u32 %v6627, 16
        %v6830 = vrot.slane %v6828, 7
        %v6831 = vrot.slane %v6830, 4
        %v6833 = vshrl.u32 %v6628, 16
        %v6835 = vrot.slane %v6833, 7
        %v6836 = vshll.u32 %v6628, 16
        %v6838 = vor.u32 %v6835, %v6836
        %v6839 = vsel %vm637, %v6831, %v6838
        %v6840 = vrot.slane %v6835, 4
        %v6842 = vshrl.u32 %v6629, 16
        %v6844 = vrot.slane %v6842, 7
        %v6845 = vshll.u32 %v6629, 16
        %v6847 = vor.u32 %v6844, %v6845
        %v6848 = vsel %vm637, %v6840, %v6847
        %v6850 = vshrl.u32 %v6630, 16
        %v6852 = vrot.slane %v6850, 7
        %v6853 = vrot.slane %v6852, 4
        %v6855 = vshrl.u32 %v6631, 16
        %v6857 = vrot.slane %v6855, 7
        %v6858 = vshll.u32 %v6631, 16
        %v6860 = vor.u32 %v6857, %v6858
        %v6861 = vsel %vm637, %v6853, %v6860
        %v6862 = vrot.slane %v6857, 4
        %v6864 = vshrl.u32 %v6632, 16
        %v6866 = vrot.slane %v6864, 7
        %v6867 = vshll.u32 %v6632, 16
        %v6869 = vor.u32 %v6866, %v6867
        %v6870 = vsel %vm637, %v6862, %v6869
        %v6872 = vshrl.u32 %v6633, 16
        %v6874 = vrot.slane %v6872, 7
        %v6875 = vrot.slane %v6874, 4
        %v6877 = vshrl.u32 %v6634, 16
        %v6879 = vrot.slane %v6877, 7
        %v6880 = vshll.u32 %v6634, 16
        %v6882 = vor.u32 %v6879, %v6880
        %v6883 = vsel %vm637, %v6875, %v6882
        %v6884 = vrot.slane %v6879, 4
        %v6886 = vshrl.u32 %v6635, 16
        %v6888 = vrot.slane %v6886, 7
        %v6889 = vshll.u32 %v6635, 16
        %v6891 = vor.u32 %v6888, %v6889
        %v6892 = vsel %vm637, %v6884, %v6891
        %v6894 = vshrl.u32 %v6636, 16
        %v6896 = vrot.slane %v6894, 7
        %v6897 = vrot.slane %v6896, 4
        %v6899 = vshrl.u32 %v6637, 16
        %v6901 = vrot.slane %v6899, 7
        %v6902 = vshll.u32 %v6637, 16
        %v6904 = vor.u32 %v6901, %v6902
        %v6905 = vsel %vm637, %v6897, %v6904
        %v6906 = vrot.slane %v6901, 4
        %v6908 = vshrl.u32 %v6638, 16
        %v6910 = vrot.slane %v6908, 7
        %v6911 = vshll.u32 %v6638, 16
        %v6913 = vor.u32 %v6910, %v6911
        %v6914 = vsel %vm637, %v6906, %v6913
        %v6916 = vshrl.u32 %v6639, 16
        %v6918 = vrot.slane %v6916, 7
        %v6919 = vrot.slane %v6918, 4
        %v6921 = vshrl.u32 %v6640, 16
        %v6923 = vrot.slane %v6921, 7
        %v6924 = vshll.u32 %v6640, 16
        %v6926 = vor.u32 %v6923, %v6924
        %v6927 = vsel %vm637, %v6919, %v6926
        %v6928 = vrot.slane %v6923, 4
        %v6930 = vshrl.u32 %v6641, 16
        %v6932 = vrot.slane %v6930, 7
        %v6933 = vshll.u32 %v6641, 16
        %v6935 = vor.u32 %v6932, %v6933
        %v6936 = vsel %vm637, %v6928, %v6935
        %v6938 = vshrl.u32 %v6642, 16
        %v6940 = vrot.slane %v6938, 7
        %v6941 = vrot.slane %v6940, 4
        %v6943 = vshrl.u32 %v6643, 16
        %v6945 = vrot.slane %v6943, 7
        %v6946 = vshll.u32 %v6643, 16
        %v6948 = vor.u32 %v6945, %v6946
        %v6949 = vsel %vm637, %v6941, %v6948
        %v6950 = vrot.slane %v6945, 4
        %v6952 = vshrl.u32 %v6644, 16
        %v6954 = vrot.slane %v6952, 7
        %v6955 = vshll.u32 %v6644, 16
        %v6957 = vor.u32 %v6954, %v6955
        %v6958 = vsel %vm637, %v6950, %v6957
        %v6960 = vshrl.u32 %v6645, 16
        %v6962 = vrot.slane %v6960, 7
        %v6963 = vrot.slane %v6962, 4
        %v6965 = vshrl.u32 %v6646, 16
        %v6967 = vrot.slane %v6965, 7
        %v6968 = vshll.u32 %v6646, 16
        %v6970 = vor.u32 %v6967, %v6968
        %v6971 = vsel %vm637, %v6963, %v6970
        %v6972 = vrot.slane %v6967, 4
        %v6974 = vshrl.u32 %v6647, 16
        %v6976 = vrot.slane %v6974, 7
        %v6977 = vshll.u32 %v6647, 16
        %v6979 = vor.u32 %v6976, %v6977
        %v6980 = vsel %vm637, %v6972, %v6979
        %v6982 = vshrl.u32 %v6648, 16
        %v6984 = vrot.slane %v6982, 7
        %v6985 = vrot.slane %v6984, 4
        %v6987 = vshrl.u32 %v6649, 16
        %v6989 = vrot.slane %v6987, 7
        %v6990 = vshll.u32 %v6649, 16
        %v6992 = vor.u32 %v6989, %v6990
        %v6993 = vsel %vm637, %v6985, %v6992
        %v6994 = vrot.slane %v6989, 4
        %v6996 = vshrl.u32 %v6650, 16
        %v6998 = vrot.slane %v6996, 7
        %v6999 = vshll.u32 %v6650, 16
        %v7001 = vor.u32 %v6998, %v6999
        %v7002 = vsel %vm637, %v6994, %v7001
        %v7003 = vld [vmem:[%s2] sm:$0xf]
        %v7004 = vld [vmem:[%s2 + $0x4] sm:$0xf]
        %v7005 = vld [vmem:[%s2 + $0x8] sm:$0xf]
        %v7006 = vld [vmem:[%s2 + $0xc] sm:$0xf]
        %v7007 = vld [vmem:[%s2 + $0x10] sm:$0xf]
        %v7008 = vld [vmem:[%s2 + $0x14] sm:$0xf]
        %v7009 = vld [vmem:[%s2 + $0x18] sm:$0xf]
        %v7010 = vld [vmem:[%s2 + $0x1c] sm:$0xf]
        %v7011 = vld [vmem:[%s2 + $0x20] sm:$0xf]
        %v7012 = vld [vmem:[%s2 + $0x24] sm:$0xf]
        %v7013 = vld [vmem:[%s2 + $0x28] sm:$0xf]
        %v7014 = vld [vmem:[%s2 + $0x2c] sm:$0xf]
        %v7015 = vld [vmem:[%s2 + $0x30] sm:$0xf]
        %v7016 = vld [vmem:[%s2 + $0x34] sm:$0xf]
        %v7017 = vld [vmem:[%s2 + $0x38] sm:$0xf]
        %v7018 = vld [vmem:[%s2 + $0x3c] sm:$0xf]
        %s7019 = scalar_lea.vmem %s2, 64
        %v7020 = vld [vmem:[%s7019] sm:$0xf]
        %v7021 = vld [vmem:[%s7019 + $0x4] sm:$0xf]
        %v7022 = vld [vmem:[%s7019 + $0x8] sm:$0xf]
        %v7023 = vld [vmem:[%s7019 + $0xc] sm:$0xf]
        %v7024 = vld [vmem:[%s7019 + $0x10] sm:$0xf]
        %v7025 = vld [vmem:[%s7019 + $0x14] sm:$0xf]
        %v7026 = vld [vmem:[%s7019 + $0x18] sm:$0xf]
        %v7027 = vld [vmem:[%s7019 + $0x1c] sm:$0xf]
        %v7028 = vld [vmem:[%s7019 + $0x20] sm:$0xf]
        %v7029 = vld [vmem:[%s7019 + $0x24] sm:$0xf]
        %v7030 = vld [vmem:[%s7019 + $0x28] sm:$0xf]
        %v7031 = vld [vmem:[%s7019 + $0x2c] sm:$0xf]
        %v7032 = vld [vmem:[%s7019 + $0x30] sm:$0xf]
        %v7033 = vld [vmem:[%s7019 + $0x34] sm:$0xf]
        %v7034 = vld [vmem:[%s7019 + $0x38] sm:$0xf]
        %v7035 = vld [vmem:[%s7019 + $0x3c] sm:$0xf]
        %v7068 = vunpack.c.l.b16 %v6556
        %v7069 = vunpack.c.l.b16 %v6557
        %v7070 = vunpack.c.l.b16 %v6559
        %v7071 = vunpack.c.l.b16 %v6560
        %v7072 = vunpack.c.l.b16 %v6562
        %v7073 = vunpack.c.l.b16 %v6563
        %v7074 = vunpack.c.l.b16 %v6565
        %v7075 = vunpack.c.l.b16 %v6566
        %v7076 = vunpack.c.l.b16 %v6568
        %v7077 = vunpack.c.l.b16 %v6569
        %v7078 = vunpack.c.l.b16 %v6571
        %v7079 = vunpack.c.l.b16 %v6572
        %v7080 = vunpack.c.l.b16 %v6574
        %v7081 = vunpack.c.l.b16 %v6575
        %v7082 = vunpack.c.l.b16 %v6577
        %v7083 = vunpack.c.l.b16 %v6578
        %v7084 = vunpack.c.l.b16 %v6580
        %v7085 = vunpack.c.l.b16 %v6581
        %v7086 = vunpack.c.l.b16 %v6583
        %v7087 = vunpack.c.l.b16 %v6584
        %v7088 = vunpack.c.l.b16 %v6586
        %v7089 = vunpack.c.l.b16 %v6587
        %v7090 = vunpack.c.l.b16 %v6589
        %v7091 = vunpack.c.l.b16 %v6590
        %v7092 = vunpack.c.l.b16 %v6592
        %v7093 = vunpack.c.l.b16 %v6593
        %v7094 = vunpack.c.l.b16 %v6595
        %v7095 = vunpack.c.l.b16 %v6596
        %v7096 = vunpack.c.l.b16 %v6598
        %v7097 = vunpack.c.l.b16 %v6599
        %v7098 = vunpack.c.l.b16 %v6601
        %v7099 = vunpack.c.l.b16 %v6602
        %v7100 = vpack.c.b16 %v7069, %v7068
        %v7101 = vpack.c.b16 %v7071, %v7070
        %v7102 = vpack.c.b16 %v7073, %v7072
        %v7103 = vpack.c.b16 %v7075, %v7074
        %v7104 = vpack.c.b16 %v7077, %v7076
        %v7105 = vpack.c.b16 %v7079, %v7078
        %v7106 = vpack.c.b16 %v7081, %v7080
        %v7107 = vpack.c.b16 %v7083, %v7082
        %v7108 = vpack.c.b16 %v7085, %v7084
        %v7109 = vpack.c.b16 %v7087, %v7086
        %v7110 = vpack.c.b16 %v7089, %v7088
        %v7111 = vpack.c.b16 %v7091, %v7090
        %v7112 = vpack.c.b16 %v7093, %v7092
        %v7113 = vpack.c.b16 %v7095, %v7094
        %v7114 = vpack.c.b16 %v7097, %v7096
        %v7115 = vpack.c.b16 %v7099, %v7098
        %v7148 = vunpack.c.l.b16 %v7020
        %v7149 = vunpack.c.l.b16 %v7021
        %v7150 = vunpack.c.l.b16 %v7022
        %v7151 = vunpack.c.l.b16 %v7023
        %v7152 = vunpack.c.l.b16 %v7024
        %v7153 = vunpack.c.l.b16 %v7025
        %v7154 = vunpack.c.l.b16 %v7026
        %v7155 = vunpack.c.l.b16 %v7027
        %v7156 = vunpack.c.l.b16 %v7028
        %v7157 = vunpack.c.l.b16 %v7029
        %v7158 = vunpack.c.l.b16 %v7030
        %v7159 = vunpack.c.l.b16 %v7031
        %v7160 = vunpack.c.l.b16 %v7032
        %v7161 = vunpack.c.l.b16 %v7033
        %v7162 = vunpack.c.l.b16 %v7034
        %v7163 = vunpack.c.l.b16 %v7035
        %v7164 = vpack.c.b16 %v7149, %v7148
        %v7165 = vpack.c.b16 %v7151, %v7150
        %v7166 = vpack.c.b16 %v7153, %v7152
        %v7167 = vpack.c.b16 %v7155, %v7154
        %v7168 = vpack.c.b16 %v7157, %v7156
        %v7169 = vpack.c.b16 %v7159, %v7158
        %v7170 = vpack.c.b16 %v7161, %v7160
        %v7171 = vpack.c.b16 %v7163, %v7162
        %7180 = vmatprep.subr.bf16.mxu0 0
        %7181 = vmatpush1.bf16.msra.mxu0 %v7171
        %7182 = vmatprep.subr.bf16.mxu0 0
        %7183 = vmatpush1.bf16.msra.mxu0 %v7170
        %7184 = vmatprep.subr.bf16.mxu0 0
        %7185 = vmatpush1.bf16.msra.mxu0 %v7169
        %7186 = vmatprep.subr.bf16.mxu0 0
        %7187 = vmatpush1.bf16.msra.mxu0 %v7168
        %7188 = vmatprep.subr.bf16.mxu0 0
        %7189 = vmatpush1.bf16.msra.mxu0 %v7167
        %7190 = vmatprep.subr.bf16.mxu0 0
        %7191 = vmatpush1.bf16.msra.mxu0 %v7166
        %7192 = vmatprep.subr.bf16.mxu0 0
        %7193 = vmatpush1.bf16.msra.mxu0 %v7165
        %7194 = vmatprep.subr.bf16.mxu0 0
        %7195 = vmatpush1.bf16.msra.mxu0 %v7164
        %7196 = vmatprep.subr.bf16.mxu0 0
        %7197 = vmatpush2.bf16.msra.mxu0 0
        %7198 = vmatprep.subr.bf16.mxu0 0
        %7199 = vmatpush2.bf16.msra.mxu0 0
        %7200 = vmatprep.subr.bf16.mxu0 0
        %7201 = vmatpush2.bf16.msra.mxu0 0
        %7202 = vmatprep.subr.bf16.mxu0 0
        %7203 = vmatpush2.bf16.msra.mxu0 0
        %7204 = vmatprep.subr.bf16.mxu0 0
        %7205 = vmatpush2.bf16.msra.mxu0 0
        %7206 = vmatprep.subr.bf16.mxu0 0
        %7207 = vmatpush2.bf16.msra.mxu0 0
        %7208 = vmatprep.subr.bf16.mxu0 0
        %7209 = vmatpush2.bf16.msra.mxu0 0
        %7210 = vmatprep.subr.bf16.mxu0 0
        %7211 = vmatpush2.bf16.msra.mxu0 0
        %7212 = vmatprep.mubr.bf16.mxu0 0
        %7213 = vmatmul.mubr.bf16.gmra.mxu0 %v7100
        %v7214 = vpop.f32.mrf.mxu0
        %v7215 = vadd.f32 0.0, %v7214
        %v7216 = vpop.f32.mrf.mxu0
        %v7217 = vpop.f32.mrf.mxu0
        %v7218 = vadd.f32 0.0, %v7217
        %v7219 = vpop.f32.mrf.mxu0
        %7220 = vmatprep.mubr.bf16.mxu0 0
        %7221 = vmatmul.mubr.bf16.gmra.mxu0 %v7101
        %v7222 = vpop.f32.mrf.mxu0
        %v7223 = vadd.f32 0.0, %v7222
        %v7224 = vpop.f32.mrf.mxu0
        %v7225 = vpop.f32.mrf.mxu0
        %v7226 = vadd.f32 0.0, %v7225
        %v7227 = vpop.f32.mrf.mxu0
        %7228 = vmatprep.mubr.bf16.mxu0 0
        %7229 = vmatmul.mubr.bf16.gmra.mxu0 %v7102
        %v7230 = vpop.f32.mrf.mxu0
        %v7231 = vadd.f32 0.0, %v7230
        %v7232 = vpop.f32.mrf.mxu0
        %v7233 = vpop.f32.mrf.mxu0
        %v7234 = vadd.f32 0.0, %v7233
        %v7235 = vpop.f32.mrf.mxu0
        %7236 = vmatprep.mubr.bf16.mxu0 0
        %7237 = vmatmul.mubr.bf16.gmra.mxu0 %v7103
        %v7238 = vpop.f32.mrf.mxu0
        %v7239 = vadd.f32 0.0, %v7238
        %v7240 = vpop.f32.mrf.mxu0
        %v7241 = vpop.f32.mrf.mxu0
        %v7242 = vadd.f32 0.0, %v7241
        %v7243 = vpop.f32.mrf.mxu0
        %7244 = vmatprep.mubr.bf16.mxu0 0
        %7245 = vmatmul.mubr.bf16.gmra.mxu0 %v7104
        %v7246 = vpop.f32.mrf.mxu0
        %v7247 = vadd.f32 0.0, %v7246
        %v7248 = vpop.f32.mrf.mxu0
        %v7249 = vpop.f32.mrf.mxu0
        %v7250 = vadd.f32 0.0, %v7249
        %v7251 = vpop.f32.mrf.mxu0
        %7252 = vmatprep.mubr.bf16.mxu0 0
        %7253 = vmatmul.mubr.bf16.gmra.mxu0 %v7105
        %v7254 = vpop.f32.mrf.mxu0
        %v7255 = vadd.f32 0.0, %v7254
        %v7256 = vpop.f32.mrf.mxu0
        %v7257 = vpop.f32.mrf.mxu0
        %v7258 = vadd.f32 0.0, %v7257
        %v7259 = vpop.f32.mrf.mxu0
        %7260 = vmatprep.mubr.bf16.mxu0 0
        %7261 = vmatmul.mubr.bf16.gmra.mxu0 %v7106
        %v7262 = vpop.f32.mrf.mxu0
        %v7263 = vadd.f32 0.0, %v7262
        %v7264 = vpop.f32.mrf.mxu0
        %v7265 = vpop.f32.mrf.mxu0
        %v7266 = vadd.f32 0.0, %v7265
        %v7267 = vpop.f32.mrf.mxu0
        %7268 = vmatprep.mubr.bf16.mxu0 0
        %7269 = vmatmul.mubr.bf16.gmra.mxu0 %v7107
        %v7270 = vpop.f32.mrf.mxu0
        %v7271 = vadd.f32 0.0, %v7270
        %v7272 = vpop.f32.mrf.mxu0
        %v7273 = vpop.f32.mrf.mxu0
        %v7274 = vadd.f32 0.0, %v7273
        %v7275 = vpop.f32.mrf.mxu0
        %7276 = vmatprep.mubr.bf16.mxu0 0
        %7277 = vmatmul.mubr.bf16.gmra.mxu0 %v7108
        %v7278 = vpop.f32.mrf.mxu0
        %v7279 = vadd.f32 0.0, %v7278
        %v7280 = vpop.f32.mrf.mxu0
        %v7281 = vpop.f32.mrf.mxu0
        %v7282 = vadd.f32 0.0, %v7281
        %v7283 = vpop.f32.mrf.mxu0
        %7284 = vmatprep.mubr.bf16.mxu0 0
        %7285 = vmatmul.mubr.bf16.gmra.mxu0 %v7109
        %v7286 = vpop.f32.mrf.mxu0
        %v7287 = vadd.f32 0.0, %v7286
        %v7288 = vpop.f32.mrf.mxu0
        %v7289 = vpop.f32.mrf.mxu0
        %v7290 = vadd.f32 0.0, %v7289
        %v7291 = vpop.f32.mrf.mxu0
        %7292 = vmatprep.mubr.bf16.mxu0 0
        %7293 = vmatmul.mubr.bf16.gmra.mxu0 %v7110
        %v7294 = vpop.f32.mrf.mxu0
        %v7295 = vadd.f32 0.0, %v7294
        %v7296 = vpop.f32.mrf.mxu0
        %v7297 = vpop.f32.mrf.mxu0
        %v7298 = vadd.f32 0.0, %v7297
        %v7299 = vpop.f32.mrf.mxu0
        %7300 = vmatprep.mubr.bf16.mxu0 0
        %7301 = vmatmul.mubr.bf16.gmra.mxu0 %v7111
        %v7302 = vpop.f32.mrf.mxu0
        %v7303 = vadd.f32 0.0, %v7302
        %v7304 = vpop.f32.mrf.mxu0
        %v7305 = vpop.f32.mrf.mxu0
        %v7306 = vadd.f32 0.0, %v7305
        %v7307 = vpop.f32.mrf.mxu0
        %7308 = vmatprep.mubr.bf16.mxu0 0
        %7309 = vmatmul.mubr.bf16.gmra.mxu0 %v7112
        %v7310 = vpop.f32.mrf.mxu0
        %v7311 = vadd.f32 0.0, %v7310
        %v7312 = vpop.f32.mrf.mxu0
        %v7313 = vpop.f32.mrf.mxu0
        %v7314 = vadd.f32 0.0, %v7313
        %v7315 = vpop.f32.mrf.mxu0
        %7316 = vmatprep.mubr.bf16.mxu0 0
        %7317 = vmatmul.mubr.bf16.gmra.mxu0 %v7113
        %v7318 = vpop.f32.mrf.mxu0
        %v7319 = vadd.f32 0.0, %v7318
        %v7320 = vpop.f32.mrf.mxu0
        %v7321 = vpop.f32.mrf.mxu0
        %v7322 = vadd.f32 0.0, %v7321
        %v7323 = vpop.f32.mrf.mxu0
        %7324 = vmatprep.mubr.bf16.mxu0 0
        %7325 = vmatmul.mubr.bf16.gmra.mxu0 %v7114
        %v7326 = vpop.f32.mrf.mxu0
        %v7327 = vadd.f32 0.0, %v7326
        %v7328 = vpop.f32.mrf.mxu0
        %v7329 = vpop.f32.mrf.mxu0
        %v7330 = vadd.f32 0.0, %v7329
        %v7331 = vpop.f32.mrf.mxu0
        %7332 = vmatprep.mubr.bf16.mxu0 0
        %7333 = vmatmul.mubr.bf16.gmra.mxu0 %v7115
        %v7334 = vpop.f32.mrf.mxu0
        %v7335 = vadd.f32 0.0, %v7334
        %v7336 = vpop.f32.mrf.mxu0
        %v7337 = vpop.f32.mrf.mxu0
        %v7338 = vadd.f32 0.0, %v7337
        %v7339 = vpop.f32.mrf.mxu0
        %7340 = vdwg.mxu0
        %v7341 = vunpack.c.l.b16 %v6663
        %v7342 = vunpack.c.l.b16 %v6672
        %v7343 = vunpack.c.l.b16 %v6685
        %v7344 = vunpack.c.l.b16 %v6694
        %v7345 = vunpack.c.l.b16 %v6707
        %v7346 = vunpack.c.l.b16 %v6716
        %v7347 = vunpack.c.l.b16 %v6729
        %v7348 = vunpack.c.l.b16 %v6738
        %v7349 = vunpack.c.l.b16 %v6751
        %v7350 = vunpack.c.l.b16 %v6760
        %v7351 = vunpack.c.l.b16 %v6773
        %v7352 = vunpack.c.l.b16 %v6782
        %v7353 = vunpack.c.l.b16 %v6795
        %v7354 = vunpack.c.l.b16 %v6804
        %v7355 = vunpack.c.l.b16 %v6817
        %v7356 = vunpack.c.l.b16 %v6826
        %v7357 = vunpack.c.l.b16 %v6839
        %v7358 = vunpack.c.l.b16 %v6848
        %v7359 = vunpack.c.l.b16 %v6861
        %v7360 = vunpack.c.l.b16 %v6870
        %v7361 = vunpack.c.l.b16 %v6883
        %v7362 = vunpack.c.l.b16 %v6892
        %v7363 = vunpack.c.l.b16 %v6905
        %v7364 = vunpack.c.l.b16 %v6914
        %v7365 = vunpack.c.l.b16 %v6927
        %v7366 = vunpack.c.l.b16 %v6936
        %v7367 = vunpack.c.l.b16 %v6949
        %v7368 = vunpack.c.l.b16 %v6958
        %v7369 = vunpack.c.l.b16 %v6971
        %v7370 = vunpack.c.l.b16 %v6980
        %v7371 = vunpack.c.l.b16 %v6993
        %v7372 = vunpack.c.l.b16 %v7002
        %v7373 = vpack.c.b16 %v7342, %v7341
        %v7374 = vpack.c.b16 %v7344, %v7343
        %v7375 = vpack.c.b16 %v7346, %v7345
        %v7376 = vpack.c.b16 %v7348, %v7347
        %v7377 = vpack.c.b16 %v7350, %v7349
        %v7378 = vpack.c.b16 %v7352, %v7351
        %v7379 = vpack.c.b16 %v7354, %v7353
        %v7380 = vpack.c.b16 %v7356, %v7355
        %v7381 = vpack.c.b16 %v7358, %v7357
        %v7382 = vpack.c.b16 %v7360, %v7359
        %v7383 = vpack.c.b16 %v7362, %v7361
        %v7384 = vpack.c.b16 %v7364, %v7363
        %v7385 = vpack.c.b16 %v7366, %v7365
        %v7386 = vpack.c.b16 %v7368, %v7367
        %v7387 = vpack.c.b16 %v7370, %v7369
        %v7388 = vpack.c.b16 %v7372, %v7371
        %v7421 = vunpack.c.l.b16 %v7003
        %v7422 = vunpack.c.l.b16 %v7004
        %v7423 = vunpack.c.l.b16 %v7005
        %v7424 = vunpack.c.l.b16 %v7006
        %v7425 = vunpack.c.l.b16 %v7007
        %v7426 = vunpack.c.l.b16 %v7008
        %v7427 = vunpack.c.l.b16 %v7009
        %v7428 = vunpack.c.l.b16 %v7010
        %v7429 = vunpack.c.l.b16 %v7011
        %v7430 = vunpack.c.l.b16 %v7012
        %v7431 = vunpack.c.l.b16 %v7013
        %v7432 = vunpack.c.l.b16 %v7014
        %v7433 = vunpack.c.l.b16 %v7015
        %v7434 = vunpack.c.l.b16 %v7016
        %v7435 = vunpack.c.l.b16 %v7017
        %v7436 = vunpack.c.l.b16 %v7018
        %v7437 = vpack.c.b16 %v7422, %v7421
        %v7438 = vpack.c.b16 %v7424, %v7423
        %v7439 = vpack.c.b16 %v7426, %v7425
        %v7440 = vpack.c.b16 %v7428, %v7427
        %v7441 = vpack.c.b16 %v7430, %v7429
        %v7442 = vpack.c.b16 %v7432, %v7431
        %v7443 = vpack.c.b16 %v7434, %v7433
        %v7444 = vpack.c.b16 %v7436, %v7435
        %7453 = vmatprep.subr.bf16.mxu0 0
        %7454 = vmatpush1.bf16.msra.mxu0 %v7444
        %7455 = vmatprep.subr.bf16.mxu0 0
        %7456 = vmatpush1.bf16.msra.mxu0 %v7443
        %7457 = vmatprep.subr.bf16.mxu0 0
        %7458 = vmatpush1.bf16.msra.mxu0 %v7442
        %7459 = vmatprep.subr.bf16.mxu0 0
        %7460 = vmatpush1.bf16.msra.mxu0 %v7441
        %7461 = vmatprep.subr.bf16.mxu0 0
        %7462 = vmatpush1.bf16.msra.mxu0 %v7440
        %7463 = vmatprep.subr.bf16.mxu0 0
        %7464 = vmatpush1.bf16.msra.mxu0 %v7439
        %7465 = vmatprep.subr.bf16.mxu0 0
        %7466 = vmatpush1.bf16.msra.mxu0 %v7438
        %7467 = vmatprep.subr.bf16.mxu0 0
        %7468 = vmatpush1.bf16.msra.mxu0 %v7437
        %7469 = vmatprep.subr.bf16.mxu0 0
        %7470 = vmatpush2.bf16.msra.mxu0 0
        %7471 = vmatprep.subr.bf16.mxu0 0
        %7472 = vmatpush2.bf16.msra.mxu0 0
        %7473 = vmatprep.subr.bf16.mxu0 0
        %7474 = vmatpush2.bf16.msra.mxu0 0
        %7475 = vmatprep.subr.bf16.mxu0 0
        %7476 = vmatpush2.bf16.msra.mxu0 0
        %7477 = vmatprep.subr.bf16.mxu0 0
        %7478 = vmatpush2.bf16.msra.mxu0 0
        %7479 = vmatprep.subr.bf16.mxu0 0
        %7480 = vmatpush2.bf16.msra.mxu0 0
        %7481 = vmatprep.subr.bf16.mxu0 0
        %7482 = vmatpush2.bf16.msra.mxu0 0
        %7483 = vmatprep.subr.bf16.mxu0 0
        %7484 = vmatpush2.bf16.msra.mxu0 0
        %7485 = vmatprep.mubr.bf16.mxu0 0
        %7486 = vmatmul.mubr.bf16.gmra.mxu0 %v7373
        %v7487 = vpop.f32.mrf.mxu0
        %v7488 = vadd.f32 %v7215, %v7487
        %v7489 = vpop.f32.mrf.mxu0
        %v7490 = vpop.f32.mrf.mxu0
        %v7491 = vadd.f32 %v7218, %v7490
        %v7492 = vpop.f32.mrf.mxu0
        %7493 = vmatprep.mubr.bf16.mxu0 0
        %7494 = vmatmul.mubr.bf16.gmra.mxu0 %v7374
        %v7495 = vpop.f32.mrf.mxu0
        %v7496 = vadd.f32 %v7223, %v7495
        %v7497 = vpop.f32.mrf.mxu0
        %v7498 = vpop.f32.mrf.mxu0
        %v7499 = vadd.f32 %v7226, %v7498
        %v7500 = vpop.f32.mrf.mxu0
        %7501 = vmatprep.mubr.bf16.mxu0 0
        %7502 = vmatmul.mubr.bf16.gmra.mxu0 %v7375
        %v7503 = vpop.f32.mrf.mxu0
        %v7504 = vadd.f32 %v7231, %v7503
        %v7505 = vpop.f32.mrf.mxu0
        %v7506 = vpop.f32.mrf.mxu0
        %v7507 = vadd.f32 %v7234, %v7506
        %v7508 = vpop.f32.mrf.mxu0
        %7509 = vmatprep.mubr.bf16.mxu0 0
        %7510 = vmatmul.mubr.bf16.gmra.mxu0 %v7376
        %v7511 = vpop.f32.mrf.mxu0
        %v7512 = vadd.f32 %v7239, %v7511
        %v7513 = vpop.f32.mrf.mxu0
        %v7514 = vpop.f32.mrf.mxu0
        %v7515 = vadd.f32 %v7242, %v7514
        %v7516 = vpop.f32.mrf.mxu0
        %7517 = vmatprep.mubr.bf16.mxu0 0
        %7518 = vmatmul.mubr.bf16.gmra.mxu0 %v7377
        %v7519 = vpop.f32.mrf.mxu0
        %v7520 = vadd.f32 %v7247, %v7519
        %v7521 = vpop.f32.mrf.mxu0
        %v7522 = vpop.f32.mrf.mxu0
        %v7523 = vadd.f32 %v7250, %v7522
        %v7524 = vpop.f32.mrf.mxu0
        %7525 = vmatprep.mubr.bf16.mxu0 0
        %7526 = vmatmul.mubr.bf16.gmra.mxu0 %v7378
        %v7527 = vpop.f32.mrf.mxu0
        %v7528 = vadd.f32 %v7255, %v7527
        %v7529 = vpop.f32.mrf.mxu0
        %v7530 = vpop.f32.mrf.mxu0
        %v7531 = vadd.f32 %v7258, %v7530
        %v7532 = vpop.f32.mrf.mxu0
        %7533 = vmatprep.mubr.bf16.mxu0 0
        %7534 = vmatmul.mubr.bf16.gmra.mxu0 %v7379
        %v7535 = vpop.f32.mrf.mxu0
        %v7536 = vadd.f32 %v7263, %v7535
        %v7537 = vpop.f32.mrf.mxu0
        %v7538 = vpop.f32.mrf.mxu0
        %v7539 = vadd.f32 %v7266, %v7538
        %v7540 = vpop.f32.mrf.mxu0
        %7541 = vmatprep.mubr.bf16.mxu0 0
        %7542 = vmatmul.mubr.bf16.gmra.mxu0 %v7380
        %v7543 = vpop.f32.mrf.mxu0
        %v7544 = vadd.f32 %v7271, %v7543
        %v7545 = vpop.f32.mrf.mxu0
        %v7546 = vpop.f32.mrf.mxu0
        %v7547 = vadd.f32 %v7274, %v7546
        %v7548 = vpop.f32.mrf.mxu0
        %7549 = vmatprep.mubr.bf16.mxu0 0
        %7550 = vmatmul.mubr.bf16.gmra.mxu0 %v7381
        %v7551 = vpop.f32.mrf.mxu0
        %v7552 = vadd.f32 %v7279, %v7551
        %v7553 = vpop.f32.mrf.mxu0
        %v7554 = vpop.f32.mrf.mxu0
        %v7555 = vadd.f32 %v7282, %v7554
        %v7556 = vpop.f32.mrf.mxu0
        %7557 = vmatprep.mubr.bf16.mxu0 0
        %7558 = vmatmul.mubr.bf16.gmra.mxu0 %v7382
        %v7559 = vpop.f32.mrf.mxu0
        %v7560 = vadd.f32 %v7287, %v7559
        %v7561 = vpop.f32.mrf.mxu0
        %v7562 = vpop.f32.mrf.mxu0
        %v7563 = vadd.f32 %v7290, %v7562
        %v7564 = vpop.f32.mrf.mxu0
        %7565 = vmatprep.mubr.bf16.mxu0 0
        %7566 = vmatmul.mubr.bf16.gmra.mxu0 %v7383
        %v7567 = vpop.f32.mrf.mxu0
        %v7568 = vadd.f32 %v7295, %v7567
        %v7569 = vpop.f32.mrf.mxu0
        %v7570 = vpop.f32.mrf.mxu0
        %v7571 = vadd.f32 %v7298, %v7570
        %v7572 = vpop.f32.mrf.mxu0
        %7573 = vmatprep.mubr.bf16.mxu0 0
        %7574 = vmatmul.mubr.bf16.gmra.mxu0 %v7384
        %v7575 = vpop.f32.mrf.mxu0
        %v7576 = vadd.f32 %v7303, %v7575
        %v7577 = vpop.f32.mrf.mxu0
        %v7578 = vpop.f32.mrf.mxu0
        %v7579 = vadd.f32 %v7306, %v7578
        %v7580 = vpop.f32.mrf.mxu0
        %7581 = vmatprep.mubr.bf16.mxu0 0
        %7582 = vmatmul.mubr.bf16.gmra.mxu0 %v7385
        %v7583 = vpop.f32.mrf.mxu0
        %v7584 = vadd.f32 %v7311, %v7583
        %v7585 = vpop.f32.mrf.mxu0
        %v7586 = vpop.f32.mrf.mxu0
        %v7587 = vadd.f32 %v7314, %v7586
        %v7588 = vpop.f32.mrf.mxu0
        %7589 = vmatprep.mubr.bf16.mxu0 0
        %7590 = vmatmul.mubr.bf16.gmra.mxu0 %v7386
        %v7591 = vpop.f32.mrf.mxu0
        %v7592 = vadd.f32 %v7319, %v7591
        %v7593 = vpop.f32.mrf.mxu0
        %v7594 = vpop.f32.mrf.mxu0
        %v7595 = vadd.f32 %v7322, %v7594
        %v7596 = vpop.f32.mrf.mxu0
        %7597 = vmatprep.mubr.bf16.mxu0 0
        %7598 = vmatmul.mubr.bf16.gmra.mxu0 %v7387
        %v7599 = vpop.f32.mrf.mxu0
        %v7600 = vadd.f32 %v7327, %v7599
        %v7601 = vpop.f32.mrf.mxu0
        %v7602 = vpop.f32.mrf.mxu0
        %v7603 = vadd.f32 %v7330, %v7602
        %v7604 = vpop.f32.mrf.mxu0
        %7605 = vmatprep.mubr.bf16.mxu0 0
        %7606 = vmatmul.mubr.bf16.gmra.mxu0 %v7388
        %v7607 = vpop.f32.mrf.mxu0
        %v7608 = vadd.f32 %v7335, %v7607
        %v7609 = vpop.f32.mrf.mxu0
        %v7610 = vpop.f32.mrf.mxu0
        %v7611 = vadd.f32 %v7338, %v7610
        %v7612 = vpop.f32.mrf.mxu0
        %7613 = vdwg.mxu0
        %v7614 = vld [vmem:[#allocation3 + $0x8] sm:$0xf]
        %v7615 = vld [vmem:[#allocation3 + $0xc] sm:$0xf]
        %v7616 = vld [vmem:[#allocation3 + $0x10] sm:$0x1]
        %v7617 = vld [vmem:[#allocation3 + $0x20] sm:$0xf]
        %v7618 = vld [vmem:[#allocation3 + $0x24] sm:$0xf]
        %v7619 = vld [vmem:[#allocation3 + $0x28] sm:$0x1]
        %v7620 = vld [vmem:[#allocation3 + $0x38] sm:$0xf]
        %v7621 = vld [vmem:[#allocation3 + $0x3c] sm:$0xf]
        %v7622 = vld [vmem:[#allocation3 + $0x40] sm:$0x1]
        %v7623 = vld [vmem:[#allocation3 + $0x50] sm:$0xf]
        %v7624 = vld [vmem:[#allocation3 + $0x54] sm:$0xf]
        %v7625 = vld [vmem:[#allocation3 + $0x58] sm:$0x1]
        %v7626 = vld [vmem:[#allocation3 + $0x68] sm:$0xf]
        %v7627 = vld [vmem:[#allocation3 + $0x6c] sm:$0xf]
        %v7628 = vld [vmem:[#allocation3 + $0x70] sm:$0x1]
        %v7629 = vld [vmem:[#allocation3 + $0x80] sm:$0xf]
        %v7630 = vld [vmem:[#allocation3 + $0x84] sm:$0xf]
        %v7631 = vld [vmem:[#allocation3 + $0x88] sm:$0x1]
        %v7632 = vld [vmem:[#allocation3 + $0x98] sm:$0xf]
        %v7633 = vld [vmem:[#allocation3 + $0x9c] sm:$0xf]
        %v7634 = vld [vmem:[#allocation3 + $0xa0] sm:$0x1]
        %v7635 = vld [vmem:[#allocation3 + $0xb0] sm:$0xf]
        %v7636 = vld [vmem:[#allocation3 + $0xb4] sm:$0xf]
        %v7637 = vld [vmem:[#allocation3 + $0xb8] sm:$0x1]
        %v7638 = vld [vmem:[#allocation3 + $0xc8] sm:$0xf]
        %v7639 = vld [vmem:[#allocation3 + $0xcc] sm:$0xf]
        %v7640 = vld [vmem:[#allocation3 + $0xd0] sm:$0x1]
        %v7641 = vld [vmem:[#allocation3 + $0xe0] sm:$0xf]
        %v7642 = vld [vmem:[#allocation3 + $0xe4] sm:$0xf]
        %v7643 = vld [vmem:[#allocation3 + $0xe8] sm:$0x1]
        %v7644 = vld [vmem:[#allocation3 + $0xf8] sm:$0xf]
        %v7645 = vld [vmem:[#allocation3 + $0xfc] sm:$0xf]
        %v7646 = vld [vmem:[#allocation3 + $0x100] sm:$0x1]
        %v7647 = vld [vmem:[#allocation3 + $0x110] sm:$0xf]
        %v7648 = vld [vmem:[#allocation3 + $0x114] sm:$0xf]
        %v7649 = vld [vmem:[#allocation3 + $0x118] sm:$0x1]
        %v7650 = vld [vmem:[#allocation3 + $0x128] sm:$0xf]
        %v7651 = vld [vmem:[#allocation3 + $0x12c] sm:$0xf]
        %v7652 = vld [vmem:[#allocation3 + $0x130] sm:$0x1]
        %v7653 = vld [vmem:[#allocation3 + $0x140] sm:$0xf]
        %v7654 = vld [vmem:[#allocation3 + $0x144] sm:$0xf]
        %v7655 = vld [vmem:[#allocation3 + $0x148] sm:$0x1]
        %v7656 = vld [vmem:[#allocation3 + $0x158] sm:$0xf]
        %v7657 = vld [vmem:[#allocation3 + $0x15c] sm:$0xf]
        %v7658 = vld [vmem:[#allocation3 + $0x160] sm:$0x1]
        %v7659 = vld [vmem:[#allocation3 + $0x170] sm:$0xf]
        %v7660 = vld [vmem:[#allocation3 + $0x174] sm:$0xf]
        %v7661 = vld [vmem:[#allocation3 + $0x178] sm:$0x1]
        %v7662 = vsel %vm1674, %v7614, 0
        %v7663 = vsel %vm1675, %v7615, 0
        %v7664 = vsel %vm1676, %v7616, 0
        %v7665 = vsel %vm1674, %v7617, 0
        %v7666 = vsel %vm1675, %v7618, 0
        %v7667 = vsel %vm1676, %v7619, 0
        %v7668 = vsel %vm1674, %v7620, 0
        %v7669 = vsel %vm1675, %v7621, 0
        %v7670 = vsel %vm1676, %v7622, 0
        %v7671 = vsel %vm1674, %v7623, 0
        %v7672 = vsel %vm1675, %v7624, 0
        %v7673 = vsel %vm1676, %v7625, 0
        %v7674 = vsel %vm1674, %v7626, 0
        %v7675 = vsel %vm1675, %v7627, 0
        %v7676 = vsel %vm1676, %v7628, 0
        %v7677 = vsel %vm1674, %v7629, 0
        %v7678 = vsel %vm1675, %v7630, 0
        %v7679 = vsel %vm1676, %v7631, 0
        %v7680 = vsel %vm1674, %v7632, 0
        %v7681 = vsel %vm1675, %v7633, 0
        %v7682 = vsel %vm1676, %v7634, 0
        %v7683 = vsel %vm1674, %v7635, 0
        %v7684 = vsel %vm1675, %v7636, 0
        %v7685 = vsel %vm1676, %v7637, 0
        %v7686 = vsel %vm1674, %v7638, 0
        %v7687 = vsel %vm1675, %v7639, 0
        %v7688 = vsel %vm1676, %v7640, 0
        %v7689 = vsel %vm1674, %v7641, 0
        %v7690 = vsel %vm1675, %v7642, 0
        %v7691 = vsel %vm1676, %v7643, 0
        %v7692 = vsel %vm1674, %v7644, 0
        %v7693 = vsel %vm1675, %v7645, 0
        %v7694 = vsel %vm1676, %v7646, 0
        %v7695 = vsel %vm1674, %v7647, 0
        %v7696 = vsel %vm1675, %v7648, 0
        %v7697 = vsel %vm1676, %v7649, 0
        %v7698 = vsel %vm1674, %v7650, 0
        %v7699 = vsel %vm1675, %v7651, 0
        %v7700 = vsel %vm1676, %v7652, 0
        %v7701 = vsel %vm1674, %v7653, 0
        %v7702 = vsel %vm1675, %v7654, 0
        %v7703 = vsel %vm1676, %v7655, 0
        %v7704 = vsel %vm1674, %v7656, 0
        %v7705 = vsel %vm1675, %v7657, 0
        %v7706 = vsel %vm1676, %v7658, 0
        %v7707 = vsel %vm1674, %v7659, 0
        %v7708 = vsel %vm1675, %v7660, 0
        %v7709 = vsel %vm1676, %v7661, 0
        %v7711 = vshrl.u32 %v7662, 16
        %v7713 = vrot.slane %v7711, 4
        %v7714 = vshll.u32 %v7662, 16
        %v7716 = vrot.slane %v7714, 5
        %v7717 = vor.u32 %v7713, %v7716
        %v7718 = vrot.slane %v7717, 4
        %v7720 = vshll.u32 %v7663, 16
        %v7722 = vrot.slane %v7720, 5
        %v7723 = vsel %vm564, %v7718, %v7722
        %v7724 = vshrl.u32 %v7663, 16
        %v7726 = vrot.slane %v7724, 4
        %v7727 = vor.u32 %v7726, %v7722
        %v7728 = vrot.slane %v7727, 4
        %v7730 = vshll.u32 %v7664, 16
        %v7732 = vrot.slane %v7730, 5
        %v7733 = vsel %vm564, %v7728, %v7732
        %v7735 = vshrl.u32 %v7665, 16
        %v7737 = vrot.slane %v7735, 4
        %v7738 = vshll.u32 %v7665, 16
        %v7740 = vrot.slane %v7738, 5
        %v7741 = vor.u32 %v7737, %v7740
        %v7742 = vrot.slane %v7741, 4
        %v7744 = vshll.u32 %v7666, 16
        %v7746 = vrot.slane %v7744, 5
        %v7747 = vsel %vm564, %v7742, %v7746
        %v7748 = vshrl.u32 %v7666, 16
        %v7750 = vrot.slane %v7748, 4
        %v7751 = vor.u32 %v7750, %v7746
        %v7752 = vrot.slane %v7751, 4
        %v7754 = vshll.u32 %v7667, 16
        %v7756 = vrot.slane %v7754, 5
        %v7757 = vsel %vm564, %v7752, %v7756
        %v7759 = vshrl.u32 %v7668, 16
        %v7761 = vrot.slane %v7759, 4
        %v7762 = vshll.u32 %v7668, 16
        %v7764 = vrot.slane %v7762, 5
        %v7765 = vor.u32 %v7761, %v7764
        %v7766 = vrot.slane %v7765, 4
        %v7768 = vshll.u32 %v7669, 16
        %v7770 = vrot.slane %v7768, 5
        %v7771 = vsel %vm564, %v7766, %v7770
        %v7772 = vshrl.u32 %v7669, 16
        %v7774 = vrot.slane %v7772, 4
        %v7775 = vor.u32 %v7774, %v7770
        %v7776 = vrot.slane %v7775, 4
        %v7778 = vshll.u32 %v7670, 16
        %v7780 = vrot.slane %v7778, 5
        %v7781 = vsel %vm564, %v7776, %v7780
        %v7783 = vshrl.u32 %v7671, 16
        %v7785 = vrot.slane %v7783, 4
        %v7786 = vshll.u32 %v7671, 16
        %v7788 = vrot.slane %v7786, 5
        %v7789 = vor.u32 %v7785, %v7788
        %v7790 = vrot.slane %v7789, 4
        %v7792 = vshll.u32 %v7672, 16
        %v7794 = vrot.slane %v7792, 5
        %v7795 = vsel %vm564, %v7790, %v7794
        %v7796 = vshrl.u32 %v7672, 16
        %v7798 = vrot.slane %v7796, 4
        %v7799 = vor.u32 %v7798, %v7794
        %v7800 = vrot.slane %v7799, 4
        %v7802 = vshll.u32 %v7673, 16
        %v7804 = vrot.slane %v7802, 5
        %v7805 = vsel %vm564, %v7800, %v7804
        %v7807 = vshrl.u32 %v7674, 16
        %v7809 = vrot.slane %v7807, 4
        %v7810 = vshll.u32 %v7674, 16
        %v7812 = vrot.slane %v7810, 5
        %v7813 = vor.u32 %v7809, %v7812
        %v7814 = vrot.slane %v7813, 4
        %v7816 = vshll.u32 %v7675, 16
        %v7818 = vrot.slane %v7816, 5
        %v7819 = vsel %vm564, %v7814, %v7818
        %v7820 = vshrl.u32 %v7675, 16
        %v7822 = vrot.slane %v7820, 4
        %v7823 = vor.u32 %v7822, %v7818
        %v7824 = vrot.slane %v7823, 4
        %v7826 = vshll.u32 %v7676, 16
        %v7828 = vrot.slane %v7826, 5
        %v7829 = vsel %vm564, %v7824, %v7828
        %v7831 = vshrl.u32 %v7677, 16
        %v7833 = vrot.slane %v7831, 4
        %v7834 = vshll.u32 %v7677, 16
        %v7836 = vrot.slane %v7834, 5
        %v7837 = vor.u32 %v7833, %v7836
        %v7838 = vrot.slane %v7837, 4
        %v7840 = vshll.u32 %v7678, 16
        %v7842 = vrot.slane %v7840, 5
        %v7843 = vsel %vm564, %v7838, %v7842
        %v7844 = vshrl.u32 %v7678, 16
        %v7846 = vrot.slane %v7844, 4
        %v7847 = vor.u32 %v7846, %v7842
        %v7848 = vrot.slane %v7847, 4
        %v7850 = vshll.u32 %v7679, 16
        %v7852 = vrot.slane %v7850, 5
        %v7853 = vsel %vm564, %v7848, %v7852
        %v7855 = vshrl.u32 %v7680, 16
        %v7857 = vrot.slane %v7855, 4
        %v7858 = vshll.u32 %v7680, 16
        %v7860 = vrot.slane %v7858, 5
        %v7861 = vor.u32 %v7857, %v7860
        %v7862 = vrot.slane %v7861, 4
        %v7864 = vshll.u32 %v7681, 16
        %v7866 = vrot.slane %v7864, 5
        %v7867 = vsel %vm564, %v7862, %v7866
        %v7868 = vshrl.u32 %v7681, 16
        %v7870 = vrot.slane %v7868, 4
        %v7871 = vor.u32 %v7870, %v7866
        %v7872 = vrot.slane %v7871, 4
        %v7874 = vshll.u32 %v7682, 16
        %v7876 = vrot.slane %v7874, 5
        %v7877 = vsel %vm564, %v7872, %v7876
        %v7879 = vshrl.u32 %v7683, 16
        %v7881 = vrot.slane %v7879, 4
        %v7882 = vshll.u32 %v7683, 16
        %v7884 = vrot.slane %v7882, 5
        %v7885 = vor.u32 %v7881, %v7884
        %v7886 = vrot.slane %v7885, 4
        %v7888 = vshll.u32 %v7684, 16
        %v7890 = vrot.slane %v7888, 5
        %v7891 = vsel %vm564, %v7886, %v7890
        %v7892 = vshrl.u32 %v7684, 16
        %v7894 = vrot.slane %v7892, 4
        %v7895 = vor.u32 %v7894, %v7890
        %v7896 = vrot.slane %v7895, 4
        %v7898 = vshll.u32 %v7685, 16
        %v7900 = vrot.slane %v7898, 5
        %v7901 = vsel %vm564, %v7896, %v7900
        %v7903 = vshrl.u32 %v7686, 16
        %v7905 = vrot.slane %v7903, 4
        %v7906 = vshll.u32 %v7686, 16
        %v7908 = vrot.slane %v7906, 5
        %v7909 = vor.u32 %v7905, %v7908
        %v7910 = vrot.slane %v7909, 4
        %v7912 = vshll.u32 %v7687, 16
        %v7914 = vrot.slane %v7912, 5
        %v7915 = vsel %vm564, %v7910, %v7914
        %v7916 = vshrl.u32 %v7687, 16
        %v7918 = vrot.slane %v7916, 4
        %v7919 = vor.u32 %v7918, %v7914
        %v7920 = vrot.slane %v7919, 4
        %v7922 = vshll.u32 %v7688, 16
        %v7924 = vrot.slane %v7922, 5
        %v7925 = vsel %vm564, %v7920, %v7924
        %v7927 = vshrl.u32 %v7689, 16
        %v7929 = vrot.slane %v7927, 4
        %v7930 = vshll.u32 %v7689, 16
        %v7932 = vrot.slane %v7930, 5
        %v7933 = vor.u32 %v7929, %v7932
        %v7934 = vrot.slane %v7933, 4
        %v7936 = vshll.u32 %v7690, 16
        %v7938 = vrot.slane %v7936, 5
        %v7939 = vsel %vm564, %v7934, %v7938
        %v7940 = vshrl.u32 %v7690, 16
        %v7942 = vrot.slane %v7940, 4
        %v7943 = vor.u32 %v7942, %v7938
        %v7944 = vrot.slane %v7943, 4
        %v7946 = vshll.u32 %v7691, 16
        %v7948 = vrot.slane %v7946, 5
        %v7949 = vsel %vm564, %v7944, %v7948
        %v7951 = vshrl.u32 %v7692, 16
        %v7953 = vrot.slane %v7951, 4
        %v7954 = vshll.u32 %v7692, 16
        %v7956 = vrot.slane %v7954, 5
        %v7957 = vor.u32 %v7953, %v7956
        %v7958 = vrot.slane %v7957, 4
        %v7960 = vshll.u32 %v7693, 16
        %v7962 = vrot.slane %v7960, 5
        %v7963 = vsel %vm564, %v7958, %v7962
        %v7964 = vshrl.u32 %v7693, 16
        %v7966 = vrot.slane %v7964, 4
        %v7967 = vor.u32 %v7966, %v7962
        %v7968 = vrot.slane %v7967, 4
        %v7970 = vshll.u32 %v7694, 16
        %v7972 = vrot.slane %v7970, 5
        %v7973 = vsel %vm564, %v7968, %v7972
        %v7975 = vshrl.u32 %v7695, 16
        %v7977 = vrot.slane %v7975, 4
        %v7978 = vshll.u32 %v7695, 16
        %v7980 = vrot.slane %v7978, 5
        %v7981 = vor.u32 %v7977, %v7980
        %v7982 = vrot.slane %v7981, 4
        %v7984 = vshll.u32 %v7696, 16
        %v7986 = vrot.slane %v7984, 5
        %v7987 = vsel %vm564, %v7982, %v7986
        %v7988 = vshrl.u32 %v7696, 16
        %v7990 = vrot.slane %v7988, 4
        %v7991 = vor.u32 %v7990, %v7986
        %v7992 = vrot.slane %v7991, 4
        %v7994 = vshll.u32 %v7697, 16
        %v7996 = vrot.slane %v7994, 5
        %v7997 = vsel %vm564, %v7992, %v7996
        %v7999 = vshrl.u32 %v7698, 16
        %v8001 = vrot.slane %v7999, 4
        %v8002 = vshll.u32 %v7698, 16
        %v8004 = vrot.slane %v8002, 5
        %v8005 = vor.u32 %v8001, %v8004
        %v8006 = vrot.slane %v8005, 4
        %v8008 = vshll.u32 %v7699, 16
        %v8010 = vrot.slane %v8008, 5
        %v8011 = vsel %vm564, %v8006, %v8010
        %v8012 = vshrl.u32 %v7699, 16
        %v8014 = vrot.slane %v8012, 4
        %v8015 = vor.u32 %v8014, %v8010
        %v8016 = vrot.slane %v8015, 4
        %v8018 = vshll.u32 %v7700, 16
        %v8020 = vrot.slane %v8018, 5
        %v8021 = vsel %vm564, %v8016, %v8020
        %v8023 = vshrl.u32 %v7701, 16
        %v8025 = vrot.slane %v8023, 4
        %v8026 = vshll.u32 %v7701, 16
        %v8028 = vrot.slane %v8026, 5
        %v8029 = vor.u32 %v8025, %v8028
        %v8030 = vrot.slane %v8029, 4
        %v8032 = vshll.u32 %v7702, 16
        %v8034 = vrot.slane %v8032, 5
        %v8035 = vsel %vm564, %v8030, %v8034
        %v8036 = vshrl.u32 %v7702, 16
        %v8038 = vrot.slane %v8036, 4
        %v8039 = vor.u32 %v8038, %v8034
        %v8040 = vrot.slane %v8039, 4
        %v8042 = vshll.u32 %v7703, 16
        %v8044 = vrot.slane %v8042, 5
        %v8045 = vsel %vm564, %v8040, %v8044
        %v8047 = vshrl.u32 %v7704, 16
        %v8049 = vrot.slane %v8047, 4
        %v8050 = vshll.u32 %v7704, 16
        %v8052 = vrot.slane %v8050, 5
        %v8053 = vor.u32 %v8049, %v8052
        %v8054 = vrot.slane %v8053, 4
        %v8056 = vshll.u32 %v7705, 16
        %v8058 = vrot.slane %v8056, 5
        %v8059 = vsel %vm564, %v8054, %v8058
        %v8060 = vshrl.u32 %v7705, 16
        %v8062 = vrot.slane %v8060, 4
        %v8063 = vor.u32 %v8062, %v8058
        %v8064 = vrot.slane %v8063, 4
        %v8066 = vshll.u32 %v7706, 16
        %v8068 = vrot.slane %v8066, 5
        %v8069 = vsel %vm564, %v8064, %v8068
        %v8071 = vshrl.u32 %v7707, 16
        %v8073 = vrot.slane %v8071, 4
        %v8074 = vshll.u32 %v7707, 16
        %v8076 = vrot.slane %v8074, 5
        %v8077 = vor.u32 %v8073, %v8076
        %v8078 = vrot.slane %v8077, 4
        %v8080 = vshll.u32 %v7708, 16
        %v8082 = vrot.slane %v8080, 5
        %v8083 = vsel %vm564, %v8078, %v8082
        %v8084 = vshrl.u32 %v7708, 16
        %v8086 = vrot.slane %v8084, 4
        %v8087 = vor.u32 %v8086, %v8082
        %v8088 = vrot.slane %v8087, 4
        %v8090 = vshll.u32 %v7709, 16
        %v8092 = vrot.slane %v8090, 5
        %v8093 = vsel %vm564, %v8088, %v8092
        %s8094 = scalar_lea.vmem %s2, 128
        %v8095 = vld [vmem:[%s8094] sm:$0xf]
        %v8096 = vld [vmem:[%s8094 + $0x4] sm:$0xf]
        %v8097 = vld [vmem:[%s8094 + $0x8] sm:$0xf]
        %v8098 = vld [vmem:[%s8094 + $0xc] sm:$0xf]
        %v8099 = vld [vmem:[%s8094 + $0x10] sm:$0xf]
        %v8100 = vld [vmem:[%s8094 + $0x14] sm:$0xf]
        %v8101 = vld [vmem:[%s8094 + $0x18] sm:$0xf]
        %v8102 = vld [vmem:[%s8094 + $0x1c] sm:$0xf]
        %v8103 = vld [vmem:[%s8094 + $0x20] sm:$0xf]
        %v8104 = vld [vmem:[%s8094 + $0x24] sm:$0xf]
        %v8105 = vld [vmem:[%s8094 + $0x28] sm:$0xf]
        %v8106 = vld [vmem:[%s8094 + $0x2c] sm:$0xf]
        %v8107 = vld [vmem:[%s8094 + $0x30] sm:$0xf]
        %v8108 = vld [vmem:[%s8094 + $0x34] sm:$0xf]
        %v8109 = vld [vmem:[%s8094 + $0x38] sm:$0xf]
        %v8110 = vld [vmem:[%s8094 + $0x3c] sm:$0xf]
        %v8111 = vunpack.c.l.b16 %v7723
        %v8112 = vunpack.c.l.b16 %v7733
        %v8113 = vunpack.c.l.b16 %v7747
        %v8114 = vunpack.c.l.b16 %v7757
        %v8115 = vunpack.c.l.b16 %v7771
        %v8116 = vunpack.c.l.b16 %v7781
        %v8117 = vunpack.c.l.b16 %v7795
        %v8118 = vunpack.c.l.b16 %v7805
        %v8119 = vunpack.c.l.b16 %v7819
        %v8120 = vunpack.c.l.b16 %v7829
        %v8121 = vunpack.c.l.b16 %v7843
        %v8122 = vunpack.c.l.b16 %v7853
        %v8123 = vunpack.c.l.b16 %v7867
        %v8124 = vunpack.c.l.b16 %v7877
        %v8125 = vunpack.c.l.b16 %v7891
        %v8126 = vunpack.c.l.b16 %v7901
        %v8127 = vunpack.c.l.b16 %v7915
        %v8128 = vunpack.c.l.b16 %v7925
        %v8129 = vunpack.c.l.b16 %v7939
        %v8130 = vunpack.c.l.b16 %v7949
        %v8131 = vunpack.c.l.b16 %v7963
        %v8132 = vunpack.c.l.b16 %v7973
        %v8133 = vunpack.c.l.b16 %v7987
        %v8134 = vunpack.c.l.b16 %v7997
        %v8135 = vunpack.c.l.b16 %v8011
        %v8136 = vunpack.c.l.b16 %v8021
        %v8137 = vunpack.c.l.b16 %v8035
        %v8138 = vunpack.c.l.b16 %v8045
        %v8139 = vunpack.c.l.b16 %v8059
        %v8140 = vunpack.c.l.b16 %v8069
        %v8141 = vunpack.c.l.b16 %v8083
        %v8142 = vunpack.c.l.b16 %v8093
        %v8143 = vpack.c.b16 %v8112, %v8111
        %v8144 = vpack.c.b16 %v8114, %v8113
        %v8145 = vpack.c.b16 %v8116, %v8115
        %v8146 = vpack.c.b16 %v8118, %v8117
        %v8147 = vpack.c.b16 %v8120, %v8119
        %v8148 = vpack.c.b16 %v8122, %v8121
        %v8149 = vpack.c.b16 %v8124, %v8123
        %v8150 = vpack.c.b16 %v8126, %v8125
        %v8151 = vpack.c.b16 %v8128, %v8127
        %v8152 = vpack.c.b16 %v8130, %v8129
        %v8153 = vpack.c.b16 %v8132, %v8131
        %v8154 = vpack.c.b16 %v8134, %v8133
        %v8155 = vpack.c.b16 %v8136, %v8135
        %v8156 = vpack.c.b16 %v8138, %v8137
        %v8157 = vpack.c.b16 %v8140, %v8139
        %v8158 = vpack.c.b16 %v8142, %v8141
        %v8191 = vunpack.c.l.b16 %v8095
        %v8192 = vunpack.c.l.b16 %v8096
        %v8193 = vunpack.c.l.b16 %v8097
        %v8194 = vunpack.c.l.b16 %v8098
        %v8195 = vunpack.c.l.b16 %v8099
        %v8196 = vunpack.c.l.b16 %v8100
        %v8197 = vunpack.c.l.b16 %v8101
        %v8198 = vunpack.c.l.b16 %v8102
        %v8199 = vunpack.c.l.b16 %v8103
        %v8200 = vunpack.c.l.b16 %v8104
        %v8201 = vunpack.c.l.b16 %v8105
        %v8202 = vunpack.c.l.b16 %v8106
        %v8203 = vunpack.c.l.b16 %v8107
        %v8204 = vunpack.c.l.b16 %v8108
        %v8205 = vunpack.c.l.b16 %v8109
        %v8206 = vunpack.c.l.b16 %v8110
        %v8207 = vpack.c.b16 %v8192, %v8191
        %v8208 = vpack.c.b16 %v8194, %v8193
        %v8209 = vpack.c.b16 %v8196, %v8195
        %v8210 = vpack.c.b16 %v8198, %v8197
        %v8211 = vpack.c.b16 %v8200, %v8199
        %v8212 = vpack.c.b16 %v8202, %v8201
        %v8213 = vpack.c.b16 %v8204, %v8203
        %v8214 = vpack.c.b16 %v8206, %v8205
        %8223 = vmatprep.subr.bf16.mxu0 0
        %8224 = vmatpush1.bf16.msra.mxu0 %v8214
        %8225 = vmatprep.subr.bf16.mxu0 0
        %8226 = vmatpush1.bf16.msra.mxu0 %v8213
        %8227 = vmatprep.subr.bf16.mxu0 0
        %8228 = vmatpush1.bf16.msra.mxu0 %v8212
        %8229 = vmatprep.subr.bf16.mxu0 0
        %8230 = vmatpush1.bf16.msra.mxu0 %v8211
        %8231 = vmatprep.subr.bf16.mxu0 0
        %8232 = vmatpush1.bf16.msra.mxu0 %v8210
        %8233 = vmatprep.subr.bf16.mxu0 0
        %8234 = vmatpush1.bf16.msra.mxu0 %v8209
        %8235 = vmatprep.subr.bf16.mxu0 0
        %8236 = vmatpush1.bf16.msra.mxu0 %v8208
        %8237 = vmatprep.subr.bf16.mxu0 0
        %8238 = vmatpush1.bf16.msra.mxu0 %v8207
        %8239 = vmatprep.subr.bf16.mxu0 0
        %8240 = vmatpush2.bf16.msra.mxu0 0
        %8241 = vmatprep.subr.bf16.mxu0 0
        %8242 = vmatpush2.bf16.msra.mxu0 0
        %8243 = vmatprep.subr.bf16.mxu0 0
        %8244 = vmatpush2.bf16.msra.mxu0 0
        %8245 = vmatprep.subr.bf16.mxu0 0
        %8246 = vmatpush2.bf16.msra.mxu0 0
        %8247 = vmatprep.subr.bf16.mxu0 0
        %8248 = vmatpush2.bf16.msra.mxu0 0
        %8249 = vmatprep.subr.bf16.mxu0 0
        %8250 = vmatpush2.bf16.msra.mxu0 0
        %8251 = vmatprep.subr.bf16.mxu0 0
        %8252 = vmatpush2.bf16.msra.mxu0 0
        %8253 = vmatprep.subr.bf16.mxu0 0
        %8254 = vmatpush2.bf16.msra.mxu0 0
        %8255 = vmatprep.mubr.bf16.mxu0 0
        %8256 = vmatmul.mubr.bf16.gmra.mxu0 %v8143
        %v8257 = vpop.f32.mrf.mxu0
        %v8258 = vadd.f32 0.0, %v8257
        %v8259 = vpop.f32.mrf.mxu0
        %v8260 = vpop.f32.mrf.mxu0
        %v8261 = vadd.f32 0.0, %v8260
        %v8262 = vpop.f32.mrf.mxu0
        %8263 = vmatprep.mubr.bf16.mxu0 0
        %8264 = vmatmul.mubr.bf16.gmra.mxu0 %v8144
        %v8265 = vpop.f32.mrf.mxu0
        %v8266 = vadd.f32 0.0, %v8265
        %v8267 = vpop.f32.mrf.mxu0
        %v8268 = vpop.f32.mrf.mxu0
        %v8269 = vadd.f32 0.0, %v8268
        %v8270 = vpop.f32.mrf.mxu0
        %8271 = vmatprep.mubr.bf16.mxu0 0
        %8272 = vmatmul.mubr.bf16.gmra.mxu0 %v8145
        %v8273 = vpop.f32.mrf.mxu0
        %v8274 = vadd.f32 0.0, %v8273
        %v8275 = vpop.f32.mrf.mxu0
        %v8276 = vpop.f32.mrf.mxu0
        %v8277 = vadd.f32 0.0, %v8276
        %v8278 = vpop.f32.mrf.mxu0
        %8279 = vmatprep.mubr.bf16.mxu0 0
        %8280 = vmatmul.mubr.bf16.gmra.mxu0 %v8146
        %v8281 = vpop.f32.mrf.mxu0
        %v8282 = vadd.f32 0.0, %v8281
        %v8283 = vpop.f32.mrf.mxu0
        %v8284 = vpop.f32.mrf.mxu0
        %v8285 = vadd.f32 0.0, %v8284
        %v8286 = vpop.f32.mrf.mxu0
        %8287 = vmatprep.mubr.bf16.mxu0 0
        %8288 = vmatmul.mubr.bf16.gmra.mxu0 %v8147
        %v8289 = vpop.f32.mrf.mxu0
        %v8290 = vadd.f32 0.0, %v8289
        %v8291 = vpop.f32.mrf.mxu0
        %v8292 = vpop.f32.mrf.mxu0
        %v8293 = vadd.f32 0.0, %v8292
        %v8294 = vpop.f32.mrf.mxu0
        %8295 = vmatprep.mubr.bf16.mxu0 0
        %8296 = vmatmul.mubr.bf16.gmra.mxu0 %v8148
        %v8297 = vpop.f32.mrf.mxu0
        %v8298 = vadd.f32 0.0, %v8297
        %v8299 = vpop.f32.mrf.mxu0
        %v8300 = vpop.f32.mrf.mxu0
        %v8301 = vadd.f32 0.0, %v8300
        %v8302 = vpop.f32.mrf.mxu0
        %8303 = vmatprep.mubr.bf16.mxu0 0
        %8304 = vmatmul.mubr.bf16.gmra.mxu0 %v8149
        %v8305 = vpop.f32.mrf.mxu0
        %v8306 = vadd.f32 0.0, %v8305
        %v8307 = vpop.f32.mrf.mxu0
        %v8308 = vpop.f32.mrf.mxu0
        %v8309 = vadd.f32 0.0, %v8308
        %v8310 = vpop.f32.mrf.mxu0
        %8311 = vmatprep.mubr.bf16.mxu0 0
        %8312 = vmatmul.mubr.bf16.gmra.mxu0 %v8150
        %v8313 = vpop.f32.mrf.mxu0
        %v8314 = vadd.f32 0.0, %v8313
        %v8315 = vpop.f32.mrf.mxu0
        %v8316 = vpop.f32.mrf.mxu0
        %v8317 = vadd.f32 0.0, %v8316
        %v8318 = vpop.f32.mrf.mxu0
        %8319 = vmatprep.mubr.bf16.mxu0 0
        %8320 = vmatmul.mubr.bf16.gmra.mxu0 %v8151
        %v8321 = vpop.f32.mrf.mxu0
        %v8322 = vadd.f32 0.0, %v8321
        %v8323 = vpop.f32.mrf.mxu0
        %v8324 = vpop.f32.mrf.mxu0
        %v8325 = vadd.f32 0.0, %v8324
        %v8326 = vpop.f32.mrf.mxu0
        %8327 = vmatprep.mubr.bf16.mxu0 0
        %8328 = vmatmul.mubr.bf16.gmra.mxu0 %v8152
        %v8329 = vpop.f32.mrf.mxu0
        %v8330 = vadd.f32 0.0, %v8329
        %v8331 = vpop.f32.mrf.mxu0
        %v8332 = vpop.f32.mrf.mxu0
        %v8333 = vadd.f32 0.0, %v8332
        %v8334 = vpop.f32.mrf.mxu0
        %8335 = vmatprep.mubr.bf16.mxu0 0
        %8336 = vmatmul.mubr.bf16.gmra.mxu0 %v8153
        %v8337 = vpop.f32.mrf.mxu0
        %v8338 = vadd.f32 0.0, %v8337
        %v8339 = vpop.f32.mrf.mxu0
        %v8340 = vpop.f32.mrf.mxu0
        %v8341 = vadd.f32 0.0, %v8340
        %v8342 = vpop.f32.mrf.mxu0
        %8343 = vmatprep.mubr.bf16.mxu0 0
        %8344 = vmatmul.mubr.bf16.gmra.mxu0 %v8154
        %v8345 = vpop.f32.mrf.mxu0
        %v8346 = vadd.f32 0.0, %v8345
        %v8347 = vpop.f32.mrf.mxu0
        %v8348 = vpop.f32.mrf.mxu0
        %v8349 = vadd.f32 0.0, %v8348
        %v8350 = vpop.f32.mrf.mxu0
        %8351 = vmatprep.mubr.bf16.mxu0 0
        %8352 = vmatmul.mubr.bf16.gmra.mxu0 %v8155
        %v8353 = vpop.f32.mrf.mxu0
        %v8354 = vadd.f32 0.0, %v8353
        %v8355 = vpop.f32.mrf.mxu0
        %v8356 = vpop.f32.mrf.mxu0
        %v8357 = vadd.f32 0.0, %v8356
        %v8358 = vpop.f32.mrf.mxu0
        %8359 = vmatprep.mubr.bf16.mxu0 0
        %8360 = vmatmul.mubr.bf16.gmra.mxu0 %v8156
        %v8361 = vpop.f32.mrf.mxu0
        %v8362 = vadd.f32 0.0, %v8361
        %v8363 = vpop.f32.mrf.mxu0
        %v8364 = vpop.f32.mrf.mxu0
        %v8365 = vadd.f32 0.0, %v8364
        %v8366 = vpop.f32.mrf.mxu0
        %8367 = vmatprep.mubr.bf16.mxu0 0
        %8368 = vmatmul.mubr.bf16.gmra.mxu0 %v8157
        %v8369 = vpop.f32.mrf.mxu0
        %v8370 = vadd.f32 0.0, %v8369
        %v8371 = vpop.f32.mrf.mxu0
        %v8372 = vpop.f32.mrf.mxu0
        %v8373 = vadd.f32 0.0, %v8372
        %v8374 = vpop.f32.mrf.mxu0
        %8375 = vmatprep.mubr.bf16.mxu0 0
        %8376 = vmatmul.mubr.bf16.gmra.mxu0 %v8158
        %v8377 = vpop.f32.mrf.mxu0
        %v8378 = vadd.f32 0.0, %v8377
        %v8379 = vpop.f32.mrf.mxu0
        %v8380 = vpop.f32.mrf.mxu0
        %v8381 = vadd.f32 0.0, %v8380
        %v8382 = vpop.f32.mrf.mxu0
        %8383 = vdwg.mxu0
        %v8384 = vadd.f32 %v7488, %v8258
        %v8385 = vadd.f32 %v7491, %v8261
        %v8386 = vadd.f32 %v7496, %v8266
        %v8387 = vadd.f32 %v7499, %v8269
        %v8388 = vadd.f32 %v7504, %v8274
        %v8389 = vadd.f32 %v7507, %v8277
        %v8390 = vadd.f32 %v7512, %v8282
        %v8391 = vadd.f32 %v7515, %v8285
        %v8392 = vadd.f32 %v7520, %v8290
        %v8393 = vadd.f32 %v7523, %v8293
        %v8394 = vadd.f32 %v7528, %v8298
        %v8395 = vadd.f32 %v7531, %v8301
        %v8396 = vadd.f32 %v7536, %v8306
        %v8397 = vadd.f32 %v7539, %v8309
        %v8398 = vadd.f32 %v7544, %v8314
        %v8399 = vadd.f32 %v7547, %v8317
        %v8400 = vadd.f32 %v7552, %v8322
        %v8401 = vadd.f32 %v7555, %v8325
        %v8402 = vadd.f32 %v7560, %v8330
        %v8403 = vadd.f32 %v7563, %v8333
        %v8404 = vadd.f32 %v7568, %v8338
        %v8405 = vadd.f32 %v7571, %v8341
        %v8406 = vadd.f32 %v7576, %v8346
        %v8407 = vadd.f32 %v7579, %v8349
        %v8408 = vadd.f32 %v7584, %v8354
        %v8409 = vadd.f32 %v7587, %v8357
        %v8410 = vadd.f32 %v7592, %v8362
        %v8411 = vadd.f32 %v7595, %v8365
        %v8412 = vadd.f32 %v7600, %v8370
        %v8413 = vadd.f32 %v7603, %v8373
        %v8414 = vadd.f32 %v7608, %v8378
        %v8415 = vadd.f32 %v7611, %v8381
        %v8416 = vld [vmem:[%s6522 + $0x4] sm:$0x8]
        %v8417 = vld [vmem:[%s6522 + $0x8] sm:$0xf]
        %v8418 = vld [vmem:[%s6522 + $0xc] sm:$0xf]
        %v8419 = vld [vmem:[%s6522 + $0x1c] sm:$0x8]
        %v8420 = vld [vmem:[%s6522 + $0x20] sm:$0xf]
        %v8421 = vld [vmem:[%s6522 + $0x24] sm:$0xf]
        %v8422 = vld [vmem:[%s6522 + $0x34] sm:$0x8]
        %v8423 = vld [vmem:[%s6522 + $0x38] sm:$0xf]
        %v8424 = vld [vmem:[%s6522 + $0x3c] sm:$0xf]
        %v8425 = vld [vmem:[%s6522 + $0x4c] sm:$0x8]
        %v8426 = vld [vmem:[%s6522 + $0x50] sm:$0xf]
        %v8427 = vld [vmem:[%s6522 + $0x54] sm:$0xf]
        %v8428 = vld [vmem:[%s6522 + $0x64] sm:$0x8]
        %v8429 = vld [vmem:[%s6522 + $0x68] sm:$0xf]
        %v8430 = vld [vmem:[%s6522 + $0x6c] sm:$0xf]
        %v8431 = vld [vmem:[%s6522 + $0x7c] sm:$0x8]
        %v8432 = vld [vmem:[%s6522 + $0x80] sm:$0xf]
        %v8433 = vld [vmem:[%s6522 + $0x84] sm:$0xf]
        %v8434 = vld [vmem:[%s6522 + $0x94] sm:$0x8]
        %v8435 = vld [vmem:[%s6522 + $0x98] sm:$0xf]
        %v8436 = vld [vmem:[%s6522 + $0x9c] sm:$0xf]
        %v8437 = vld [vmem:[%s6522 + $0xac] sm:$0x8]
        %v8438 = vld [vmem:[%s6522 + $0xb0] sm:$0xf]
        %v8439 = vld [vmem:[%s6522 + $0xb4] sm:$0xf]
        %v8440 = vld [vmem:[%s6522 + $0xc4] sm:$0x8]
        %v8441 = vld [vmem:[%s6522 + $0xc8] sm:$0xf]
        %v8442 = vld [vmem:[%s6522 + $0xcc] sm:$0xf]
        %v8443 = vld [vmem:[%s6522 + $0xdc] sm:$0x8]
        %v8444 = vld [vmem:[%s6522 + $0xe0] sm:$0xf]
        %v8445 = vld [vmem:[%s6522 + $0xe4] sm:$0xf]
        %v8446 = vld [vmem:[%s6522 + $0xf4] sm:$0x8]
        %v8447 = vld [vmem:[%s6522 + $0xf8] sm:$0xf]
        %v8448 = vld [vmem:[%s6522 + $0xfc] sm:$0xf]
        %v8449 = vld [vmem:[%s6522 + $0x10c] sm:$0x8]
        %v8450 = vld [vmem:[%s6522 + $0x110] sm:$0xf]
        %v8451 = vld [vmem:[%s6522 + $0x114] sm:$0xf]
        %v8452 = vld [vmem:[%s6522 + $0x124] sm:$0x8]
        %v8453 = vld [vmem:[%s6522 + $0x128] sm:$0xf]
        %v8454 = vld [vmem:[%s6522 + $0x12c] sm:$0xf]
        %v8455 = vld [vmem:[%s6522 + $0x13c] sm:$0x8]
        %v8456 = vld [vmem:[%s6522 + $0x140] sm:$0xf]
        %v8457 = vld [vmem:[%s6522 + $0x144] sm:$0xf]
        %v8458 = vld [vmem:[%s6522 + $0x154] sm:$0x8]
        %v8459 = vld [vmem:[%s6522 + $0x158] sm:$0xf]
        %v8460 = vld [vmem:[%s6522 + $0x15c] sm:$0xf]
        %v8461 = vld [vmem:[%s6522 + $0x16c] sm:$0x8]
        %v8462 = vld [vmem:[%s6522 + $0x170] sm:$0xf]
        %v8463 = vld [vmem:[%s6522 + $0x174] sm:$0xf]
        %v8464 = vsel %vm584, %v8416, 0
        %v8465 = vsel %vm585, %v8417, 0
        %v8466 = vsel %vm586, %v8418, 0
        %v8467 = vsel %vm584, %v8419, 0
        %v8468 = vsel %vm585, %v8420, 0
        %v8469 = vsel %vm586, %v8421, 0
        %v8470 = vsel %vm584, %v8422, 0
        %v8471 = vsel %vm585, %v8423, 0
        %v8472 = vsel %vm586, %v8424, 0
        %v8473 = vsel %vm584, %v8425, 0
        %v8474 = vsel %vm585, %v8426, 0
        %v8475 = vsel %vm586, %v8427, 0
        %v8476 = vsel %vm584, %v8428, 0
        %v8477 = vsel %vm585, %v8429, 0
        %v8478 = vsel %vm586, %v8430, 0
        %v8479 = vsel %vm584, %v8431, 0
        %v8480 = vsel %vm585, %v8432, 0
        %v8481 = vsel %vm586, %v8433, 0
        %v8482 = vsel %vm584, %v8434, 0
        %v8483 = vsel %vm585, %v8435, 0
        %v8484 = vsel %vm586, %v8436, 0
        %v8485 = vsel %vm584, %v8437, 0
        %v8486 = vsel %vm585, %v8438, 0
        %v8487 = vsel %vm586, %v8439, 0
        %v8488 = vsel %vm584, %v8440, 0
        %v8489 = vsel %vm585, %v8441, 0
        %v8490 = vsel %vm586, %v8442, 0
        %v8491 = vsel %vm584, %v8443, 0
        %v8492 = vsel %vm585, %v8444, 0
        %v8493 = vsel %vm586, %v8445, 0
        %v8494 = vsel %vm584, %v8446, 0
        %v8495 = vsel %vm585, %v8447, 0
        %v8496 = vsel %vm586, %v8448, 0
        %v8497 = vsel %vm584, %v8449, 0
        %v8498 = vsel %vm585, %v8450, 0
        %v8499 = vsel %vm586, %v8451, 0
        %v8500 = vsel %vm584, %v8452, 0
        %v8501 = vsel %vm585, %v8453, 0
        %v8502 = vsel %vm586, %v8454, 0
        %v8503 = vsel %vm584, %v8455, 0
        %v8504 = vsel %vm585, %v8456, 0
        %v8505 = vsel %vm586, %v8457, 0
        %v8506 = vsel %vm584, %v8458, 0
        %v8507 = vsel %vm585, %v8459, 0
        %v8508 = vsel %vm586, %v8460, 0
        %v8509 = vsel %vm584, %v8461, 0
        %v8510 = vsel %vm585, %v8462, 0
        %v8511 = vsel %vm586, %v8463, 0
        %v8513 = vshrl.u32 %v8464, 16
        %v8515 = vrot.slane %v8513, 7
        %v8516 = vrot.slane %v8515, 4
        %v8518 = vshrl.u32 %v8465, 16
        %v8520 = vrot.slane %v8518, 7
        %v8521 = vshll.u32 %v8465, 16
        %v8523 = vor.u32 %v8520, %v8521
        %v8524 = vsel %vm637, %v8516, %v8523
        %v8525 = vrot.slane %v8520, 4
        %v8527 = vshrl.u32 %v8466, 16
        %v8529 = vrot.slane %v8527, 7
        %v8530 = vshll.u32 %v8466, 16
        %v8532 = vor.u32 %v8529, %v8530
        %v8533 = vsel %vm637, %v8525, %v8532
        %v8535 = vshrl.u32 %v8467, 16
        %v8537 = vrot.slane %v8535, 7
        %v8538 = vrot.slane %v8537, 4
        %v8540 = vshrl.u32 %v8468, 16
        %v8542 = vrot.slane %v8540, 7
        %v8543 = vshll.u32 %v8468, 16
        %v8545 = vor.u32 %v8542, %v8543
        %v8546 = vsel %vm637, %v8538, %v8545
        %v8547 = vrot.slane %v8542, 4
        %v8549 = vshrl.u32 %v8469, 16
        %v8551 = vrot.slane %v8549, 7
        %v8552 = vshll.u32 %v8469, 16
        %v8554 = vor.u32 %v8551, %v8552
        %v8555 = vsel %vm637, %v8547, %v8554
        %v8557 = vshrl.u32 %v8470, 16
        %v8559 = vrot.slane %v8557, 7
        %v8560 = vrot.slane %v8559, 4
        %v8562 = vshrl.u32 %v8471, 16
        %v8564 = vrot.slane %v8562, 7
        %v8565 = vshll.u32 %v8471, 16
        %v8567 = vor.u32 %v8564, %v8565
        %v8568 = vsel %vm637, %v8560, %v8567
        %v8569 = vrot.slane %v8564, 4
        %v8571 = vshrl.u32 %v8472, 16
        %v8573 = vrot.slane %v8571, 7
        %v8574 = vshll.u32 %v8472, 16
        %v8576 = vor.u32 %v8573, %v8574
        %v8577 = vsel %vm637, %v8569, %v8576
        %v8579 = vshrl.u32 %v8473, 16
        %v8581 = vrot.slane %v8579, 7
        %v8582 = vrot.slane %v8581, 4
        %v8584 = vshrl.u32 %v8474, 16
        %v8586 = vrot.slane %v8584, 7
        %v8587 = vshll.u32 %v8474, 16
        %v8589 = vor.u32 %v8586, %v8587
        %v8590 = vsel %vm637, %v8582, %v8589
        %v8591 = vrot.slane %v8586, 4
        %v8593 = vshrl.u32 %v8475, 16
        %v8595 = vrot.slane %v8593, 7
        %v8596 = vshll.u32 %v8475, 16
        %v8598 = vor.u32 %v8595, %v8596
        %v8599 = vsel %vm637, %v8591, %v8598
        %v8601 = vshrl.u32 %v8476, 16
        %v8603 = vrot.slane %v8601, 7
        %v8604 = vrot.slane %v8603, 4
        %v8606 = vshrl.u32 %v8477, 16
        %v8608 = vrot.slane %v8606, 7
        %v8609 = vshll.u32 %v8477, 16
        %v8611 = vor.u32 %v8608, %v8609
        %v8612 = vsel %vm637, %v8604, %v8611
        %v8613 = vrot.slane %v8608, 4
        %v8615 = vshrl.u32 %v8478, 16
        %v8617 = vrot.slane %v8615, 7
        %v8618 = vshll.u32 %v8478, 16
        %v8620 = vor.u32 %v8617, %v8618
        %v8621 = vsel %vm637, %v8613, %v8620
        %v8623 = vshrl.u32 %v8479, 16
        %v8625 = vrot.slane %v8623, 7
        %v8626 = vrot.slane %v8625, 4
        %v8628 = vshrl.u32 %v8480, 16
        %v8630 = vrot.slane %v8628, 7
        %v8631 = vshll.u32 %v8480, 16
        %v8633 = vor.u32 %v8630, %v8631
        %v8634 = vsel %vm637, %v8626, %v8633
        %v8635 = vrot.slane %v8630, 4
        %v8637 = vshrl.u32 %v8481, 16
        %v8639 = vrot.slane %v8637, 7
        %v8640 = vshll.u32 %v8481, 16
        %v8642 = vor.u32 %v8639, %v8640
        %v8643 = vsel %vm637, %v8635, %v8642
        %v8645 = vshrl.u32 %v8482, 16
        %v8647 = vrot.slane %v8645, 7
        %v8648 = vrot.slane %v8647, 4
        %v8650 = vshrl.u32 %v8483, 16
        %v8652 = vrot.slane %v8650, 7
        %v8653 = vshll.u32 %v8483, 16
        %v8655 = vor.u32 %v8652, %v8653
        %v8656 = vsel %vm637, %v8648, %v8655
        %v8657 = vrot.slane %v8652, 4
        %v8659 = vshrl.u32 %v8484, 16
        %v8661 = vrot.slane %v8659, 7
        %v8662 = vshll.u32 %v8484, 16
        %v8664 = vor.u32 %v8661, %v8662
        %v8665 = vsel %vm637, %v8657, %v8664
        %v8667 = vshrl.u32 %v8485, 16
        %v8669 = vrot.slane %v8667, 7
        %v8670 = vrot.slane %v8669, 4
        %v8672 = vshrl.u32 %v8486, 16
        %v8674 = vrot.slane %v8672, 7
        %v8675 = vshll.u32 %v8486, 16
        %v8677 = vor.u32 %v8674, %v8675
        %v8678 = vsel %vm637, %v8670, %v8677
        %v8679 = vrot.slane %v8674, 4
        %v8681 = vshrl.u32 %v8487, 16
        %v8683 = vrot.slane %v8681, 7
        %v8684 = vshll.u32 %v8487, 16
        %v8686 = vor.u32 %v8683, %v8684
        %v8687 = vsel %vm637, %v8679, %v8686
        %v8689 = vshrl.u32 %v8488, 16
        %v8691 = vrot.slane %v8689, 7
        %v8692 = vrot.slane %v8691, 4
        %v8694 = vshrl.u32 %v8489, 16
        %v8696 = vrot.slane %v8694, 7
        %v8697 = vshll.u32 %v8489, 16
        %v8699 = vor.u32 %v8696, %v8697
        %v8700 = vsel %vm637, %v8692, %v8699
        %v8701 = vrot.slane %v8696, 4
        %v8703 = vshrl.u32 %v8490, 16
        %v8705 = vrot.slane %v8703, 7
        %v8706 = vshll.u32 %v8490, 16
        %v8708 = vor.u32 %v8705, %v8706
        %v8709 = vsel %vm637, %v8701, %v8708
        %v8711 = vshrl.u32 %v8491, 16
        %v8713 = vrot.slane %v8711, 7
        %v8714 = vrot.slane %v8713, 4
        %v8716 = vshrl.u32 %v8492, 16
        %v8718 = vrot.slane %v8716, 7
        %v8719 = vshll.u32 %v8492, 16
        %v8721 = vor.u32 %v8718, %v8719
        %v8722 = vsel %vm637, %v8714, %v8721
        %v8723 = vrot.slane %v8718, 4
        %v8725 = vshrl.u32 %v8493, 16
        %v8727 = vrot.slane %v8725, 7
        %v8728 = vshll.u32 %v8493, 16
        %v8730 = vor.u32 %v8727, %v8728
        %v8731 = vsel %vm637, %v8723, %v8730
        %v8733 = vshrl.u32 %v8494, 16
        %v8735 = vrot.slane %v8733, 7
        %v8736 = vrot.slane %v8735, 4
        %v8738 = vshrl.u32 %v8495, 16
        %v8740 = vrot.slane %v8738, 7
        %v8741 = vshll.u32 %v8495, 16
        %v8743 = vor.u32 %v8740, %v8741
        %v8744 = vsel %vm637, %v8736, %v8743
        %v8745 = vrot.slane %v8740, 4
        %v8747 = vshrl.u32 %v8496, 16
        %v8749 = vrot.slane %v8747, 7
        %v8750 = vshll.u32 %v8496, 16
        %v8752 = vor.u32 %v8749, %v8750
        %v8753 = vsel %vm637, %v8745, %v8752
        %v8755 = vshrl.u32 %v8497, 16
        %v8757 = vrot.slane %v8755, 7
        %v8758 = vrot.slane %v8757, 4
        %v8760 = vshrl.u32 %v8498, 16
        %v8762 = vrot.slane %v8760, 7
        %v8763 = vshll.u32 %v8498, 16
        %v8765 = vor.u32 %v8762, %v8763
        %v8766 = vsel %vm637, %v8758, %v8765
        %v8767 = vrot.slane %v8762, 4
        %v8769 = vshrl.u32 %v8499, 16
        %v8771 = vrot.slane %v8769, 7
        %v8772 = vshll.u32 %v8499, 16
        %v8774 = vor.u32 %v8771, %v8772
        %v8775 = vsel %vm637, %v8767, %v8774
        %v8777 = vshrl.u32 %v8500, 16
        %v8779 = vrot.slane %v8777, 7
        %v8780 = vrot.slane %v8779, 4
        %v8782 = vshrl.u32 %v8501, 16
        %v8784 = vrot.slane %v8782, 7
        %v8785 = vshll.u32 %v8501, 16
        %v8787 = vor.u32 %v8784, %v8785
        %v8788 = vsel %vm637, %v8780, %v8787
        %v8789 = vrot.slane %v8784, 4
        %v8791 = vshrl.u32 %v8502, 16
        %v8793 = vrot.slane %v8791, 7
        %v8794 = vshll.u32 %v8502, 16
        %v8796 = vor.u32 %v8793, %v8794
        %v8797 = vsel %vm637, %v8789, %v8796
        %v8799 = vshrl.u32 %v8503, 16
        %v8801 = vrot.slane %v8799, 7
        %v8802 = vrot.slane %v8801, 4
        %v8804 = vshrl.u32 %v8504, 16
        %v8806 = vrot.slane %v8804, 7
        %v8807 = vshll.u32 %v8504, 16
        %v8809 = vor.u32 %v8806, %v8807
        %v8810 = vsel %vm637, %v8802, %v8809
        %v8811 = vrot.slane %v8806, 4
        %v8813 = vshrl.u32 %v8505, 16
        %v8815 = vrot.slane %v8813, 7
        %v8816 = vshll.u32 %v8505, 16
        %v8818 = vor.u32 %v8815, %v8816
        %v8819 = vsel %vm637, %v8811, %v8818
        %v8821 = vshrl.u32 %v8506, 16
        %v8823 = vrot.slane %v8821, 7
        %v8824 = vrot.slane %v8823, 4
        %v8826 = vshrl.u32 %v8507, 16
        %v8828 = vrot.slane %v8826, 7
        %v8829 = vshll.u32 %v8507, 16
        %v8831 = vor.u32 %v8828, %v8829
        %v8832 = vsel %vm637, %v8824, %v8831
        %v8833 = vrot.slane %v8828, 4
        %v8835 = vshrl.u32 %v8508, 16
        %v8837 = vrot.slane %v8835, 7
        %v8838 = vshll.u32 %v8508, 16
        %v8840 = vor.u32 %v8837, %v8838
        %v8841 = vsel %vm637, %v8833, %v8840
        %v8843 = vshrl.u32 %v8509, 16
        %v8845 = vrot.slane %v8843, 7
        %v8846 = vrot.slane %v8845, 4
        %v8848 = vshrl.u32 %v8510, 16
        %v8850 = vrot.slane %v8848, 7
        %v8851 = vshll.u32 %v8510, 16
        %v8853 = vor.u32 %v8850, %v8851
        %v8854 = vsel %vm637, %v8846, %v8853
        %v8855 = vrot.slane %v8850, 4
        %v8857 = vshrl.u32 %v8511, 16
        %v8859 = vrot.slane %v8857, 7
        %v8860 = vshll.u32 %v8511, 16
        %v8862 = vor.u32 %v8859, %v8860
        %v8863 = vsel %vm637, %v8855, %v8862
        %s8864 = scalar_lea.vmem %s2, 192
        %v8865 = vld [vmem:[%s8864] sm:$0xf]
        %v8866 = vld [vmem:[%s8864 + $0x4] sm:$0xf]
        %v8867 = vld [vmem:[%s8864 + $0x8] sm:$0xf]
        %v8868 = vld [vmem:[%s8864 + $0xc] sm:$0xf]
        %v8869 = vld [vmem:[%s8864 + $0x10] sm:$0xf]
        %v8870 = vld [vmem:[%s8864 + $0x14] sm:$0xf]
        %v8871 = vld [vmem:[%s8864 + $0x18] sm:$0xf]
        %v8872 = vld [vmem:[%s8864 + $0x1c] sm:$0xf]
        %v8873 = vld [vmem:[%s8864 + $0x20] sm:$0xf]
        %v8874 = vld [vmem:[%s8864 + $0x24] sm:$0xf]
        %v8875 = vld [vmem:[%s8864 + $0x28] sm:$0xf]
        %v8876 = vld [vmem:[%s8864 + $0x2c] sm:$0xf]
        %v8877 = vld [vmem:[%s8864 + $0x30] sm:$0xf]
        %v8878 = vld [vmem:[%s8864 + $0x34] sm:$0xf]
        %v8879 = vld [vmem:[%s8864 + $0x38] sm:$0xf]
        %v8880 = vld [vmem:[%s8864 + $0x3c] sm:$0xf]
        %v8881 = vunpack.c.l.b16 %v8524
        %v8882 = vunpack.c.l.b16 %v8533
        %v8883 = vunpack.c.l.b16 %v8546
        %v8884 = vunpack.c.l.b16 %v8555
        %v8885 = vunpack.c.l.b16 %v8568
        %v8886 = vunpack.c.l.b16 %v8577
        %v8887 = vunpack.c.l.b16 %v8590
        %v8888 = vunpack.c.l.b16 %v8599
        %v8889 = vunpack.c.l.b16 %v8612
        %v8890 = vunpack.c.l.b16 %v8621
        %v8891 = vunpack.c.l.b16 %v8634
        %v8892 = vunpack.c.l.b16 %v8643
        %v8893 = vunpack.c.l.b16 %v8656
        %v8894 = vunpack.c.l.b16 %v8665
        %v8895 = vunpack.c.l.b16 %v8678
        %v8896 = vunpack.c.l.b16 %v8687
        %v8897 = vunpack.c.l.b16 %v8700
        %v8898 = vunpack.c.l.b16 %v8709
        %v8899 = vunpack.c.l.b16 %v8722
        %v8900 = vunpack.c.l.b16 %v8731
        %v8901 = vunpack.c.l.b16 %v8744
        %v8902 = vunpack.c.l.b16 %v8753
        %v8903 = vunpack.c.l.b16 %v8766
        %v8904 = vunpack.c.l.b16 %v8775
        %v8905 = vunpack.c.l.b16 %v8788
        %v8906 = vunpack.c.l.b16 %v8797
        %v8907 = vunpack.c.l.b16 %v8810
        %v8908 = vunpack.c.l.b16 %v8819
        %v8909 = vunpack.c.l.b16 %v8832
        %v8910 = vunpack.c.l.b16 %v8841
        %v8911 = vunpack.c.l.b16 %v8854
        %v8912 = vunpack.c.l.b16 %v8863
        %v8913 = vpack.c.b16 %v8882, %v8881
        %v8914 = vpack.c.b16 %v8884, %v8883
        %v8915 = vpack.c.b16 %v8886, %v8885
        %v8916 = vpack.c.b16 %v8888, %v8887
        %v8917 = vpack.c.b16 %v8890, %v8889
        %v8918 = vpack.c.b16 %v8892, %v8891
        %v8919 = vpack.c.b16 %v8894, %v8893
        %v8920 = vpack.c.b16 %v8896, %v8895
        %v8921 = vpack.c.b16 %v8898, %v8897
        %v8922 = vpack.c.b16 %v8900, %v8899
        %v8923 = vpack.c.b16 %v8902, %v8901
        %v8924 = vpack.c.b16 %v8904, %v8903
        %v8925 = vpack.c.b16 %v8906, %v8905
        %v8926 = vpack.c.b16 %v8908, %v8907
        %v8927 = vpack.c.b16 %v8910, %v8909
        %v8928 = vpack.c.b16 %v8912, %v8911
        %v8961 = vunpack.c.l.b16 %v8865
        %v8962 = vunpack.c.l.b16 %v8866
        %v8963 = vunpack.c.l.b16 %v8867
        %v8964 = vunpack.c.l.b16 %v8868
        %v8965 = vunpack.c.l.b16 %v8869
        %v8966 = vunpack.c.l.b16 %v8870
        %v8967 = vunpack.c.l.b16 %v8871
        %v8968 = vunpack.c.l.b16 %v8872
        %v8969 = vunpack.c.l.b16 %v8873
        %v8970 = vunpack.c.l.b16 %v8874
        %v8971 = vunpack.c.l.b16 %v8875
        %v8972 = vunpack.c.l.b16 %v8876
        %v8973 = vunpack.c.l.b16 %v8877
        %v8974 = vunpack.c.l.b16 %v8878
        %v8975 = vunpack.c.l.b16 %v8879
        %v8976 = vunpack.c.l.b16 %v8880
        %v8977 = vpack.c.b16 %v8962, %v8961
        %v8978 = vpack.c.b16 %v8964, %v8963
        %v8979 = vpack.c.b16 %v8966, %v8965
        %v8980 = vpack.c.b16 %v8968, %v8967
        %v8981 = vpack.c.b16 %v8970, %v8969
        %v8982 = vpack.c.b16 %v8972, %v8971
        %v8983 = vpack.c.b16 %v8974, %v8973
        %v8984 = vpack.c.b16 %v8976, %v8975
        %8993 = vmatprep.subr.bf16.mxu0 0
        %8994 = vmatpush1.bf16.msra.mxu0 %v8984
        %8995 = vmatprep.subr.bf16.mxu0 0
        %8996 = vmatpush1.bf16.msra.mxu0 %v8983
        %8997 = vmatprep.subr.bf16.mxu0 0
        %8998 = vmatpush1.bf16.msra.mxu0 %v8982
        %8999 = vmatprep.subr.bf16.mxu0 0
        %9000 = vmatpush1.bf16.msra.mxu0 %v8981
        %9001 = vmatprep.subr.bf16.mxu0 0
        %9002 = vmatpush1.bf16.msra.mxu0 %v8980
        %9003 = vmatprep.subr.bf16.mxu0 0
        %9004 = vmatpush1.bf16.msra.mxu0 %v8979
        %9005 = vmatprep.subr.bf16.mxu0 0
        %9006 = vmatpush1.bf16.msra.mxu0 %v8978
        %9007 = vmatprep.subr.bf16.mxu0 0
        %9008 = vmatpush1.bf16.msra.mxu0 %v8977
        %9009 = vmatprep.subr.bf16.mxu0 0
        %9010 = vmatpush2.bf16.msra.mxu0 0
        %9011 = vmatprep.subr.bf16.mxu0 0
        %9012 = vmatpush2.bf16.msra.mxu0 0
        %9013 = vmatprep.subr.bf16.mxu0 0
        %9014 = vmatpush2.bf16.msra.mxu0 0
        %9015 = vmatprep.subr.bf16.mxu0 0
        %9016 = vmatpush2.bf16.msra.mxu0 0
        %9017 = vmatprep.subr.bf16.mxu0 0
        %9018 = vmatpush2.bf16.msra.mxu0 0
        %9019 = vmatprep.subr.bf16.mxu0 0
        %9020 = vmatpush2.bf16.msra.mxu0 0
        %9021 = vmatprep.subr.bf16.mxu0 0
        %9022 = vmatpush2.bf16.msra.mxu0 0
        %9023 = vmatprep.subr.bf16.mxu0 0
        %9024 = vmatpush2.bf16.msra.mxu0 0
        %9025 = vmatprep.mubr.bf16.mxu0 0
        %9026 = vmatmul.mubr.bf16.gmra.mxu0 %v8913
        %v9027 = vpop.f32.mrf.mxu0
        %v9028 = vadd.f32 0.0, %v9027
        %v9029 = vpop.f32.mrf.mxu0
        %v9030 = vpop.f32.mrf.mxu0
        %v9031 = vadd.f32 0.0, %v9030
        %v9032 = vpop.f32.mrf.mxu0
        %9033 = vmatprep.mubr.bf16.mxu0 0
        %9034 = vmatmul.mubr.bf16.gmra.mxu0 %v8914
        %v9035 = vpop.f32.mrf.mxu0
        %v9036 = vadd.f32 0.0, %v9035
        %v9037 = vpop.f32.mrf.mxu0
        %v9038 = vpop.f32.mrf.mxu0
        %v9039 = vadd.f32 0.0, %v9038
        %v9040 = vpop.f32.mrf.mxu0
        %9041 = vmatprep.mubr.bf16.mxu0 0
        %9042 = vmatmul.mubr.bf16.gmra.mxu0 %v8915
        %v9043 = vpop.f32.mrf.mxu0
        %v9044 = vadd.f32 0.0, %v9043
        %v9045 = vpop.f32.mrf.mxu0
        %v9046 = vpop.f32.mrf.mxu0
        %v9047 = vadd.f32 0.0, %v9046
        %v9048 = vpop.f32.mrf.mxu0
        %9049 = vmatprep.mubr.bf16.mxu0 0
        %9050 = vmatmul.mubr.bf16.gmra.mxu0 %v8916
        %v9051 = vpop.f32.mrf.mxu0
        %v9052 = vadd.f32 0.0, %v9051
        %v9053 = vpop.f32.mrf.mxu0
        %v9054 = vpop.f32.mrf.mxu0
        %v9055 = vadd.f32 0.0, %v9054
        %v9056 = vpop.f32.mrf.mxu0
        %9057 = vmatprep.mubr.bf16.mxu0 0
        %9058 = vmatmul.mubr.bf16.gmra.mxu0 %v8917
        %v9059 = vpop.f32.mrf.mxu0
        %v9060 = vadd.f32 0.0, %v9059
        %v9061 = vpop.f32.mrf.mxu0
        %v9062 = vpop.f32.mrf.mxu0
        %v9063 = vadd.f32 0.0, %v9062
        %v9064 = vpop.f32.mrf.mxu0
        %9065 = vmatprep.mubr.bf16.mxu0 0
        %9066 = vmatmul.mubr.bf16.gmra.mxu0 %v8918
        %v9067 = vpop.f32.mrf.mxu0
        %v9068 = vadd.f32 0.0, %v9067
        %v9069 = vpop.f32.mrf.mxu0
        %v9070 = vpop.f32.mrf.mxu0
        %v9071 = vadd.f32 0.0, %v9070
        %v9072 = vpop.f32.mrf.mxu0
        %9073 = vmatprep.mubr.bf16.mxu0 0
        %9074 = vmatmul.mubr.bf16.gmra.mxu0 %v8919
        %v9075 = vpop.f32.mrf.mxu0
        %v9076 = vadd.f32 0.0, %v9075
        %v9077 = vpop.f32.mrf.mxu0
        %v9078 = vpop.f32.mrf.mxu0
        %v9079 = vadd.f32 0.0, %v9078
        %v9080 = vpop.f32.mrf.mxu0
        %9081 = vmatprep.mubr.bf16.mxu0 0
        %9082 = vmatmul.mubr.bf16.gmra.mxu0 %v8920
        %v9083 = vpop.f32.mrf.mxu0
        %v9084 = vadd.f32 0.0, %v9083
        %v9085 = vpop.f32.mrf.mxu0
        %v9086 = vpop.f32.mrf.mxu0
        %v9087 = vadd.f32 0.0, %v9086
        %v9088 = vpop.f32.mrf.mxu0
        %9089 = vmatprep.mubr.bf16.mxu0 0
        %9090 = vmatmul.mubr.bf16.gmra.mxu0 %v8921
        %v9091 = vpop.f32.mrf.mxu0
        %v9092 = vadd.f32 0.0, %v9091
        %v9093 = vpop.f32.mrf.mxu0
        %v9094 = vpop.f32.mrf.mxu0
        %v9095 = vadd.f32 0.0, %v9094
        %v9096 = vpop.f32.mrf.mxu0
        %9097 = vmatprep.mubr.bf16.mxu0 0
        %9098 = vmatmul.mubr.bf16.gmra.mxu0 %v8922
        %v9099 = vpop.f32.mrf.mxu0
        %v9100 = vadd.f32 0.0, %v9099
        %v9101 = vpop.f32.mrf.mxu0
        %v9102 = vpop.f32.mrf.mxu0
        %v9103 = vadd.f32 0.0, %v9102
        %v9104 = vpop.f32.mrf.mxu0
        %9105 = vmatprep.mubr.bf16.mxu0 0
        %9106 = vmatmul.mubr.bf16.gmra.mxu0 %v8923
        %v9107 = vpop.f32.mrf.mxu0
        %v9108 = vadd.f32 0.0, %v9107
        %v9109 = vpop.f32.mrf.mxu0
        %v9110 = vpop.f32.mrf.mxu0
        %v9111 = vadd.f32 0.0, %v9110
        %v9112 = vpop.f32.mrf.mxu0
        %9113 = vmatprep.mubr.bf16.mxu0 0
        %9114 = vmatmul.mubr.bf16.gmra.mxu0 %v8924
        %v9115 = vpop.f32.mrf.mxu0
        %v9116 = vadd.f32 0.0, %v9115
        %v9117 = vpop.f32.mrf.mxu0
        %v9118 = vpop.f32.mrf.mxu0
        %v9119 = vadd.f32 0.0, %v9118
        %v9120 = vpop.f32.mrf.mxu0
        %9121 = vmatprep.mubr.bf16.mxu0 0
        %9122 = vmatmul.mubr.bf16.gmra.mxu0 %v8925
        %v9123 = vpop.f32.mrf.mxu0
        %v9124 = vadd.f32 0.0, %v9123
        %v9125 = vpop.f32.mrf.mxu0
        %v9126 = vpop.f32.mrf.mxu0
        %v9127 = vadd.f32 0.0, %v9126
        %v9128 = vpop.f32.mrf.mxu0
        %9129 = vmatprep.mubr.bf16.mxu0 0
        %9130 = vmatmul.mubr.bf16.gmra.mxu0 %v8926
        %v9131 = vpop.f32.mrf.mxu0
        %v9132 = vadd.f32 0.0, %v9131
        %v9133 = vpop.f32.mrf.mxu0
        %v9134 = vpop.f32.mrf.mxu0
        %v9135 = vadd.f32 0.0, %v9134
        %v9136 = vpop.f32.mrf.mxu0
        %9137 = vmatprep.mubr.bf16.mxu0 0
        %9138 = vmatmul.mubr.bf16.gmra.mxu0 %v8927
        %v9139 = vpop.f32.mrf.mxu0
        %v9140 = vadd.f32 0.0, %v9139
        %v9141 = vpop.f32.mrf.mxu0
        %v9142 = vpop.f32.mrf.mxu0
        %v9143 = vadd.f32 0.0, %v9142
        %v9144 = vpop.f32.mrf.mxu0
        %9145 = vmatprep.mubr.bf16.mxu0 0
        %9146 = vmatmul.mubr.bf16.gmra.mxu0 %v8928
        %v9147 = vpop.f32.mrf.mxu0
        %v9148 = vadd.f32 0.0, %v9147
        %v9149 = vpop.f32.mrf.mxu0
        %v9150 = vpop.f32.mrf.mxu0
        %v9151 = vadd.f32 0.0, %v9150
        %v9152 = vpop.f32.mrf.mxu0
        %9153 = vdwg.mxu0
        %v9154 = vadd.f32 %v8384, %v9028
        %v9155 = vadd.f32 %v8385, %v9031
        %v9156 = vadd.f32 %v8386, %v9036
        %v9157 = vadd.f32 %v8387, %v9039
        %v9158 = vadd.f32 %v8388, %v9044
        %v9159 = vadd.f32 %v8389, %v9047
        %v9160 = vadd.f32 %v8390, %v9052
        %v9161 = vadd.f32 %v8391, %v9055
        %v9162 = vadd.f32 %v8392, %v9060
        %v9163 = vadd.f32 %v8393, %v9063
        %v9164 = vadd.f32 %v8394, %v9068
        %v9165 = vadd.f32 %v8395, %v9071
        %v9166 = vadd.f32 %v8396, %v9076
        %v9167 = vadd.f32 %v8397, %v9079
        %v9168 = vadd.f32 %v8398, %v9084
        %v9169 = vadd.f32 %v8399, %v9087
        %v9170 = vadd.f32 %v8400, %v9092
        %v9171 = vadd.f32 %v8401, %v9095
        %v9172 = vadd.f32 %v8402, %v9100
        %v9173 = vadd.f32 %v8403, %v9103
        %v9174 = vadd.f32 %v8404, %v9108
        %v9175 = vadd.f32 %v8405, %v9111
        %v9176 = vadd.f32 %v8406, %v9116
        %v9177 = vadd.f32 %v8407, %v9119
        %v9178 = vadd.f32 %v8408, %v9124
        %v9179 = vadd.f32 %v8409, %v9127
        %v9180 = vadd.f32 %v8410, %v9132
        %v9181 = vadd.f32 %v8411, %v9135
        %v9182 = vadd.f32 %v8412, %v9140
        %v9183 = vadd.f32 %v8413, %v9143
        %v9184 = vadd.f32 %v8414, %v9148
        %v9185 = vadd.f32 %v8415, %v9151
        %s9186 = scalar_lea.vmem %s2, 256
        %v9187 = vld [vmem:[%s9186] sm:$0xf]
        %v9188 = vld [vmem:[%s9186 + $0x4] sm:$0xf]
        %v9189 = vld [vmem:[%s9186 + $0x8] sm:$0xf]
        %v9190 = vld [vmem:[%s9186 + $0xc] sm:$0xf]
        %v9191 = vld [vmem:[%s9186 + $0x10] sm:$0xf]
        %v9192 = vld [vmem:[%s9186 + $0x14] sm:$0xf]
        %v9193 = vld [vmem:[%s9186 + $0x18] sm:$0xf]
        %v9194 = vld [vmem:[%s9186 + $0x1c] sm:$0xf]
        %v9195 = vld [vmem:[%s9186 + $0x20] sm:$0xf]
        %v9196 = vld [vmem:[%s9186 + $0x24] sm:$0xf]
        %v9197 = vld [vmem:[%s9186 + $0x28] sm:$0xf]
        %v9198 = vld [vmem:[%s9186 + $0x2c] sm:$0xf]
        %v9199 = vld [vmem:[%s9186 + $0x30] sm:$0xf]
        %v9200 = vld [vmem:[%s9186 + $0x34] sm:$0xf]
        %v9201 = vld [vmem:[%s9186 + $0x38] sm:$0xf]
        %v9202 = vld [vmem:[%s9186 + $0x3c] sm:$0xf]
        %v9235 = vunpack.c.l.b16 %v8417
        %v9236 = vunpack.c.l.b16 %v8418
        %v9237 = vunpack.c.l.b16 %v8420
        %v9238 = vunpack.c.l.b16 %v8421
        %v9239 = vunpack.c.l.b16 %v8423
        %v9240 = vunpack.c.l.b16 %v8424
        %v9241 = vunpack.c.l.b16 %v8426
        %v9242 = vunpack.c.l.b16 %v8427
        %v9243 = vunpack.c.l.b16 %v8429
        %v9244 = vunpack.c.l.b16 %v8430
        %v9245 = vunpack.c.l.b16 %v8432
        %v9246 = vunpack.c.l.b16 %v8433
        %v9247 = vunpack.c.l.b16 %v8435
        %v9248 = vunpack.c.l.b16 %v8436
        %v9249 = vunpack.c.l.b16 %v8438
        %v9250 = vunpack.c.l.b16 %v8439
        %v9251 = vunpack.c.l.b16 %v8441
        %v9252 = vunpack.c.l.b16 %v8442
        %v9253 = vunpack.c.l.b16 %v8444
        %v9254 = vunpack.c.l.b16 %v8445
        %v9255 = vunpack.c.l.b16 %v8447
        %v9256 = vunpack.c.l.b16 %v8448
        %v9257 = vunpack.c.l.b16 %v8450
        %v9258 = vunpack.c.l.b16 %v8451
        %v9259 = vunpack.c.l.b16 %v8453
        %v9260 = vunpack.c.l.b16 %v8454
        %v9261 = vunpack.c.l.b16 %v8456
        %v9262 = vunpack.c.l.b16 %v8457
        %v9263 = vunpack.c.l.b16 %v8459
        %v9264 = vunpack.c.l.b16 %v8460
        %v9265 = vunpack.c.l.b16 %v8462
        %v9266 = vunpack.c.l.b16 %v8463
        %v9267 = vpack.c.b16 %v9236, %v9235
        %v9268 = vpack.c.b16 %v9238, %v9237
        %v9269 = vpack.c.b16 %v9240, %v9239
        %v9270 = vpack.c.b16 %v9242, %v9241
        %v9271 = vpack.c.b16 %v9244, %v9243
        %v9272 = vpack.c.b16 %v9246, %v9245
        %v9273 = vpack.c.b16 %v9248, %v9247
        %v9274 = vpack.c.b16 %v9250, %v9249
        %v9275 = vpack.c.b16 %v9252, %v9251
        %v9276 = vpack.c.b16 %v9254, %v9253
        %v9277 = vpack.c.b16 %v9256, %v9255
        %v9278 = vpack.c.b16 %v9258, %v9257
        %v9279 = vpack.c.b16 %v9260, %v9259
        %v9280 = vpack.c.b16 %v9262, %v9261
        %v9281 = vpack.c.b16 %v9264, %v9263
        %v9282 = vpack.c.b16 %v9266, %v9265
        %v9315 = vunpack.c.l.b16 %v9187
        %v9316 = vunpack.c.l.b16 %v9188
        %v9317 = vunpack.c.l.b16 %v9189
        %v9318 = vunpack.c.l.b16 %v9190
        %v9319 = vunpack.c.l.b16 %v9191
        %v9320 = vunpack.c.l.b16 %v9192
        %v9321 = vunpack.c.l.b16 %v9193
        %v9322 = vunpack.c.l.b16 %v9194
        %v9323 = vunpack.c.l.b16 %v9195
        %v9324 = vunpack.c.l.b16 %v9196
        %v9325 = vunpack.c.l.b16 %v9197
        %v9326 = vunpack.c.l.b16 %v9198
        %v9327 = vunpack.c.l.b16 %v9199
        %v9328 = vunpack.c.l.b16 %v9200
        %v9329 = vunpack.c.l.b16 %v9201
        %v9330 = vunpack.c.l.b16 %v9202
        %v9331 = vpack.c.b16 %v9316, %v9315
        %v9332 = vpack.c.b16 %v9318, %v9317
        %v9333 = vpack.c.b16 %v9320, %v9319
        %v9334 = vpack.c.b16 %v9322, %v9321
        %v9335 = vpack.c.b16 %v9324, %v9323
        %v9336 = vpack.c.b16 %v9326, %v9325
        %v9337 = vpack.c.b16 %v9328, %v9327
        %v9338 = vpack.c.b16 %v9330, %v9329
        %9347 = vmatprep.subr.bf16.mxu0 0
        %9348 = vmatpush1.bf16.msra.mxu0 %v9338
        %9349 = vmatprep.subr.bf16.mxu0 0
        %9350 = vmatpush1.bf16.msra.mxu0 %v9337
        %9351 = vmatprep.subr.bf16.mxu0 0
        %9352 = vmatpush1.bf16.msra.mxu0 %v9336
        %9353 = vmatprep.subr.bf16.mxu0 0
        %9354 = vmatpush1.bf16.msra.mxu0 %v9335
        %9355 = vmatprep.subr.bf16.mxu0 0
        %9356 = vmatpush1.bf16.msra.mxu0 %v9334
        %9357 = vmatprep.subr.bf16.mxu0 0
        %9358 = vmatpush1.bf16.msra.mxu0 %v9333
        %9359 = vmatprep.subr.bf16.mxu0 0
        %9360 = vmatpush1.bf16.msra.mxu0 %v9332
        %9361 = vmatprep.subr.bf16.mxu0 0
        %9362 = vmatpush1.bf16.msra.mxu0 %v9331
        %9363 = vmatprep.subr.bf16.mxu0 0
        %9364 = vmatpush2.bf16.msra.mxu0 0
        %9365 = vmatprep.subr.bf16.mxu0 0
        %9366 = vmatpush2.bf16.msra.mxu0 0
        %9367 = vmatprep.subr.bf16.mxu0 0
        %9368 = vmatpush2.bf16.msra.mxu0 0
        %9369 = vmatprep.subr.bf16.mxu0 0
        %9370 = vmatpush2.bf16.msra.mxu0 0
        %9371 = vmatprep.subr.bf16.mxu0 0
        %9372 = vmatpush2.bf16.msra.mxu0 0
        %9373 = vmatprep.subr.bf16.mxu0 0
        %9374 = vmatpush2.bf16.msra.mxu0 0
        %9375 = vmatprep.subr.bf16.mxu0 0
        %9376 = vmatpush2.bf16.msra.mxu0 0
        %9377 = vmatprep.subr.bf16.mxu0 0
        %9378 = vmatpush2.bf16.msra.mxu0 0
        %9379 = vmatprep.mubr.bf16.mxu0 0
        %9380 = vmatmul.mubr.bf16.gmra.mxu0 %v9267
        %v9381 = vpop.f32.mrf.mxu0
        %v9382 = vadd.f32 0.0, %v9381
        %v9383 = vpop.f32.mrf.mxu0
        %v9384 = vpop.f32.mrf.mxu0
        %v9385 = vadd.f32 0.0, %v9384
        %v9386 = vpop.f32.mrf.mxu0
        %9387 = vmatprep.mubr.bf16.mxu0 0
        %9388 = vmatmul.mubr.bf16.gmra.mxu0 %v9268
        %v9389 = vpop.f32.mrf.mxu0
        %v9390 = vadd.f32 0.0, %v9389
        %v9391 = vpop.f32.mrf.mxu0
        %v9392 = vpop.f32.mrf.mxu0
        %v9393 = vadd.f32 0.0, %v9392
        %v9394 = vpop.f32.mrf.mxu0
        %9395 = vmatprep.mubr.bf16.mxu0 0
        %9396 = vmatmul.mubr.bf16.gmra.mxu0 %v9269
        %v9397 = vpop.f32.mrf.mxu0
        %v9398 = vadd.f32 0.0, %v9397
        %v9399 = vpop.f32.mrf.mxu0
        %v9400 = vpop.f32.mrf.mxu0
        %v9401 = vadd.f32 0.0, %v9400
        %v9402 = vpop.f32.mrf.mxu0
        %9403 = vmatprep.mubr.bf16.mxu0 0
        %9404 = vmatmul.mubr.bf16.gmra.mxu0 %v9270
        %v9405 = vpop.f32.mrf.mxu0
        %v9406 = vadd.f32 0.0, %v9405
        %v9407 = vpop.f32.mrf.mxu0
        %v9408 = vpop.f32.mrf.mxu0
        %v9409 = vadd.f32 0.0, %v9408
        %v9410 = vpop.f32.mrf.mxu0
        %9411 = vmatprep.mubr.bf16.mxu0 0
        %9412 = vmatmul.mubr.bf16.gmra.mxu0 %v9271
        %v9413 = vpop.f32.mrf.mxu0
        %v9414 = vadd.f32 0.0, %v9413
        %v9415 = vpop.f32.mrf.mxu0
        %v9416 = vpop.f32.mrf.mxu0
        %v9417 = vadd.f32 0.0, %v9416
        %v9418 = vpop.f32.mrf.mxu0
        %9419 = vmatprep.mubr.bf16.mxu0 0
        %9420 = vmatmul.mubr.bf16.gmra.mxu0 %v9272
        %v9421 = vpop.f32.mrf.mxu0
        %v9422 = vadd.f32 0.0, %v9421
        %v9423 = vpop.f32.mrf.mxu0
        %v9424 = vpop.f32.mrf.mxu0
        %v9425 = vadd.f32 0.0, %v9424
        %v9426 = vpop.f32.mrf.mxu0
        %9427 = vmatprep.mubr.bf16.mxu0 0
        %9428 = vmatmul.mubr.bf16.gmra.mxu0 %v9273
        %v9429 = vpop.f32.mrf.mxu0
        %v9430 = vadd.f32 0.0, %v9429
        %v9431 = vpop.f32.mrf.mxu0
        %v9432 = vpop.f32.mrf.mxu0
        %v9433 = vadd.f32 0.0, %v9432
        %v9434 = vpop.f32.mrf.mxu0
        %9435 = vmatprep.mubr.bf16.mxu0 0
        %9436 = vmatmul.mubr.bf16.gmra.mxu0 %v9274
        %v9437 = vpop.f32.mrf.mxu0
        %v9438 = vadd.f32 0.0, %v9437
        %v9439 = vpop.f32.mrf.mxu0
        %v9440 = vpop.f32.mrf.mxu0
        %v9441 = vadd.f32 0.0, %v9440
        %v9442 = vpop.f32.mrf.mxu0
        %9443 = vmatprep.mubr.bf16.mxu0 0
        %9444 = vmatmul.mubr.bf16.gmra.mxu0 %v9275
        %v9445 = vpop.f32.mrf.mxu0
        %v9446 = vadd.f32 0.0, %v9445
        %v9447 = vpop.f32.mrf.mxu0
        %v9448 = vpop.f32.mrf.mxu0
        %v9449 = vadd.f32 0.0, %v9448
        %v9450 = vpop.f32.mrf.mxu0
        %9451 = vmatprep.mubr.bf16.mxu0 0
        %9452 = vmatmul.mubr.bf16.gmra.mxu0 %v9276
        %v9453 = vpop.f32.mrf.mxu0
        %v9454 = vadd.f32 0.0, %v9453
        %v9455 = vpop.f32.mrf.mxu0
        %v9456 = vpop.f32.mrf.mxu0
        %v9457 = vadd.f32 0.0, %v9456
        %v9458 = vpop.f32.mrf.mxu0
        %9459 = vmatprep.mubr.bf16.mxu0 0
        %9460 = vmatmul.mubr.bf16.gmra.mxu0 %v9277
        %v9461 = vpop.f32.mrf.mxu0
        %v9462 = vadd.f32 0.0, %v9461
        %v9463 = vpop.f32.mrf.mxu0
        %v9464 = vpop.f32.mrf.mxu0
        %v9465 = vadd.f32 0.0, %v9464
        %v9466 = vpop.f32.mrf.mxu0
        %9467 = vmatprep.mubr.bf16.mxu0 0
        %9468 = vmatmul.mubr.bf16.gmra.mxu0 %v9278
        %v9469 = vpop.f32.mrf.mxu0
        %v9470 = vadd.f32 0.0, %v9469
        %v9471 = vpop.f32.mrf.mxu0
        %v9472 = vpop.f32.mrf.mxu0
        %v9473 = vadd.f32 0.0, %v9472
        %v9474 = vpop.f32.mrf.mxu0
        %9475 = vmatprep.mubr.bf16.mxu0 0
        %9476 = vmatmul.mubr.bf16.gmra.mxu0 %v9279
        %v9477 = vpop.f32.mrf.mxu0
        %v9478 = vadd.f32 0.0, %v9477
        %v9479 = vpop.f32.mrf.mxu0
        %v9480 = vpop.f32.mrf.mxu0
        %v9481 = vadd.f32 0.0, %v9480
        %v9482 = vpop.f32.mrf.mxu0
        %9483 = vmatprep.mubr.bf16.mxu0 0
        %9484 = vmatmul.mubr.bf16.gmra.mxu0 %v9280
        %v9485 = vpop.f32.mrf.mxu0
        %v9486 = vadd.f32 0.0, %v9485
        %v9487 = vpop.f32.mrf.mxu0
        %v9488 = vpop.f32.mrf.mxu0
        %v9489 = vadd.f32 0.0, %v9488
        %v9490 = vpop.f32.mrf.mxu0
        %9491 = vmatprep.mubr.bf16.mxu0 0
        %9492 = vmatmul.mubr.bf16.gmra.mxu0 %v9281
        %v9493 = vpop.f32.mrf.mxu0
        %v9494 = vadd.f32 0.0, %v9493
        %v9495 = vpop.f32.mrf.mxu0
        %v9496 = vpop.f32.mrf.mxu0
        %v9497 = vadd.f32 0.0, %v9496
        %v9498 = vpop.f32.mrf.mxu0
        %9499 = vmatprep.mubr.bf16.mxu0 0
        %9500 = vmatmul.mubr.bf16.gmra.mxu0 %v9282
        %v9501 = vpop.f32.mrf.mxu0
        %v9502 = vadd.f32 0.0, %v9501
        %v9503 = vpop.f32.mrf.mxu0
        %v9504 = vpop.f32.mrf.mxu0
        %v9505 = vadd.f32 0.0, %v9504
        %v9506 = vpop.f32.mrf.mxu0
        %9507 = vdwg.mxu0
        %v9508 = vadd.f32 %v9154, %v9382
        %v9509 = vadd.f32 %v9155, %v9385
        %v9510 = vadd.f32 %v9156, %v9390
        %v9511 = vadd.f32 %v9157, %v9393
        %v9512 = vadd.f32 %v9158, %v9398
        %v9513 = vadd.f32 %v9159, %v9401
        %v9514 = vadd.f32 %v9160, %v9406
        %v9515 = vadd.f32 %v9161, %v9409
        %v9516 = vadd.f32 %v9162, %v9414
        %v9517 = vadd.f32 %v9163, %v9417
        %v9518 = vadd.f32 %v9164, %v9422
        %v9519 = vadd.f32 %v9165, %v9425
        %v9520 = vadd.f32 %v9166, %v9430
        %v9521 = vadd.f32 %v9167, %v9433
        %v9522 = vadd.f32 %v9168, %v9438
        %v9523 = vadd.f32 %v9169, %v9441
        %v9524 = vadd.f32 %v9170, %v9446
        %v9525 = vadd.f32 %v9171, %v9449
        %v9526 = vadd.f32 %v9172, %v9454
        %v9527 = vadd.f32 %v9173, %v9457
        %v9528 = vadd.f32 %v9174, %v9462
        %v9529 = vadd.f32 %v9175, %v9465
        %v9530 = vadd.f32 %v9176, %v9470
        %v9531 = vadd.f32 %v9177, %v9473
        %v9532 = vadd.f32 %v9178, %v9478
        %v9533 = vadd.f32 %v9179, %v9481
        %v9534 = vadd.f32 %v9180, %v9486
        %v9535 = vadd.f32 %v9181, %v9489
        %v9536 = vadd.f32 %v9182, %v9494
        %v9537 = vadd.f32 %v9183, %v9497
        %v9538 = vadd.f32 %v9184, %v9502
        %v9539 = vadd.f32 %v9185, %v9505
        %v9540 = vld [vmem:[%s6522 + $0x8] sm:$0xf]
        %v9541 = vld [vmem:[%s6522 + $0xc] sm:$0xf]
        %v9542 = vld [vmem:[%s6522 + $0x10] sm:$0x1]
        %v9543 = vld [vmem:[%s6522 + $0x20] sm:$0xf]
        %v9544 = vld [vmem:[%s6522 + $0x24] sm:$0xf]
        %v9545 = vld [vmem:[%s6522 + $0x28] sm:$0x1]
        %v9546 = vld [vmem:[%s6522 + $0x38] sm:$0xf]
        %v9547 = vld [vmem:[%s6522 + $0x3c] sm:$0xf]
        %v9548 = vld [vmem:[%s6522 + $0x40] sm:$0x1]
        %v9549 = vld [vmem:[%s6522 + $0x50] sm:$0xf]
        %v9550 = vld [vmem:[%s6522 + $0x54] sm:$0xf]
        %v9551 = vld [vmem:[%s6522 + $0x58] sm:$0x1]
        %v9552 = vld [vmem:[%s6522 + $0x68] sm:$0xf]
        %v9553 = vld [vmem:[%s6522 + $0x6c] sm:$0xf]
        %v9554 = vld [vmem:[%s6522 + $0x70] sm:$0x1]
        %v9555 = vld [vmem:[%s6522 + $0x80] sm:$0xf]
        %v9556 = vld [vmem:[%s6522 + $0x84] sm:$0xf]
        %v9557 = vld [vmem:[%s6522 + $0x88] sm:$0x1]
        %v9558 = vld [vmem:[%s6522 + $0x98] sm:$0xf]
        %v9559 = vld [vmem:[%s6522 + $0x9c] sm:$0xf]
        %v9560 = vld [vmem:[%s6522 + $0xa0] sm:$0x1]
        %v9561 = vld [vmem:[%s6522 + $0xb0] sm:$0xf]
        %v9562 = vld [vmem:[%s6522 + $0xb4] sm:$0xf]
        %v9563 = vld [vmem:[%s6522 + $0xb8] sm:$0x1]
        %v9564 = vld [vmem:[%s6522 + $0xc8] sm:$0xf]
        %v9565 = vld [vmem:[%s6522 + $0xcc] sm:$0xf]
        %v9566 = vld [vmem:[%s6522 + $0xd0] sm:$0x1]
        %v9567 = vld [vmem:[%s6522 + $0xe0] sm:$0xf]
        %v9568 = vld [vmem:[%s6522 + $0xe4] sm:$0xf]
        %v9569 = vld [vmem:[%s6522 + $0xe8] sm:$0x1]
        %v9570 = vld [vmem:[%s6522 + $0xf8] sm:$0xf]
        %v9571 = vld [vmem:[%s6522 + $0xfc] sm:$0xf]
        %v9572 = vld [vmem:[%s6522 + $0x100] sm:$0x1]
        %v9573 = vld [vmem:[%s6522 + $0x110] sm:$0xf]
        %v9574 = vld [vmem:[%s6522 + $0x114] sm:$0xf]
        %v9575 = vld [vmem:[%s6522 + $0x118] sm:$0x1]
        %v9576 = vld [vmem:[%s6522 + $0x128] sm:$0xf]
        %v9577 = vld [vmem:[%s6522 + $0x12c] sm:$0xf]
        %v9578 = vld [vmem:[%s6522 + $0x130] sm:$0x1]
        %v9579 = vld [vmem:[%s6522 + $0x140] sm:$0xf]
        %v9580 = vld [vmem:[%s6522 + $0x144] sm:$0xf]
        %v9581 = vld [vmem:[%s6522 + $0x148] sm:$0x1]
        %v9582 = vld [vmem:[%s6522 + $0x158] sm:$0xf]
        %v9583 = vld [vmem:[%s6522 + $0x15c] sm:$0xf]
        %v9584 = vld [vmem:[%s6522 + $0x160] sm:$0x1]
        %v9585 = vld [vmem:[%s6522 + $0x170] sm:$0xf]
        %v9586 = vld [vmem:[%s6522 + $0x174] sm:$0xf]
        %v9587 = vld [vmem:[%s6522 + $0x178] sm:$0x1]
        %v9588 = vsel %vm1674, %v9540, 0
        %v9589 = vsel %vm1675, %v9541, 0
        %v9590 = vsel %vm1676, %v9542, 0
        %v9591 = vsel %vm1674, %v9543, 0
        %v9592 = vsel %vm1675, %v9544, 0
        %v9593 = vsel %vm1676, %v9545, 0
        %v9594 = vsel %vm1674, %v9546, 0
        %v9595 = vsel %vm1675, %v9547, 0
        %v9596 = vsel %vm1676, %v9548, 0
        %v9597 = vsel %vm1674, %v9549, 0
        %v9598 = vsel %vm1675, %v9550, 0
        %v9599 = vsel %vm1676, %v9551, 0
        %v9600 = vsel %vm1674, %v9552, 0
        %v9601 = vsel %vm1675, %v9553, 0
        %v9602 = vsel %vm1676, %v9554, 0
        %v9603 = vsel %vm1674, %v9555, 0
        %v9604 = vsel %vm1675, %v9556, 0
        %v9605 = vsel %vm1676, %v9557, 0
        %v9606 = vsel %vm1674, %v9558, 0
        %v9607 = vsel %vm1675, %v9559, 0
        %v9608 = vsel %vm1676, %v9560, 0
        %v9609 = vsel %vm1674, %v9561, 0
        %v9610 = vsel %vm1675, %v9562, 0
        %v9611 = vsel %vm1676, %v9563, 0
        %v9612 = vsel %vm1674, %v9564, 0
        %v9613 = vsel %vm1675, %v9565, 0
        %v9614 = vsel %vm1676, %v9566, 0
        %v9615 = vsel %vm1674, %v9567, 0
        %v9616 = vsel %vm1675, %v9568, 0
        %v9617 = vsel %vm1676, %v9569, 0
        %v9618 = vsel %vm1674, %v9570, 0
        %v9619 = vsel %vm1675, %v9571, 0
        %v9620 = vsel %vm1676, %v9572, 0
        %v9621 = vsel %vm1674, %v9573, 0
        %v9622 = vsel %vm1675, %v9574, 0
        %v9623 = vsel %vm1676, %v9575, 0
        %v9624 = vsel %vm1674, %v9576, 0
        %v9625 = vsel %vm1675, %v9577, 0
        %v9626 = vsel %vm1676, %v9578, 0
        %v9627 = vsel %vm1674, %v9579, 0
        %v9628 = vsel %vm1675, %v9580, 0
        %v9629 = vsel %vm1676, %v9581, 0
        %v9630 = vsel %vm1674, %v9582, 0
        %v9631 = vsel %vm1675, %v9583, 0
        %v9632 = vsel %vm1676, %v9584, 0
        %v9633 = vsel %vm1674, %v9585, 0
        %v9634 = vsel %vm1675, %v9586, 0
        %v9635 = vsel %vm1676, %v9587, 0
        %v9637 = vshrl.u32 %v9588, 16
        %v9639 = vrot.slane %v9637, 4
        %v9640 = vshll.u32 %v9588, 16
        %v9642 = vrot.slane %v9640, 5
        %v9643 = vor.u32 %v9639, %v9642
        %v9644 = vrot.slane %v9643, 4
        %v9646 = vshll.u32 %v9589, 16
        %v9648 = vrot.slane %v9646, 5
        %v9649 = vsel %vm564, %v9644, %v9648
        %v9650 = vshrl.u32 %v9589, 16
        %v9652 = vrot.slane %v9650, 4
        %v9653 = vor.u32 %v9652, %v9648
        %v9654 = vrot.slane %v9653, 4
        %v9656 = vshll.u32 %v9590, 16
        %v9658 = vrot.slane %v9656, 5
        %v9659 = vsel %vm564, %v9654, %v9658
        %v9661 = vshrl.u32 %v9591, 16
        %v9663 = vrot.slane %v9661, 4
        %v9664 = vshll.u32 %v9591, 16
        %v9666 = vrot.slane %v9664, 5
        %v9667 = vor.u32 %v9663, %v9666
        %v9668 = vrot.slane %v9667, 4
        %v9670 = vshll.u32 %v9592, 16
        %v9672 = vrot.slane %v9670, 5
        %v9673 = vsel %vm564, %v9668, %v9672
        %v9674 = vshrl.u32 %v9592, 16
        %v9676 = vrot.slane %v9674, 4
        %v9677 = vor.u32 %v9676, %v9672
        %v9678 = vrot.slane %v9677, 4
        %v9680 = vshll.u32 %v9593, 16
        %v9682 = vrot.slane %v9680, 5
        %v9683 = vsel %vm564, %v9678, %v9682
        %v9685 = vshrl.u32 %v9594, 16
        %v9687 = vrot.slane %v9685, 4
        %v9688 = vshll.u32 %v9594, 16
        %v9690 = vrot.slane %v9688, 5
        %v9691 = vor.u32 %v9687, %v9690
        %v9692 = vrot.slane %v9691, 4
        %v9694 = vshll.u32 %v9595, 16
        %v9696 = vrot.slane %v9694, 5
        %v9697 = vsel %vm564, %v9692, %v9696
        %v9698 = vshrl.u32 %v9595, 16
        %v9700 = vrot.slane %v9698, 4
        %v9701 = vor.u32 %v9700, %v9696
        %v9702 = vrot.slane %v9701, 4
        %v9704 = vshll.u32 %v9596, 16
        %v9706 = vrot.slane %v9704, 5
        %v9707 = vsel %vm564, %v9702, %v9706
        %v9709 = vshrl.u32 %v9597, 16
        %v9711 = vrot.slane %v9709, 4
        %v9712 = vshll.u32 %v9597, 16
        %v9714 = vrot.slane %v9712, 5
        %v9715 = vor.u32 %v9711, %v9714
        %v9716 = vrot.slane %v9715, 4
        %v9718 = vshll.u32 %v9598, 16
        %v9720 = vrot.slane %v9718, 5
        %v9721 = vsel %vm564, %v9716, %v9720
        %v9722 = vshrl.u32 %v9598, 16
        %v9724 = vrot.slane %v9722, 4
        %v9725 = vor.u32 %v9724, %v9720
        %v9726 = vrot.slane %v9725, 4
        %v9728 = vshll.u32 %v9599, 16
        %v9730 = vrot.slane %v9728, 5
        %v9731 = vsel %vm564, %v9726, %v9730
        %v9733 = vshrl.u32 %v9600, 16
        %v9735 = vrot.slane %v9733, 4
        %v9736 = vshll.u32 %v9600, 16
        %v9738 = vrot.slane %v9736, 5
        %v9739 = vor.u32 %v9735, %v9738
        %v9740 = vrot.slane %v9739, 4
        %v9742 = vshll.u32 %v9601, 16
        %v9744 = vrot.slane %v9742, 5
        %v9745 = vsel %vm564, %v9740, %v9744
        %v9746 = vshrl.u32 %v9601, 16
        %v9748 = vrot.slane %v9746, 4
        %v9749 = vor.u32 %v9748, %v9744
        %v9750 = vrot.slane %v9749, 4
        %v9752 = vshll.u32 %v9602, 16
        %v9754 = vrot.slane %v9752, 5
        %v9755 = vsel %vm564, %v9750, %v9754
        %v9757 = vshrl.u32 %v9603, 16
        %v9759 = vrot.slane %v9757, 4
        %v9760 = vshll.u32 %v9603, 16
        %v9762 = vrot.slane %v9760, 5
        %v9763 = vor.u32 %v9759, %v9762
        %v9764 = vrot.slane %v9763, 4
        %v9766 = vshll.u32 %v9604, 16
        %v9768 = vrot.slane %v9766, 5
        %v9769 = vsel %vm564, %v9764, %v9768
        %v9770 = vshrl.u32 %v9604, 16
        %v9772 = vrot.slane %v9770, 4
        %v9773 = vor.u32 %v9772, %v9768
        %v9774 = vrot.slane %v9773, 4
        %v9776 = vshll.u32 %v9605, 16
        %v9778 = vrot.slane %v9776, 5
        %v9779 = vsel %vm564, %v9774, %v9778
        %v9781 = vshrl.u32 %v9606, 16
        %v9783 = vrot.slane %v9781, 4
        %v9784 = vshll.u32 %v9606, 16
        %v9786 = vrot.slane %v9784, 5
        %v9787 = vor.u32 %v9783, %v9786
        %v9788 = vrot.slane %v9787, 4
        %v9790 = vshll.u32 %v9607, 16
        %v9792 = vrot.slane %v9790, 5
        %v9793 = vsel %vm564, %v9788, %v9792
        %v9794 = vshrl.u32 %v9607, 16
        %v9796 = vrot.slane %v9794, 4
        %v9797 = vor.u32 %v9796, %v9792
        %v9798 = vrot.slane %v9797, 4
        %v9800 = vshll.u32 %v9608, 16
        %v9802 = vrot.slane %v9800, 5
        %v9803 = vsel %vm564, %v9798, %v9802
        %v9805 = vshrl.u32 %v9609, 16
        %v9807 = vrot.slane %v9805, 4
        %v9808 = vshll.u32 %v9609, 16
        %v9810 = vrot.slane %v9808, 5
        %v9811 = vor.u32 %v9807, %v9810
        %v9812 = vrot.slane %v9811, 4
        %v9814 = vshll.u32 %v9610, 16
        %v9816 = vrot.slane %v9814, 5
        %v9817 = vsel %vm564, %v9812, %v9816
        %v9818 = vshrl.u32 %v9610, 16
        %v9820 = vrot.slane %v9818, 4
        %v9821 = vor.u32 %v9820, %v9816
        %v9822 = vrot.slane %v9821, 4
        %v9824 = vshll.u32 %v9611, 16
        %v9826 = vrot.slane %v9824, 5
        %v9827 = vsel %vm564, %v9822, %v9826
        %v9829 = vshrl.u32 %v9612, 16
        %v9831 = vrot.slane %v9829, 4
        %v9832 = vshll.u32 %v9612, 16
        %v9834 = vrot.slane %v9832, 5
        %v9835 = vor.u32 %v9831, %v9834
        %v9836 = vrot.slane %v9835, 4
        %v9838 = vshll.u32 %v9613, 16
        %v9840 = vrot.slane %v9838, 5
        %v9841 = vsel %vm564, %v9836, %v9840
        %v9842 = vshrl.u32 %v9613, 16
        %v9844 = vrot.slane %v9842, 4
        %v9845 = vor.u32 %v9844, %v9840
        %v9846 = vrot.slane %v9845, 4
        %v9848 = vshll.u32 %v9614, 16
        %v9850 = vrot.slane %v9848, 5
        %v9851 = vsel %vm564, %v9846, %v9850
        %v9853 = vshrl.u32 %v9615, 16
        %v9855 = vrot.slane %v9853, 4
        %v9856 = vshll.u32 %v9615, 16
        %v9858 = vrot.slane %v9856, 5
        %v9859 = vor.u32 %v9855, %v9858
        %v9860 = vrot.slane %v9859, 4
        %v9862 = vshll.u32 %v9616, 16
        %v9864 = vrot.slane %v9862, 5
        %v9865 = vsel %vm564, %v9860, %v9864
        %v9866 = vshrl.u32 %v9616, 16
        %v9868 = vrot.slane %v9866, 4
        %v9869 = vor.u32 %v9868, %v9864
        %v9870 = vrot.slane %v9869, 4
        %v9872 = vshll.u32 %v9617, 16
        %v9874 = vrot.slane %v9872, 5
        %v9875 = vsel %vm564, %v9870, %v9874
        %v9877 = vshrl.u32 %v9618, 16
        %v9879 = vrot.slane %v9877, 4
        %v9880 = vshll.u32 %v9618, 16
        %v9882 = vrot.slane %v9880, 5
        %v9883 = vor.u32 %v9879, %v9882
        %v9884 = vrot.slane %v9883, 4
        %v9886 = vshll.u32 %v9619, 16
        %v9888 = vrot.slane %v9886, 5
        %v9889 = vsel %vm564, %v9884, %v9888
        %v9890 = vshrl.u32 %v9619, 16
        %v9892 = vrot.slane %v9890, 4
        %v9893 = vor.u32 %v9892, %v9888
        %v9894 = vrot.slane %v9893, 4
        %v9896 = vshll.u32 %v9620, 16
        %v9898 = vrot.slane %v9896, 5
        %v9899 = vsel %vm564, %v9894, %v9898
        %v9901 = vshrl.u32 %v9621, 16
        %v9903 = vrot.slane %v9901, 4
        %v9904 = vshll.u32 %v9621, 16
        %v9906 = vrot.slane %v9904, 5
        %v9907 = vor.u32 %v9903, %v9906
        %v9908 = vrot.slane %v9907, 4
        %v9910 = vshll.u32 %v9622, 16
        %v9912 = vrot.slane %v9910, 5
        %v9913 = vsel %vm564, %v9908, %v9912
        %v9914 = vshrl.u32 %v9622, 16
        %v9916 = vrot.slane %v9914, 4
        %v9917 = vor.u32 %v9916, %v9912
        %v9918 = vrot.slane %v9917, 4
        %v9920 = vshll.u32 %v9623, 16
        %v9922 = vrot.slane %v9920, 5
        %v9923 = vsel %vm564, %v9918, %v9922
        %v9925 = vshrl.u32 %v9624, 16
        %v9927 = vrot.slane %v9925, 4
        %v9928 = vshll.u32 %v9624, 16
        %v9930 = vrot.slane %v9928, 5
        %v9931 = vor.u32 %v9927, %v9930
        %v9932 = vrot.slane %v9931, 4
        %v9934 = vshll.u32 %v9625, 16
        %v9936 = vrot.slane %v9934, 5
        %v9937 = vsel %vm564, %v9932, %v9936
        %v9938 = vshrl.u32 %v9625, 16
        %v9940 = vrot.slane %v9938, 4
        %v9941 = vor.u32 %v9940, %v9936
        %v9942 = vrot.slane %v9941, 4
        %v9944 = vshll.u32 %v9626, 16
        %v9946 = vrot.slane %v9944, 5
        %v9947 = vsel %vm564, %v9942, %v9946
        %v9949 = vshrl.u32 %v9627, 16
        %v9951 = vrot.slane %v9949, 4
        %v9952 = vshll.u32 %v9627, 16
        %v9954 = vrot.slane %v9952, 5
        %v9955 = vor.u32 %v9951, %v9954
        %v9956 = vrot.slane %v9955, 4
        %v9958 = vshll.u32 %v9628, 16
        %v9960 = vrot.slane %v9958, 5
        %v9961 = vsel %vm564, %v9956, %v9960
        %v9962 = vshrl.u32 %v9628, 16
        %v9964 = vrot.slane %v9962, 4
        %v9965 = vor.u32 %v9964, %v9960
        %v9966 = vrot.slane %v9965, 4
        %v9968 = vshll.u32 %v9629, 16
        %v9970 = vrot.slane %v9968, 5
        %v9971 = vsel %vm564, %v9966, %v9970
        %v9973 = vshrl.u32 %v9630, 16
        %v9975 = vrot.slane %v9973, 4
        %v9976 = vshll.u32 %v9630, 16
        %v9978 = vrot.slane %v9976, 5
        %v9979 = vor.u32 %v9975, %v9978
        %v9980 = vrot.slane %v9979, 4
        %v9982 = vshll.u32 %v9631, 16
        %v9984 = vrot.slane %v9982, 5
        %v9985 = vsel %vm564, %v9980, %v9984
        %v9986 = vshrl.u32 %v9631, 16
        %v9988 = vrot.slane %v9986, 4
        %v9989 = vor.u32 %v9988, %v9984
        %v9990 = vrot.slane %v9989, 4
        %v9992 = vshll.u32 %v9632, 16
        %v9994 = vrot.slane %v9992, 5
        %v9995 = vsel %vm564, %v9990, %v9994
        %v9997 = vshrl.u32 %v9633, 16
        %v9999 = vrot.slane %v9997, 4
        %v10000 = vshll.u32 %v9633, 16
        %v10002 = vrot.slane %v10000, 5
        %v10003 = vor.u32 %v9999, %v10002
        %v10004 = vrot.slane %v10003, 4
        %v10006 = vshll.u32 %v9634, 16
        %v10008 = vrot.slane %v10006, 5
        %v10009 = vsel %vm564, %v10004, %v10008
        %v10010 = vshrl.u32 %v9634, 16
        %v10012 = vrot.slane %v10010, 4
        %v10013 = vor.u32 %v10012, %v10008
        %v10014 = vrot.slane %v10013, 4
        %v10016 = vshll.u32 %v9635, 16
        %v10018 = vrot.slane %v10016, 5
        %v10019 = vsel %vm564, %v10014, %v10018
        %s10020 = scalar_lea.vmem %s2, 320
        %v10021 = vld [vmem:[%s10020] sm:$0xf]
        %v10022 = vld [vmem:[%s10020 + $0x4] sm:$0xf]
        %v10023 = vld [vmem:[%s10020 + $0x8] sm:$0xf]
        %v10024 = vld [vmem:[%s10020 + $0xc] sm:$0xf]
        %v10025 = vld [vmem:[%s10020 + $0x10] sm:$0xf]
        %v10026 = vld [vmem:[%s10020 + $0x14] sm:$0xf]
        %v10027 = vld [vmem:[%s10020 + $0x18] sm:$0xf]
        %v10028 = vld [vmem:[%s10020 + $0x1c] sm:$0xf]
        %v10029 = vld [vmem:[%s10020 + $0x20] sm:$0xf]
        %v10030 = vld [vmem:[%s10020 + $0x24] sm:$0xf]
        %v10031 = vld [vmem:[%s10020 + $0x28] sm:$0xf]
        %v10032 = vld [vmem:[%s10020 + $0x2c] sm:$0xf]
        %v10033 = vld [vmem:[%s10020 + $0x30] sm:$0xf]
        %v10034 = vld [vmem:[%s10020 + $0x34] sm:$0xf]
        %v10035 = vld [vmem:[%s10020 + $0x38] sm:$0xf]
        %v10036 = vld [vmem:[%s10020 + $0x3c] sm:$0xf]
        %v10037 = vunpack.c.l.b16 %v9649
        %v10038 = vunpack.c.l.b16 %v9659
        %v10039 = vunpack.c.l.b16 %v9673
        %v10040 = vunpack.c.l.b16 %v9683
        %v10041 = vunpack.c.l.b16 %v9697
        %v10042 = vunpack.c.l.b16 %v9707
        %v10043 = vunpack.c.l.b16 %v9721
        %v10044 = vunpack.c.l.b16 %v9731
        %v10045 = vunpack.c.l.b16 %v9745
        %v10046 = vunpack.c.l.b16 %v9755
        %v10047 = vunpack.c.l.b16 %v9769
        %v10048 = vunpack.c.l.b16 %v9779
        %v10049 = vunpack.c.l.b16 %v9793
        %v10050 = vunpack.c.l.b16 %v9803
        %v10051 = vunpack.c.l.b16 %v9817
        %v10052 = vunpack.c.l.b16 %v9827
        %v10053 = vunpack.c.l.b16 %v9841
        %v10054 = vunpack.c.l.b16 %v9851
        %v10055 = vunpack.c.l.b16 %v9865
        %v10056 = vunpack.c.l.b16 %v9875
        %v10057 = vunpack.c.l.b16 %v9889
        %v10058 = vunpack.c.l.b16 %v9899
        %v10059 = vunpack.c.l.b16 %v9913
        %v10060 = vunpack.c.l.b16 %v9923
        %v10061 = vunpack.c.l.b16 %v9937
        %v10062 = vunpack.c.l.b16 %v9947
        %v10063 = vunpack.c.l.b16 %v9961
        %v10064 = vunpack.c.l.b16 %v9971
        %v10065 = vunpack.c.l.b16 %v9985
        %v10066 = vunpack.c.l.b16 %v9995
        %v10067 = vunpack.c.l.b16 %v10009
        %v10068 = vunpack.c.l.b16 %v10019
        %v10069 = vpack.c.b16 %v10038, %v10037
        %v10070 = vpack.c.b16 %v10040, %v10039
        %v10071 = vpack.c.b16 %v10042, %v10041
        %v10072 = vpack.c.b16 %v10044, %v10043
        %v10073 = vpack.c.b16 %v10046, %v10045
        %v10074 = vpack.c.b16 %v10048, %v10047
        %v10075 = vpack.c.b16 %v10050, %v10049
        %v10076 = vpack.c.b16 %v10052, %v10051
        %v10077 = vpack.c.b16 %v10054, %v10053
        %v10078 = vpack.c.b16 %v10056, %v10055
        %v10079 = vpack.c.b16 %v10058, %v10057
        %v10080 = vpack.c.b16 %v10060, %v10059
        %v10081 = vpack.c.b16 %v10062, %v10061
        %v10082 = vpack.c.b16 %v10064, %v10063
        %v10083 = vpack.c.b16 %v10066, %v10065
        %v10084 = vpack.c.b16 %v10068, %v10067
        %v10117 = vunpack.c.l.b16 %v10021
        %v10118 = vunpack.c.l.b16 %v10022
        %v10119 = vunpack.c.l.b16 %v10023
        %v10120 = vunpack.c.l.b16 %v10024
        %v10121 = vunpack.c.l.b16 %v10025
        %v10122 = vunpack.c.l.b16 %v10026
        %v10123 = vunpack.c.l.b16 %v10027
        %v10124 = vunpack.c.l.b16 %v10028
        %v10125 = vunpack.c.l.b16 %v10029
        %v10126 = vunpack.c.l.b16 %v10030
        %v10127 = vunpack.c.l.b16 %v10031
        %v10128 = vunpack.c.l.b16 %v10032
        %v10129 = vunpack.c.l.b16 %v10033
        %v10130 = vunpack.c.l.b16 %v10034
        %v10131 = vunpack.c.l.b16 %v10035
        %v10132 = vunpack.c.l.b16 %v10036
        %v10133 = vpack.c.b16 %v10118, %v10117
        %v10134 = vpack.c.b16 %v10120, %v10119
        %v10135 = vpack.c.b16 %v10122, %v10121
        %v10136 = vpack.c.b16 %v10124, %v10123
        %v10137 = vpack.c.b16 %v10126, %v10125
        %v10138 = vpack.c.b16 %v10128, %v10127
        %v10139 = vpack.c.b16 %v10130, %v10129
        %v10140 = vpack.c.b16 %v10132, %v10131
        %10149 = vmatprep.subr.bf16.mxu0 0
        %10150 = vmatpush1.bf16.msra.mxu0 %v10140
        %10151 = vmatprep.subr.bf16.mxu0 0
        %10152 = vmatpush1.bf16.msra.mxu0 %v10139
        %10153 = vmatprep.subr.bf16.mxu0 0
        %10154 = vmatpush1.bf16.msra.mxu0 %v10138
        %10155 = vmatprep.subr.bf16.mxu0 0
        %10156 = vmatpush1.bf16.msra.mxu0 %v10137
        %10157 = vmatprep.subr.bf16.mxu0 0
        %10158 = vmatpush1.bf16.msra.mxu0 %v10136
        %10159 = vmatprep.subr.bf16.mxu0 0
        %10160 = vmatpush1.bf16.msra.mxu0 %v10135
        %10161 = vmatprep.subr.bf16.mxu0 0
        %10162 = vmatpush1.bf16.msra.mxu0 %v10134
        %10163 = vmatprep.subr.bf16.mxu0 0
        %10164 = vmatpush1.bf16.msra.mxu0 %v10133
        %10165 = vmatprep.subr.bf16.mxu0 0
        %10166 = vmatpush2.bf16.msra.mxu0 0
        %10167 = vmatprep.subr.bf16.mxu0 0
        %10168 = vmatpush2.bf16.msra.mxu0 0
        %10169 = vmatprep.subr.bf16.mxu0 0
        %10170 = vmatpush2.bf16.msra.mxu0 0
        %10171 = vmatprep.subr.bf16.mxu0 0
        %10172 = vmatpush2.bf16.msra.mxu0 0
        %10173 = vmatprep.subr.bf16.mxu0 0
        %10174 = vmatpush2.bf16.msra.mxu0 0
        %10175 = vmatprep.subr.bf16.mxu0 0
        %10176 = vmatpush2.bf16.msra.mxu0 0
        %10177 = vmatprep.subr.bf16.mxu0 0
        %10178 = vmatpush2.bf16.msra.mxu0 0
        %10179 = vmatprep.subr.bf16.mxu0 0
        %10180 = vmatpush2.bf16.msra.mxu0 0
        %10181 = vmatprep.mubr.bf16.mxu0 0
        %10182 = vmatmul.mubr.bf16.gmra.mxu0 %v10069
        %v10183 = vpop.f32.mrf.mxu0
        %v10184 = vadd.f32 0.0, %v10183
        %v10185 = vpop.f32.mrf.mxu0
        %v10186 = vpop.f32.mrf.mxu0
        %v10187 = vadd.f32 0.0, %v10186
        %v10188 = vpop.f32.mrf.mxu0
        %10189 = vmatprep.mubr.bf16.mxu0 0
        %10190 = vmatmul.mubr.bf16.gmra.mxu0 %v10070
        %v10191 = vpop.f32.mrf.mxu0
        %v10192 = vadd.f32 0.0, %v10191
        %v10193 = vpop.f32.mrf.mxu0
        %v10194 = vpop.f32.mrf.mxu0
        %v10195 = vadd.f32 0.0, %v10194
        %v10196 = vpop.f32.mrf.mxu0
        %10197 = vmatprep.mubr.bf16.mxu0 0
        %10198 = vmatmul.mubr.bf16.gmra.mxu0 %v10071
        %v10199 = vpop.f32.mrf.mxu0
        %v10200 = vadd.f32 0.0, %v10199
        %v10201 = vpop.f32.mrf.mxu0
        %v10202 = vpop.f32.mrf.mxu0
        %v10203 = vadd.f32 0.0, %v10202
        %v10204 = vpop.f32.mrf.mxu0
        %10205 = vmatprep.mubr.bf16.mxu0 0
        %10206 = vmatmul.mubr.bf16.gmra.mxu0 %v10072
        %v10207 = vpop.f32.mrf.mxu0
        %v10208 = vadd.f32 0.0, %v10207
        %v10209 = vpop.f32.mrf.mxu0
        %v10210 = vpop.f32.mrf.mxu0
        %v10211 = vadd.f32 0.0, %v10210
        %v10212 = vpop.f32.mrf.mxu0
        %10213 = vmatprep.mubr.bf16.mxu0 0
        %10214 = vmatmul.mubr.bf16.gmra.mxu0 %v10073
        %v10215 = vpop.f32.mrf.mxu0
        %v10216 = vadd.f32 0.0, %v10215
        %v10217 = vpop.f32.mrf.mxu0
        %v10218 = vpop.f32.mrf.mxu0
        %v10219 = vadd.f32 0.0, %v10218
        %v10220 = vpop.f32.mrf.mxu0
        %10221 = vmatprep.mubr.bf16.mxu0 0
        %10222 = vmatmul.mubr.bf16.gmra.mxu0 %v10074
        %v10223 = vpop.f32.mrf.mxu0
        %v10224 = vadd.f32 0.0, %v10223
        %v10225 = vpop.f32.mrf.mxu0
        %v10226 = vpop.f32.mrf.mxu0
        %v10227 = vadd.f32 0.0, %v10226
        %v10228 = vpop.f32.mrf.mxu0
        %10229 = vmatprep.mubr.bf16.mxu0 0
        %10230 = vmatmul.mubr.bf16.gmra.mxu0 %v10075
        %v10231 = vpop.f32.mrf.mxu0
        %v10232 = vadd.f32 0.0, %v10231
        %v10233 = vpop.f32.mrf.mxu0
        %v10234 = vpop.f32.mrf.mxu0
        %v10235 = vadd.f32 0.0, %v10234
        %v10236 = vpop.f32.mrf.mxu0
        %10237 = vmatprep.mubr.bf16.mxu0 0
        %10238 = vmatmul.mubr.bf16.gmra.mxu0 %v10076
        %v10239 = vpop.f32.mrf.mxu0
        %v10240 = vadd.f32 0.0, %v10239
        %v10241 = vpop.f32.mrf.mxu0
        %v10242 = vpop.f32.mrf.mxu0
        %v10243 = vadd.f32 0.0, %v10242
        %v10244 = vpop.f32.mrf.mxu0
        %10245 = vmatprep.mubr.bf16.mxu0 0
        %10246 = vmatmul.mubr.bf16.gmra.mxu0 %v10077
        %v10247 = vpop.f32.mrf.mxu0
        %v10248 = vadd.f32 0.0, %v10247
        %v10249 = vpop.f32.mrf.mxu0
        %v10250 = vpop.f32.mrf.mxu0
        %v10251 = vadd.f32 0.0, %v10250
        %v10252 = vpop.f32.mrf.mxu0
        %10253 = vmatprep.mubr.bf16.mxu0 0
        %10254 = vmatmul.mubr.bf16.gmra.mxu0 %v10078
        %v10255 = vpop.f32.mrf.mxu0
        %v10256 = vadd.f32 0.0, %v10255
        %v10257 = vpop.f32.mrf.mxu0
        %v10258 = vpop.f32.mrf.mxu0
        %v10259 = vadd.f32 0.0, %v10258
        %v10260 = vpop.f32.mrf.mxu0
        %10261 = vmatprep.mubr.bf16.mxu0 0
        %10262 = vmatmul.mubr.bf16.gmra.mxu0 %v10079
        %v10263 = vpop.f32.mrf.mxu0
        %v10264 = vadd.f32 0.0, %v10263
        %v10265 = vpop.f32.mrf.mxu0
        %v10266 = vpop.f32.mrf.mxu0
        %v10267 = vadd.f32 0.0, %v10266
        %v10268 = vpop.f32.mrf.mxu0
        %10269 = vmatprep.mubr.bf16.mxu0 0
        %10270 = vmatmul.mubr.bf16.gmra.mxu0 %v10080
        %v10271 = vpop.f32.mrf.mxu0
        %v10272 = vadd.f32 0.0, %v10271
        %v10273 = vpop.f32.mrf.mxu0
        %v10274 = vpop.f32.mrf.mxu0
        %v10275 = vadd.f32 0.0, %v10274
        %v10276 = vpop.f32.mrf.mxu0
        %10277 = vmatprep.mubr.bf16.mxu0 0
        %10278 = vmatmul.mubr.bf16.gmra.mxu0 %v10081
        %v10279 = vpop.f32.mrf.mxu0
        %v10280 = vadd.f32 0.0, %v10279
        %v10281 = vpop.f32.mrf.mxu0
        %v10282 = vpop.f32.mrf.mxu0
        %v10283 = vadd.f32 0.0, %v10282
        %v10284 = vpop.f32.mrf.mxu0
        %10285 = vmatprep.mubr.bf16.mxu0 0
        %10286 = vmatmul.mubr.bf16.gmra.mxu0 %v10082
        %v10287 = vpop.f32.mrf.mxu0
        %v10288 = vadd.f32 0.0, %v10287
        %v10289 = vpop.f32.mrf.mxu0
        %v10290 = vpop.f32.mrf.mxu0
        %v10291 = vadd.f32 0.0, %v10290
        %v10292 = vpop.f32.mrf.mxu0
        %10293 = vmatprep.mubr.bf16.mxu0 0
        %10294 = vmatmul.mubr.bf16.gmra.mxu0 %v10083
        %v10295 = vpop.f32.mrf.mxu0
        %v10296 = vadd.f32 0.0, %v10295
        %v10297 = vpop.f32.mrf.mxu0
        %v10298 = vpop.f32.mrf.mxu0
        %v10299 = vadd.f32 0.0, %v10298
        %v10300 = vpop.f32.mrf.mxu0
        %10301 = vmatprep.mubr.bf16.mxu0 0
        %10302 = vmatmul.mubr.bf16.gmra.mxu0 %v10084
        %v10303 = vpop.f32.mrf.mxu0
        %v10304 = vadd.f32 0.0, %v10303
        %v10305 = vpop.f32.mrf.mxu0
        %v10306 = vpop.f32.mrf.mxu0
        %v10307 = vadd.f32 0.0, %v10306
        %v10308 = vpop.f32.mrf.mxu0
        %10309 = vdwg.mxu0
        %v10310 = vadd.f32 %v9508, %v10184
        %v10311 = vadd.f32 %v9509, %v10187
        %v10312 = vadd.f32 %v9510, %v10192
        %v10313 = vadd.f32 %v9511, %v10195
        %v10314 = vadd.f32 %v9512, %v10200
        %v10315 = vadd.f32 %v9513, %v10203
        %v10316 = vadd.f32 %v9514, %v10208
        %v10317 = vadd.f32 %v9515, %v10211
        %v10318 = vadd.f32 %v9516, %v10216
        %v10319 = vadd.f32 %v9517, %v10219
        %v10320 = vadd.f32 %v9518, %v10224
        %v10321 = vadd.f32 %v9519, %v10227
        %v10322 = vadd.f32 %v9520, %v10232
        %v10323 = vadd.f32 %v9521, %v10235
        %v10324 = vadd.f32 %v9522, %v10240
        %v10325 = vadd.f32 %v9523, %v10243
        %v10326 = vadd.f32 %v9524, %v10248
        %v10327 = vadd.f32 %v9525, %v10251
        %v10328 = vadd.f32 %v9526, %v10256
        %v10329 = vadd.f32 %v9527, %v10259
        %v10330 = vadd.f32 %v9528, %v10264
        %v10331 = vadd.f32 %v9529, %v10267
        %v10332 = vadd.f32 %v9530, %v10272
        %v10333 = vadd.f32 %v9531, %v10275
        %v10334 = vadd.f32 %v9532, %v10280
        %v10335 = vadd.f32 %v9533, %v10283
        %v10336 = vadd.f32 %v9534, %v10288
        %v10337 = vadd.f32 %v9535, %v10291
        %v10338 = vadd.f32 %v9536, %v10296
        %v10339 = vadd.f32 %v9537, %v10299
        %v10340 = vadd.f32 %v9538, %v10304
        %v10341 = vadd.f32 %v9539, %v10307
        %s10342 = scalar_lea.vmem [#allocation3], 48
        %v10343 = vld [vmem:[%s10342 + $0x4] sm:$0x8]
        %v10344 = vld [vmem:[%s10342 + $0x8] sm:$0xf]
        %v10345 = vld [vmem:[%s10342 + $0xc] sm:$0xf]
        %v10346 = vld [vmem:[%s10342 + $0x1c] sm:$0x8]
        %v10347 = vld [vmem:[%s10342 + $0x20] sm:$0xf]
        %v10348 = vld [vmem:[%s10342 + $0x24] sm:$0xf]
        %v10349 = vld [vmem:[%s10342 + $0x34] sm:$0x8]
        %v10350 = vld [vmem:[%s10342 + $0x38] sm:$0xf]
        %v10351 = vld [vmem:[%s10342 + $0x3c] sm:$0xf]
        %v10352 = vld [vmem:[%s10342 + $0x4c] sm:$0x8]
        %v10353 = vld [vmem:[%s10342 + $0x50] sm:$0xf]
        %v10354 = vld [vmem:[%s10342 + $0x54] sm:$0xf]
        %v10355 = vld [vmem:[%s10342 + $0x64] sm:$0x8]
        %v10356 = vld [vmem:[%s10342 + $0x68] sm:$0xf]
        %v10357 = vld [vmem:[%s10342 + $0x6c] sm:$0xf]
        %v10358 = vld [vmem:[%s10342 + $0x7c] sm:$0x8]
        %v10359 = vld [vmem:[%s10342 + $0x80] sm:$0xf]
        %v10360 = vld [vmem:[%s10342 + $0x84] sm:$0xf]
        %v10361 = vld [vmem:[%s10342 + $0x94] sm:$0x8]
        %v10362 = vld [vmem:[%s10342 + $0x98] sm:$0xf]
        %v10363 = vld [vmem:[%s10342 + $0x9c] sm:$0xf]
        %v10364 = vld [vmem:[%s10342 + $0xac] sm:$0x8]
        %v10365 = vld [vmem:[%s10342 + $0xb0] sm:$0xf]
        %v10366 = vld [vmem:[%s10342 + $0xb4] sm:$0xf]
        %v10367 = vld [vmem:[%s10342 + $0xc4] sm:$0x8]
        %v10368 = vld [vmem:[%s10342 + $0xc8] sm:$0xf]
        %v10369 = vld [vmem:[%s10342 + $0xcc] sm:$0xf]
        %v10370 = vld [vmem:[%s10342 + $0xdc] sm:$0x8]
        %v10371 = vld [vmem:[%s10342 + $0xe0] sm:$0xf]
        %v10372 = vld [vmem:[%s10342 + $0xe4] sm:$0xf]
        %v10373 = vld [vmem:[%s10342 + $0xf4] sm:$0x8]
        %v10374 = vld [vmem:[%s10342 + $0xf8] sm:$0xf]
        %v10375 = vld [vmem:[%s10342 + $0xfc] sm:$0xf]
        %v10376 = vld [vmem:[%s10342 + $0x10c] sm:$0x8]
        %v10377 = vld [vmem:[%s10342 + $0x110] sm:$0xf]
        %v10378 = vld [vmem:[%s10342 + $0x114] sm:$0xf]
        %v10379 = vld [vmem:[%s10342 + $0x124] sm:$0x8]
        %v10380 = vld [vmem:[%s10342 + $0x128] sm:$0xf]
        %v10381 = vld [vmem:[%s10342 + $0x12c] sm:$0xf]
        %v10382 = vld [vmem:[%s10342 + $0x13c] sm:$0x8]
        %v10383 = vld [vmem:[%s10342 + $0x140] sm:$0xf]
        %v10384 = vld [vmem:[%s10342 + $0x144] sm:$0xf]
        %v10385 = vld [vmem:[%s10342 + $0x154] sm:$0x8]
        %v10386 = vld [vmem:[%s10342 + $0x158] sm:$0xf]
        %v10387 = vld [vmem:[%s10342 + $0x15c] sm:$0xf]
        %v10388 = vld [vmem:[%s10342 + $0x16c] sm:$0x8]
        %v10389 = vld [vmem:[%s10342 + $0x170] sm:$0xf]
        %v10390 = vld [vmem:[%s10342 + $0x174] sm:$0xf]
        %v10391 = vsel %vm584, %v10343, 0
        %v10392 = vsel %vm585, %v10344, 0
        %v10393 = vsel %vm586, %v10345, 0
        %v10394 = vsel %vm584, %v10346, 0
        %v10395 = vsel %vm585, %v10347, 0
        %v10396 = vsel %vm586, %v10348, 0
        %v10397 = vsel %vm584, %v10349, 0
        %v10398 = vsel %vm585, %v10350, 0
        %v10399 = vsel %vm586, %v10351, 0
        %v10400 = vsel %vm584, %v10352, 0
        %v10401 = vsel %vm585, %v10353, 0
        %v10402 = vsel %vm586, %v10354, 0
        %v10403 = vsel %vm584, %v10355, 0
        %v10404 = vsel %vm585, %v10356, 0
        %v10405 = vsel %vm586, %v10357, 0
        %v10406 = vsel %vm584, %v10358, 0
        %v10407 = vsel %vm585, %v10359, 0
        %v10408 = vsel %vm586, %v10360, 0
        %v10409 = vsel %vm584, %v10361, 0
        %v10410 = vsel %vm585, %v10362, 0
        %v10411 = vsel %vm586, %v10363, 0
        %v10412 = vsel %vm584, %v10364, 0
        %v10413 = vsel %vm585, %v10365, 0
        %v10414 = vsel %vm586, %v10366, 0
        %v10415 = vsel %vm584, %v10367, 0
        %v10416 = vsel %vm585, %v10368, 0
        %v10417 = vsel %vm586, %v10369, 0
        %v10418 = vsel %vm584, %v10370, 0
        %v10419 = vsel %vm585, %v10371, 0
        %v10420 = vsel %vm586, %v10372, 0
        %v10421 = vsel %vm584, %v10373, 0
        %v10422 = vsel %vm585, %v10374, 0
        %v10423 = vsel %vm586, %v10375, 0
        %v10424 = vsel %vm584, %v10376, 0
        %v10425 = vsel %vm585, %v10377, 0
        %v10426 = vsel %vm586, %v10378, 0
        %v10427 = vsel %vm584, %v10379, 0
        %v10428 = vsel %vm585, %v10380, 0
        %v10429 = vsel %vm586, %v10381, 0
        %v10430 = vsel %vm584, %v10382, 0
        %v10431 = vsel %vm585, %v10383, 0
        %v10432 = vsel %vm586, %v10384, 0
        %v10433 = vsel %vm584, %v10385, 0
        %v10434 = vsel %vm585, %v10386, 0
        %v10435 = vsel %vm586, %v10387, 0
        %v10436 = vsel %vm584, %v10388, 0
        %v10437 = vsel %vm585, %v10389, 0
        %v10438 = vsel %vm586, %v10390, 0
        %v10440 = vshrl.u32 %v10391, 16
        %v10442 = vrot.slane %v10440, 7
        %v10443 = vrot.slane %v10442, 4
        %v10445 = vshrl.u32 %v10392, 16
        %v10447 = vrot.slane %v10445, 7
        %v10448 = vshll.u32 %v10392, 16
        %v10450 = vor.u32 %v10447, %v10448
        %v10451 = vsel %vm637, %v10443, %v10450
        %v10452 = vrot.slane %v10447, 4
        %v10454 = vshrl.u32 %v10393, 16
        %v10456 = vrot.slane %v10454, 7
        %v10457 = vshll.u32 %v10393, 16
        %v10459 = vor.u32 %v10456, %v10457
        %v10460 = vsel %vm637, %v10452, %v10459
        %v10462 = vshrl.u32 %v10394, 16
        %v10464 = vrot.slane %v10462, 7
        %v10465 = vrot.slane %v10464, 4
        %v10467 = vshrl.u32 %v10395, 16
        %v10469 = vrot.slane %v10467, 7
        %v10470 = vshll.u32 %v10395, 16
        %v10472 = vor.u32 %v10469, %v10470
        %v10473 = vsel %vm637, %v10465, %v10472
        %v10474 = vrot.slane %v10469, 4
        %v10476 = vshrl.u32 %v10396, 16
        %v10478 = vrot.slane %v10476, 7
        %v10479 = vshll.u32 %v10396, 16
        %v10481 = vor.u32 %v10478, %v10479
        %v10482 = vsel %vm637, %v10474, %v10481
        %v10484 = vshrl.u32 %v10397, 16
        %v10486 = vrot.slane %v10484, 7
        %v10487 = vrot.slane %v10486, 4
        %v10489 = vshrl.u32 %v10398, 16
        %v10491 = vrot.slane %v10489, 7
        %v10492 = vshll.u32 %v10398, 16
        %v10494 = vor.u32 %v10491, %v10492
        %v10495 = vsel %vm637, %v10487, %v10494
        %v10496 = vrot.slane %v10491, 4
        %v10498 = vshrl.u32 %v10399, 16
        %v10500 = vrot.slane %v10498, 7
        %v10501 = vshll.u32 %v10399, 16
        %v10503 = vor.u32 %v10500, %v10501
        %v10504 = vsel %vm637, %v10496, %v10503
        %v10506 = vshrl.u32 %v10400, 16
        %v10508 = vrot.slane %v10506, 7
        %v10509 = vrot.slane %v10508, 4
        %v10511 = vshrl.u32 %v10401, 16
        %v10513 = vrot.slane %v10511, 7
        %v10514 = vshll.u32 %v10401, 16
        %v10516 = vor.u32 %v10513, %v10514
        %v10517 = vsel %vm637, %v10509, %v10516
        %v10518 = vrot.slane %v10513, 4
        %v10520 = vshrl.u32 %v10402, 16
        %v10522 = vrot.slane %v10520, 7
        %v10523 = vshll.u32 %v10402, 16
        %v10525 = vor.u32 %v10522, %v10523
        %v10526 = vsel %vm637, %v10518, %v10525
        %v10528 = vshrl.u32 %v10403, 16
        %v10530 = vrot.slane %v10528, 7
        %v10531 = vrot.slane %v10530, 4
        %v10533 = vshrl.u32 %v10404, 16
        %v10535 = vrot.slane %v10533, 7
        %v10536 = vshll.u32 %v10404, 16
        %v10538 = vor.u32 %v10535, %v10536
        %v10539 = vsel %vm637, %v10531, %v10538
        %v10540 = vrot.slane %v10535, 4
        %v10542 = vshrl.u32 %v10405, 16
        %v10544 = vrot.slane %v10542, 7
        %v10545 = vshll.u32 %v10405, 16
        %v10547 = vor.u32 %v10544, %v10545
        %v10548 = vsel %vm637, %v10540, %v10547
        %v10550 = vshrl.u32 %v10406, 16
        %v10552 = vrot.slane %v10550, 7
        %v10553 = vrot.slane %v10552, 4
        %v10555 = vshrl.u32 %v10407, 16
        %v10557 = vrot.slane %v10555, 7
        %v10558 = vshll.u32 %v10407, 16
        %v10560 = vor.u32 %v10557, %v10558
        %v10561 = vsel %vm637, %v10553, %v10560
        %v10562 = vrot.slane %v10557, 4
        %v10564 = vshrl.u32 %v10408, 16
        %v10566 = vrot.slane %v10564, 7
        %v10567 = vshll.u32 %v10408, 16
        %v10569 = vor.u32 %v10566, %v10567
        %v10570 = vsel %vm637, %v10562, %v10569
        %v10572 = vshrl.u32 %v10409, 16
        %v10574 = vrot.slane %v10572, 7
        %v10575 = vrot.slane %v10574, 4
        %v10577 = vshrl.u32 %v10410, 16
        %v10579 = vrot.slane %v10577, 7
        %v10580 = vshll.u32 %v10410, 16
        %v10582 = vor.u32 %v10579, %v10580
        %v10583 = vsel %vm637, %v10575, %v10582
        %v10584 = vrot.slane %v10579, 4
        %v10586 = vshrl.u32 %v10411, 16
        %v10588 = vrot.slane %v10586, 7
        %v10589 = vshll.u32 %v10411, 16
        %v10591 = vor.u32 %v10588, %v10589
        %v10592 = vsel %vm637, %v10584, %v10591
        %v10594 = vshrl.u32 %v10412, 16
        %v10596 = vrot.slane %v10594, 7
        %v10597 = vrot.slane %v10596, 4
        %v10599 = vshrl.u32 %v10413, 16
        %v10601 = vrot.slane %v10599, 7
        %v10602 = vshll.u32 %v10413, 16
        %v10604 = vor.u32 %v10601, %v10602
        %v10605 = vsel %vm637, %v10597, %v10604
        %v10606 = vrot.slane %v10601, 4
        %v10608 = vshrl.u32 %v10414, 16
        %v10610 = vrot.slane %v10608, 7
        %v10611 = vshll.u32 %v10414, 16
        %v10613 = vor.u32 %v10610, %v10611
        %v10614 = vsel %vm637, %v10606, %v10613
        %v10616 = vshrl.u32 %v10415, 16
        %v10618 = vrot.slane %v10616, 7
        %v10619 = vrot.slane %v10618, 4
        %v10621 = vshrl.u32 %v10416, 16
        %v10623 = vrot.slane %v10621, 7
        %v10624 = vshll.u32 %v10416, 16
        %v10626 = vor.u32 %v10623, %v10624
        %v10627 = vsel %vm637, %v10619, %v10626
        %v10628 = vrot.slane %v10623, 4
        %v10630 = vshrl.u32 %v10417, 16
        %v10632 = vrot.slane %v10630, 7
        %v10633 = vshll.u32 %v10417, 16
        %v10635 = vor.u32 %v10632, %v10633
        %v10636 = vsel %vm637, %v10628, %v10635
        %v10638 = vshrl.u32 %v10418, 16
        %v10640 = vrot.slane %v10638, 7
        %v10641 = vrot.slane %v10640, 4
        %v10643 = vshrl.u32 %v10419, 16
        %v10645 = vrot.slane %v10643, 7
        %v10646 = vshll.u32 %v10419, 16
        %v10648 = vor.u32 %v10645, %v10646
        %v10649 = vsel %vm637, %v10641, %v10648
        %v10650 = vrot.slane %v10645, 4
        %v10652 = vshrl.u32 %v10420, 16
        %v10654 = vrot.slane %v10652, 7
        %v10655 = vshll.u32 %v10420, 16
        %v10657 = vor.u32 %v10654, %v10655
        %v10658 = vsel %vm637, %v10650, %v10657
        %v10660 = vshrl.u32 %v10421, 16
        %v10662 = vrot.slane %v10660, 7
        %v10663 = vrot.slane %v10662, 4
        %v10665 = vshrl.u32 %v10422, 16
        %v10667 = vrot.slane %v10665, 7
        %v10668 = vshll.u32 %v10422, 16
        %v10670 = vor.u32 %v10667, %v10668
        %v10671 = vsel %vm637, %v10663, %v10670
        %v10672 = vrot.slane %v10667, 4
        %v10674 = vshrl.u32 %v10423, 16
        %v10676 = vrot.slane %v10674, 7
        %v10677 = vshll.u32 %v10423, 16
        %v10679 = vor.u32 %v10676, %v10677
        %v10680 = vsel %vm637, %v10672, %v10679
        %v10682 = vshrl.u32 %v10424, 16
        %v10684 = vrot.slane %v10682, 7
        %v10685 = vrot.slane %v10684, 4
        %v10687 = vshrl.u32 %v10425, 16
        %v10689 = vrot.slane %v10687, 7
        %v10690 = vshll.u32 %v10425, 16
        %v10692 = vor.u32 %v10689, %v10690
        %v10693 = vsel %vm637, %v10685, %v10692
        %v10694 = vrot.slane %v10689, 4
        %v10696 = vshrl.u32 %v10426, 16
        %v10698 = vrot.slane %v10696, 7
        %v10699 = vshll.u32 %v10426, 16
        %v10701 = vor.u32 %v10698, %v10699
        %v10702 = vsel %vm637, %v10694, %v10701
        %v10704 = vshrl.u32 %v10427, 16
        %v10706 = vrot.slane %v10704, 7
        %v10707 = vrot.slane %v10706, 4
        %v10709 = vshrl.u32 %v10428, 16
        %v10711 = vrot.slane %v10709, 7
        %v10712 = vshll.u32 %v10428, 16
        %v10714 = vor.u32 %v10711, %v10712
        %v10715 = vsel %vm637, %v10707, %v10714
        %v10716 = vrot.slane %v10711, 4
        %v10718 = vshrl.u32 %v10429, 16
        %v10720 = vrot.slane %v10718, 7
        %v10721 = vshll.u32 %v10429, 16
        %v10723 = vor.u32 %v10720, %v10721
        %v10724 = vsel %vm637, %v10716, %v10723
        %v10726 = vshrl.u32 %v10430, 16
        %v10728 = vrot.slane %v10726, 7
        %v10729 = vrot.slane %v10728, 4
        %v10731 = vshrl.u32 %v10431, 16
        %v10733 = vrot.slane %v10731, 7
        %v10734 = vshll.u32 %v10431, 16
        %v10736 = vor.u32 %v10733, %v10734
        %v10737 = vsel %vm637, %v10729, %v10736
        %v10738 = vrot.slane %v10733, 4
        %v10740 = vshrl.u32 %v10432, 16
        %v10742 = vrot.slane %v10740, 7
        %v10743 = vshll.u32 %v10432, 16
        %v10745 = vor.u32 %v10742, %v10743
        %v10746 = vsel %vm637, %v10738, %v10745
        %v10748 = vshrl.u32 %v10433, 16
        %v10750 = vrot.slane %v10748, 7
        %v10751 = vrot.slane %v10750, 4
        %v10753 = vshrl.u32 %v10434, 16
        %v10755 = vrot.slane %v10753, 7
        %v10756 = vshll.u32 %v10434, 16
        %v10758 = vor.u32 %v10755, %v10756
        %v10759 = vsel %vm637, %v10751, %v10758
        %v10760 = vrot.slane %v10755, 4
        %v10762 = vshrl.u32 %v10435, 16
        %v10764 = vrot.slane %v10762, 7
        %v10765 = vshll.u32 %v10435, 16
        %v10767 = vor.u32 %v10764, %v10765
        %v10768 = vsel %vm637, %v10760, %v10767
        %v10770 = vshrl.u32 %v10436, 16
        %v10772 = vrot.slane %v10770, 7
        %v10773 = vrot.slane %v10772, 4
        %v10775 = vshrl.u32 %v10437, 16
        %v10777 = vrot.slane %v10775, 7
        %v10778 = vshll.u32 %v10437, 16
        %v10780 = vor.u32 %v10777, %v10778
        %v10781 = vsel %vm637, %v10773, %v10780
        %v10782 = vrot.slane %v10777, 4
        %v10784 = vshrl.u32 %v10438, 16
        %v10786 = vrot.slane %v10784, 7
        %v10787 = vshll.u32 %v10438, 16
        %v10789 = vor.u32 %v10786, %v10787
        %v10790 = vsel %vm637, %v10782, %v10789
        %s10791 = scalar_lea.vmem %s2, 384
        %v10792 = vld [vmem:[%s10791] sm:$0xf]
        %v10793 = vld [vmem:[%s10791 + $0x4] sm:$0xf]
        %v10794 = vld [vmem:[%s10791 + $0x8] sm:$0xf]
        %v10795 = vld [vmem:[%s10791 + $0xc] sm:$0xf]
        %v10796 = vld [vmem:[%s10791 + $0x10] sm:$0xf]
        %v10797 = vld [vmem:[%s10791 + $0x14] sm:$0xf]
        %v10798 = vld [vmem:[%s10791 + $0x18] sm:$0xf]
        %v10799 = vld [vmem:[%s10791 + $0x1c] sm:$0xf]
        %v10800 = vld [vmem:[%s10791 + $0x20] sm:$0xf]
        %v10801 = vld [vmem:[%s10791 + $0x24] sm:$0xf]
        %v10802 = vld [vmem:[%s10791 + $0x28] sm:$0xf]
        %v10803 = vld [vmem:[%s10791 + $0x2c] sm:$0xf]
        %v10804 = vld [vmem:[%s10791 + $0x30] sm:$0xf]
        %v10805 = vld [vmem:[%s10791 + $0x34] sm:$0xf]
        %v10806 = vld [vmem:[%s10791 + $0x38] sm:$0xf]
        %v10807 = vld [vmem:[%s10791 + $0x3c] sm:$0xf]
        %v10808 = vunpack.c.l.b16 %v10451
        %v10809 = vunpack.c.l.b16 %v10460
        %v10810 = vunpack.c.l.b16 %v10473
        %v10811 = vunpack.c.l.b16 %v10482
        %v10812 = vunpack.c.l.b16 %v10495
        %v10813 = vunpack.c.l.b16 %v10504
        %v10814 = vunpack.c.l.b16 %v10517
        %v10815 = vunpack.c.l.b16 %v10526
        %v10816 = vunpack.c.l.b16 %v10539
        %v10817 = vunpack.c.l.b16 %v10548
        %v10818 = vunpack.c.l.b16 %v10561
        %v10819 = vunpack.c.l.b16 %v10570
        %v10820 = vunpack.c.l.b16 %v10583
        %v10821 = vunpack.c.l.b16 %v10592
        %v10822 = vunpack.c.l.b16 %v10605
        %v10823 = vunpack.c.l.b16 %v10614
        %v10824 = vunpack.c.l.b16 %v10627
        %v10825 = vunpack.c.l.b16 %v10636
        %v10826 = vunpack.c.l.b16 %v10649
        %v10827 = vunpack.c.l.b16 %v10658
        %v10828 = vunpack.c.l.b16 %v10671
        %v10829 = vunpack.c.l.b16 %v10680
        %v10830 = vunpack.c.l.b16 %v10693
        %v10831 = vunpack.c.l.b16 %v10702
        %v10832 = vunpack.c.l.b16 %v10715
        %v10833 = vunpack.c.l.b16 %v10724
        %v10834 = vunpack.c.l.b16 %v10737
        %v10835 = vunpack.c.l.b16 %v10746
        %v10836 = vunpack.c.l.b16 %v10759
        %v10837 = vunpack.c.l.b16 %v10768
        %v10838 = vunpack.c.l.b16 %v10781
        %v10839 = vunpack.c.l.b16 %v10790
        %v10840 = vpack.c.b16 %v10809, %v10808
        %v10841 = vpack.c.b16 %v10811, %v10810
        %v10842 = vpack.c.b16 %v10813, %v10812
        %v10843 = vpack.c.b16 %v10815, %v10814
        %v10844 = vpack.c.b16 %v10817, %v10816
        %v10845 = vpack.c.b16 %v10819, %v10818
        %v10846 = vpack.c.b16 %v10821, %v10820
        %v10847 = vpack.c.b16 %v10823, %v10822
        %v10848 = vpack.c.b16 %v10825, %v10824
        %v10849 = vpack.c.b16 %v10827, %v10826
        %v10850 = vpack.c.b16 %v10829, %v10828
        %v10851 = vpack.c.b16 %v10831, %v10830
        %v10852 = vpack.c.b16 %v10833, %v10832
        %v10853 = vpack.c.b16 %v10835, %v10834
        %v10854 = vpack.c.b16 %v10837, %v10836
        %v10855 = vpack.c.b16 %v10839, %v10838
        %v10888 = vunpack.c.l.b16 %v10792
        %v10889 = vunpack.c.l.b16 %v10793
        %v10890 = vunpack.c.l.b16 %v10794
        %v10891 = vunpack.c.l.b16 %v10795
        %v10892 = vunpack.c.l.b16 %v10796
        %v10893 = vunpack.c.l.b16 %v10797
        %v10894 = vunpack.c.l.b16 %v10798
        %v10895 = vunpack.c.l.b16 %v10799
        %v10896 = vunpack.c.l.b16 %v10800
        %v10897 = vunpack.c.l.b16 %v10801
        %v10898 = vunpack.c.l.b16 %v10802
        %v10899 = vunpack.c.l.b16 %v10803
        %v10900 = vunpack.c.l.b16 %v10804
        %v10901 = vunpack.c.l.b16 %v10805
        %v10902 = vunpack.c.l.b16 %v10806
        %v10903 = vunpack.c.l.b16 %v10807
        %v10904 = vpack.c.b16 %v10889, %v10888
        %v10905 = vpack.c.b16 %v10891, %v10890
        %v10906 = vpack.c.b16 %v10893, %v10892
        %v10907 = vpack.c.b16 %v10895, %v10894
        %v10908 = vpack.c.b16 %v10897, %v10896
        %v10909 = vpack.c.b16 %v10899, %v10898
        %v10910 = vpack.c.b16 %v10901, %v10900
        %v10911 = vpack.c.b16 %v10903, %v10902
        %10920 = vmatprep.subr.bf16.mxu0 0
        %10921 = vmatpush1.bf16.msra.mxu0 %v10911
        %10922 = vmatprep.subr.bf16.mxu0 0
        %10923 = vmatpush1.bf16.msra.mxu0 %v10910
        %10924 = vmatprep.subr.bf16.mxu0 0
        %10925 = vmatpush1.bf16.msra.mxu0 %v10909
        %10926 = vmatprep.subr.bf16.mxu0 0
        %10927 = vmatpush1.bf16.msra.mxu0 %v10908
        %10928 = vmatprep.subr.bf16.mxu0 0
        %10929 = vmatpush1.bf16.msra.mxu0 %v10907
        %10930 = vmatprep.subr.bf16.mxu0 0
        %10931 = vmatpush1.bf16.msra.mxu0 %v10906
        %10932 = vmatprep.subr.bf16.mxu0 0
        %10933 = vmatpush1.bf16.msra.mxu0 %v10905
        %10934 = vmatprep.subr.bf16.mxu0 0
        %10935 = vmatpush1.bf16.msra.mxu0 %v10904
        %10936 = vmatprep.subr.bf16.mxu0 0
        %10937 = vmatpush2.bf16.msra.mxu0 0
        %10938 = vmatprep.subr.bf16.mxu0 0
        %10939 = vmatpush2.bf16.msra.mxu0 0
        %10940 = vmatprep.subr.bf16.mxu0 0
        %10941 = vmatpush2.bf16.msra.mxu0 0
        %10942 = vmatprep.subr.bf16.mxu0 0
        %10943 = vmatpush2.bf16.msra.mxu0 0
        %10944 = vmatprep.subr.bf16.mxu0 0
        %10945 = vmatpush2.bf16.msra.mxu0 0
        %10946 = vmatprep.subr.bf16.mxu0 0
        %10947 = vmatpush2.bf16.msra.mxu0 0
        %10948 = vmatprep.subr.bf16.mxu0 0
        %10949 = vmatpush2.bf16.msra.mxu0 0
        %10950 = vmatprep.subr.bf16.mxu0 0
        %10951 = vmatpush2.bf16.msra.mxu0 0
        %10952 = vmatprep.mubr.bf16.mxu0 0
        %10953 = vmatmul.mubr.bf16.gmra.mxu0 %v10840
        %v10954 = vpop.f32.mrf.mxu0
        %v10955 = vadd.f32 0.0, %v10954
        %v10956 = vpop.f32.mrf.mxu0
        %v10957 = vpop.f32.mrf.mxu0
        %v10958 = vadd.f32 0.0, %v10957
        %v10959 = vpop.f32.mrf.mxu0
        %10960 = vmatprep.mubr.bf16.mxu0 0
        %10961 = vmatmul.mubr.bf16.gmra.mxu0 %v10841
        %v10962 = vpop.f32.mrf.mxu0
        %v10963 = vadd.f32 0.0, %v10962
        %v10964 = vpop.f32.mrf.mxu0
        %v10965 = vpop.f32.mrf.mxu0
        %v10966 = vadd.f32 0.0, %v10965
        %v10967 = vpop.f32.mrf.mxu0
        %10968 = vmatprep.mubr.bf16.mxu0 0
        %10969 = vmatmul.mubr.bf16.gmra.mxu0 %v10842
        %v10970 = vpop.f32.mrf.mxu0
        %v10971 = vadd.f32 0.0, %v10970
        %v10972 = vpop.f32.mrf.mxu0
        %v10973 = vpop.f32.mrf.mxu0
        %v10974 = vadd.f32 0.0, %v10973
        %v10975 = vpop.f32.mrf.mxu0
        %10976 = vmatprep.mubr.bf16.mxu0 0
        %10977 = vmatmul.mubr.bf16.gmra.mxu0 %v10843
        %v10978 = vpop.f32.mrf.mxu0
        %v10979 = vadd.f32 0.0, %v10978
        %v10980 = vpop.f32.mrf.mxu0
        %v10981 = vpop.f32.mrf.mxu0
        %v10982 = vadd.f32 0.0, %v10981
        %v10983 = vpop.f32.mrf.mxu0
        %10984 = vmatprep.mubr.bf16.mxu0 0
        %10985 = vmatmul.mubr.bf16.gmra.mxu0 %v10844
        %v10986 = vpop.f32.mrf.mxu0
        %v10987 = vadd.f32 0.0, %v10986
        %v10988 = vpop.f32.mrf.mxu0
        %v10989 = vpop.f32.mrf.mxu0
        %v10990 = vadd.f32 0.0, %v10989
        %v10991 = vpop.f32.mrf.mxu0
        %10992 = vmatprep.mubr.bf16.mxu0 0
        %10993 = vmatmul.mubr.bf16.gmra.mxu0 %v10845
        %v10994 = vpop.f32.mrf.mxu0
        %v10995 = vadd.f32 0.0, %v10994
        %v10996 = vpop.f32.mrf.mxu0
        %v10997 = vpop.f32.mrf.mxu0
        %v10998 = vadd.f32 0.0, %v10997
        %v10999 = vpop.f32.mrf.mxu0
        %11000 = vmatprep.mubr.bf16.mxu0 0
        %11001 = vmatmul.mubr.bf16.gmra.mxu0 %v10846
        %v11002 = vpop.f32.mrf.mxu0
        %v11003 = vadd.f32 0.0, %v11002
        %v11004 = vpop.f32.mrf.mxu0
        %v11005 = vpop.f32.mrf.mxu0
        %v11006 = vadd.f32 0.0, %v11005
        %v11007 = vpop.f32.mrf.mxu0
        %11008 = vmatprep.mubr.bf16.mxu0 0
        %11009 = vmatmul.mubr.bf16.gmra.mxu0 %v10847
        %v11010 = vpop.f32.mrf.mxu0
        %v11011 = vadd.f32 0.0, %v11010
        %v11012 = vpop.f32.mrf.mxu0
        %v11013 = vpop.f32.mrf.mxu0
        %v11014 = vadd.f32 0.0, %v11013
        %v11015 = vpop.f32.mrf.mxu0
        %11016 = vmatprep.mubr.bf16.mxu0 0
        %11017 = vmatmul.mubr.bf16.gmra.mxu0 %v10848
        %v11018 = vpop.f32.mrf.mxu0
        %v11019 = vadd.f32 0.0, %v11018
        %v11020 = vpop.f32.mrf.mxu0
        %v11021 = vpop.f32.mrf.mxu0
        %v11022 = vadd.f32 0.0, %v11021
        %v11023 = vpop.f32.mrf.mxu0
        %11024 = vmatprep.mubr.bf16.mxu0 0
        %11025 = vmatmul.mubr.bf16.gmra.mxu0 %v10849
        %v11026 = vpop.f32.mrf.mxu0
        %v11027 = vadd.f32 0.0, %v11026
        %v11028 = vpop.f32.mrf.mxu0
        %v11029 = vpop.f32.mrf.mxu0
        %v11030 = vadd.f32 0.0, %v11029
        %v11031 = vpop.f32.mrf.mxu0
        %11032 = vmatprep.mubr.bf16.mxu0 0
        %11033 = vmatmul.mubr.bf16.gmra.mxu0 %v10850
        %v11034 = vpop.f32.mrf.mxu0
        %v11035 = vadd.f32 0.0, %v11034
        %v11036 = vpop.f32.mrf.mxu0
        %v11037 = vpop.f32.mrf.mxu0
        %v11038 = vadd.f32 0.0, %v11037
        %v11039 = vpop.f32.mrf.mxu0
        %11040 = vmatprep.mubr.bf16.mxu0 0
        %11041 = vmatmul.mubr.bf16.gmra.mxu0 %v10851
        %v11042 = vpop.f32.mrf.mxu0
        %v11043 = vadd.f32 0.0, %v11042
        %v11044 = vpop.f32.mrf.mxu0
        %v11045 = vpop.f32.mrf.mxu0
        %v11046 = vadd.f32 0.0, %v11045
        %v11047 = vpop.f32.mrf.mxu0
        %11048 = vmatprep.mubr.bf16.mxu0 0
        %11049 = vmatmul.mubr.bf16.gmra.mxu0 %v10852
        %v11050 = vpop.f32.mrf.mxu0
        %v11051 = vadd.f32 0.0, %v11050
        %v11052 = vpop.f32.mrf.mxu0
        %v11053 = vpop.f32.mrf.mxu0
        %v11054 = vadd.f32 0.0, %v11053
        %v11055 = vpop.f32.mrf.mxu0
        %11056 = vmatprep.mubr.bf16.mxu0 0
        %11057 = vmatmul.mubr.bf16.gmra.mxu0 %v10853
        %v11058 = vpop.f32.mrf.mxu0
        %v11059 = vadd.f32 0.0, %v11058
        %v11060 = vpop.f32.mrf.mxu0
        %v11061 = vpop.f32.mrf.mxu0
        %v11062 = vadd.f32 0.0, %v11061
        %v11063 = vpop.f32.mrf.mxu0
        %11064 = vmatprep.mubr.bf16.mxu0 0
        %11065 = vmatmul.mubr.bf16.gmra.mxu0 %v10854
        %v11066 = vpop.f32.mrf.mxu0
        %v11067 = vadd.f32 0.0, %v11066
        %v11068 = vpop.f32.mrf.mxu0
        %v11069 = vpop.f32.mrf.mxu0
        %v11070 = vadd.f32 0.0, %v11069
        %v11071 = vpop.f32.mrf.mxu0
        %11072 = vmatprep.mubr.bf16.mxu0 0
        %11073 = vmatmul.mubr.bf16.gmra.mxu0 %v10855
        %v11074 = vpop.f32.mrf.mxu0
        %v11075 = vadd.f32 0.0, %v11074
        %v11076 = vpop.f32.mrf.mxu0
        %v11077 = vpop.f32.mrf.mxu0
        %v11078 = vadd.f32 0.0, %v11077
        %v11079 = vpop.f32.mrf.mxu0
        %11080 = vdwg.mxu0
        %v11081 = vadd.f32 %v10310, %v10955
        %v11082 = vadd.f32 %v10311, %v10958
        %v11083 = vadd.f32 %v10312, %v10963
        %v11084 = vadd.f32 %v10313, %v10966
        %v11085 = vadd.f32 %v10314, %v10971
        %v11086 = vadd.f32 %v10315, %v10974
        %v11087 = vadd.f32 %v10316, %v10979
        %v11088 = vadd.f32 %v10317, %v10982
        %v11089 = vadd.f32 %v10318, %v10987
        %v11090 = vadd.f32 %v10319, %v10990
        %v11091 = vadd.f32 %v10320, %v10995
        %v11092 = vadd.f32 %v10321, %v10998
        %v11093 = vadd.f32 %v10322, %v11003
        %v11094 = vadd.f32 %v10323, %v11006
        %v11095 = vadd.f32 %v10324, %v11011
        %v11096 = vadd.f32 %v10325, %v11014
        %v11097 = vadd.f32 %v10326, %v11019
        %v11098 = vadd.f32 %v10327, %v11022
        %v11099 = vadd.f32 %v10328, %v11027
        %v11100 = vadd.f32 %v10329, %v11030
        %v11101 = vadd.f32 %v10330, %v11035
        %v11102 = vadd.f32 %v10331, %v11038
        %v11103 = vadd.f32 %v10332, %v11043
        %v11104 = vadd.f32 %v10333, %v11046
        %v11105 = vadd.f32 %v10334, %v11051
        %v11106 = vadd.f32 %v10335, %v11054
        %v11107 = vadd.f32 %v10336, %v11059
        %v11108 = vadd.f32 %v10337, %v11062
        %v11109 = vadd.f32 %v10338, %v11067
        %v11110 = vadd.f32 %v10339, %v11070
        %v11111 = vadd.f32 %v10340, %v11075
        %v11112 = vadd.f32 %v10341, %v11078
        %s11113 = scalar_lea.vmem %s2, 448
        %v11114 = vld [vmem:[%s11113] sm:$0xf]
        %v11115 = vld [vmem:[%s11113 + $0x4] sm:$0xf]
        %v11116 = vld [vmem:[%s11113 + $0x8] sm:$0xf]
        %v11117 = vld [vmem:[%s11113 + $0xc] sm:$0xf]
        %v11118 = vld [vmem:[%s11113 + $0x10] sm:$0xf]
        %v11119 = vld [vmem:[%s11113 + $0x14] sm:$0xf]
        %v11120 = vld [vmem:[%s11113 + $0x18] sm:$0xf]
        %v11121 = vld [vmem:[%s11113 + $0x1c] sm:$0xf]
        %v11122 = vld [vmem:[%s11113 + $0x20] sm:$0xf]
        %v11123 = vld [vmem:[%s11113 + $0x24] sm:$0xf]
        %v11124 = vld [vmem:[%s11113 + $0x28] sm:$0xf]
        %v11125 = vld [vmem:[%s11113 + $0x2c] sm:$0xf]
        %v11126 = vld [vmem:[%s11113 + $0x30] sm:$0xf]
        %v11127 = vld [vmem:[%s11113 + $0x34] sm:$0xf]
        %v11128 = vld [vmem:[%s11113 + $0x38] sm:$0xf]
        %v11129 = vld [vmem:[%s11113 + $0x3c] sm:$0xf]
        %v11162 = vunpack.c.l.b16 %v10344
        %v11163 = vunpack.c.l.b16 %v10345
        %v11164 = vunpack.c.l.b16 %v10347
        %v11165 = vunpack.c.l.b16 %v10348
        %v11166 = vunpack.c.l.b16 %v10350
        %v11167 = vunpack.c.l.b16 %v10351
        %v11168 = vunpack.c.l.b16 %v10353
        %v11169 = vunpack.c.l.b16 %v10354
        %v11170 = vunpack.c.l.b16 %v10356
        %v11171 = vunpack.c.l.b16 %v10357
        %v11172 = vunpack.c.l.b16 %v10359
        %v11173 = vunpack.c.l.b16 %v10360
        %v11174 = vunpack.c.l.b16 %v10362
        %v11175 = vunpack.c.l.b16 %v10363
        %v11176 = vunpack.c.l.b16 %v10365
        %v11177 = vunpack.c.l.b16 %v10366
        %v11178 = vunpack.c.l.b16 %v10368
        %v11179 = vunpack.c.l.b16 %v10369
        %v11180 = vunpack.c.l.b16 %v10371
        %v11181 = vunpack.c.l.b16 %v10372
        %v11182 = vunpack.c.l.b16 %v10374
        %v11183 = vunpack.c.l.b16 %v10375
        %v11184 = vunpack.c.l.b16 %v10377
        %v11185 = vunpack.c.l.b16 %v10378
        %v11186 = vunpack.c.l.b16 %v10380
        %v11187 = vunpack.c.l.b16 %v10381
        %v11188 = vunpack.c.l.b16 %v10383
        %v11189 = vunpack.c.l.b16 %v10384
        %v11190 = vunpack.c.l.b16 %v10386
        %v11191 = vunpack.c.l.b16 %v10387
        %v11192 = vunpack.c.l.b16 %v10389
        %v11193 = vunpack.c.l.b16 %v10390
        %v11194 = vpack.c.b16 %v11163, %v11162
        %v11195 = vpack.c.b16 %v11165, %v11164
        %v11196 = vpack.c.b16 %v11167, %v11166
        %v11197 = vpack.c.b16 %v11169, %v11168
        %v11198 = vpack.c.b16 %v11171, %v11170
        %v11199 = vpack.c.b16 %v11173, %v11172
        %v11200 = vpack.c.b16 %v11175, %v11174
        %v11201 = vpack.c.b16 %v11177, %v11176
        %v11202 = vpack.c.b16 %v11179, %v11178
        %v11203 = vpack.c.b16 %v11181, %v11180
        %v11204 = vpack.c.b16 %v11183, %v11182
        %v11205 = vpack.c.b16 %v11185, %v11184
        %v11206 = vpack.c.b16 %v11187, %v11186
        %v11207 = vpack.c.b16 %v11189, %v11188
        %v11208 = vpack.c.b16 %v11191, %v11190
        %v11209 = vpack.c.b16 %v11193, %v11192
        %v11242 = vunpack.c.l.b16 %v11114
        %v11243 = vunpack.c.l.b16 %v11115
        %v11244 = vunpack.c.l.b16 %v11116
        %v11245 = vunpack.c.l.b16 %v11117
        %v11246 = vunpack.c.l.b16 %v11118
        %v11247 = vunpack.c.l.b16 %v11119
        %v11248 = vunpack.c.l.b16 %v11120
        %v11249 = vunpack.c.l.b16 %v11121
        %v11250 = vunpack.c.l.b16 %v11122
        %v11251 = vunpack.c.l.b16 %v11123
        %v11252 = vunpack.c.l.b16 %v11124
        %v11253 = vunpack.c.l.b16 %v11125
        %v11254 = vunpack.c.l.b16 %v11126
        %v11255 = vunpack.c.l.b16 %v11127
        %v11256 = vunpack.c.l.b16 %v11128
        %v11257 = vunpack.c.l.b16 %v11129
        %v11258 = vpack.c.b16 %v11243, %v11242
        %v11259 = vpack.c.b16 %v11245, %v11244
        %v11260 = vpack.c.b16 %v11247, %v11246
        %v11261 = vpack.c.b16 %v11249, %v11248
        %v11262 = vpack.c.b16 %v11251, %v11250
        %v11263 = vpack.c.b16 %v11253, %v11252
        %v11264 = vpack.c.b16 %v11255, %v11254
        %v11265 = vpack.c.b16 %v11257, %v11256
        %11274 = vmatprep.subr.bf16.mxu0 0
        %11275 = vmatpush1.bf16.msra.mxu0 %v11265
        %11276 = vmatprep.subr.bf16.mxu0 0
        %11277 = vmatpush1.bf16.msra.mxu0 %v11264
        %11278 = vmatprep.subr.bf16.mxu0 0
        %11279 = vmatpush1.bf16.msra.mxu0 %v11263
        %11280 = vmatprep.subr.bf16.mxu0 0
        %11281 = vmatpush1.bf16.msra.mxu0 %v11262
        %11282 = vmatprep.subr.bf16.mxu0 0
        %11283 = vmatpush1.bf16.msra.mxu0 %v11261
        %11284 = vmatprep.subr.bf16.mxu0 0
        %11285 = vmatpush1.bf16.msra.mxu0 %v11260
        %11286 = vmatprep.subr.bf16.mxu0 0
        %11287 = vmatpush1.bf16.msra.mxu0 %v11259
        %11288 = vmatprep.subr.bf16.mxu0 0
        %11289 = vmatpush1.bf16.msra.mxu0 %v11258
        %11290 = vmatprep.subr.bf16.mxu0 0
        %11291 = vmatpush2.bf16.msra.mxu0 0
        %11292 = vmatprep.subr.bf16.mxu0 0
        %11293 = vmatpush2.bf16.msra.mxu0 0
        %11294 = vmatprep.subr.bf16.mxu0 0
        %11295 = vmatpush2.bf16.msra.mxu0 0
        %11296 = vmatprep.subr.bf16.mxu0 0
        %11297 = vmatpush2.bf16.msra.mxu0 0
        %11298 = vmatprep.subr.bf16.mxu0 0
        %11299 = vmatpush2.bf16.msra.mxu0 0
        %11300 = vmatprep.subr.bf16.mxu0 0
        %11301 = vmatpush2.bf16.msra.mxu0 0
        %11302 = vmatprep.subr.bf16.mxu0 0
        %11303 = vmatpush2.bf16.msra.mxu0 0
        %11304 = vmatprep.subr.bf16.mxu0 0
        %11305 = vmatpush2.bf16.msra.mxu0 0
        %11306 = vmatprep.mubr.bf16.mxu0 0
        %11307 = vmatmul.mubr.bf16.gmra.mxu0 %v11194
        %v11308 = vpop.f32.mrf.mxu0
        %v11309 = vadd.f32 0.0, %v11308
        %v11310 = vpop.f32.mrf.mxu0
        %v11311 = vpop.f32.mrf.mxu0
        %v11312 = vadd.f32 0.0, %v11311
        %v11313 = vpop.f32.mrf.mxu0
        %11314 = vmatprep.mubr.bf16.mxu0 0
        %11315 = vmatmul.mubr.bf16.gmra.mxu0 %v11195
        %v11316 = vpop.f32.mrf.mxu0
        %v11317 = vadd.f32 0.0, %v11316
        %v11318 = vpop.f32.mrf.mxu0
        %v11319 = vpop.f32.mrf.mxu0
        %v11320 = vadd.f32 0.0, %v11319
        %v11321 = vpop.f32.mrf.mxu0
        %11322 = vmatprep.mubr.bf16.mxu0 0
        %11323 = vmatmul.mubr.bf16.gmra.mxu0 %v11196
        %v11324 = vpop.f32.mrf.mxu0
        %v11325 = vadd.f32 0.0, %v11324
        %v11326 = vpop.f32.mrf.mxu0
        %v11327 = vpop.f32.mrf.mxu0
        %v11328 = vadd.f32 0.0, %v11327
        %v11329 = vpop.f32.mrf.mxu0
        %11330 = vmatprep.mubr.bf16.mxu0 0
        %11331 = vmatmul.mubr.bf16.gmra.mxu0 %v11197
        %v11332 = vpop.f32.mrf.mxu0
        %v11333 = vadd.f32 0.0, %v11332
        %v11334 = vpop.f32.mrf.mxu0
        %v11335 = vpop.f32.mrf.mxu0
        %v11336 = vadd.f32 0.0, %v11335
        %v11337 = vpop.f32.mrf.mxu0
        %11338 = vmatprep.mubr.bf16.mxu0 0
        %11339 = vmatmul.mubr.bf16.gmra.mxu0 %v11198
        %v11340 = vpop.f32.mrf.mxu0
        %v11341 = vadd.f32 0.0, %v11340
        %v11342 = vpop.f32.mrf.mxu0
        %v11343 = vpop.f32.mrf.mxu0
        %v11344 = vadd.f32 0.0, %v11343
        %v11345 = vpop.f32.mrf.mxu0
        %11346 = vmatprep.mubr.bf16.mxu0 0
        %11347 = vmatmul.mubr.bf16.gmra.mxu0 %v11199
        %v11348 = vpop.f32.mrf.mxu0
        %v11349 = vadd.f32 0.0, %v11348
        %v11350 = vpop.f32.mrf.mxu0
        %v11351 = vpop.f32.mrf.mxu0
        %v11352 = vadd.f32 0.0, %v11351
        %v11353 = vpop.f32.mrf.mxu0
        %11354 = vmatprep.mubr.bf16.mxu0 0
        %11355 = vmatmul.mubr.bf16.gmra.mxu0 %v11200
        %v11356 = vpop.f32.mrf.mxu0
        %v11357 = vadd.f32 0.0, %v11356
        %v11358 = vpop.f32.mrf.mxu0
        %v11359 = vpop.f32.mrf.mxu0
        %v11360 = vadd.f32 0.0, %v11359
        %v11361 = vpop.f32.mrf.mxu0
        %11362 = vmatprep.mubr.bf16.mxu0 0
        %11363 = vmatmul.mubr.bf16.gmra.mxu0 %v11201
        %v11364 = vpop.f32.mrf.mxu0
        %v11365 = vadd.f32 0.0, %v11364
        %v11366 = vpop.f32.mrf.mxu0
        %v11367 = vpop.f32.mrf.mxu0
        %v11368 = vadd.f32 0.0, %v11367
        %v11369 = vpop.f32.mrf.mxu0
        %11370 = vmatprep.mubr.bf16.mxu0 0
        %11371 = vmatmul.mubr.bf16.gmra.mxu0 %v11202
        %v11372 = vpop.f32.mrf.mxu0
        %v11373 = vadd.f32 0.0, %v11372
        %v11374 = vpop.f32.mrf.mxu0
        %v11375 = vpop.f32.mrf.mxu0
        %v11376 = vadd.f32 0.0, %v11375
        %v11377 = vpop.f32.mrf.mxu0
        %11378 = vmatprep.mubr.bf16.mxu0 0
        %11379 = vmatmul.mubr.bf16.gmra.mxu0 %v11203
        %v11380 = vpop.f32.mrf.mxu0
        %v11381 = vadd.f32 0.0, %v11380
        %v11382 = vpop.f32.mrf.mxu0
        %v11383 = vpop.f32.mrf.mxu0
        %v11384 = vadd.f32 0.0, %v11383
        %v11385 = vpop.f32.mrf.mxu0
        %11386 = vmatprep.mubr.bf16.mxu0 0
        %11387 = vmatmul.mubr.bf16.gmra.mxu0 %v11204
        %v11388 = vpop.f32.mrf.mxu0
        %v11389 = vadd.f32 0.0, %v11388
        %v11390 = vpop.f32.mrf.mxu0
        %v11391 = vpop.f32.mrf.mxu0
        %v11392 = vadd.f32 0.0, %v11391
        %v11393 = vpop.f32.mrf.mxu0
        %11394 = vmatprep.mubr.bf16.mxu0 0
        %11395 = vmatmul.mubr.bf16.gmra.mxu0 %v11205
        %v11396 = vpop.f32.mrf.mxu0
        %v11397 = vadd.f32 0.0, %v11396
        %v11398 = vpop.f32.mrf.mxu0
        %v11399 = vpop.f32.mrf.mxu0
        %v11400 = vadd.f32 0.0, %v11399
        %v11401 = vpop.f32.mrf.mxu0
        %11402 = vmatprep.mubr.bf16.mxu0 0
        %11403 = vmatmul.mubr.bf16.gmra.mxu0 %v11206
        %v11404 = vpop.f32.mrf.mxu0
        %v11405 = vadd.f32 0.0, %v11404
        %v11406 = vpop.f32.mrf.mxu0
        %v11407 = vpop.f32.mrf.mxu0
        %v11408 = vadd.f32 0.0, %v11407
        %v11409 = vpop.f32.mrf.mxu0
        %11410 = vmatprep.mubr.bf16.mxu0 0
        %11411 = vmatmul.mubr.bf16.gmra.mxu0 %v11207
        %v11412 = vpop.f32.mrf.mxu0
        %v11413 = vadd.f32 0.0, %v11412
        %v11414 = vpop.f32.mrf.mxu0
        %v11415 = vpop.f32.mrf.mxu0
        %v11416 = vadd.f32 0.0, %v11415
        %v11417 = vpop.f32.mrf.mxu0
        %11418 = vmatprep.mubr.bf16.mxu0 0
        %11419 = vmatmul.mubr.bf16.gmra.mxu0 %v11208
        %v11420 = vpop.f32.mrf.mxu0
        %v11421 = vadd.f32 0.0, %v11420
        %v11422 = vpop.f32.mrf.mxu0
        %v11423 = vpop.f32.mrf.mxu0
        %v11424 = vadd.f32 0.0, %v11423
        %v11425 = vpop.f32.mrf.mxu0
        %11426 = vmatprep.mubr.bf16.mxu0 0
        %11427 = vmatmul.mubr.bf16.gmra.mxu0 %v11209
        %v11428 = vpop.f32.mrf.mxu0
        %v11429 = vadd.f32 0.0, %v11428
        %v11430 = vpop.f32.mrf.mxu0
        %v11431 = vpop.f32.mrf.mxu0
        %v11432 = vadd.f32 0.0, %v11431
        %v11433 = vpop.f32.mrf.mxu0
        %11434 = vdwg.mxu0
        %v11435 = vadd.f32 %v11081, %v11309
        %v11436 = vadd.f32 %v11082, %v11312
        %v11437 = vadd.f32 %v11083, %v11317
        %v11438 = vadd.f32 %v11084, %v11320
        %v11439 = vadd.f32 %v11085, %v11325
        %v11440 = vadd.f32 %v11086, %v11328
        %v11441 = vadd.f32 %v11087, %v11333
        %v11442 = vadd.f32 %v11088, %v11336
        %v11443 = vadd.f32 %v11089, %v11341
        %v11444 = vadd.f32 %v11090, %v11344
        %v11445 = vadd.f32 %v11091, %v11349
        %v11446 = vadd.f32 %v11092, %v11352
        %v11447 = vadd.f32 %v11093, %v11357
        %v11448 = vadd.f32 %v11094, %v11360
        %v11449 = vadd.f32 %v11095, %v11365
        %v11450 = vadd.f32 %v11096, %v11368
        %v11451 = vadd.f32 %v11097, %v11373
        %v11452 = vadd.f32 %v11098, %v11376
        %v11453 = vadd.f32 %v11099, %v11381
        %v11454 = vadd.f32 %v11100, %v11384
        %v11455 = vadd.f32 %v11101, %v11389
        %v11456 = vadd.f32 %v11102, %v11392
        %v11457 = vadd.f32 %v11103, %v11397
        %v11458 = vadd.f32 %v11104, %v11400
        %v11459 = vadd.f32 %v11105, %v11405
        %v11460 = vadd.f32 %v11106, %v11408
        %v11461 = vadd.f32 %v11107, %v11413
        %v11462 = vadd.f32 %v11108, %v11416
        %v11463 = vadd.f32 %v11109, %v11421
        %v11464 = vadd.f32 %v11110, %v11424
        %v11465 = vadd.f32 %v11111, %v11429
        %v11466 = vadd.f32 %v11112, %v11432
        %v11467 = vld [vmem:[%s10342 + $0x8] sm:$0xf]
        %v11468 = vld [vmem:[%s10342 + $0xc] sm:$0xf]
        %v11469 = vld [vmem:[%s10342 + $0x10] sm:$0x1]
        %v11470 = vld [vmem:[%s10342 + $0x20] sm:$0xf]
        %v11471 = vld [vmem:[%s10342 + $0x24] sm:$0xf]
        %v11472 = vld [vmem:[%s10342 + $0x28] sm:$0x1]
        %v11473 = vld [vmem:[%s10342 + $0x38] sm:$0xf]
        %v11474 = vld [vmem:[%s10342 + $0x3c] sm:$0xf]
        %v11475 = vld [vmem:[%s10342 + $0x40] sm:$0x1]
        %v11476 = vld [vmem:[%s10342 + $0x50] sm:$0xf]
        %v11477 = vld [vmem:[%s10342 + $0x54] sm:$0xf]
        %v11478 = vld [vmem:[%s10342 + $0x58] sm:$0x1]
        %v11479 = vld [vmem:[%s10342 + $0x68] sm:$0xf]
        %v11480 = vld [vmem:[%s10342 + $0x6c] sm:$0xf]
        %v11481 = vld [vmem:[%s10342 + $0x70] sm:$0x1]
        %v11482 = vld [vmem:[%s10342 + $0x80] sm:$0xf]
        %v11483 = vld [vmem:[%s10342 + $0x84] sm:$0xf]
        %v11484 = vld [vmem:[%s10342 + $0x88] sm:$0x1]
        %v11485 = vld [vmem:[%s10342 + $0x98] sm:$0xf]
        %v11486 = vld [vmem:[%s10342 + $0x9c] sm:$0xf]
        %v11487 = vld [vmem:[%s10342 + $0xa0] sm:$0x1]
        %v11488 = vld [vmem:[%s10342 + $0xb0] sm:$0xf]
        %v11489 = vld [vmem:[%s10342 + $0xb4] sm:$0xf]
        %v11490 = vld [vmem:[%s10342 + $0xb8] sm:$0x1]
        %v11491 = vld [vmem:[%s10342 + $0xc8] sm:$0xf]
        %v11492 = vld [vmem:[%s10342 + $0xcc] sm:$0xf]
        %v11493 = vld [vmem:[%s10342 + $0xd0] sm:$0x1]
        %v11494 = vld [vmem:[%s10342 + $0xe0] sm:$0xf]
        %v11495 = vld [vmem:[%s10342 + $0xe4] sm:$0xf]
        %v11496 = vld [vmem:[%s10342 + $0xe8] sm:$0x1]
        %v11497 = vld [vmem:[%s10342 + $0xf8] sm:$0xf]
        %v11498 = vld [vmem:[%s10342 + $0xfc] sm:$0xf]
        %v11499 = vld [vmem:[%s10342 + $0x100] sm:$0x1]
        %v11500 = vld [vmem:[%s10342 + $0x110] sm:$0xf]
        %v11501 = vld [vmem:[%s10342 + $0x114] sm:$0xf]
        %v11502 = vld [vmem:[%s10342 + $0x118] sm:$0x1]
        %v11503 = vld [vmem:[%s10342 + $0x128] sm:$0xf]
        %v11504 = vld [vmem:[%s10342 + $0x12c] sm:$0xf]
        %v11505 = vld [vmem:[%s10342 + $0x130] sm:$0x1]
        %v11506 = vld [vmem:[%s10342 + $0x140] sm:$0xf]
        %v11507 = vld [vmem:[%s10342 + $0x144] sm:$0xf]
        %v11508 = vld [vmem:[%s10342 + $0x148] sm:$0x1]
        %v11509 = vld [vmem:[%s10342 + $0x158] sm:$0xf]
        %v11510 = vld [vmem:[%s10342 + $0x15c] sm:$0xf]
        %v11511 = vld [vmem:[%s10342 + $0x160] sm:$0x1]
        %v11512 = vld [vmem:[%s10342 + $0x170] sm:$0xf]
        %v11513 = vld [vmem:[%s10342 + $0x174] sm:$0xf]
        %v11514 = vld [vmem:[%s10342 + $0x178] sm:$0x1]
        %v11515 = vsel %vm1674, %v11467, 0
        %v11516 = vsel %vm1675, %v11468, 0
        %v11517 = vsel %vm1676, %v11469, 0
        %v11518 = vsel %vm1674, %v11470, 0
        %v11519 = vsel %vm1675, %v11471, 0
        %v11520 = vsel %vm1676, %v11472, 0
        %v11521 = vsel %vm1674, %v11473, 0
        %v11522 = vsel %vm1675, %v11474, 0
        %v11523 = vsel %vm1676, %v11475, 0
        %v11524 = vsel %vm1674, %v11476, 0
        %v11525 = vsel %vm1675, %v11477, 0
        %v11526 = vsel %vm1676, %v11478, 0
        %v11527 = vsel %vm1674, %v11479, 0
        %v11528 = vsel %vm1675, %v11480, 0
        %v11529 = vsel %vm1676, %v11481, 0
        %v11530 = vsel %vm1674, %v11482, 0
        %v11531 = vsel %vm1675, %v11483, 0
        %v11532 = vsel %vm1676, %v11484, 0
        %v11533 = vsel %vm1674, %v11485, 0
        %v11534 = vsel %vm1675, %v11486, 0
        %v11535 = vsel %vm1676, %v11487, 0
        %v11536 = vsel %vm1674, %v11488, 0
        %v11537 = vsel %vm1675, %v11489, 0
        %v11538 = vsel %vm1676, %v11490, 0
        %v11539 = vsel %vm1674, %v11491, 0
        %v11540 = vsel %vm1675, %v11492, 0
        %v11541 = vsel %vm1676, %v11493, 0
        %v11542 = vsel %vm1674, %v11494, 0
        %v11543 = vsel %vm1675, %v11495, 0
        %v11544 = vsel %vm1676, %v11496, 0
        %v11545 = vsel %vm1674, %v11497, 0
        %v11546 = vsel %vm1675, %v11498, 0
        %v11547 = vsel %vm1676, %v11499, 0
        %v11548 = vsel %vm1674, %v11500, 0
        %v11549 = vsel %vm1675, %v11501, 0
        %v11550 = vsel %vm1676, %v11502, 0
        %v11551 = vsel %vm1674, %v11503, 0
        %v11552 = vsel %vm1675, %v11504, 0
        %v11553 = vsel %vm1676, %v11505, 0
        %v11554 = vsel %vm1674, %v11506, 0
        %v11555 = vsel %vm1675, %v11507, 0
        %v11556 = vsel %vm1676, %v11508, 0
        %v11557 = vsel %vm1674, %v11509, 0
        %v11558 = vsel %vm1675, %v11510, 0
        %v11559 = vsel %vm1676, %v11511, 0
        %v11560 = vsel %vm1674, %v11512, 0
        %v11561 = vsel %vm1675, %v11513, 0
        %v11562 = vsel %vm1676, %v11514, 0
        %v11564 = vshrl.u32 %v11515, 16
        %v11566 = vrot.slane %v11564, 4
        %v11567 = vshll.u32 %v11515, 16
        %v11569 = vrot.slane %v11567, 5
        %v11570 = vor.u32 %v11566, %v11569
        %v11571 = vrot.slane %v11570, 4
        %v11573 = vshll.u32 %v11516, 16
        %v11575 = vrot.slane %v11573, 5
        %v11576 = vsel %vm564, %v11571, %v11575
        %v11577 = vshrl.u32 %v11516, 16
        %v11579 = vrot.slane %v11577, 4
        %v11580 = vor.u32 %v11579, %v11575
        %v11581 = vrot.slane %v11580, 4
        %v11583 = vshll.u32 %v11517, 16
        %v11585 = vrot.slane %v11583, 5
        %v11586 = vsel %vm564, %v11581, %v11585
        %v11588 = vshrl.u32 %v11518, 16
        %v11590 = vrot.slane %v11588, 4
        %v11591 = vshll.u32 %v11518, 16
        %v11593 = vrot.slane %v11591, 5
        %v11594 = vor.u32 %v11590, %v11593
        %v11595 = vrot.slane %v11594, 4
        %v11597 = vshll.u32 %v11519, 16
        %v11599 = vrot.slane %v11597, 5
        %v11600 = vsel %vm564, %v11595, %v11599
        %v11601 = vshrl.u32 %v11519, 16
        %v11603 = vrot.slane %v11601, 4
        %v11604 = vor.u32 %v11603, %v11599
        %v11605 = vrot.slane %v11604, 4
        %v11607 = vshll.u32 %v11520, 16
        %v11609 = vrot.slane %v11607, 5
        %v11610 = vsel %vm564, %v11605, %v11609
        %v11612 = vshrl.u32 %v11521, 16
        %v11614 = vrot.slane %v11612, 4
        %v11615 = vshll.u32 %v11521, 16
        %v11617 = vrot.slane %v11615, 5
        %v11618 = vor.u32 %v11614, %v11617
        %v11619 = vrot.slane %v11618, 4
        %v11621 = vshll.u32 %v11522, 16
        %v11623 = vrot.slane %v11621, 5
        %v11624 = vsel %vm564, %v11619, %v11623
        %v11625 = vshrl.u32 %v11522, 16
        %v11627 = vrot.slane %v11625, 4
        %v11628 = vor.u32 %v11627, %v11623
        %v11629 = vrot.slane %v11628, 4
        %v11631 = vshll.u32 %v11523, 16
        %v11633 = vrot.slane %v11631, 5
        %v11634 = vsel %vm564, %v11629, %v11633
        %v11636 = vshrl.u32 %v11524, 16
        %v11638 = vrot.slane %v11636, 4
        %v11639 = vshll.u32 %v11524, 16
        %v11641 = vrot.slane %v11639, 5
        %v11642 = vor.u32 %v11638, %v11641
        %v11643 = vrot.slane %v11642, 4
        %v11645 = vshll.u32 %v11525, 16
        %v11647 = vrot.slane %v11645, 5
        %v11648 = vsel %vm564, %v11643, %v11647
        %v11649 = vshrl.u32 %v11525, 16
        %v11651 = vrot.slane %v11649, 4
        %v11652 = vor.u32 %v11651, %v11647
        %v11653 = vrot.slane %v11652, 4
        %v11655 = vshll.u32 %v11526, 16
        %v11657 = vrot.slane %v11655, 5
        %v11658 = vsel %vm564, %v11653, %v11657
        %v11660 = vshrl.u32 %v11527, 16
        %v11662 = vrot.slane %v11660, 4
        %v11663 = vshll.u32 %v11527, 16
        %v11665 = vrot.slane %v11663, 5
        %v11666 = vor.u32 %v11662, %v11665
        %v11667 = vrot.slane %v11666, 4
        %v11669 = vshll.u32 %v11528, 16
        %v11671 = vrot.slane %v11669, 5
        %v11672 = vsel %vm564, %v11667, %v11671
        %v11673 = vshrl.u32 %v11528, 16
        %v11675 = vrot.slane %v11673, 4
        %v11676 = vor.u32 %v11675, %v11671
        %v11677 = vrot.slane %v11676, 4
        %v11679 = vshll.u32 %v11529, 16
        %v11681 = vrot.slane %v11679, 5
        %v11682 = vsel %vm564, %v11677, %v11681
        %v11684 = vshrl.u32 %v11530, 16
        %v11686 = vrot.slane %v11684, 4
        %v11687 = vshll.u32 %v11530, 16
        %v11689 = vrot.slane %v11687, 5
        %v11690 = vor.u32 %v11686, %v11689
        %v11691 = vrot.slane %v11690, 4
        %v11693 = vshll.u32 %v11531, 16
        %v11695 = vrot.slane %v11693, 5
        %v11696 = vsel %vm564, %v11691, %v11695
        %v11697 = vshrl.u32 %v11531, 16
        %v11699 = vrot.slane %v11697, 4
        %v11700 = vor.u32 %v11699, %v11695
        %v11701 = vrot.slane %v11700, 4
        %v11703 = vshll.u32 %v11532, 16
        %v11705 = vrot.slane %v11703, 5
        %v11706 = vsel %vm564, %v11701, %v11705
        %v11708 = vshrl.u32 %v11533, 16
        %v11710 = vrot.slane %v11708, 4
        %v11711 = vshll.u32 %v11533, 16
        %v11713 = vrot.slane %v11711, 5
        %v11714 = vor.u32 %v11710, %v11713
        %v11715 = vrot.slane %v11714, 4
        %v11717 = vshll.u32 %v11534, 16
        %v11719 = vrot.slane %v11717, 5
        %v11720 = vsel %vm564, %v11715, %v11719
        %v11721 = vshrl.u32 %v11534, 16
        %v11723 = vrot.slane %v11721, 4
        %v11724 = vor.u32 %v11723, %v11719
        %v11725 = vrot.slane %v11724, 4
        %v11727 = vshll.u32 %v11535, 16
        %v11729 = vrot.slane %v11727, 5
        %v11730 = vsel %vm564, %v11725, %v11729
        %v11732 = vshrl.u32 %v11536, 16
        %v11734 = vrot.slane %v11732, 4
        %v11735 = vshll.u32 %v11536, 16
        %v11737 = vrot.slane %v11735, 5
        %v11738 = vor.u32 %v11734, %v11737
        %v11739 = vrot.slane %v11738, 4
        %v11741 = vshll.u32 %v11537, 16
        %v11743 = vrot.slane %v11741, 5
        %v11744 = vsel %vm564, %v11739, %v11743
        %v11745 = vshrl.u32 %v11537, 16
        %v11747 = vrot.slane %v11745, 4
        %v11748 = vor.u32 %v11747, %v11743
        %v11749 = vrot.slane %v11748, 4
        %v11751 = vshll.u32 %v11538, 16
        %v11753 = vrot.slane %v11751, 5
        %v11754 = vsel %vm564, %v11749, %v11753
        %v11756 = vshrl.u32 %v11539, 16
        %v11758 = vrot.slane %v11756, 4
        %v11759 = vshll.u32 %v11539, 16
        %v11761 = vrot.slane %v11759, 5
        %v11762 = vor.u32 %v11758, %v11761
        %v11763 = vrot.slane %v11762, 4
        %v11765 = vshll.u32 %v11540, 16
        %v11767 = vrot.slane %v11765, 5
        %v11768 = vsel %vm564, %v11763, %v11767
        %v11769 = vshrl.u32 %v11540, 16
        %v11771 = vrot.slane %v11769, 4
        %v11772 = vor.u32 %v11771, %v11767
        %v11773 = vrot.slane %v11772, 4
        %v11775 = vshll.u32 %v11541, 16
        %v11777 = vrot.slane %v11775, 5
        %v11778 = vsel %vm564, %v11773, %v11777
        %v11780 = vshrl.u32 %v11542, 16
        %v11782 = vrot.slane %v11780, 4
        %v11783 = vshll.u32 %v11542, 16
        %v11785 = vrot.slane %v11783, 5
        %v11786 = vor.u32 %v11782, %v11785
        %v11787 = vrot.slane %v11786, 4
        %v11789 = vshll.u32 %v11543, 16
        %v11791 = vrot.slane %v11789, 5
        %v11792 = vsel %vm564, %v11787, %v11791
        %v11793 = vshrl.u32 %v11543, 16
        %v11795 = vrot.slane %v11793, 4
        %v11796 = vor.u32 %v11795, %v11791
        %v11797 = vrot.slane %v11796, 4
        %v11799 = vshll.u32 %v11544, 16
        %v11801 = vrot.slane %v11799, 5
        %v11802 = vsel %vm564, %v11797, %v11801
        %v11804 = vshrl.u32 %v11545, 16
        %v11806 = vrot.slane %v11804, 4
        %v11807 = vshll.u32 %v11545, 16
        %v11809 = vrot.slane %v11807, 5
        %v11810 = vor.u32 %v11806, %v11809
        %v11811 = vrot.slane %v11810, 4
        %v11813 = vshll.u32 %v11546, 16
        %v11815 = vrot.slane %v11813, 5
        %v11816 = vsel %vm564, %v11811, %v11815
        %v11817 = vshrl.u32 %v11546, 16
        %v11819 = vrot.slane %v11817, 4
        %v11820 = vor.u32 %v11819, %v11815
        %v11821 = vrot.slane %v11820, 4
        %v11823 = vshll.u32 %v11547, 16
        %v11825 = vrot.slane %v11823, 5
        %v11826 = vsel %vm564, %v11821, %v11825
        %v11828 = vshrl.u32 %v11548, 16
        %v11830 = vrot.slane %v11828, 4
        %v11831 = vshll.u32 %v11548, 16
        %v11833 = vrot.slane %v11831, 5
        %v11834 = vor.u32 %v11830, %v11833
        %v11835 = vrot.slane %v11834, 4
        %v11837 = vshll.u32 %v11549, 16
        %v11839 = vrot.slane %v11837, 5
        %v11840 = vsel %vm564, %v11835, %v11839
        %v11841 = vshrl.u32 %v11549, 16
        %v11843 = vrot.slane %v11841, 4
        %v11844 = vor.u32 %v11843, %v11839
        %v11845 = vrot.slane %v11844, 4
        %v11847 = vshll.u32 %v11550, 16
        %v11849 = vrot.slane %v11847, 5
        %v11850 = vsel %vm564, %v11845, %v11849
        %v11852 = vshrl.u32 %v11551, 16
        %v11854 = vrot.slane %v11852, 4
        %v11855 = vshll.u32 %v11551, 16
        %v11857 = vrot.slane %v11855, 5
        %v11858 = vor.u32 %v11854, %v11857
        %v11859 = vrot.slane %v11858, 4
        %v11861 = vshll.u32 %v11552, 16
        %v11863 = vrot.slane %v11861, 5
        %v11864 = vsel %vm564, %v11859, %v11863
        %v11865 = vshrl.u32 %v11552, 16
        %v11867 = vrot.slane %v11865, 4
        %v11868 = vor.u32 %v11867, %v11863
        %v11869 = vrot.slane %v11868, 4
        %v11871 = vshll.u32 %v11553, 16
        %v11873 = vrot.slane %v11871, 5
        %v11874 = vsel %vm564, %v11869, %v11873
        %v11876 = vshrl.u32 %v11554, 16
        %v11878 = vrot.slane %v11876, 4
        %v11879 = vshll.u32 %v11554, 16
        %v11881 = vrot.slane %v11879, 5
        %v11882 = vor.u32 %v11878, %v11881
        %v11883 = vrot.slane %v11882, 4
        %v11885 = vshll.u32 %v11555, 16
        %v11887 = vrot.slane %v11885, 5
        %v11888 = vsel %vm564, %v11883, %v11887
        %v11889 = vshrl.u32 %v11555, 16
        %v11891 = vrot.slane %v11889, 4
        %v11892 = vor.u32 %v11891, %v11887
        %v11893 = vrot.slane %v11892, 4
        %v11895 = vshll.u32 %v11556, 16
        %v11897 = vrot.slane %v11895, 5
        %v11898 = vsel %vm564, %v11893, %v11897
        %v11900 = vshrl.u32 %v11557, 16
        %v11902 = vrot.slane %v11900, 4
        %v11903 = vshll.u32 %v11557, 16
        %v11905 = vrot.slane %v11903, 5
        %v11906 = vor.u32 %v11902, %v11905
        %v11907 = vrot.slane %v11906, 4
        %v11909 = vshll.u32 %v11558, 16
        %v11911 = vrot.slane %v11909, 5
        %v11912 = vsel %vm564, %v11907, %v11911
        %v11913 = vshrl.u32 %v11558, 16
        %v11915 = vrot.slane %v11913, 4
        %v11916 = vor.u32 %v11915, %v11911
        %v11917 = vrot.slane %v11916, 4
        %v11919 = vshll.u32 %v11559, 16
        %v11921 = vrot.slane %v11919, 5
        %v11922 = vsel %vm564, %v11917, %v11921
        %v11924 = vshrl.u32 %v11560, 16
        %v11926 = vrot.slane %v11924, 4
        %v11927 = vshll.u32 %v11560, 16
        %v11929 = vrot.slane %v11927, 5
        %v11930 = vor.u32 %v11926, %v11929
        %v11931 = vrot.slane %v11930, 4
        %v11933 = vshll.u32 %v11561, 16
        %v11935 = vrot.slane %v11933, 5
        %v11936 = vsel %vm564, %v11931, %v11935
        %v11937 = vshrl.u32 %v11561, 16
        %v11939 = vrot.slane %v11937, 4
        %v11940 = vor.u32 %v11939, %v11935
        %v11941 = vrot.slane %v11940, 4
        %v11943 = vshll.u32 %v11562, 16
        %v11945 = vrot.slane %v11943, 5
        %v11946 = vsel %vm564, %v11941, %v11945
        %s11947 = scalar_lea.vmem %s2, 512
        %v11948 = vld [vmem:[%s11947] sm:$0xf]
        %v11949 = vld [vmem:[%s11947 + $0x4] sm:$0xf]
        %v11950 = vld [vmem:[%s11947 + $0x8] sm:$0xf]
        %v11951 = vld [vmem:[%s11947 + $0xc] sm:$0xf]
        %v11952 = vld [vmem:[%s11947 + $0x10] sm:$0xf]
        %v11953 = vld [vmem:[%s11947 + $0x14] sm:$0xf]
        %v11954 = vld [vmem:[%s11947 + $0x18] sm:$0xf]
        %v11955 = vld [vmem:[%s11947 + $0x1c] sm:$0xf]
        %v11956 = vld [vmem:[%s11947 + $0x20] sm:$0xf]
        %v11957 = vld [vmem:[%s11947 + $0x24] sm:$0xf]
        %v11958 = vld [vmem:[%s11947 + $0x28] sm:$0xf]
        %v11959 = vld [vmem:[%s11947 + $0x2c] sm:$0xf]
        %v11960 = vld [vmem:[%s11947 + $0x30] sm:$0xf]
        %v11961 = vld [vmem:[%s11947 + $0x34] sm:$0xf]
        %v11962 = vld [vmem:[%s11947 + $0x38] sm:$0xf]
        %v11963 = vld [vmem:[%s11947 + $0x3c] sm:$0xf]
        %v11964 = vunpack.c.l.b16 %v11576
        %v11965 = vunpack.c.l.b16 %v11586
        %v11966 = vunpack.c.l.b16 %v11600
        %v11967 = vunpack.c.l.b16 %v11610
        %v11968 = vunpack.c.l.b16 %v11624
        %v11969 = vunpack.c.l.b16 %v11634
        %v11970 = vunpack.c.l.b16 %v11648
        %v11971 = vunpack.c.l.b16 %v11658
        %v11972 = vunpack.c.l.b16 %v11672
        %v11973 = vunpack.c.l.b16 %v11682
        %v11974 = vunpack.c.l.b16 %v11696
        %v11975 = vunpack.c.l.b16 %v11706
        %v11976 = vunpack.c.l.b16 %v11720
        %v11977 = vunpack.c.l.b16 %v11730
        %v11978 = vunpack.c.l.b16 %v11744
        %v11979 = vunpack.c.l.b16 %v11754
        %v11980 = vunpack.c.l.b16 %v11768
        %v11981 = vunpack.c.l.b16 %v11778
        %v11982 = vunpack.c.l.b16 %v11792
        %v11983 = vunpack.c.l.b16 %v11802
        %v11984 = vunpack.c.l.b16 %v11816
        %v11985 = vunpack.c.l.b16 %v11826
        %v11986 = vunpack.c.l.b16 %v11840
        %v11987 = vunpack.c.l.b16 %v11850
        %v11988 = vunpack.c.l.b16 %v11864
        %v11989 = vunpack.c.l.b16 %v11874
        %v11990 = vunpack.c.l.b16 %v11888
        %v11991 = vunpack.c.l.b16 %v11898
        %v11992 = vunpack.c.l.b16 %v11912
        %v11993 = vunpack.c.l.b16 %v11922
        %v11994 = vunpack.c.l.b16 %v11936
        %v11995 = vunpack.c.l.b16 %v11946
        %v11996 = vpack.c.b16 %v11965, %v11964
        %v11997 = vpack.c.b16 %v11967, %v11966
        %v11998 = vpack.c.b16 %v11969, %v11968
        %v11999 = vpack.c.b16 %v11971, %v11970
        %v12000 = vpack.c.b16 %v11973, %v11972
        %v12001 = vpack.c.b16 %v11975, %v11974
        %v12002 = vpack.c.b16 %v11977, %v11976
        %v12003 = vpack.c.b16 %v11979, %v11978
        %v12004 = vpack.c.b16 %v11981, %v11980
        %v12005 = vpack.c.b16 %v11983, %v11982
        %v12006 = vpack.c.b16 %v11985, %v11984
        %v12007 = vpack.c.b16 %v11987, %v11986
        %v12008 = vpack.c.b16 %v11989, %v11988
        %v12009 = vpack.c.b16 %v11991, %v11990
        %v12010 = vpack.c.b16 %v11993, %v11992
        %v12011 = vpack.c.b16 %v11995, %v11994
        %v12044 = vunpack.c.l.b16 %v11948
        %v12045 = vunpack.c.l.b16 %v11949
        %v12046 = vunpack.c.l.b16 %v11950
        %v12047 = vunpack.c.l.b16 %v11951
        %v12048 = vunpack.c.l.b16 %v11952
        %v12049 = vunpack.c.l.b16 %v11953
        %v12050 = vunpack.c.l.b16 %v11954
        %v12051 = vunpack.c.l.b16 %v11955
        %v12052 = vunpack.c.l.b16 %v11956
        %v12053 = vunpack.c.l.b16 %v11957
        %v12054 = vunpack.c.l.b16 %v11958
        %v12055 = vunpack.c.l.b16 %v11959
        %v12056 = vunpack.c.l.b16 %v11960
        %v12057 = vunpack.c.l.b16 %v11961
        %v12058 = vunpack.c.l.b16 %v11962
        %v12059 = vunpack.c.l.b16 %v11963
        %v12060 = vpack.c.b16 %v12045, %v12044
        %v12061 = vpack.c.b16 %v12047, %v12046
        %v12062 = vpack.c.b16 %v12049, %v12048
        %v12063 = vpack.c.b16 %v12051, %v12050
        %v12064 = vpack.c.b16 %v12053, %v12052
        %v12065 = vpack.c.b16 %v12055, %v12054
        %v12066 = vpack.c.b16 %v12057, %v12056
        %v12067 = vpack.c.b16 %v12059, %v12058
        %12076 = vmatprep.subr.bf16.mxu0 0
        %12077 = vmatpush1.bf16.msra.mxu0 %v12067
        %12078 = vmatprep.subr.bf16.mxu0 0
        %12079 = vmatpush1.bf16.msra.mxu0 %v12066
        %12080 = vmatprep.subr.bf16.mxu0 0
        %12081 = vmatpush1.bf16.msra.mxu0 %v12065
        %12082 = vmatprep.subr.bf16.mxu0 0
        %12083 = vmatpush1.bf16.msra.mxu0 %v12064
        %12084 = vmatprep.subr.bf16.mxu0 0
        %12085 = vmatpush1.bf16.msra.mxu0 %v12063
        %12086 = vmatprep.subr.bf16.mxu0 0
        %12087 = vmatpush1.bf16.msra.mxu0 %v12062
        %12088 = vmatprep.subr.bf16.mxu0 0
        %12089 = vmatpush1.bf16.msra.mxu0 %v12061
        %12090 = vmatprep.subr.bf16.mxu0 0
        %12091 = vmatpush1.bf16.msra.mxu0 %v12060
        %12092 = vmatprep.subr.bf16.mxu0 0
        %12093 = vmatpush2.bf16.msra.mxu0 0
        %12094 = vmatprep.subr.bf16.mxu0 0
        %12095 = vmatpush2.bf16.msra.mxu0 0
        %12096 = vmatprep.subr.bf16.mxu0 0
        %12097 = vmatpush2.bf16.msra.mxu0 0
        %12098 = vmatprep.subr.bf16.mxu0 0
        %12099 = vmatpush2.bf16.msra.mxu0 0
        %12100 = vmatprep.subr.bf16.mxu0 0
        %12101 = vmatpush2.bf16.msra.mxu0 0
        %12102 = vmatprep.subr.bf16.mxu0 0
        %12103 = vmatpush2.bf16.msra.mxu0 0
        %12104 = vmatprep.subr.bf16.mxu0 0
        %12105 = vmatpush2.bf16.msra.mxu0 0
        %12106 = vmatprep.subr.bf16.mxu0 0
        %12107 = vmatpush2.bf16.msra.mxu0 0
        %12108 = vmatprep.mubr.bf16.mxu0 0
        %12109 = vmatmul.mubr.bf16.gmra.mxu0 %v11996
        %v12110 = vpop.f32.mrf.mxu0
        %v12111 = vadd.f32 0.0, %v12110
        %v12112 = vpop.f32.mrf.mxu0
        %v12113 = vpop.f32.mrf.mxu0
        %v12114 = vadd.f32 0.0, %v12113
        %v12115 = vpop.f32.mrf.mxu0
        %12116 = vmatprep.mubr.bf16.mxu0 0
        %12117 = vmatmul.mubr.bf16.gmra.mxu0 %v11997
        %v12118 = vpop.f32.mrf.mxu0
        %v12119 = vadd.f32 0.0, %v12118
        %v12120 = vpop.f32.mrf.mxu0
        %v12121 = vpop.f32.mrf.mxu0
        %v12122 = vadd.f32 0.0, %v12121
        %v12123 = vpop.f32.mrf.mxu0
        %12124 = vmatprep.mubr.bf16.mxu0 0
        %12125 = vmatmul.mubr.bf16.gmra.mxu0 %v11998
        %v12126 = vpop.f32.mrf.mxu0
        %v12127 = vadd.f32 0.0, %v12126
        %v12128 = vpop.f32.mrf.mxu0
        %v12129 = vpop.f32.mrf.mxu0
        %v12130 = vadd.f32 0.0, %v12129
        %v12131 = vpop.f32.mrf.mxu0
        %12132 = vmatprep.mubr.bf16.mxu0 0
        %12133 = vmatmul.mubr.bf16.gmra.mxu0 %v11999
        %v12134 = vpop.f32.mrf.mxu0
        %v12135 = vadd.f32 0.0, %v12134
        %v12136 = vpop.f32.mrf.mxu0
        %v12137 = vpop.f32.mrf.mxu0
        %v12138 = vadd.f32 0.0, %v12137
        %v12139 = vpop.f32.mrf.mxu0
        %12140 = vmatprep.mubr.bf16.mxu0 0
        %12141 = vmatmul.mubr.bf16.gmra.mxu0 %v12000
        %v12142 = vpop.f32.mrf.mxu0
        %v12143 = vadd.f32 0.0, %v12142
        %v12144 = vpop.f32.mrf.mxu0
        %v12145 = vpop.f32.mrf.mxu0
        %v12146 = vadd.f32 0.0, %v12145
        %v12147 = vpop.f32.mrf.mxu0
        %12148 = vmatprep.mubr.bf16.mxu0 0
        %12149 = vmatmul.mubr.bf16.gmra.mxu0 %v12001
        %v12150 = vpop.f32.mrf.mxu0
        %v12151 = vadd.f32 0.0, %v12150
        %v12152 = vpop.f32.mrf.mxu0
        %v12153 = vpop.f32.mrf.mxu0
        %v12154 = vadd.f32 0.0, %v12153
        %v12155 = vpop.f32.mrf.mxu0
        %12156 = vmatprep.mubr.bf16.mxu0 0
        %12157 = vmatmul.mubr.bf16.gmra.mxu0 %v12002
        %v12158 = vpop.f32.mrf.mxu0
        %v12159 = vadd.f32 0.0, %v12158
        %v12160 = vpop.f32.mrf.mxu0
        %v12161 = vpop.f32.mrf.mxu0
        %v12162 = vadd.f32 0.0, %v12161
        %v12163 = vpop.f32.mrf.mxu0
        %12164 = vmatprep.mubr.bf16.mxu0 0
        %12165 = vmatmul.mubr.bf16.gmra.mxu0 %v12003
        %v12166 = vpop.f32.mrf.mxu0
        %v12167 = vadd.f32 0.0, %v12166
        %v12168 = vpop.f32.mrf.mxu0
        %v12169 = vpop.f32.mrf.mxu0
        %v12170 = vadd.f32 0.0, %v12169
        %v12171 = vpop.f32.mrf.mxu0
        %12172 = vmatprep.mubr.bf16.mxu0 0
        %12173 = vmatmul.mubr.bf16.gmra.mxu0 %v12004
        %v12174 = vpop.f32.mrf.mxu0
        %v12175 = vadd.f32 0.0, %v12174
        %v12176 = vpop.f32.mrf.mxu0
        %v12177 = vpop.f32.mrf.mxu0
        %v12178 = vadd.f32 0.0, %v12177
        %v12179 = vpop.f32.mrf.mxu0
        %12180 = vmatprep.mubr.bf16.mxu0 0
        %12181 = vmatmul.mubr.bf16.gmra.mxu0 %v12005
        %v12182 = vpop.f32.mrf.mxu0
        %v12183 = vadd.f32 0.0, %v12182
        %v12184 = vpop.f32.mrf.mxu0
        %v12185 = vpop.f32.mrf.mxu0
        %v12186 = vadd.f32 0.0, %v12185
        %v12187 = vpop.f32.mrf.mxu0
        %12188 = vmatprep.mubr.bf16.mxu0 0
        %12189 = vmatmul.mubr.bf16.gmra.mxu0 %v12006
        %v12190 = vpop.f32.mrf.mxu0
        %v12191 = vadd.f32 0.0, %v12190
        %v12192 = vpop.f32.mrf.mxu0
        %v12193 = vpop.f32.mrf.mxu0
        %v12194 = vadd.f32 0.0, %v12193
        %v12195 = vpop.f32.mrf.mxu0
        %12196 = vmatprep.mubr.bf16.mxu0 0
        %12197 = vmatmul.mubr.bf16.gmra.mxu0 %v12007
        %v12198 = vpop.f32.mrf.mxu0
        %v12199 = vadd.f32 0.0, %v12198
        %v12200 = vpop.f32.mrf.mxu0
        %v12201 = vpop.f32.mrf.mxu0
        %v12202 = vadd.f32 0.0, %v12201
        %v12203 = vpop.f32.mrf.mxu0
        %12204 = vmatprep.mubr.bf16.mxu0 0
        %12205 = vmatmul.mubr.bf16.gmra.mxu0 %v12008
        %v12206 = vpop.f32.mrf.mxu0
        %v12207 = vadd.f32 0.0, %v12206
        %v12208 = vpop.f32.mrf.mxu0
        %v12209 = vpop.f32.mrf.mxu0
        %v12210 = vadd.f32 0.0, %v12209
        %v12211 = vpop.f32.mrf.mxu0
        %12212 = vmatprep.mubr.bf16.mxu0 0
        %12213 = vmatmul.mubr.bf16.gmra.mxu0 %v12009
        %v12214 = vpop.f32.mrf.mxu0
        %v12215 = vadd.f32 0.0, %v12214
        %v12216 = vpop.f32.mrf.mxu0
        %v12217 = vpop.f32.mrf.mxu0
        %v12218 = vadd.f32 0.0, %v12217
        %v12219 = vpop.f32.mrf.mxu0
        %12220 = vmatprep.mubr.bf16.mxu0 0
        %12221 = vmatmul.mubr.bf16.gmra.mxu0 %v12010
        %v12222 = vpop.f32.mrf.mxu0
        %v12223 = vadd.f32 0.0, %v12222
        %v12224 = vpop.f32.mrf.mxu0
        %v12225 = vpop.f32.mrf.mxu0
        %v12226 = vadd.f32 0.0, %v12225
        %v12227 = vpop.f32.mrf.mxu0
        %12228 = vmatprep.mubr.bf16.mxu0 0
        %12229 = vmatmul.mubr.bf16.gmra.mxu0 %v12011
        %v12230 = vpop.f32.mrf.mxu0
        %v12231 = vadd.f32 0.0, %v12230
        %v12232 = vpop.f32.mrf.mxu0
        %v12233 = vpop.f32.mrf.mxu0
        %v12234 = vadd.f32 0.0, %v12233
        %v12235 = vpop.f32.mrf.mxu0
        %12236 = vdwg.mxu0
        %v12237 = vadd.f32 %v11435, %v12111
        %v12238 = vadd.f32 %v11436, %v12114
        %v12239 = vadd.f32 %v11437, %v12119
        %v12240 = vadd.f32 %v11438, %v12122
        %v12241 = vadd.f32 %v11439, %v12127
        %v12242 = vadd.f32 %v11440, %v12130
        %v12243 = vadd.f32 %v11441, %v12135
        %v12244 = vadd.f32 %v11442, %v12138
        %v12245 = vadd.f32 %v11443, %v12143
        %v12246 = vadd.f32 %v11444, %v12146
        %v12247 = vadd.f32 %v11445, %v12151
        %v12248 = vadd.f32 %v11446, %v12154
        %v12249 = vadd.f32 %v11447, %v12159
        %v12250 = vadd.f32 %v11448, %v12162
        %v12251 = vadd.f32 %v11449, %v12167
        %v12252 = vadd.f32 %v11450, %v12170
        %v12253 = vadd.f32 %v11451, %v12175
        %v12254 = vadd.f32 %v11452, %v12178
        %v12255 = vadd.f32 %v11453, %v12183
        %v12256 = vadd.f32 %v11454, %v12186
        %v12257 = vadd.f32 %v11455, %v12191
        %v12258 = vadd.f32 %v11456, %v12194
        %v12259 = vadd.f32 %v11457, %v12199
        %v12260 = vadd.f32 %v11458, %v12202
        %v12261 = vadd.f32 %v11459, %v12207
        %v12262 = vadd.f32 %v11460, %v12210
        %v12263 = vadd.f32 %v11461, %v12215
        %v12264 = vadd.f32 %v11462, %v12218
        %v12265 = vadd.f32 %v11463, %v12223
        %v12266 = vadd.f32 %v11464, %v12226
        %v12267 = vadd.f32 %v11465, %v12231
        %v12268 = vadd.f32 %v11466, %v12234
        %v12269 = vld [vmem:[%s5] sm:$0x1]
        %v12271 = vlaneseq
        %v12272 = vshrl.u32 %v12271, 7
        %v12273 = vsub.s32 0, %v12272
        %v12274 = vrot.slane %v12269, %v12273
        %v12276 = vmul.f32 %v12237, %v12274
        %v12277 = vmul.f32 %v12238, %v12274
        %v12278 = vmul.f32 %v12239, %v12274
        %v12279 = vmul.f32 %v12240, %v12274
        %v12280 = vmul.f32 %v12241, %v12274
        %v12281 = vmul.f32 %v12242, %v12274
        %v12282 = vmul.f32 %v12243, %v12274
        %v12283 = vmul.f32 %v12244, %v12274
        %v12284 = vmul.f32 %v12245, %v12274
        %v12285 = vmul.f32 %v12246, %v12274
        %v12286 = vmul.f32 %v12247, %v12274
        %v12287 = vmul.f32 %v12248, %v12274
        %v12288 = vmul.f32 %v12249, %v12274
        %v12289 = vmul.f32 %v12250, %v12274
        %v12290 = vmul.f32 %v12251, %v12274
        %v12291 = vmul.f32 %v12252, %v12274
        %v12292 = vmul.f32 %v12253, %v12274
        %v12293 = vmul.f32 %v12254, %v12274
        %v12294 = vmul.f32 %v12255, %v12274
        %v12295 = vmul.f32 %v12256, %v12274
        %v12296 = vmul.f32 %v12257, %v12274
        %v12297 = vmul.f32 %v12258, %v12274
        %v12298 = vmul.f32 %v12259, %v12274
        %v12299 = vmul.f32 %v12260, %v12274
        %v12300 = vmul.f32 %v12261, %v12274
        %v12301 = vmul.f32 %v12262, %v12274
        %v12302 = vmul.f32 %v12263, %v12274
        %v12303 = vmul.f32 %v12264, %v12274
        %v12304 = vmul.f32 %v12265, %v12274
        %v12305 = vmul.f32 %v12266, %v12274
        %v12306 = vmul.f32 %v12267, %v12274
        %v12307 = vmul.f32 %v12268, %v12274
        %v12308 = vld [vmem:[%s6] sm:$0x1]
        %v12310 = vlaneseq
        %v12311 = vshrl.u32 %v12310, 7
        %v12312 = vsub.s32 0, %v12311
        %v12313 = vrot.slane %v12308, %v12312
        %v12315 = vadd.f32 %v12276, %v12313
        %v12316 = vadd.f32 %v12277, %v12313
        %v12317 = vadd.f32 %v12278, %v12313
        %v12318 = vadd.f32 %v12279, %v12313
        %v12319 = vadd.f32 %v12280, %v12313
        %v12320 = vadd.f32 %v12281, %v12313
        %v12321 = vadd.f32 %v12282, %v12313
        %v12322 = vadd.f32 %v12283, %v12313
        %v12323 = vadd.f32 %v12284, %v12313
        %v12324 = vadd.f32 %v12285, %v12313
        %v12325 = vadd.f32 %v12286, %v12313
        %v12326 = vadd.f32 %v12287, %v12313
        %v12327 = vadd.f32 %v12288, %v12313
        %v12328 = vadd.f32 %v12289, %v12313
        %v12329 = vadd.f32 %v12290, %v12313
        %v12330 = vadd.f32 %v12291, %v12313
        %v12331 = vadd.f32 %v12292, %v12313
        %v12332 = vadd.f32 %v12293, %v12313
        %v12333 = vadd.f32 %v12294, %v12313
        %v12334 = vadd.f32 %v12295, %v12313
        %v12335 = vadd.f32 %v12296, %v12313
        %v12336 = vadd.f32 %v12297, %v12313
        %v12337 = vadd.f32 %v12298, %v12313
        %v12338 = vadd.f32 %v12299, %v12313
        %v12339 = vadd.f32 %v12300, %v12313
        %v12340 = vadd.f32 %v12301, %v12313
        %v12341 = vadd.f32 %v12302, %v12313
        %v12342 = vadd.f32 %v12303, %v12313
        %v12343 = vadd.f32 %v12304, %v12313
        %v12344 = vadd.f32 %v12305, %v12313
        %v12345 = vadd.f32 %v12306, %v12313
        %v12346 = vadd.f32 %v12307, %v12313
        %v12347 = vld [vmem:[%s276] sm:$0xff]
        %v12348 = vld [vmem:[%s276 + $0x8] sm:$0xff]
        %v12349 = vld [vmem:[%s276 + $0x10] sm:$0xff]
        %v12350 = vld [vmem:[%s276 + $0x18] sm:$0xff]
        %v12351 = vld [vmem:[%s276 + $0x20] sm:$0xff]
        %v12352 = vld [vmem:[%s276 + $0x28] sm:$0xff]
        %v12353 = vld [vmem:[%s276 + $0x30] sm:$0xff]
        %v12354 = vld [vmem:[%s276 + $0x38] sm:$0xff]
        %v12355 = vld [vmem:[%s276 + $0x40] sm:$0xff]
        %v12356 = vld [vmem:[%s276 + $0x48] sm:$0xff]
        %v12357 = vld [vmem:[%s276 + $0x50] sm:$0xff]
        %v12358 = vld [vmem:[%s276 + $0x58] sm:$0xff]
        %v12359 = vld [vmem:[%s276 + $0x60] sm:$0xff]
        %v12360 = vld [vmem:[%s276 + $0x68] sm:$0xff]
        %v12361 = vld [vmem:[%s276 + $0x70] sm:$0xff]
        %v12362 = vld [vmem:[%s276 + $0x78] sm:$0xff]
        %v12363 = vld [vmem:[%s276 + $0x80] sm:$0xff]
        %v12364 = vld [vmem:[%s276 + $0x88] sm:$0xff]
        %v12365 = vld [vmem:[%s276 + $0x90] sm:$0xff]
        %v12366 = vld [vmem:[%s276 + $0x98] sm:$0xff]
        %v12367 = vld [vmem:[%s276 + $0xa0] sm:$0xff]
        %v12368 = vld [vmem:[%s276 + $0xa8] sm:$0xff]
        %v12369 = vld [vmem:[%s276 + $0xb0] sm:$0xff]
        %v12370 = vld [vmem:[%s276 + $0xb8] sm:$0xff]
        %v12371 = vld [vmem:[%s276 + $0xc0] sm:$0xff]
        %v12372 = vld [vmem:[%s276 + $0xc8] sm:$0xff]
        %v12373 = vld [vmem:[%s276 + $0xd0] sm:$0xff]
        %v12374 = vld [vmem:[%s276 + $0xd8] sm:$0xff]
        %v12375 = vld [vmem:[%s276 + $0xe0] sm:$0xff]
        %v12376 = vld [vmem:[%s276 + $0xe8] sm:$0xff]
        %v12377 = vld [vmem:[%s276 + $0xf0] sm:$0xff]
        %v12378 = vld [vmem:[%s276 + $0xf8] sm:$0xff]
        %v12379 = vadd.f32 %v12315, %v12347
        %v12380 = vadd.f32 %v12316, %v12348
        %v12381 = vadd.f32 %v12317, %v12349
        %v12382 = vadd.f32 %v12318, %v12350
        %v12383 = vadd.f32 %v12319, %v12351
        %v12384 = vadd.f32 %v12320, %v12352
        %v12385 = vadd.f32 %v12321, %v12353
        %v12386 = vadd.f32 %v12322, %v12354
        %v12387 = vadd.f32 %v12323, %v12355
        %v12388 = vadd.f32 %v12324, %v12356
        %v12389 = vadd.f32 %v12325, %v12357
        %v12390 = vadd.f32 %v12326, %v12358
        %v12391 = vadd.f32 %v12327, %v12359
        %v12392 = vadd.f32 %v12328, %v12360
        %v12393 = vadd.f32 %v12329, %v12361
        %v12394 = vadd.f32 %v12330, %v12362
        %v12395 = vadd.f32 %v12331, %v12363
        %v12396 = vadd.f32 %v12332, %v12364
        %v12397 = vadd.f32 %v12333, %v12365
        %v12398 = vadd.f32 %v12334, %v12366
        %v12399 = vadd.f32 %v12335, %v12367
        %v12400 = vadd.f32 %v12336, %v12368
        %v12401 = vadd.f32 %v12337, %v12369
        %v12402 = vadd.f32 %v12338, %v12370
        %v12403 = vadd.f32 %v12339, %v12371
        %v12404 = vadd.f32 %v12340, %v12372
        %v12405 = vadd.f32 %v12341, %v12373
        %v12406 = vadd.f32 %v12342, %v12374
        %v12407 = vadd.f32 %v12343, %v12375
        %v12408 = vadd.f32 %v12344, %v12376
        %v12409 = vadd.f32 %v12345, %v12377
        %v12410 = vadd.f32 %v12346, %v12378
        %v12411 = vmax.f32 %v12379, 0.0
        %v12412 = vmax.f32 %v12380, 0.0
        %v12413 = vmax.f32 %v12381, 0.0
        %v12414 = vmax.f32 %v12382, 0.0
        %v12415 = vmax.f32 %v12383, 0.0
        %v12416 = vmax.f32 %v12384, 0.0
        %v12417 = vmax.f32 %v12385, 0.0
        %v12418 = vmax.f32 %v12386, 0.0
        %v12419 = vmax.f32 %v12387, 0.0
        %v12420 = vmax.f32 %v12388, 0.0
        %v12421 = vmax.f32 %v12389, 0.0
        %v12422 = vmax.f32 %v12390, 0.0
        %v12423 = vmax.f32 %v12391, 0.0
        %v12424 = vmax.f32 %v12392, 0.0
        %v12425 = vmax.f32 %v12393, 0.0
        %v12426 = vmax.f32 %v12394, 0.0
        %v12427 = vmax.f32 %v12395, 0.0
        %v12428 = vmax.f32 %v12396, 0.0
        %v12429 = vmax.f32 %v12397, 0.0
        %v12430 = vmax.f32 %v12398, 0.0
        %v12431 = vmax.f32 %v12399, 0.0
        %v12432 = vmax.f32 %v12400, 0.0
        %v12433 = vmax.f32 %v12401, 0.0
        %v12434 = vmax.f32 %v12402, 0.0
        %v12435 = vmax.f32 %v12403, 0.0
        %v12436 = vmax.f32 %v12404, 0.0
        %v12437 = vmax.f32 %v12405, 0.0
        %v12438 = vmax.f32 %v12406, 0.0
        %v12439 = vmax.f32 %v12407, 0.0
        %v12440 = vmax.f32 %v12408, 0.0
        %v12441 = vmax.f32 %v12409, 0.0
        %v12442 = vmax.f32 %v12410, 0.0
        %12443 = vst [vmem:[%s271] sm:$0xff] %v12411
        %12444 = vst [vmem:[%s271 + $0x8] sm:$0xff] %v12412
        %12445 = vst [vmem:[%s271 + $0x10] sm:$0xff] %v12413
        %12446 = vst [vmem:[%s271 + $0x18] sm:$0xff] %v12414
        %12447 = vst [vmem:[%s271 + $0x20] sm:$0xff] %v12415
        %12448 = vst [vmem:[%s271 + $0x28] sm:$0xff] %v12416
        %12449 = vst [vmem:[%s271 + $0x30] sm:$0xff] %v12417
        %12450 = vst [vmem:[%s271 + $0x38] sm:$0xff] %v12418
        %12451 = vst [vmem:[%s271 + $0x40] sm:$0xff] %v12419
        %12452 = vst [vmem:[%s271 + $0x48] sm:$0xff] %v12420
        %12453 = vst [vmem:[%s271 + $0x50] sm:$0xff] %v12421
        %12454 = vst [vmem:[%s271 + $0x58] sm:$0xff] %v12422
        %12455 = vst [vmem:[%s271 + $0x60] sm:$0xff] %v12423
        %12456 = vst [vmem:[%s271 + $0x68] sm:$0xff] %v12424
        %12457 = vst [vmem:[%s271 + $0x70] sm:$0xff] %v12425
        %12458 = vst [vmem:[%s271 + $0x78] sm:$0xff] %v12426
        %12459 = vst [vmem:[%s271 + $0x80] sm:$0xff] %v12427
        %12460 = vst [vmem:[%s271 + $0x88] sm:$0xff] %v12428
        %12461 = vst [vmem:[%s271 + $0x90] sm:$0xff] %v12429
        %12462 = vst [vmem:[%s271 + $0x98] sm:$0xff] %v12430
        %12463 = vst [vmem:[%s271 + $0xa0] sm:$0xff] %v12431
        %12464 = vst [vmem:[%s271 + $0xa8] sm:$0xff] %v12432
        %12465 = vst [vmem:[%s271 + $0xb0] sm:$0xff] %v12433
        %12466 = vst [vmem:[%s271 + $0xb8] sm:$0xff] %v12434
        %12467 = vst [vmem:[%s271 + $0xc0] sm:$0xff] %v12435
        %12468 = vst [vmem:[%s271 + $0xc8] sm:$0xff] %v12436
        %12469 = vst [vmem:[%s271 + $0xd0] sm:$0xff] %v12437
        %12470 = vst [vmem:[%s271 + $0xd8] sm:$0xff] %v12438
        %12471 = vst [vmem:[%s271 + $0xe0] sm:$0xff] %v12439
        %12472 = vst [vmem:[%s271 + $0xe8] sm:$0xff] %v12440
        %12473 = vst [vmem:[%s271 + $0xf0] sm:$0xff] %v12441
        %12474 = vst [vmem:[%s271 + $0xf8] sm:$0xff] %v12442
        %s12475 = sand.u32 %s181, 1
        %s12476 = scalar_lea.sflag [#allocation5], %s12475
        %s12477 = sand.u32 %s181, 1
        %s12478 = smul.addr %s12477, 256
        %s12479 = scalar_lea.vmem [#allocation4], %s12478
        // Predicated region
        $region49: #{basic_block_forward_nhwc.1} parent=47 // pred_check
          %p12480 = pneg %p191
        $region50: #{basic_block_forward_nhwc.1} parent=47 // pred_check_branch
          %12482 = sbr.rel (%p12480) target = $region52
        $region51: #{basic_block_forward_nhwc.1} parent=47 // pred_region
          %s12484 = ssub.s32 4096, 4096
          %12485 = vsyncadd %s12476, %s12484
          %s12486 = smul.addr %s21, 32
          %s12487 = smul.addr %s12486, 128
          %s12488 = scalar_lea.hbm %s7, %s12487
          %s12489 = sshll.u32 %s12479, 4
          %s12490 = int_to_ptr.vmem [resolvable:$true] %s12489
          %12495 = dma.vmem_to_hbm [thread:$0]  %s12490, 4096, %s12488, %s12476, 128, 128, 8
        $region52: #{basic_block_forward_nhwc.1} parent=47 // pred_fallthru
          _
      $region48: #{basic_block_forward_nhwc.1} parent=5 // pred_fallthru
        _
      %p12496 = scmp.le.s32.totalorder 2, %s16
      // Predicated region
      $region53: #{basic_block_forward_nhwc.1} parent=5 // pred_check
        %p12497 = pneg %p12496
      $region54: #{basic_block_forward_nhwc.1} parent=5 // pred_check_branch
        %12499 = sbr.rel (%p12497) target = $region56
      $region55: #{basic_block_forward_nhwc.1} parent=5 // pred_region
        %s12500 = ssub.s32 %s16, 2
        // Predicated region
        $region57: #{basic_block_forward_nhwc.1} parent=55 // pred_check
          %p12501 = pneg %p197
        $region58: #{basic_block_forward_nhwc.1} parent=55 // pred_check_branch
          %12503 = sbr.rel (%p12501) target = $region60
        $region59: #{basic_block_forward_nhwc.1} parent=55 // pred_region
          %s12504 = sand.u32 %s182, 1
          %s12505 = scalar_lea.sflag [#allocation5], %s12504
          %s12506 = sand.u32 %s182, 1
          %s12507 = smul.addr %s12506, 256
          %s12508 = scalar_lea.vmem [#allocation4], %s12507
          %12509 = dma.done %s12505, 4096
        $region60: #{basic_block_forward_nhwc.1} parent=55 // pred_fallthru
          _
      $region56: #{basic_block_forward_nhwc.1} parent=5 // pred_fallthru
        _
    $region6: #{basic_block_forward_nhwc.1} parent=1 // loop_footer
      %s20 = sadd.s32 1, %s16
    $region7: #{basic_block_forward_nhwc.1} parent=1 // loop_footer_branch
      %15 = sbr.rel target = $region3
    $region8: #{basic_block_forward_nhwc.1} parent=1 // loop_exit
      _
    %12510 = vsyncpa [#allocation5], 1
    %s12511 = scalar_lea.sflag [#allocation5], 1
    %12512 = vsyncpa %s12511, 1

</llo_original>
